<compile_context>
chip_gen: v5e
topology: v5e:2x2
jax: 0.10.0
libtpu: 0.0.40
codegen_flags: <defaults>
</compile_context>

<pallas_src>
import math
from functools import partial

import jax
import jax.numpy as jnp
from jax.experimental import pallas as pl
from jax.experimental.pallas import tpu as pltpu

PAD = 0  # config.PAD


def _tpu_budgets():
    """Per-generation VMEM budget and tile caps."""
    vmem_bytes = 128 * 1024 * 1024
    try:
        info = pltpu.get_tpu_info()
        vmem_bytes = int(getattr(info, "vmem_capacity_bytes", vmem_bytes))
    except Exception:
        pass
    if vmem_bytes >= 100 * 1024 * 1024:          # v5e / v6e: 128 MiB VMEM
        return 64 * 1024 * 1024, 512, 2048
    return 40 * 1024 * 1024, 256, 1024           # v7x: 64 MiB VMEM / TC


VMEM_LIMIT, ROW_TILE_CAP, VOCAB_TILE_CAP = _tpu_budgets()


def _pick_tile(dim, cap, mult):
    """Largest divisor of `dim` that is <= cap and a multiple of `mult`
    (or the full dim)."""
    for t in range(min(dim, cap), 0, -1):
        if dim % t == 0 and (t % mult == 0 or t == dim):
            return t
    return dim


def _const2d(shape):
    # TODO(synk): at realistic d_model/d_inner sizes, single-buffer resident
    # weights (pipeline_mode) or tile the contraction to fit v7x's 64 MiB VMEM.
    return pl.BlockSpec(shape, lambda *_: (0, 0))


# ---------------------------------------------------------------------------
# Kernel bodies
# ---------------------------------------------------------------------------

def _mha_kernel(xq_ref, kv_ref, kpad_ref, npm_ref,
                wq_ref, bq_ref, wkv_ref, bkv_ref,
                wfc_ref, bfc_ref, g_ref, beta_ref, o_ref,
                *, n_head, d_k, d_v, inv_temp, eps, causal):
    """One q-row tile of one batch element, all heads, fully fused:
    Q/K/V projection + attention + output proj + residual + LN + pad mask."""
    xq = xq_ref[0]                        # (tq, d_model) bf16 (q rows + residual)
    kvs = kv_ref[0]                       # (lk, d_model) bf16 (key/value source)
    tq = xq.shape[0]
    lk = kvs.shape[0]
    nqk = n_head * d_k

    # fused projections (bf16 operands, f32 accumulate)
    q = jnp.dot(xq, wq_ref[...], preferred_element_type=jnp.float32) + bq_ref[...]
    kv = jnp.dot(kvs, wkv_ref[...], preferred_element_type=jnp.float32) + bkv_ref[...]
    k = kv[:, :nqk]
    v = kv[:, nqk:]

    # mask built in-kernel: key padding (streamed as (1, lk)) + causal iota
    masked = jnp.broadcast_to(kpad_ref[0] > 0.0, (tq, lk))
    if causal:
        q_start = pl.program_id(1) * tq
        qpos = q_start + jax.lax.broadcasted_iota(jnp.int32, (tq, lk), 0)
        kpos = jax.lax.broadcasted_iota(jnp.int32, (tq, lk), 1)
        masked = jnp.logical_or(masked, kpos > qpos)

    # per-head attention (static unroll; heads are few), contexts concatenated
    # TODO(synk): for large n_head switch to head-major layout / fori_loop to
    #             avoid sub-128-lane slices and bound vreg live ranges.
    ctxs = []
    for h in range(n_head):
        qh = q[:, h * d_k:(h + 1) * d_k].astype(jnp.bfloat16)
        kh = k[:, h * d_k:(h + 1) * d_k].astype(jnp.bfloat16)
        vh = v[:, h * d_v:(h + 1) * d_v].astype(jnp.bfloat16)
        s = jax.lax.dot_general(qh, kh, (((1,), (1,)), ((), ())),
                                preferred_element_type=jnp.float32) * inv_temp
        s = jnp.where(masked, -1e30, s)
        s = s - jnp.max(s, axis=-1, keepdims=True)
        p = jnp.exp(s)
        p = p * pl.reciprocal(jnp.sum(p, axis=-1, keepdims=True), approx=True)
        ctxs.append(jnp.dot(p.astype(jnp.bfloat16), vh,
                            preferred_element_type=jnp.float32))
    ctx = jnp.concatenate(ctxs, axis=-1)              # (tq, n_head*d_v) f32

    # single deep-K output projection + bias + residual + LayerNorm + pad mask
    fc = jnp.dot(ctx.astype(jnp.bfloat16), wfc_ref[...],
                 preferred_element_type=jnp.float32) + bfc_ref[...]
    y = fc + xq.astype(jnp.float32)
    mu = jnp.mean(y, axis=-1, keepdims=True)
    var = jnp.mean(jnp.square(y - mu), axis=-1, keepdims=True)
    yn = (y - mu) * jax.lax.rsqrt(var + eps)
    out = (yn * g_ref[...] + beta_ref[...]) * npm_ref[0]
    o_ref[0] = out.astype(o_ref.dtype)


def _ffn_ln_kernel(x_ref, w1_ref, b1_ref, w2_ref, b2_ref,
                   g_ref, beta_ref, npm_ref, o_ref, *, eps):
    x = x_ref[...]                                    # (tm, d_model) bf16
    h = jnp.dot(x, w1_ref[...], preferred_element_type=jnp.float32) + b1_ref[...]
    h = jnp.maximum(h, 0.0)
    y = jnp.dot(h.astype(jnp.bfloat16), w2_ref[...],
                preferred_element_type=jnp.float32) + b2_ref[...]
    y = y + x.astype(jnp.float32)
    mu = jnp.mean(y, axis=-1, keepdims=True)
    var = jnp.mean(jnp.square(y - mu), axis=-1, keepdims=True)
    yn = (y - mu) * jax.lax.rsqrt(var + eps)
    o_ref[...] = ((yn * g_ref[...] + beta_ref[...]) * npm_ref[...]).astype(o_ref.dtype)


def _proj_softmax_kernel(x_ref, w_ref, o_ref, *, scale):
    # single vocab tile: plain row softmax (exact division for module output)
    logits = jnp.dot(x_ref[...], w_ref[...],
                     preferred_element_type=jnp.float32) * scale
    logits = logits - jnp.max(logits, axis=-1, keepdims=True)
    e = jnp.exp(logits)
    o_ref[...] = e / jnp.sum(e, axis=-1, keepdims=True)


def _proj_stats_kernel(x_ref, w_ref, m_out_ref, l_out_ref, m_sc, l_sc, *, scale):
    # pass 1: online max / sum-exp over vocab tiles
    j = pl.program_id(1)

    @pl.when(j == 0)
    def _():
        m_sc[...] = jnp.full_like(m_sc, -jnp.inf)
        l_sc[...] = jnp.zeros_like(l_sc)

    logits = jnp.dot(x_ref[...], w_ref[...],
                     preferred_element_type=jnp.float32) * scale
    tile_max = jnp.max(logits, axis=-1, keepdims=True)
    m_new = jnp.maximum(m_sc[...], tile_max)
    l_sc[...] = (l_sc[...] * jnp.exp(m_sc[...] - m_new)
                 + jnp.sum(jnp.exp(logits - m_new), axis=-1, keepdims=True))
    m_sc[...] = m_new

    @pl.when(j == pl.num_programs(1) - 1)
    def _():
        m_out_ref[...] = m_sc[...]
        l_out_ref[...] = l_sc[...]


def _proj_write_kernel(x_ref, w_ref, m_ref, l_ref, o_ref, *, scale):
    # pass 2: recompute logits tile and normalize with global stats
    logits = jnp.dot(x_ref[...], w_ref[...],
                     preferred_element_type=jnp.float32) * scale
    o_ref[...] = jnp.exp(logits - m_ref[...]) / l_ref[...]


# ---------------------------------------------------------------------------
# pallas_call wrappers
# ---------------------------------------------------------------------------

def attention_block(ap, x, kv_src, key_pad, npm3, n_head, d_k, d_v, *, causal):
    """Fused attention sub-layer: x, kv_src are bf16 activations in HBM."""
    b, lq, d_model = x.shape
    lk = kv_src.shape[1]
    tq = _pick_tile(lq, ROW_TILE_CAP, 8)
    nqk = n_head * d_k
    nkv = n_head * (d_k + d_v)
    kern = partial(_mha_kernel, n_head=n_head, d_k=d_k, d_v=d_v,
                   inv_temp=1.0 / math.sqrt(d_k), eps=1e-5, causal=causal)
    return pl.pallas_call(
        kern,
        out_shape=jax.ShapeDtypeStruct((b, lq, d_model), jnp.bfloat16),
        grid=(b, lq // tq),
        in_specs=[
            pl.BlockSpec((1, tq, d_model), lambda i, j: (i, j, 0)),   # q rows / residual
            pl.BlockSpec((1, lk, d_model), lambda i, j: (i, 0, 0)),   # key/value source
            pl.BlockSpec((1, 1, lk), lambda i, j: (i, 0, 0)),         # key pad vector
            pl.BlockSpec((1, tq, 1), lambda i, j: (i, j, 0)),         # non-pad mask
            _const2d((d_model, nqk)),
            _const2d((1, nqk)),
            _const2d((d_model, nkv)),
            _const2d((1, nkv)),
            _const2d((n_head * d_v, d_model)),
            _const2d((1, d_model)),
            _const2d((1, d_model)),
            _const2d((1, d_model)),
        ],
        out_specs=pl.BlockSpec((1, tq, d_model), lambda i, j: (i, j, 0)),
        compiler_params=pltpu.CompilerParams(
            dimension_semantics=("parallel", "parallel"),
            vmem_limit_bytes=VMEM_LIMIT),
    )(x, kv_src, key_pad, npm3,
      ap["w_q"], ap["b_q"], ap["w_kv"], ap["b_kv"],
      ap["w_fc"], ap["b_fc"], ap["ln_g"], ap["ln_b"])


def ffn_ln(x, fp, npm3):
    b, lq, d_model = x.shape
    m = b * lq
    d_inner = fp["w1"].shape[1]
    tm = _pick_tile(m, ROW_TILE_CAP, 8)
    out = pl.pallas_call(
        partial(_ffn_ln_kernel, eps=1e-5),
        out_shape=jax.ShapeDtypeStruct((m, d_model), jnp.bfloat16),
        grid=(m // tm,),
        in_specs=[
            pl.BlockSpec((tm, d_model), lambda i: (i, 0)),
            _const2d((d_model, d_inner)),
            _const2d((1, d_inner)),
            _const2d((d_inner, d_model)),
            _const2d((1, d_model)),
            _const2d((1, d_model)),
            _const2d((1, d_model)),
            pl.BlockSpec((tm, 1), lambda i: (i, 0)),
        ],
        out_specs=pl.BlockSpec((tm, d_model), lambda i: (i, 0)),
        compiler_params=pltpu.CompilerParams(
            dimension_semantics=("parallel",), vmem_limit_bytes=VMEM_LIMIT),
    )(x.reshape(m, d_model), fp["w1"], fp["b1"], fp["w2"], fp["b2"],
      fp["ln_g"], fp["ln_b"], npm3.reshape(m, 1))
    return out.reshape(b, lq, d_model)


def project_softmax(x2d, w_t, scale):
    """softmax(x @ W^T * scale), x2d bf16, tiled over rows and vocab.
    Rows are tiled as large as possible first: the weight is re-streamed
    once per row tile, so big row tiles minimize total weight DMA."""
    m, d = x2d.shape
    v = w_t.shape[1]
    tm = _pick_tile(m, ROW_TILE_CAP, 8)
    tv = _pick_tile(v, VOCAB_TILE_CAP, 128)
    n_vt = v // tv
    cp1 = pltpu.CompilerParams(dimension_semantics=("parallel",),
                               vmem_limit_bytes=VMEM_LIMIT)

    if n_vt == 1:
        return pl.pallas_call(
            partial(_proj_softmax_kernel, scale=scale),
            out_shape=jax.ShapeDtypeStruct((m, v), jnp.float32),
            grid=(m // tm,),
            in_specs=[pl.BlockSpec((tm, d), lambda i: (i, 0)),
                      _const2d((d, v))],
            out_specs=pl.BlockSpec((tm, v), lambda i: (i, 0)),
            compiler_params=cp1,
        )(x2d, w_t)

    # pass 1: per-row max / sum-exp across vocab tiles (online update)
    m_stats, l_stats = pl.pallas_call(
        partial(_proj_stats_kernel, scale=scale),
        out_shape=(jax.ShapeDtypeStruct((m, 1), jnp.float32),
                   jax.ShapeDtypeStruct((m, 1), jnp.float32)),
        grid=(m // tm, n_vt),
        in_specs=[pl.BlockSpec((tm, d), lambda i, j: (i, 0)),
                  pl.BlockSpec((d, tv), lambda i, j: (0, j))],
        out_specs=(pl.BlockSpec((tm, 1), lambda i, j: (i, 0)),
                   pl.BlockSpec((tm, 1), lambda i, j: (i, 0))),
        scratch_shapes=[pltpu.VMEM((tm, 1), jnp.float32),
                        pltpu.VMEM((tm, 1), jnp.float32)],
        compiler_params=pltpu.CompilerParams(
            dimension_semantics=("parallel", "arbitrary"),
            vmem_limit_bytes=VMEM_LIMIT),
    )(x2d, w_t)

    # pass 2: recompute each logits tile and normalize
    return pl.pallas_call(
        partial(_proj_write_kernel, scale=scale),
        out_shape=jax.ShapeDtypeStruct((m, v), jnp.float32),
        grid=(m // tm, n_vt),
        in_specs=[pl.BlockSpec((tm, d), lambda i, j: (i, 0)),
                  pl.BlockSpec((d, tv), lambda i, j: (0, j)),
                  pl.BlockSpec((tm, 1), lambda i, j: (i, 0)),
                  pl.BlockSpec((tm, 1), lambda i, j: (i, 0))],
        out_specs=pl.BlockSpec((tm, tv), lambda i, j: (i, j)),
        compiler_params=pltpu.CompilerParams(
            dimension_semantics=("parallel", "parallel"),
            vmem_limit_bytes=VMEM_LIMIT),
    )(x2d, w_t, m_stats, l_stats)


# ---------------------------------------------------------------------------
# JAX glue reproducing the module composition
# ---------------------------------------------------------------------------

def tran_decoder_forward(pp, tgt_seq, tgt_pos, src_seq, enc_output,
                         n_head, d_k, d_v):
    b, lq = tgt_seq.shape

    # mask glue: only tiny per-batch vectors are materialized; the (lq, lk)
    # self-attn mask (key-pad + causal) is built inside the attention kernel.
    non_pad_mask = (tgt_seq != PAD).astype(jnp.float32)[:, :, None]    # (b, lq, 1)
    tgt_key_pad = (tgt_seq == PAD).astype(jnp.float32)[:, None, :]     # (b, 1, lq)
    src_key_pad = (src_seq == PAD).astype(jnp.float32)[:, None, :]     # (b, 1, lk)

    # embeddings (gather glue); activations kept bf16 between kernels
    dec_output = (jnp.take(pp["tgt_word_emb"], tgt_seq, axis=0)
                  + jnp.take(pp["position_enc"], tgt_pos, axis=0)).astype(jnp.bfloat16)
    enc_bf16 = enc_output.astype(jnp.bfloat16)

    for lp in pp["layers"]:
        dec_output = attention_block(lp["slf"], dec_output, dec_output,
                                     tgt_key_pad, non_pad_mask,
                                     n_head, d_k, d_v, causal=True)
        dec_output = attention_block(lp["enc"], dec_output, enc_bf16,
                                     src_key_pad, non_pad_mask,
                                     n_head, d_k, d_v, causal=False)
        dec_output = ffn_ln(dec_output, lp["ffn"], non_pad_mask)

    x_logit_scale = 1.0  # TODO(synk): undefined in reference __init__; assumed 1.0
    probs = project_softmax(dec_output.reshape(b * lq, -1),
                            pp["tgt_word_prj_t"], x_logit_scale)
    return probs.reshape(b, lq, -1)


# ---------------------------------------------------------------------------
# parameter construction (torch layout) + one-time kernel-friendly prep
# ---------------------------------------------------------------------------

def positional_encoding(max_len, d_model, padding_idx=None):
    position = jnp.arange(max_len, dtype=jnp.float32)[:, None]
    div_term = jnp.exp(jnp.arange(0, d_model, 2, dtype=jnp.float32)
                       * -(math.log(10000.0) / d_model))
    pe = jnp.zeros((max_len, d_model), dtype=jnp.float32)
    pe = pe.at[:, 0::2].set(jnp.sin(position * div_term))
    pe = pe.at[:, 1::2].set(jnp.cos(position * div_term))
    if padding_idx is not None:
        pe = pe.at[padding_idx].set(0.0)
    return pe


def init_params(key, n_tgt_vocab, len_max_seq, d_word_vec, n_layers,
                n_head, d_k, d_v, d_model, d_inner):
    keys = jax.random.split(key, 2 + n_layers)

    emb = jax.random.normal(keys[0], (n_tgt_vocab, d_word_vec), jnp.float32) * 0.1
    emb = emb.at[PAD].set(0.0)

    prj = jax.random.normal(keys[1], (n_tgt_vocab, d_model), jnp.float32) \
        * math.sqrt(2.0 / (d_model + n_tgt_vocab))

    def lin(kk, out_dim, in_dim, std):
        return jax.random.normal(kk, (out_dim, in_dim), jnp.float32) * std

    layers = []
    for l in range(n_layers):
        lk = jax.random.split(keys[2 + l], 10)

        def attn_params(ks):
            std_qk = math.sqrt(2.0 / (d_model + d_k))
            std_v = math.sqrt(2.0 / (d_model + d_v))
            return {
                "w_qs": lin(ks[0], n_head * d_k, d_model, std_qk),
                "b_qs": jnp.zeros((n_head * d_k,), jnp.float32),
                "w_ks": lin(ks[1], n_head * d_k, d_model, std_qk),
                "b_ks": jnp.zeros((n_head * d_k,), jnp.float32),
                "w_vs": lin(ks[2], n_head * d_v, d_model, std_v),
                "b_vs": jnp.zeros((n_head * d_v,), jnp.float32),
                "w_fc": lin(ks[3], d_model, n_head * d_v,
                            math.sqrt(2.0 / (d_model + n_head * d_v))),
                "b_fc": jnp.zeros((d_model,), jnp.float32),
                "ln_g": jnp.ones((d_model,), jnp.float32),
                "ln_b": jnp.zeros((d_model,), jnp.float32),
            }

        layers.append({
            "slf": attn_params(lk[0:4]),
            "enc": attn_params(lk[4:8]),
            "ffn": {
                "w1": lin(lk[8], d_inner, d_model, math.sqrt(2.0 / (d_model + d_inner))),
                "b1": jnp.zeros((d_inner,), jnp.float32),
                "w2": lin(lk[9], d_model, d_inner, math.sqrt(2.0 / (d_model + d_inner))),
                "b2": jnp.zeros((d_model,), jnp.float32),
                "ln_g": jnp.ones((d_model,), jnp.float32),
                "ln_b": jnp.zeros((d_model,), jnp.float32),
            },
        })

    return {
        "tgt_word_emb": emb,
        "position_enc": positional_encoding(len_max_seq + 1, d_word_vec, padding_idx=PAD),
        "tgt_word_prj": prj,
        "layers": layers,
    }


def prepare_params(params):
    """One-time: transpose weights to (in,out), cast matmul weights to bf16,
    fuse K/V projection weights (Q kept separate: it runs on q-row tiles)."""
    bf16 = jnp.bfloat16

    def prep_attn(p):
        return {
            "w_q": p["w_qs"].T.astype(bf16),
            "b_q": p["b_qs"][None, :],
            "w_kv": jnp.concatenate([p["w_ks"].T, p["w_vs"].T], axis=1).astype(bf16),
            "b_kv": jnp.concatenate([p["b_ks"], p["b_vs"]])[None, :],
            "w_fc": p["w_fc"].T.astype(bf16), "b_fc": p["b_fc"][None, :],
            "ln_g": p["ln_g"][None, :], "ln_b": p["ln_b"][None, :],
        }

    def prep_ffn(p):
        return {
            "w1": p["w1"].T.astype(bf16), "b1": p["b1"][None, :],
            "w2": p["w2"].T.astype(bf16), "b2": p["b2"][None, :],
            "ln_g": p["ln_g"][None, :], "ln_b": p["ln_b"][None, :],
        }

    return {
        "tgt_word_emb": params["tgt_word_emb"],
        "position_enc": params["position_enc"],
        "tgt_word_prj_t": params["tgt_word_prj"].T.astype(bf16),
        "layers": [{"slf": prep_attn(lp["slf"]),
                    "enc": prep_attn(lp["enc"]),
                    "ffn": prep_ffn(lp["ffn"])} for lp in params["layers"]],
    }


if __name__ == "__main__":
    # small shapes consistent with the module (vocab chosen so the tiled
    # two-pass vocab softmax path is exercised on every generation)
    n_tgt_vocab = 4096
    len_max_seq = 16
    d_word_vec = d_model = 32   # TODO(synk): pad feature dim to 128 for lane-dense stores in production configs
    n_layers = 2
    n_head = 2
    d_k = d_v = 16
    d_inner = 64
    batch, tgt_len, src_len = 2, 8, 8

    key = jax.random.PRNGKey(0)
    pkey, k1, k2, k3 = jax.random.split(key, 4)

    params = init_params(pkey, n_tgt_vocab, len_max_seq, d_word_vec,
                         n_layers, n_head, d_k, d_v, d_model, d_inner)
    pp = prepare_params(params)

    tgt_seq = jax.random.randint(k1, (batch, tgt_len), 1, n_tgt_vocab)
    tgt_seq = tgt_seq.at[:, -1].set(PAD)  # exercise the padding masks
    tgt_pos = jnp.broadcast_to(jnp.arange(1, tgt_len + 1), (batch, tgt_len)) \
        * (tgt_seq != PAD)
    src_seq = jax.random.randint(k2, (batch, src_len), 1, n_tgt_vocab)
    enc_output = jax.random.normal(k3, (batch, src_len, d_model), jnp.float32)

    fwd = jax.jit(tran_decoder_forward, static_argnums=(5, 6, 7))
    out = fwd(pp, tgt_seq, tgt_pos, src_seq, enc_output, n_head, d_k, d_v)
    out = jax.block_until_ready(out)

    assert out.shape == (batch, tgt_len, n_tgt_vocab)
    assert bool(jnp.all(jnp.isfinite(out)))
    # rows of the final softmax sum to 1
    assert bool(jnp.allclose(jnp.sum(out, axis=-1), 1.0, atol=1e-3))
    print("KERNEL_OK")
</pallas_src>

<mosaic_0001>
module attributes {stable_mosaic.version = 11 : i64} {
  func.func @_mha_kernel(%arg0: i32, %arg1: i32, %arg2: memref<1x8x32xbf16, #tpu.memory_space<vmem>>, %arg3: memref<1x8x32xbf16, #tpu.memory_space<vmem>>, %arg4: memref<1x1x8xf32, #tpu.memory_space<vmem>>, %arg5: memref<1x8x1xf32, #tpu.memory_space<vmem>>, %arg6: memref<32x32xbf16, #tpu.memory_space<vmem>>, %arg7: memref<1x32xf32, #tpu.memory_space<vmem>>, %arg8: memref<32x64xbf16, #tpu.memory_space<vmem>>, %arg9: memref<1x64xf32, #tpu.memory_space<vmem>>, %arg10: memref<32x32xbf16, #tpu.memory_space<vmem>>, %arg11: memref<1x32xf32, #tpu.memory_space<vmem>>, %arg12: memref<1x32xf32, #tpu.memory_space<vmem>>, %arg13: memref<1x32xf32, #tpu.memory_space<vmem>>, %arg14: memref<1x8x32xbf16, #tpu.memory_space<vmem>>) attributes {dimension_semantics = [#tpu.dimension_semantics<parallel>, #tpu.dimension_semantics<parallel>], iteration_bounds = array<i64: 2, 1>, scalar_prefetch = 0 : i64, scratch_operands = 0 : i64, tpu.core_type = #tpu.core_type<tc>, window_params = [{transform_indices = @transform_0, window_bounds = array<i64: 1, 8, 32>}, {transform_indices = @transform_1, window_bounds = array<i64: 1, 8, 32>}, {transform_indices = @transform_2, window_bounds = array<i64: 1, 1, 8>}, {transform_indices = @transform_3, window_bounds = array<i64: 1, 8, 1>}, {pipeline_mode = #tpu.pipeline_mode<synchronous>, transform_indices = @transform_4, window_bounds = array<i64: 32, 32>}, {pipeline_mode = #tpu.pipeline_mode<synchronous>, transform_indices = @transform_5, window_bounds = array<i64: 1, 32>}, {pipeline_mode = #tpu.pipeline_mode<synchronous>, transform_indices = @transform_6, window_bounds = array<i64: 32, 64>}, {pipeline_mode = #tpu.pipeline_mode<synchronous>, transform_indices = @transform_7, window_bounds = array<i64: 1, 64>}, {pipeline_mode = #tpu.pipeline_mode<synchronous>, transform_indices = @transform_8, window_bounds = array<i64: 32, 32>}, {pipeline_mode = #tpu.pipeline_mode<synchronous>, transform_indices = @transform_9, window_bounds = array<i64: 1, 32>}, {pipeline_mode = #tpu.pipeline_mode<synchronous>, transform_indices = @transform_10, window_bounds = array<i64: 1, 32>}, {pipeline_mode = #tpu.pipeline_mode<synchronous>, transform_indices = @transform_11, window_bounds = array<i64: 1, 32>}, {transform_indices = @transform_12, window_bounds = array<i64: 1, 8, 32>}]} {
    %c0 = arith.constant 0 : index
    %c0_0 = arith.constant 0 : index
    %c0_1 = arith.constant 0 : index
    %0 = vector.load %arg2[%c0, %c0_0, %c0_1] : memref<1x8x32xbf16, #tpu.memory_space<vmem>>, vector<1x8x32xbf16>
    %1 = vector.shape_cast %0 : vector<1x8x32xbf16> to vector<8x32xbf16>
    %c0_2 = arith.constant 0 : index
    %c0_3 = arith.constant 0 : index
    %c0_4 = arith.constant 0 : index
    %2 = vector.load %arg3[%c0_2, %c0_3, %c0_4] : memref<1x8x32xbf16, #tpu.memory_space<vmem>>, vector<1x8x32xbf16>
    %3 = vector.shape_cast %2 : vector<1x8x32xbf16> to vector<8x32xbf16>
    %c0_5 = arith.constant 0 : index
    %c0_6 = arith.constant 0 : index
    %4 = vector.load %arg6[%c0_5, %c0_6] : memref<32x32xbf16, #tpu.memory_space<vmem>>, vector<32x32xbf16>
    %cst = arith.constant dense<0.000000e+00> : vector<8x32xf32>
    %5 = tpu.matmul %1, %4, %cst {dimension_numbers = #tpu.dot_dimension_numbers<[1], [0], [0], [1], [0, 0, 1, 1], [], []>} : vector<8x32xbf16>, vector<32x32xbf16>, vector<8x32xf32> -> vector<8x32xf32>
    %c0_7 = arith.constant 0 : index
    %c0_8 = arith.constant 0 : index
    %6 = vector.load %arg7[%c0_7, %c0_8] : memref<1x32xf32, #tpu.memory_space<vmem>>, vector<1x32xf32>
    %7 = vector.broadcast %6 : vector<1x32xf32> to vector<8x32xf32>
    %8 = arith.addf %5, %7 : vector<8x32xf32>
    %c0_9 = arith.constant 0 : index
    %c0_10 = arith.constant 0 : index
    %9 = vector.load %arg8[%c0_9, %c0_10] : memref<32x64xbf16, #tpu.memory_space<vmem>>, vector<32x64xbf16>
    %cst_11 = arith.constant dense<0.000000e+00> : vector<8x64xf32>
    %10 = tpu.matmul %3, %9, %cst_11 {dimension_numbers = #tpu.dot_dimension_numbers<[1], [0], [0], [1], [0, 0, 1, 1], [], []>} : vector<8x32xbf16>, vector<32x64xbf16>, vector<8x64xf32> -> vector<8x64xf32>
    %c0_12 = arith.constant 0 : index
    %c0_13 = arith.constant 0 : index
    %11 = vector.load %arg9[%c0_12, %c0_13] : memref<1x64xf32, #tpu.memory_space<vmem>>, vector<1x64xf32>
    %12 = vector.broadcast %11 : vector<1x64xf32> to vector<8x64xf32>
    %13 = arith.addf %10, %12 : vector<8x64xf32>
    %14 = vector.extract_strided_slice %13 {offsets = [0, 0], sizes = [8, 32], strides = [1, 1]} : vector<8x64xf32> to vector<8x32xf32>
    %15 = vector.extract_strided_slice %13 {offsets = [0, 32], sizes = [8, 32], strides = [1, 1]} : vector<8x64xf32> to vector<8x32xf32>
    %c0_14 = arith.constant 0 : index
    %c0_15 = arith.constant 0 : index
    %c0_16 = arith.constant 0 : index
    %16 = vector.load %arg4[%c0_14, %c0_15, %c0_16] : memref<1x1x8xf32, #tpu.memory_space<vmem>>, vector<1x1x8xf32>
    %17 = vector.shape_cast %16 : vector<1x1x8xf32> to vector<1x8xf32>
    %cst_17 = arith.constant 0.000000e+00 : f32
    %18 = vector.broadcast %cst_17 : f32 to vector<1x8xf32>
    %19 = arith.cmpf ogt, %17, %18 : vector<1x8xf32>
    %20 = vector.shape_cast %19 : vector<1x8xi1> to vector<1x8xi1>
    %21 = vector.broadcast %20 : vector<1x8xi1> to vector<8x8xi1>
    %c8_i32 = arith.constant 8 : i32
    %22 = arith.muli %arg1, %c8_i32 : i32
    %23 = tpu.iota {dimensions = array<i32: 0>} : vector<8x8xi32>
    %24 = vector.broadcast %22 : i32 to vector<8x8xi32>
    %25 = arith.addi %24, %23 : vector<8x8xi32>
    %26 = tpu.iota {dimensions = array<i32: 1>} : vector<8x8xi32>
    %27 = arith.cmpi sgt, %26, %25 : vector<8x8xi32>
    %28 = arith.ori %21, %27 : vector<8x8xi1>
    %29 = vector.extract_strided_slice %8 {offsets = [0, 0], sizes = [8, 16], strides = [1, 1]} : vector<8x32xf32> to vector<8x16xf32>
    %30 = arith.truncf %29 : vector<8x16xf32> to vector<8x16xbf16>
    %31 = vector.extract_strided_slice %14 {offsets = [0, 0], sizes = [8, 16], strides = [1, 1]} : vector<8x32xf32> to vector<8x16xf32>
    %32 = arith.truncf %31 : vector<8x16xf32> to vector<8x16xbf16>
    %33 = vector.extract_strided_slice %15 {offsets = [0, 0], sizes = [8, 16], strides = [1, 1]} : vector<8x32xf32> to vector<8x16xf32>
    %34 = arith.truncf %33 : vector<8x16xf32> to vector<8x16xbf16>
    %cst_18 = arith.constant dense<0.000000e+00> : vector<8x8xf32>
    %35 = tpu.matmul %30, %32, %cst_18 {dimension_numbers = #tpu.dot_dimension_numbers<[1], [1], [0], [0], [0, 0, 1, 0], [], []>} : vector<8x16xbf16>, vector<8x16xbf16>, vector<8x8xf32> -> vector<8x8xf32>
    %cst_19 = arith.constant 2.500000e-01 : f32
    %36 = vector.broadcast %cst_19 : f32 to vector<8x8xf32>
    %37 = arith.mulf %35, %36 : vector<8x8xf32>
    %cst_20 = arith.constant -1.000000e+30 : f32
    %38 = vector.broadcast %cst_20 : f32 to vector<8x8xf32>
    %39 = arith.select %28, %38, %37 : vector<8x8xi1>, vector<8x8xf32>
    %cst_21 = arith.constant dense<0xFF800000> : vector<8xf32>
    %40 = vector.multi_reduction <maximumf>, %39, %cst_21 [1] : vector<8x8xf32> to vector<8xf32>
    %41 = vector.shape_cast %40 : vector<8xf32> to vector<8x1xf32>
    %42 = vector.broadcast %41 : vector<8x1xf32> to vector<8x8xf32>
    %43 = arith.subf %39, %42 : vector<8x8xf32>
    %44 = math.exp %43 : vector<8x8xf32>
    %cst_22 = arith.constant dense<0.000000e+00> : vector<8xf32>
    %45 = vector.multi_reduction <add>, %44, %cst_22 [1] : vector<8x8xf32> to vector<8xf32>
    %46 = vector.shape_cast %45 : vector<8xf32> to vector<8x1xf32>
    %47 = tpu.reciprocal %46 {approx = true} : vector<8x1xf32> -> vector<8x1xf32>
    %48 = vector.broadcast %47 : vector<8x1xf32> to vector<8x8xf32>
    %49 = arith.mulf %44, %48 : vector<8x8xf32>
    %50 = arith.truncf %49 : vector<8x8xf32> to vector<8x8xbf16>
    %cst_23 = arith.constant dense<0.000000e+00> : vector<8x16xf32>
    %51 = tpu.matmul %50, %34, %cst_23 {dimension_numbers = #tpu.dot_dimension_numbers<[1], [0], [0], [1], [0, 0, 1, 1], [], []>} : vector<8x8xbf16>, vector<8x16xbf16>, vector<8x16xf32> -> vector<8x16xf32>
    %52 = vector.extract_strided_slice %8 {offsets = [0, 16], sizes = [8, 16], strides = [1, 1]} : vector<8x32xf32> to vector<8x16xf32>
    %53 = arith.truncf %52 : vector<8x16xf32> to vector<8x16xbf16>
    %54 = vector.extract_strided_slice %14 {offsets = [0, 16], sizes = [8, 16], strides = [1, 1]} : vector<8x32xf32> to vector<8x16xf32>
    %55 = arith.truncf %54 : vector<8x16xf32> to vector<8x16xbf16>
    %56 = vector.extract_strided_slice %15 {offsets = [0, 16], sizes = [8, 16], strides = [1, 1]} : vector<8x32xf32> to vector<8x16xf32>
    %57 = arith.truncf %56 : vector<8x16xf32> to vector<8x16xbf16>
    %cst_24 = arith.constant dense<0.000000e+00> : vector<8x8xf32>
    %58 = tpu.matmul %53, %55, %cst_24 {dimension_numbers = #tpu.dot_dimension_numbers<[1], [1], [0], [0], [0, 0, 1, 0], [], []>} : vector<8x16xbf16>, vector<8x16xbf16>, vector<8x8xf32> -> vector<8x8xf32>
    %cst_25 = arith.constant 2.500000e-01 : f32
    %59 = vector.broadcast %cst_25 : f32 to vector<8x8xf32>
    %60 = arith.mulf %58, %59 : vector<8x8xf32>
    %cst_26 = arith.constant -1.000000e+30 : f32
    %61 = vector.broadcast %cst_26 : f32 to vector<8x8xf32>
    %62 = arith.select %28, %61, %60 : vector<8x8xi1>, vector<8x8xf32>
    %cst_27 = arith.constant dense<0xFF800000> : vector<8xf32>
    %63 = vector.multi_reduction <maximumf>, %62, %cst_27 [1] : vector<8x8xf32> to vector<8xf32>
    %64 = vector.shape_cast %63 : vector<8xf32> to vector<8x1xf32>
    %65 = vector.broadcast %64 : vector<8x1xf32> to vector<8x8xf32>
    %66 = arith.subf %62, %65 : vector<8x8xf32>
    %67 = math.exp %66 : vector<8x8xf32>
    %cst_28 = arith.constant dense<0.000000e+00> : vector<8xf32>
    %68 = vector.multi_reduction <add>, %67, %cst_28 [1] : vector<8x8xf32> to vector<8xf32>
    %69 = vector.shape_cast %68 : vector<8xf32> to vector<8x1xf32>
    %70 = tpu.reciprocal %69 {approx = true} : vector<8x1xf32> -> vector<8x1xf32>
    %71 = vector.broadcast %70 : vector<8x1xf32> to vector<8x8xf32>
    %72 = arith.mulf %67, %71 : vector<8x8xf32>
    %73 = arith.truncf %72 : vector<8x8xf32> to vector<8x8xbf16>
    %cst_29 = arith.constant dense<0.000000e+00> : vector<8x16xf32>
    %74 = tpu.matmul %73, %57, %cst_29 {dimension_numbers = #tpu.dot_dimension_numbers<[1], [0], [0], [1], [0, 0, 1, 1], [], []>} : vector<8x8xbf16>, vector<8x16xbf16>, vector<8x16xf32> -> vector<8x16xf32>
    %75 = tpu.concatenate %51, %74 in 1 : vector<8x16xf32>, vector<8x16xf32> -> vector<8x32xf32>
    %76 = arith.truncf %75 : vector<8x32xf32> to vector<8x32xbf16>
    %c0_30 = arith.constant 0 : index
    %c0_31 = arith.constant 0 : index
    %77 = vector.load %arg10[%c0_30, %c0_31] : memref<32x32xbf16, #tpu.memory_space<vmem>>, vector<32x32xbf16>
    %cst_32 = arith.constant dense<0.000000e+00> : vector<8x32xf32>
    %78 = tpu.matmul %76, %77, %cst_32 {dimension_numbers = #tpu.dot_dimension_numbers<[1], [0], [0], [1], [0, 0, 1, 1], [], []>} : vector<8x32xbf16>, vector<32x32xbf16>, vector<8x32xf32> -> vector<8x32xf32>
    %c0_33 = arith.constant 0 : index
    %c0_34 = arith.constant 0 : index
    %79 = vector.load %arg11[%c0_33, %c0_34] : memref<1x32xf32, #tpu.memory_space<vmem>>, vector<1x32xf32>
    %80 = vector.broadcast %79 : vector<1x32xf32> to vector<8x32xf32>
    %81 = arith.addf %78, %80 : vector<8x32xf32>
    %82 = arith.extf %1 : vector<8x32xbf16> to vector<8x32xf32>
    %83 = arith.addf %81, %82 : vector<8x32xf32>
    %cst_35 = arith.constant dense<0.000000e+00> : vector<8xf32>
    %84 = vector.multi_reduction <add>, %83, %cst_35 [1] : vector<8x32xf32> to vector<8xf32>
    %85 = vector.shape_cast %84 : vector<8xf32> to vector<8x1xf32>
    %cst_36 = arith.constant 3.200000e+01 : f32
    %86 = vector.broadcast %cst_36 : f32 to vector<8x1xf32>
    %87 = arith.divf %85, %86 : vector<8x1xf32>
    %88 = vector.broadcast %87 : vector<8x1xf32> to vector<8x32xf32>
    %89 = arith.subf %83, %88 : vector<8x32xf32>
    %90 = arith.mulf %89, %89 : vector<8x32xf32>
    %cst_37 = arith.constant dense<0.000000e+00> : vector<8xf32>
    %91 = vector.multi_reduction <add>, %90, %cst_37 [1] : vector<8x32xf32> to vector<8xf32>
    %92 = vector.shape_cast %91 : vector<8xf32> to vector<8x1xf32>
    %cst_38 = arith.constant 3.200000e+01 : f32
    %93 = vector.broadcast %cst_38 : f32 to vector<8x1xf32>
    %94 = arith.divf %92, %93 : vector<8x1xf32>
    %95 = vector.broadcast %87 : vector<8x1xf32> to vector<8x32xf32>
    %96 = arith.subf %83, %95 : vector<8x32xf32>
    %cst_39 = arith.constant 9.99999974E-6 : f32
    %97 = vector.broadcast %cst_39 : f32 to vector<8x1xf32>
    %98 = arith.addf %94, %97 : vector<8x1xf32>
    %99 = math.rsqrt %98 : vector<8x1xf32>
    %100 = vector.broadcast %99 : vector<8x1xf32> to vector<8x32xf32>
    %101 = arith.mulf %96, %100 : vector<8x32xf32>
    %c0_40 = arith.constant 0 : index
    %c0_41 = arith.constant 0 : index
    %102 = vector.load %arg12[%c0_40, %c0_41] : memref<1x32xf32, #tpu.memory_space<vmem>>, vector<1x32xf32>
    %103 = vector.broadcast %102 : vector<1x32xf32> to vector<8x32xf32>
    %104 = arith.mulf %101, %103 : vector<8x32xf32>
    %c0_42 = arith.constant 0 : index
    %c0_43 = arith.constant 0 : index
    %105 = vector.load %arg13[%c0_42, %c0_43] : memref<1x32xf32, #tpu.memory_space<vmem>>, vector<1x32xf32>
    %106 = vector.broadcast %105 : vector<1x32xf32> to vector<8x32xf32>
    %107 = arith.addf %104, %106 : vector<8x32xf32>
    %c0_44 = arith.constant 0 : index
    %c0_45 = arith.constant 0 : index
    %c0_46 = arith.constant 0 : index
    %108 = vector.load %arg5[%c0_44, %c0_45, %c0_46] : memref<1x8x1xf32, #tpu.memory_space<vmem>>, vector<1x8x1xf32>
    %109 = vector.shape_cast %108 : vector<1x8x1xf32> to vector<8x1xf32>
    %110 = vector.broadcast %109 : vector<8x1xf32> to vector<8x32xf32>
    %111 = arith.mulf %107, %110 : vector<8x32xf32>
    %112 = arith.truncf %111 : vector<8x32xf32> to vector<8x32xbf16>
    %c0_47 = arith.constant 0 : index
    %c0_48 = arith.constant 0 : index
    %c0_49 = arith.constant 0 : index
    %113 = vector.load %arg14[%c0_47, %c0_48, %c0_49] : memref<1x8x32xbf16, #tpu.memory_space<vmem>>, vector<1x8x32xbf16>
    %114 = vector.shape_cast %113 : vector<1x8x32xbf16> to vector<8x32xbf16>
    %115 = vector.shape_cast %112 : vector<8x32xbf16> to vector<1x8x32xbf16>
    tpu.vector_store %arg14[%c0_47, %c0_48, %c0_49], %115 {strides = array<i32>} : memref<1x8x32xbf16, #tpu.memory_space<vmem>>, vector<1x8x32xbf16>,
    return
  }
  func.func @transform_0(%arg0: i32, %arg1: i32) -> (i32, i32, i32) {
    %c0_i32 = arith.constant 0 : i32
    %c0_i32_0 = arith.constant 0 : i32
    return %arg0, %arg1, %c0_i32 : i32, i32, i32
  }
  func.func @transform_1(%arg0: i32, %arg1: i32) -> (i32, i32, i32) {
    %c0_i32 = arith.constant 0 : i32
    %c0_i32_0 = arith.constant 0 : i32
    %c0_i32_1 = arith.constant 0 : i32
    return %arg0, %c0_i32, %c0_i32_0 : i32, i32, i32
  }
  func.func @transform_2(%arg0: i32, %arg1: i32) -> (i32, i32, i32) {
    %c0_i32 = arith.constant 0 : i32
    %c0_i32_0 = arith.constant 0 : i32
    %c0_i32_1 = arith.constant 0 : i32
    return %arg0, %c0_i32, %c0_i32_0 : i32, i32, i32
  }
  func.func @transform_3(%arg0: i32, %arg1: i32) -> (i32, i32, i32) {
    %c0_i32 = arith.constant 0 : i32
    %c0_i32_0 = arith.constant 0 : i32
    return %arg0, %arg1, %c0_i32 : i32, i32, i32
  }
  func.func @transform_4(%arg0: i32, %arg1: i32) -> (i32, i32) {
    %c0_i32 = arith.constant 0 : i32
    %c0_i32_0 = arith.constant 0 : i32
    %c0_i32_1 = arith.constant 0 : i32
    return %c0_i32, %c0_i32_0 : i32, i32
  }
  func.func @transform_5(%arg0: i32, %arg1: i32) -> (i32, i32) {
    %c0_i32 = arith.constant 0 : i32
    %c0_i32_0 = arith.constant 0 : i32
    %c0_i32_1 = arith.constant 0 : i32
    return %c0_i32, %c0_i32_0 : i32, i32
  }
  func.func @transform_6(%arg0: i32, %arg1: i32) -> (i32, i32) {
    %c0_i32 = arith.constant 0 : i32
    %c0_i32_0 = arith.constant 0 : i32
    %c0_i32_1 = arith.constant 0 : i32
    return %c0_i32, %c0_i32_0 : i32, i32
  }
  func.func @transform_7(%arg0: i32, %arg1: i32) -> (i32, i32) {
    %c0_i32 = arith.constant 0 : i32
    %c0_i32_0 = arith.constant 0 : i32
    %c0_i32_1 = arith.constant 0 : i32
    return %c0_i32, %c0_i32_0 : i32, i32
  }
  func.func @transform_8(%arg0: i32, %arg1: i32) -> (i32, i32) {
    %c0_i32 = arith.constant 0 : i32
    %c0_i32_0 = arith.constant 0 : i32
    %c0_i32_1 = arith.constant 0 : i32
    return %c0_i32, %c0_i32_0 : i32, i32
  }
  func.func @transform_9(%arg0: i32, %arg1: i32) -> (i32, i32) {
    %c0_i32 = arith.constant 0 : i32
    %c0_i32_0 = arith.constant 0 : i32
    %c0_i32_1 = arith.constant 0 : i32
    return %c0_i32, %c0_i32_0 : i32, i32
  }
  func.func @transform_10(%arg0: i32, %arg1: i32) -> (i32, i32) {
    %c0_i32 = arith.constant 0 : i32
    %c0_i32_0 = arith.constant 0 : i32
    %c0_i32_1 = arith.constant 0 : i32
    return %c0_i32, %c0_i32_0 : i32, i32
  }
  func.func @transform_11(%arg0: i32, %arg1: i32) -> (i32, i32) {
    %c0_i32 = arith.constant 0 : i32
    %c0_i32_0 = arith.constant 0 : i32
    %c0_i32_1 = arith.constant 0 : i32
    return %c0_i32, %c0_i32_0 : i32, i32
  }
  func.func @transform_12(%arg0: i32, %arg1: i32) -> (i32, i32, i32) {
    %c0_i32 = arith.constant 0 : i32
    %c0_i32_0 = arith.constant 0 : i32
    return %arg0, %arg1, %c0_i32 : i32, i32, i32
  }
}

module attributes {stable_mosaic.version = 11 : i64} {
  func.func @_mha_kernel(%arg0: i32, %arg1: i32, %arg2: memref<1x8x32xbf16, #tpu.memory_space<vmem>>, %arg3: memref<1x8x32xbf16, #tpu.memory_space<vmem>>, %arg4: memref<1x1x8xf32, #tpu.memory_space<vmem>>, %arg5: memref<1x8x1xf32, #tpu.memory_space<vmem>>, %arg6: memref<32x32xbf16, #tpu.memory_space<vmem>>, %arg7: memref<1x32xf32, #tpu.memory_space<vmem>>, %arg8: memref<32x64xbf16, #tpu.memory_space<vmem>>, %arg9: memref<1x64xf32, #tpu.memory_space<vmem>>, %arg10: memref<32x32xbf16, #tpu.memory_space<vmem>>, %arg11: memref<1x32xf32, #tpu.memory_space<vmem>>, %arg12: memref<1x32xf32, #tpu.memory_space<vmem>>, %arg13: memref<1x32xf32, #tpu.memory_space<vmem>>, %arg14: memref<1x8x32xbf16, #tpu.memory_space<vmem>>) attributes {dimension_semantics = [#tpu.dimension_semantics<parallel>, #tpu.dimension_semantics<parallel>], iteration_bounds = array<i64: 2, 1>, scalar_prefetch = 0 : i64, scratch_operands = 0 : i64, tpu.core_type = #tpu.core_type<tc>, window_params = [{transform_indices = @transform_0, window_bounds = array<i64: 1, 8, 32>}, {transform_indices = @transform_1, window_bounds = array<i64: 1, 8, 32>}, {transform_indices = @transform_2, window_bounds = array<i64: 1, 1, 8>}, {transform_indices = @transform_3, window_bounds = array<i64: 1, 8, 1>}, {pipeline_mode = #tpu.pipeline_mode<synchronous>, transform_indices = @transform_4, window_bounds = array<i64: 32, 32>}, {pipeline_mode = #tpu.pipeline_mode<synchronous>, transform_indices = @transform_5, window_bounds = array<i64: 1, 32>}, {pipeline_mode = #tpu.pipeline_mode<synchronous>, transform_indices = @transform_6, window_bounds = array<i64: 32, 64>}, {pipeline_mode = #tpu.pipeline_mode<synchronous>, transform_indices = @transform_7, window_bounds = array<i64: 1, 64>}, {pipeline_mode = #tpu.pipeline_mode<synchronous>, transform_indices = @transform_8, window_bounds = array<i64: 32, 32>}, {pipeline_mode = #tpu.pipeline_mode<synchronous>, transform_indices = @transform_9, window_bounds = array<i64: 1, 32>}, {pipeline_mode = #tpu.pipeline_mode<synchronous>, transform_indices = @transform_10, window_bounds = array<i64: 1, 32>}, {pipeline_mode = #tpu.pipeline_mode<synchronous>, transform_indices = @transform_11, window_bounds = array<i64: 1, 32>}, {transform_indices = @transform_12, window_bounds = array<i64: 1, 8, 32>}]} {
    %c0 = arith.constant 0 : index
    %c0_0 = arith.constant 0 : index
    %c0_1 = arith.constant 0 : index
    %0 = vector.load %arg2[%c0, %c0_0, %c0_1] : memref<1x8x32xbf16, #tpu.memory_space<vmem>>, vector<1x8x32xbf16>
    %1 = vector.shape_cast %0 : vector<1x8x32xbf16> to vector<8x32xbf16>
    %c0_2 = arith.constant 0 : index
    %c0_3 = arith.constant 0 : index
    %c0_4 = arith.constant 0 : index
    %2 = vector.load %arg3[%c0_2, %c0_3, %c0_4] : memref<1x8x32xbf16, #tpu.memory_space<vmem>>, vector<1x8x32xbf16>
    %3 = vector.shape_cast %2 : vector<1x8x32xbf16> to vector<8x32xbf16>
    %c0_5 = arith.constant 0 : index
    %c0_6 = arith.constant 0 : index
    %4 = vector.load %arg6[%c0_5, %c0_6] : memref<32x32xbf16, #tpu.memory_space<vmem>>, vector<32x32xbf16>
    %cst = arith.constant dense<0.000000e+00> : vector<8x32xf32>
    %5 = tpu.matmul %1, %4, %cst {dimension_numbers = #tpu.dot_dimension_numbers<[1], [0], [0], [1], [0, 0, 1, 1], [], []>} : vector<8x32xbf16>, vector<32x32xbf16>, vector<8x32xf32> -> vector<8x32xf32>
    %c0_7 = arith.constant 0 : index
    %c0_8 = arith.constant 0 : index
    %6 = vector.load %arg7[%c0_7, %c0_8] : memref<1x32xf32, #tpu.memory_space<vmem>>, vector<1x32xf32>
    %7 = vector.broadcast %6 : vector<1x32xf32> to vector<8x32xf32>
    %8 = arith.addf %5, %7 : vector<8x32xf32>
    %c0_9 = arith.constant 0 : index
    %c0_10 = arith.constant 0 : index
    %9 = vector.load %arg8[%c0_9, %c0_10] : memref<32x64xbf16, #tpu.memory_space<vmem>>, vector<32x64xbf16>
    %cst_11 = arith.constant dense<0.000000e+00> : vector<8x64xf32>
    %10 = tpu.matmul %3, %9, %cst_11 {dimension_numbers = #tpu.dot_dimension_numbers<[1], [0], [0], [1], [0, 0, 1, 1], [], []>} : vector<8x32xbf16>, vector<32x64xbf16>, vector<8x64xf32> -> vector<8x64xf32>
    %c0_12 = arith.constant 0 : index
    %c0_13 = arith.constant 0 : index
    %11 = vector.load %arg9[%c0_12, %c0_13] : memref<1x64xf32, #tpu.memory_space<vmem>>, vector<1x64xf32>
    %12 = vector.broadcast %11 : vector<1x64xf32> to vector<8x64xf32>
    %13 = arith.addf %10, %12 : vector<8x64xf32>
    %14 = vector.extract_strided_slice %13 {offsets = [0, 0], sizes = [8, 32], strides = [1, 1]} : vector<8x64xf32> to vector<8x32xf32>
    %15 = vector.extract_strided_slice %13 {offsets = [0, 32], sizes = [8, 32], strides = [1, 1]} : vector<8x64xf32> to vector<8x32xf32>
    %c0_14 = arith.constant 0 : index
    %c0_15 = arith.constant 0 : index
    %c0_16 = arith.constant 0 : index
    %16 = vector.load %arg4[%c0_14, %c0_15, %c0_16] : memref<1x1x8xf32, #tpu.memory_space<vmem>>, vector<1x1x8xf32>
    %17 = vector.shape_cast %16 : vector<1x1x8xf32> to vector<1x8xf32>
    %cst_17 = arith.constant 0.000000e+00 : f32
    %18 = vector.broadcast %cst_17 : f32 to vector<1x8xf32>
    %19 = arith.cmpf ogt, %17, %18 : vector<1x8xf32>
    %20 = vector.shape_cast %19 : vector<1x8xi1> to vector<1x8xi1>
    %21 = vector.broadcast %20 : vector<1x8xi1> to vector<8x8xi1>
    %22 = vector.extract_strided_slice %8 {offsets = [0, 0], sizes = [8, 16], strides = [1, 1]} : vector<8x32xf32> to vector<8x16xf32>
    %23 = arith.truncf %22 : vector<8x16xf32> to vector<8x16xbf16>
    %24 = vector.extract_strided_slice %14 {offsets = [0, 0], sizes = [8, 16], strides = [1, 1]} : vector<8x32xf32> to vector<8x16xf32>
    %25 = arith.truncf %24 : vector<8x16xf32> to vector<8x16xbf16>
    %26 = vector.extract_strided_slice %15 {offsets = [0, 0], sizes = [8, 16], strides = [1, 1]} : vector<8x32xf32> to vector<8x16xf32>
    %27 = arith.truncf %26 : vector<8x16xf32> to vector<8x16xbf16>
    %cst_18 = arith.constant dense<0.000000e+00> : vector<8x8xf32>
    %28 = tpu.matmul %23, %25, %cst_18 {dimension_numbers = #tpu.dot_dimension_numbers<[1], [1], [0], [0], [0, 0, 1, 0], [], []>} : vector<8x16xbf16>, vector<8x16xbf16>, vector<8x8xf32> -> vector<8x8xf32>
    %cst_19 = arith.constant 2.500000e-01 : f32
    %29 = vector.broadcast %cst_19 : f32 to vector<8x8xf32>
    %30 = arith.mulf %28, %29 : vector<8x8xf32>
    %cst_20 = arith.constant -1.000000e+30 : f32
    %31 = vector.broadcast %cst_20 : f32 to vector<8x8xf32>
    %32 = arith.select %21, %31, %30 : vector<8x8xi1>, vector<8x8xf32>
    %cst_21 = arith.constant dense<0xFF800000> : vector<8xf32>
    %33 = vector.multi_reduction <maximumf>, %32, %cst_21 [1] : vector<8x8xf32> to vector<8xf32>
    %34 = vector.shape_cast %33 : vector<8xf32> to vector<8x1xf32>
    %35 = vector.broadcast %34 : vector<8x1xf32> to vector<8x8xf32>
    %36 = arith.subf %32, %35 : vector<8x8xf32>
    %37 = math.exp %36 : vector<8x8xf32>
    %cst_22 = arith.constant dense<0.000000e+00> : vector<8xf32>
    %38 = vector.multi_reduction <add>, %37, %cst_22 [1] : vector<8x8xf32> to vector<8xf32>
    %39 = vector.shape_cast %38 : vector<8xf32> to vector<8x1xf32>
    %40 = tpu.reciprocal %39 {approx = true} : vector<8x1xf32> -> vector<8x1xf32>
    %41 = vector.broadcast %40 : vector<8x1xf32> to vector<8x8xf32>
    %42 = arith.mulf %37, %41 : vector<8x8xf32>
    %43 = arith.truncf %42 : vector<8x8xf32> to vector<8x8xbf16>
    %cst_23 = arith.constant dense<0.000000e+00> : vector<8x16xf32>
    %44 = tpu.matmul %43, %27, %cst_23 {dimension_numbers = #tpu.dot_dimension_numbers<[1], [0], [0], [1], [0, 0, 1, 1], [], []>} : vector<8x8xbf16>, vector<8x16xbf16>, vector<8x16xf32> -> vector<8x16xf32>
    %45 = vector.extract_strided_slice %8 {offsets = [0, 16], sizes = [8, 16], strides = [1, 1]} : vector<8x32xf32> to vector<8x16xf32>
    %46 = arith.truncf %45 : vector<8x16xf32> to vector<8x16xbf16>
    %47 = vector.extract_strided_slice %14 {offsets = [0, 16], sizes = [8, 16], strides = [1, 1]} : vector<8x32xf32> to vector<8x16xf32>
    %48 = arith.truncf %47 : vector<8x16xf32> to vector<8x16xbf16>
    %49 = vector.extract_strided_slice %15 {offsets = [0, 16], sizes = [8, 16], strides = [1, 1]} : vector<8x32xf32> to vector<8x16xf32>
    %50 = arith.truncf %49 : vector<8x16xf32> to vector<8x16xbf16>
    %cst_24 = arith.constant dense<0.000000e+00> : vector<8x8xf32>
    %51 = tpu.matmul %46, %48, %cst_24 {dimension_numbers = #tpu.dot_dimension_numbers<[1], [1], [0], [0], [0, 0, 1, 0], [], []>} : vector<8x16xbf16>, vector<8x16xbf16>, vector<8x8xf32> -> vector<8x8xf32>
    %cst_25 = arith.constant 2.500000e-01 : f32
    %52 = vector.broadcast %cst_25 : f32 to vector<8x8xf32>
    %53 = arith.mulf %51, %52 : vector<8x8xf32>
    %cst_26 = arith.constant -1.000000e+30 : f32
    %54 = vector.broadcast %cst_26 : f32 to vector<8x8xf32>
    %55 = arith.select %21, %54, %53 : vector<8x8xi1>, vector<8x8xf32>
    %cst_27 = arith.constant dense<0xFF800000> : vector<8xf32>
    %56 = vector.multi_reduction <maximumf>, %55, %cst_27 [1] : vector<8x8xf32> to vector<8xf32>
    %57 = vector.shape_cast %56 : vector<8xf32> to vector<8x1xf32>
    %58 = vector.broadcast %57 : vector<8x1xf32> to vector<8x8xf32>
    %59 = arith.subf %55, %58 : vector<8x8xf32>
    %60 = math.exp %59 : vector<8x8xf32>
    %cst_28 = arith.constant dense<0.000000e+00> : vector<8xf32>
    %61 = vector.multi_reduction <add>, %60, %cst_28 [1] : vector<8x8xf32> to vector<8xf32>
    %62 = vector.shape_cast %61 : vector<8xf32> to vector<8x1xf32>
    %63 = tpu.reciprocal %62 {approx = true} : vector<8x1xf32> -> vector<8x1xf32>
    %64 = vector.broadcast %63 : vector<8x1xf32> to vector<8x8xf32>
    %65 = arith.mulf %60, %64 : vector<8x8xf32>
    %66 = arith.truncf %65 : vector<8x8xf32> to vector<8x8xbf16>
    %cst_29 = arith.constant dense<0.000000e+00> : vector<8x16xf32>
    %67 = tpu.matmul %66, %50, %cst_29 {dimension_numbers = #tpu.dot_dimension_numbers<[1], [0], [0], [1], [0, 0, 1, 1], [], []>} : vector<8x8xbf16>, vector<8x16xbf16>, vector<8x16xf32> -> vector<8x16xf32>
    %68 = tpu.concatenate %44, %67 in 1 : vector<8x16xf32>, vector<8x16xf32> -> vector<8x32xf32>
    %69 = arith.truncf %68 : vector<8x32xf32> to vector<8x32xbf16>
    %c0_30 = arith.constant 0 : index
    %c0_31 = arith.constant 0 : index
    %70 = vector.load %arg10[%c0_30, %c0_31] : memref<32x32xbf16, #tpu.memory_space<vmem>>, vector<32x32xbf16>
    %cst_32 = arith.constant dense<0.000000e+00> : vector<8x32xf32>
    %71 = tpu.matmul %69, %70, %cst_32 {dimension_numbers = #tpu.dot_dimension_numbers<[1], [0], [0], [1], [0, 0, 1, 1], [], []>} : vector<8x32xbf16>, vector<32x32xbf16>, vector<8x32xf32> -> vector<8x32xf32>
    %c0_33 = arith.constant 0 : index
    %c0_34 = arith.constant 0 : index
    %72 = vector.load %arg11[%c0_33, %c0_34] : memref<1x32xf32, #tpu.memory_space<vmem>>, vector<1x32xf32>
    %73 = vector.broadcast %72 : vector<1x32xf32> to vector<8x32xf32>
    %74 = arith.addf %71, %73 : vector<8x32xf32>
    %75 = arith.extf %1 : vector<8x32xbf16> to vector<8x32xf32>
    %76 = arith.addf %74, %75 : vector<8x32xf32>
    %cst_35 = arith.constant dense<0.000000e+00> : vector<8xf32>
    %77 = vector.multi_reduction <add>, %76, %cst_35 [1] : vector<8x32xf32> to vector<8xf32>
    %78 = vector.shape_cast %77 : vector<8xf32> to vector<8x1xf32>
    %cst_36 = arith.constant 3.200000e+01 : f32
    %79 = vector.broadcast %cst_36 : f32 to vector<8x1xf32>
    %80 = arith.divf %78, %79 : vector<8x1xf32>
    %81 = vector.broadcast %80 : vector<8x1xf32> to vector<8x32xf32>
    %82 = arith.subf %76, %81 : vector<8x32xf32>
    %83 = arith.mulf %82, %82 : vector<8x32xf32>
    %cst_37 = arith.constant dense<0.000000e+00> : vector<8xf32>
    %84 = vector.multi_reduction <add>, %83, %cst_37 [1] : vector<8x32xf32> to vector<8xf32>
    %85 = vector.shape_cast %84 : vector<8xf32> to vector<8x1xf32>
    %cst_38 = arith.constant 3.200000e+01 : f32
    %86 = vector.broadcast %cst_38 : f32 to vector<8x1xf32>
    %87 = arith.divf %85, %86 : vector<8x1xf32>
    %88 = vector.broadcast %80 : vector<8x1xf32> to vector<8x32xf32>
    %89 = arith.subf %76, %88 : vector<8x32xf32>
    %cst_39 = arith.constant 9.99999974E-6 : f32
    %90 = vector.broadcast %cst_39 : f32 to vector<8x1xf32>
    %91 = arith.addf %87, %90 : vector<8x1xf32>
    %92 = math.rsqrt %91 : vector<8x1xf32>
    %93 = vector.broadcast %92 : vector<8x1xf32> to vector<8x32xf32>
    %94 = arith.mulf %89, %93 : vector<8x32xf32>
    %c0_40 = arith.constant 0 : index
    %c0_41 = arith.constant 0 : index
    %95 = vector.load %arg12[%c0_40, %c0_41] : memref<1x32xf32, #tpu.memory_space<vmem>>, vector<1x32xf32>
    %96 = vector.broadcast %95 : vector<1x32xf32> to vector<8x32xf32>
    %97 = arith.mulf %94, %96 : vector<8x32xf32>
    %c0_42 = arith.constant 0 : index
    %c0_43 = arith.constant 0 : index
    %98 = vector.load %arg13[%c0_42, %c0_43] : memref<1x32xf32, #tpu.memory_space<vmem>>, vector<1x32xf32>
    %99 = vector.broadcast %98 : vector<1x32xf32> to vector<8x32xf32>
    %100 = arith.addf %97, %99 : vector<8x32xf32>
    %c0_44 = arith.constant 0 : index
    %c0_45 = arith.constant 0 : index
    %c0_46 = arith.constant 0 : index
    %101 = vector.load %arg5[%c0_44, %c0_45, %c0_46] : memref<1x8x1xf32, #tpu.memory_space<vmem>>, vector<1x8x1xf32>
    %102 = vector.shape_cast %101 : vector<1x8x1xf32> to vector<8x1xf32>
    %103 = vector.broadcast %102 : vector<8x1xf32> to vector<8x32xf32>
    %104 = arith.mulf %100, %103 : vector<8x32xf32>
    %105 = arith.truncf %104 : vector<8x32xf32> to vector<8x32xbf16>
    %c0_47 = arith.constant 0 : index
    %c0_48 = arith.constant 0 : index
    %c0_49 = arith.constant 0 : index
    %106 = vector.load %arg14[%c0_47, %c0_48, %c0_49] : memref<1x8x32xbf16, #tpu.memory_space<vmem>>, vector<1x8x32xbf16>
    %107 = vector.shape_cast %106 : vector<1x8x32xbf16> to vector<8x32xbf16>
    %108 = vector.shape_cast %105 : vector<8x32xbf16> to vector<1x8x32xbf16>
    tpu.vector_store %arg14[%c0_47, %c0_48, %c0_49], %108 {strides = array<i32>} : memref<1x8x32xbf16, #tpu.memory_space<vmem>>, vector<1x8x32xbf16>,
    return
  }
  func.func @transform_0(%arg0: i32, %arg1: i32) -> (i32, i32, i32) {
    %c0_i32 = arith.constant 0 : i32
    %c0_i32_0 = arith.constant 0 : i32
    return %arg0, %arg1, %c0_i32 : i32, i32, i32
  }
  func.func @transform_1(%arg0: i32, %arg1: i32) -> (i32, i32, i32) {
    %c0_i32 = arith.constant 0 : i32
    %c0_i32_0 = arith.constant 0 : i32
    %c0_i32_1 = arith.constant 0 : i32
    return %arg0, %c0_i32, %c0_i32_0 : i32, i32, i32
  }
  func.func @transform_2(%arg0: i32, %arg1: i32) -> (i32, i32, i32) {
    %c0_i32 = arith.constant 0 : i32
    %c0_i32_0 = arith.constant 0 : i32
    %c0_i32_1 = arith.constant 0 : i32
    return %arg0, %c0_i32, %c0_i32_0 : i32, i32, i32
  }
  func.func @transform_3(%arg0: i32, %arg1: i32) -> (i32, i32, i32) {
    %c0_i32 = arith.constant 0 : i32
    %c0_i32_0 = arith.constant 0 : i32
    return %arg0, %arg1, %c0_i32 : i32, i32, i32
  }
  func.func @transform_4(%arg0: i32, %arg1: i32) -> (i32, i32) {
    %c0_i32 = arith.constant 0 : i32
    %c0_i32_0 = arith.constant 0 : i32
    %c0_i32_1 = arith.constant 0 : i32
    return %c0_i32, %c0_i32_0 : i32, i32
  }
  func.func @transform_5(%arg0: i32, %arg1: i32) -> (i32, i32) {
    %c0_i32 = arith.constant 0 : i32
    %c0_i32_0 = arith.constant 0 : i32
    %c0_i32_1 = arith.constant 0 : i32
    return %c0_i32, %c0_i32_0 : i32, i32
  }
  func.func @transform_6(%arg0: i32, %arg1: i32) -> (i32, i32) {
    %c0_i32 = arith.constant 0 : i32
    %c0_i32_0 = arith.constant 0 : i32
    %c0_i32_1 = arith.constant 0 : i32
    return %c0_i32, %c0_i32_0 : i32, i32
  }
  func.func @transform_7(%arg0: i32, %arg1: i32) -> (i32, i32) {
    %c0_i32 = arith.constant 0 : i32
    %c0_i32_0 = arith.constant 0 : i32
    %c0_i32_1 = arith.constant 0 : i32
    return %c0_i32, %c0_i32_0 : i32, i32
  }
  func.func @transform_8(%arg0: i32, %arg1: i32) -> (i32, i32) {
    %c0_i32 = arith.constant 0 : i32
    %c0_i32_0 = arith.constant 0 : i32
    %c0_i32_1 = arith.constant 0 : i32
    return %c0_i32, %c0_i32_0 : i32, i32
  }
  func.func @transform_9(%arg0: i32, %arg1: i32) -> (i32, i32) {
    %c0_i32 = arith.constant 0 : i32
    %c0_i32_0 = arith.constant 0 : i32
    %c0_i32_1 = arith.constant 0 : i32
    return %c0_i32, %c0_i32_0 : i32, i32
  }
  func.func @transform_10(%arg0: i32, %arg1: i32) -> (i32, i32) {
    %c0_i32 = arith.constant 0 : i32
    %c0_i32_0 = arith.constant 0 : i32
    %c0_i32_1 = arith.constant 0 : i32
    return %c0_i32, %c0_i32_0 : i32, i32
  }
  func.func @transform_11(%arg0: i32, %arg1: i32) -> (i32, i32) {
    %c0_i32 = arith.constant 0 : i32
    %c0_i32_0 = arith.constant 0 : i32
    %c0_i32_1 = arith.constant 0 : i32
    return %c0_i32, %c0_i32_0 : i32, i32
  }
  func.func @transform_12(%arg0: i32, %arg1: i32) -> (i32, i32, i32) {
    %c0_i32 = arith.constant 0 : i32
    %c0_i32_0 = arith.constant 0 : i32
    return %arg0, %arg1, %c0_i32 : i32, i32, i32
  }
}

module attributes {stable_mosaic.version = 11 : i64} {
  func.func @_ffn_ln_kernel(%arg0: i32, %arg1: memref<16x32xbf16, #tpu.memory_space<vmem>>, %arg2: memref<32x64xbf16, #tpu.memory_space<vmem>>, %arg3: memref<1x64xf32, #tpu.memory_space<vmem>>, %arg4: memref<64x32xbf16, #tpu.memory_space<vmem>>, %arg5: memref<1x32xf32, #tpu.memory_space<vmem>>, %arg6: memref<1x32xf32, #tpu.memory_space<vmem>>, %arg7: memref<1x32xf32, #tpu.memory_space<vmem>>, %arg8: memref<16x1xf32, #tpu.memory_space<vmem>>, %arg9: memref<16x32xbf16, #tpu.memory_space<vmem>>) attributes {dimension_semantics = [#tpu.dimension_semantics<parallel>], iteration_bounds = array<i64: 1>, scalar_prefetch = 0 : i64, scratch_operands = 0 : i64, tpu.core_type = #tpu.core_type<tc>, window_params = [{transform_indices = @transform_0, window_bounds = array<i64: 16, 32>}, {pipeline_mode = #tpu.pipeline_mode<synchronous>, transform_indices = @transform_1, window_bounds = array<i64: 32, 64>}, {pipeline_mode = #tpu.pipeline_mode<synchronous>, transform_indices = @transform_2, window_bounds = array<i64: 1, 64>}, {pipeline_mode = #tpu.pipeline_mode<synchronous>, transform_indices = @transform_3, window_bounds = array<i64: 64, 32>}, {pipeline_mode = #tpu.pipeline_mode<synchronous>, transform_indices = @transform_4, window_bounds = array<i64: 1, 32>}, {pipeline_mode = #tpu.pipeline_mode<synchronous>, transform_indices = @transform_5, window_bounds = array<i64: 1, 32>}, {pipeline_mode = #tpu.pipeline_mode<synchronous>, transform_indices = @transform_6, window_bounds = array<i64: 1, 32>}, {transform_indices = @transform_7, window_bounds = array<i64: 16, 1>}, {transform_indices = @transform_8, window_bounds = array<i64: 16, 32>}]} {
    %c0 = arith.constant 0 : index
    %c0_0 = arith.constant 0 : index
    %0 = vector.load %arg1[%c0, %c0_0] : memref<16x32xbf16, #tpu.memory_space<vmem>>, vector<16x32xbf16>
    %c0_1 = arith.constant 0 : index
    %c0_2 = arith.constant 0 : index
    %1 = vector.load %arg2[%c0_1, %c0_2] : memref<32x64xbf16, #tpu.memory_space<vmem>>, vector<32x64xbf16>
    %cst = arith.constant dense<0.000000e+00> : vector<16x64xf32>
    %2 = tpu.matmul %0, %1, %cst {dimension_numbers = #tpu.dot_dimension_numbers<[1], [0], [0], [1], [0, 0, 1, 1], [], []>} : vector<16x32xbf16>, vector<32x64xbf16>, vector<16x64xf32> -> vector<16x64xf32>
    %c0_3 = arith.constant 0 : index
    %c0_4 = arith.constant 0 : index
    %3 = vector.load %arg3[%c0_3, %c0_4] : memref<1x64xf32, #tpu.memory_space<vmem>>, vector<1x64xf32>
    %4 = vector.broadcast %3 : vector<1x64xf32> to vector<16x64xf32>
    %5 = arith.addf %2, %4 : vector<16x64xf32>
    %cst_5 = arith.constant 0.000000e+00 : f32
    %6 = vector.broadcast %cst_5 : f32 to vector<16x64xf32>
    %7 = arith.maximumf %5, %6 : vector<16x64xf32>
    %8 = arith.truncf %7 : vector<16x64xf32> to vector<16x64xbf16>
    %c0_6 = arith.constant 0 : index
    %c0_7 = arith.constant 0 : index
    %9 = vector.load %arg4[%c0_6, %c0_7] : memref<64x32xbf16, #tpu.memory_space<vmem>>, vector<64x32xbf16>
    %cst_8 = arith.constant dense<0.000000e+00> : vector<16x32xf32>
    %10 = tpu.matmul %8, %9, %cst_8 {dimension_numbers = #tpu.dot_dimension_numbers<[1], [0], [0], [1], [0, 0, 1, 1], [], []>} : vector<16x64xbf16>, vector<64x32xbf16>, vector<16x32xf32> -> vector<16x32xf32>
    %c0_9 = arith.constant 0 : index
    %c0_10 = arith.constant 0 : index
    %11 = vector.load %arg5[%c0_9, %c0_10] : memref<1x32xf32, #tpu.memory_space<vmem>>, vector<1x32xf32>
    %12 = vector.broadcast %11 : vector<1x32xf32> to vector<16x32xf32>
    %13 = arith.addf %10, %12 : vector<16x32xf32>
    %14 = arith.extf %0 : vector<16x32xbf16> to vector<16x32xf32>
    %15 = arith.addf %13, %14 : vector<16x32xf32>
    %cst_11 = arith.constant dense<0.000000e+00> : vector<16xf32>
    %16 = vector.multi_reduction <add>, %15, %cst_11 [1] : vector<16x32xf32> to vector<16xf32>
    %17 = vector.shape_cast %16 : vector<16xf32> to vector<16x1xf32>
    %cst_12 = arith.constant 3.200000e+01 : f32
    %18 = vector.broadcast %cst_12 : f32 to vector<16x1xf32>
    %19 = arith.divf %17, %18 : vector<16x1xf32>
    %20 = vector.broadcast %19 : vector<16x1xf32> to vector<16x32xf32>
    %21 = arith.subf %15, %20 : vector<16x32xf32>
    %22 = arith.mulf %21, %21 : vector<16x32xf32>
    %cst_13 = arith.constant dense<0.000000e+00> : vector<16xf32>
    %23 = vector.multi_reduction <add>, %22, %cst_13 [1] : vector<16x32xf32> to vector<16xf32>
    %24 = vector.shape_cast %23 : vector<16xf32> to vector<16x1xf32>
    %cst_14 = arith.constant 3.200000e+01 : f32
    %25 = vector.broadcast %cst_14 : f32 to vector<16x1xf32>
    %26 = arith.divf %24, %25 : vector<16x1xf32>
    %27 = vector.broadcast %19 : vector<16x1xf32> to vector<16x32xf32>
    %28 = arith.subf %15, %27 : vector<16x32xf32>
    %cst_15 = arith.constant 9.99999974E-6 : f32
    %29 = vector.broadcast %cst_15 : f32 to vector<16x1xf32>
    %30 = arith.addf %26, %29 : vector<16x1xf32>
    %31 = math.rsqrt %30 : vector<16x1xf32>
    %32 = vector.broadcast %31 : vector<16x1xf32> to vector<16x32xf32>
    %33 = arith.mulf %28, %32 : vector<16x32xf32>
    %c0_16 = arith.constant 0 : index
    %c0_17 = arith.constant 0 : index
    %34 = vector.load %arg6[%c0_16, %c0_17] : memref<1x32xf32, #tpu.memory_space<vmem>>, vector<1x32xf32>
    %35 = vector.broadcast %34 : vector<1x32xf32> to vector<16x32xf32>
    %36 = arith.mulf %33, %35 : vector<16x32xf32>
    %c0_18 = arith.constant 0 : index
    %c0_19 = arith.constant 0 : index
    %37 = vector.load %arg7[%c0_18, %c0_19] : memref<1x32xf32, #tpu.memory_space<vmem>>, vector<1x32xf32>
    %38 = vector.broadcast %37 : vector<1x32xf32> to vector<16x32xf32>
    %39 = arith.addf %36, %38 : vector<16x32xf32>
    %c0_20 = arith.constant 0 : index
    %c0_21 = arith.constant 0 : index
    %40 = vector.load %arg8[%c0_20, %c0_21] : memref<16x1xf32, #tpu.memory_space<vmem>>, vector<16x1xf32>
    %41 = vector.broadcast %40 : vector<16x1xf32> to vector<16x32xf32>
    %42 = arith.mulf %39, %41 : vector<16x32xf32>
    %43 = arith.truncf %42 : vector<16x32xf32> to vector<16x32xbf16>
    %c0_22 = arith.constant 0 : index
    %c0_23 = arith.constant 0 : index
    %44 = vector.load %arg9[%c0_22, %c0_23] : memref<16x32xbf16, #tpu.memory_space<vmem>>, vector<16x32xbf16>
    tpu.vector_store %arg9[%c0_22, %c0_23], %43 {strides = array<i32>} : memref<16x32xbf16, #tpu.memory_space<vmem>>, vector<16x32xbf16>,
    return
  }
  func.func @transform_0(%arg0: i32) -> (i32, i32) {
    %c0_i32 = arith.constant 0 : i32
    %c0_i32_0 = arith.constant 0 : i32
    return %arg0, %c0_i32 : i32, i32
  }
  func.func @transform_1(%arg0: i32) -> (i32, i32) {
    %c0_i32 = arith.constant 0 : i32
    %c0_i32_0 = arith.constant 0 : i32
    %c0_i32_1 = arith.constant 0 : i32
    return %c0_i32, %c0_i32_0 : i32, i32
  }
  func.func @transform_2(%arg0: i32) -> (i32, i32) {
    %c0_i32 = arith.constant 0 : i32
    %c0_i32_0 = arith.constant 0 : i32
    %c0_i32_1 = arith.constant 0 : i32
    return %c0_i32, %c0_i32_0 : i32, i32
  }
  func.func @transform_3(%arg0: i32) -> (i32, i32) {
    %c0_i32 = arith.constant 0 : i32
    %c0_i32_0 = arith.constant 0 : i32
    %c0_i32_1 = arith.constant 0 : i32
    return %c0_i32, %c0_i32_0 : i32, i32
  }
  func.func @transform_4(%arg0: i32) -> (i32, i32) {
    %c0_i32 = arith.constant 0 : i32
    %c0_i32_0 = arith.constant 0 : i32
    %c0_i32_1 = arith.constant 0 : i32
    return %c0_i32, %c0_i32_0 : i32, i32
  }
  func.func @transform_5(%arg0: i32) -> (i32, i32) {
    %c0_i32 = arith.constant 0 : i32
    %c0_i32_0 = arith.constant 0 : i32
    %c0_i32_1 = arith.constant 0 : i32
    return %c0_i32, %c0_i32_0 : i32, i32
  }
  func.func @transform_6(%arg0: i32) -> (i32, i32) {
    %c0_i32 = arith.constant 0 : i32
    %c0_i32_0 = arith.constant 0 : i32
    %c0_i32_1 = arith.constant 0 : i32
    return %c0_i32, %c0_i32_0 : i32, i32
  }
  func.func @transform_7(%arg0: i32) -> (i32, i32) {
    %c0_i32 = arith.constant 0 : i32
    %c0_i32_0 = arith.constant 0 : i32
    return %arg0, %c0_i32 : i32, i32
  }
  func.func @transform_8(%arg0: i32) -> (i32, i32) {
    %c0_i32 = arith.constant 0 : i32
    %c0_i32_0 = arith.constant 0 : i32
    return %arg0, %c0_i32 : i32, i32
  }
}

module attributes {stable_mosaic.version = 11 : i64} {
  func.func @_mha_kernel(%arg0: i32, %arg1: i32, %arg2: memref<1x8x32xbf16, #tpu.memory_space<vmem>>, %arg3: memref<1x8x32xbf16, #tpu.memory_space<vmem>>, %arg4: memref<1x1x8xf32, #tpu.memory_space<vmem>>, %arg5: memref<1x8x1xf32, #tpu.memory_space<vmem>>, %arg6: memref<32x32xbf16, #tpu.memory_space<vmem>>, %arg7: memref<1x32xf32, #tpu.memory_space<vmem>>, %arg8: memref<32x64xbf16, #tpu.memory_space<vmem>>, %arg9: memref<1x64xf32, #tpu.memory_space<vmem>>, %arg10: memref<32x32xbf16, #tpu.memory_space<vmem>>, %arg11: memref<1x32xf32, #tpu.memory_space<vmem>>, %arg12: memref<1x32xf32, #tpu.memory_space<vmem>>, %arg13: memref<1x32xf32, #tpu.memory_space<vmem>>, %arg14: memref<1x8x32xbf16, #tpu.memory_space<vmem>>) attributes {dimension_semantics = [#tpu.dimension_semantics<parallel>, #tpu.dimension_semantics<parallel>], iteration_bounds = array<i64: 2, 1>, scalar_prefetch = 0 : i64, scratch_operands = 0 : i64, tpu.core_type = #tpu.core_type<tc>, window_params = [{transform_indices = @transform_0, window_bounds = array<i64: 1, 8, 32>}, {transform_indices = @transform_1, window_bounds = array<i64: 1, 8, 32>}, {transform_indices = @transform_2, window_bounds = array<i64: 1, 1, 8>}, {transform_indices = @transform_3, window_bounds = array<i64: 1, 8, 1>}, {pipeline_mode = #tpu.pipeline_mode<synchronous>, transform_indices = @transform_4, window_bounds = array<i64: 32, 32>}, {pipeline_mode = #tpu.pipeline_mode<synchronous>, transform_indices = @transform_5, window_bounds = array<i64: 1, 32>}, {pipeline_mode = #tpu.pipeline_mode<synchronous>, transform_indices = @transform_6, window_bounds = array<i64: 32, 64>}, {pipeline_mode = #tpu.pipeline_mode<synchronous>, transform_indices = @transform_7, window_bounds = array<i64: 1, 64>}, {pipeline_mode = #tpu.pipeline_mode<synchronous>, transform_indices = @transform_8, window_bounds = array<i64: 32, 32>}, {pipeline_mode = #tpu.pipeline_mode<synchronous>, transform_indices = @transform_9, window_bounds = array<i64: 1, 32>}, {pipeline_mode = #tpu.pipeline_mode<synchronous>, transform_indices = @transform_10, window_bounds = array<i64: 1, 32>}, {pipeline_mode = #tpu.pipeline_mode<synchronous>, transform_indices = @transform_11, window_bounds = array<i64: 1, 32>}, {transform_indices = @transform_12, window_bounds = array<i64: 1, 8, 32>}]} {
    %c0 = arith.constant 0 : index
    %c0_0 = arith.constant 0 : index
    %c0_1 = arith.constant 0 : index
    %0 = vector.load %arg2[%c0, %c0_0, %c0_1] : memref<1x8x32xbf16, #tpu.memory_space<vmem>>, vector<1x8x32xbf16>
    %1 = vector.shape_cast %0 : vector<1x8x32xbf16> to vector<8x32xbf16>
    %c0_2 = arith.constant 0 : index
    %c0_3 = arith.constant 0 : index
    %c0_4 = arith.constant 0 : index
    %2 = vector.load %arg3[%c0_2, %c0_3, %c0_4] : memref<1x8x32xbf16, #tpu.memory_space<vmem>>, vector<1x8x32xbf16>
    %3 = vector.shape_cast %2 : vector<1x8x32xbf16> to vector<8x32xbf16>
    %c0_5 = arith.constant 0 : index
    %c0_6 = arith.constant 0 : index
    %4 = vector.load %arg6[%c0_5, %c0_6] : memref<32x32xbf16, #tpu.memory_space<vmem>>, vector<32x32xbf16>
    %cst = arith.constant dense<0.000000e+00> : vector<8x32xf32>
    %5 = tpu.matmul %1, %4, %cst {dimension_numbers = #tpu.dot_dimension_numbers<[1], [0], [0], [1], [0, 0, 1, 1], [], []>} : vector<8x32xbf16>, vector<32x32xbf16>, vector<8x32xf32> -> vector<8x32xf32>
    %c0_7 = arith.constant 0 : index
    %c0_8 = arith.constant 0 : index
    %6 = vector.load %arg7[%c0_7, %c0_8] : memref<1x32xf32, #tpu.memory_space<vmem>>, vector<1x32xf32>
    %7 = vector.broadcast %6 : vector<1x32xf32> to vector<8x32xf32>
    %8 = arith.addf %5, %7 : vector<8x32xf32>
    %c0_9 = arith.constant 0 : index
    %c0_10 = arith.constant 0 : index
    %9 = vector.load %arg8[%c0_9, %c0_10] : memref<32x64xbf16, #tpu.memory_space<vmem>>, vector<32x64xbf16>
    %cst_11 = arith.constant dense<0.000000e+00> : vector<8x64xf32>
    %10 = tpu.matmul %3, %9, %cst_11 {dimension_numbers = #tpu.dot_dimension_numbers<[1], [0], [0], [1], [0, 0, 1, 1], [], []>} : vector<8x32xbf16>, vector<32x64xbf16>, vector<8x64xf32> -> vector<8x64xf32>
    %c0_12 = arith.constant 0 : index
    %c0_13 = arith.constant 0 : index
    %11 = vector.load %arg9[%c0_12, %c0_13] : memref<1x64xf32, #tpu.memory_space<vmem>>, vector<1x64xf32>
    %12 = vector.broadcast %11 : vector<1x64xf32> to vector<8x64xf32>
    %13 = arith.addf %10, %12 : vector<8x64xf32>
    %14 = vector.extract_strided_slice %13 {offsets = [0, 0], sizes = [8, 32], strides = [1, 1]} : vector<8x64xf32> to vector<8x32xf32>
    %15 = vector.extract_strided_slice %13 {offsets = [0, 32], sizes = [8, 32], strides = [1, 1]} : vector<8x64xf32> to vector<8x32xf32>
    %c0_14 = arith.constant 0 : index
    %c0_15 = arith.constant 0 : index
    %c0_16 = arith.constant 0 : index
    %16 = vector.load %arg4[%c0_14, %c0_15, %c0_16] : memref<1x1x8xf32, #tpu.memory_space<vmem>>, vector<1x1x8xf32>
    %17 = vector.shape_cast %16 : vector<1x1x8xf32> to vector<1x8xf32>
    %cst_17 = arith.constant 0.000000e+00 : f32
    %18 = vector.broadcast %cst_17 : f32 to vector<1x8xf32>
    %19 = arith.cmpf ogt, %17, %18 : vector<1x8xf32>
    %20 = vector.shape_cast %19 : vector<1x8xi1> to vector<1x8xi1>
    %21 = vector.broadcast %20 : vector<1x8xi1> to vector<8x8xi1>
    %c8_i32 = arith.constant 8 : i32
    %22 = arith.muli %arg1, %c8_i32 : i32
    %23 = tpu.iota {dimensions = array<i32: 0>} : vector<8x8xi32>
    %24 = vector.broadcast %22 : i32 to vector<8x8xi32>
    %25 = arith.addi %24, %23 : vector<8x8xi32>
    %26 = tpu.iota {dimensions = array<i32: 1>} : vector<8x8xi32>
    %27 = arith.cmpi sgt, %26, %25 : vector<8x8xi32>
    %28 = arith.ori %21, %27 : vector<8x8xi1>
    %29 = vector.extract_strided_slice %8 {offsets = [0, 0], sizes = [8, 16], strides = [1, 1]} : vector<8x32xf32> to vector<8x16xf32>
    %30 = arith.truncf %29 : vector<8x16xf32> to vector<8x16xbf16>
    %31 = vector.extract_strided_slice %14 {offsets = [0, 0], sizes = [8, 16], strides = [1, 1]} : vector<8x32xf32> to vector<8x16xf32>
    %32 = arith.truncf %31 : vector<8x16xf32> to vector<8x16xbf16>
    %33 = vector.extract_strided_slice %15 {offsets = [0, 0], sizes = [8, 16], strides = [1, 1]} : vector<8x32xf32> to vector<8x16xf32>
    %34 = arith.truncf %33 : vector<8x16xf32> to vector<8x16xbf16>
    %cst_18 = arith.constant dense<0.000000e+00> : vector<8x8xf32>
    %35 = tpu.matmul %30, %32, %cst_18 {dimension_numbers = #tpu.dot_dimension_numbers<[1], [1], [0], [0], [0, 0, 1, 0], [], []>} : vector<8x16xbf16>, vector<8x16xbf16>, vector<8x8xf32> -> vector<8x8xf32>
    %cst_19 = arith.constant 2.500000e-01 : f32
    %36 = vector.broadcast %cst_19 : f32 to vector<8x8xf32>
    %37 = arith.mulf %35, %36 : vector<8x8xf32>
    %cst_20 = arith.constant -1.000000e+30 : f32
    %38 = vector.broadcast %cst_20 : f32 to vector<8x8xf32>
    %39 = arith.select %28, %38, %37 : vector<8x8xi1>, vector<8x8xf32>
    %cst_21 = arith.constant dense<0xFF800000> : vector<8xf32>
    %40 = vector.multi_reduction <maximumf>, %39, %cst_21 [1] : vector<8x8xf32> to vector<8xf32>
    %41 = vector.shape_cast %40 : vector<8xf32> to vector<8x1xf32>
    %42 = vector.broadcast %41 : vector<8x1xf32> to vector<8x8xf32>
    %43 = arith.subf %39, %42 : vector<8x8xf32>
    %44 = math.exp %43 : vector<8x8xf32>
    %cst_22 = arith.constant dense<0.000000e+00> : vector<8xf32>
    %45 = vector.multi_reduction <add>, %44, %cst_22 [1] : vector<8x8xf32> to vector<8xf32>
    %46 = vector.shape_cast %45 : vector<8xf32> to vector<8x1xf32>
    %47 = tpu.reciprocal %46 {approx = true} : vector<8x1xf32> -> vector<8x1xf32>
    %48 = vector.broadcast %47 : vector<8x1xf32> to vector<8x8xf32>
    %49 = arith.mulf %44, %48 : vector<8x8xf32>
    %50 = arith.truncf %49 : vector<8x8xf32> to vector<8x8xbf16>
    %cst_23 = arith.constant dense<0.000000e+00> : vector<8x16xf32>
    %51 = tpu.matmul %50, %34, %cst_23 {dimension_numbers = #tpu.dot_dimension_numbers<[1], [0], [0], [1], [0, 0, 1, 1], [], []>} : vector<8x8xbf16>, vector<8x16xbf16>, vector<8x16xf32> -> vector<8x16xf32>
    %52 = vector.extract_strided_slice %8 {offsets = [0, 16], sizes = [8, 16], strides = [1, 1]} : vector<8x32xf32> to vector<8x16xf32>
    %53 = arith.truncf %52 : vector<8x16xf32> to vector<8x16xbf16>
    %54 = vector.extract_strided_slice %14 {offsets = [0, 16], sizes = [8, 16], strides = [1, 1]} : vector<8x32xf32> to vector<8x16xf32>
    %55 = arith.truncf %54 : vector<8x16xf32> to vector<8x16xbf16>
    %56 = vector.extract_strided_slice %15 {offsets = [0, 16], sizes = [8, 16], strides = [1, 1]} : vector<8x32xf32> to vector<8x16xf32>
    %57 = arith.truncf %56 : vector<8x16xf32> to vector<8x16xbf16>
    %cst_24 = arith.constant dense<0.000000e+00> : vector<8x8xf32>
    %58 = tpu.matmul %53, %55, %cst_24 {dimension_numbers = #tpu.dot_dimension_numbers<[1], [1], [0], [0], [0, 0, 1, 0], [], []>} : vector<8x16xbf16>, vector<8x16xbf16>, vector<8x8xf32> -> vector<8x8xf32>
    %cst_25 = arith.constant 2.500000e-01 : f32
    %59 = vector.broadcast %cst_25 : f32 to vector<8x8xf32>
    %60 = arith.mulf %58, %59 : vector<8x8xf32>
    %cst_26 = arith.constant -1.000000e+30 : f32
    %61 = vector.broadcast %cst_26 : f32 to vector<8x8xf32>
    %62 = arith.select %28, %61, %60 : vector<8x8xi1>, vector<8x8xf32>
    %cst_27 = arith.constant dense<0xFF800000> : vector<8xf32>
    %63 = vector.multi_reduction <maximumf>, %62, %cst_27 [1] : vector<8x8xf32> to vector<8xf32>
    %64 = vector.shape_cast %63 : vector<8xf32> to vector<8x1xf32>
    %65 = vector.broadcast %64 : vector<8x1xf32> to vector<8x8xf32>
    %66 = arith.subf %62, %65 : vector<8x8xf32>
    %67 = math.exp %66 : vector<8x8xf32>
    %cst_28 = arith.constant dense<0.000000e+00> : vector<8xf32>
    %68 = vector.multi_reduction <add>, %67, %cst_28 [1] : vector<8x8xf32> to vector<8xf32>
    %69 = vector.shape_cast %68 : vector<8xf32> to vector<8x1xf32>
    %70 = tpu.reciprocal %69 {approx = true} : vector<8x1xf32> -> vector<8x1xf32>
    %71 = vector.broadcast %70 : vector<8x1xf32> to vector<8x8xf32>
    %72 = arith.mulf %67, %71 : vector<8x8xf32>
    %73 = arith.truncf %72 : vector<8x8xf32> to vector<8x8xbf16>
    %cst_29 = arith.constant dense<0.000000e+00> : vector<8x16xf32>
    %74 = tpu.matmul %73, %57, %cst_29 {dimension_numbers = #tpu.dot_dimension_numbers<[1], [0], [0], [1], [0, 0, 1, 1], [], []>} : vector<8x8xbf16>, vector<8x16xbf16>, vector<8x16xf32> -> vector<8x16xf32>
    %75 = tpu.concatenate %51, %74 in 1 : vector<8x16xf32>, vector<8x16xf32> -> vector<8x32xf32>
    %76 = arith.truncf %75 : vector<8x32xf32> to vector<8x32xbf16>
    %c0_30 = arith.constant 0 : index
    %c0_31 = arith.constant 0 : index
    %77 = vector.load %arg10[%c0_30, %c0_31] : memref<32x32xbf16, #tpu.memory_space<vmem>>, vector<32x32xbf16>
    %cst_32 = arith.constant dense<0.000000e+00> : vector<8x32xf32>
    %78 = tpu.matmul %76, %77, %cst_32 {dimension_numbers = #tpu.dot_dimension_numbers<[1], [0], [0], [1], [0, 0, 1, 1], [], []>} : vector<8x32xbf16>, vector<32x32xbf16>, vector<8x32xf32> -> vector<8x32xf32>
    %c0_33 = arith.constant 0 : index
    %c0_34 = arith.constant 0 : index
    %79 = vector.load %arg11[%c0_33, %c0_34] : memref<1x32xf32, #tpu.memory_space<vmem>>, vector<1x32xf32>
    %80 = vector.broadcast %79 : vector<1x32xf32> to vector<8x32xf32>
    %81 = arith.addf %78, %80 : vector<8x32xf32>
    %82 = arith.extf %1 : vector<8x32xbf16> to vector<8x32xf32>
    %83 = arith.addf %81, %82 : vector<8x32xf32>
    %cst_35 = arith.constant dense<0.000000e+00> : vector<8xf32>
    %84 = vector.multi_reduction <add>, %83, %cst_35 [1] : vector<8x32xf32> to vector<8xf32>
    %85 = vector.shape_cast %84 : vector<8xf32> to vector<8x1xf32>
    %cst_36 = arith.constant 3.200000e+01 : f32
    %86 = vector.broadcast %cst_36 : f32 to vector<8x1xf32>
    %87 = arith.divf %85, %86 : vector<8x1xf32>
    %88 = vector.broadcast %87 : vector<8x1xf32> to vector<8x32xf32>
    %89 = arith.subf %83, %88 : vector<8x32xf32>
    %90 = arith.mulf %89, %89 : vector<8x32xf32>
    %cst_37 = arith.constant dense<0.000000e+00> : vector<8xf32>
    %91 = vector.multi_reduction <add>, %90, %cst_37 [1] : vector<8x32xf32> to vector<8xf32>
    %92 = vector.shape_cast %91 : vector<8xf32> to vector<8x1xf32>
    %cst_38 = arith.constant 3.200000e+01 : f32
    %93 = vector.broadcast %cst_38 : f32 to vector<8x1xf32>
    %94 = arith.divf %92, %93 : vector<8x1xf32>
    %95 = vector.broadcast %87 : vector<8x1xf32> to vector<8x32xf32>
    %96 = arith.subf %83, %95 : vector<8x32xf32>
    %cst_39 = arith.constant 9.99999974E-6 : f32
    %97 = vector.broadcast %cst_39 : f32 to vector<8x1xf32>
    %98 = arith.addf %94, %97 : vector<8x1xf32>
    %99 = math.rsqrt %98 : vector<8x1xf32>
    %100 = vector.broadcast %99 : vector<8x1xf32> to vector<8x32xf32>
    %101 = arith.mulf %96, %100 : vector<8x32xf32>
    %c0_40 = arith.constant 0 : index
    %c0_41 = arith.constant 0 : index
    %102 = vector.load %arg12[%c0_40, %c0_41] : memref<1x32xf32, #tpu.memory_space<vmem>>, vector<1x32xf32>
    %103 = vector.broadcast %102 : vector<1x32xf32> to vector<8x32xf32>
    %104 = arith.mulf %101, %103 : vector<8x32xf32>
    %c0_42 = arith.constant 0 : index
    %c0_43 = arith.constant 0 : index
    %105 = vector.load %arg13[%c0_42, %c0_43] : memref<1x32xf32, #tpu.memory_space<vmem>>, vector<1x32xf32>
    %106 = vector.broadcast %105 : vector<1x32xf32> to vector<8x32xf32>
    %107 = arith.addf %104, %106 : vector<8x32xf32>
    %c0_44 = arith.constant 0 : index
    %c0_45 = arith.constant 0 : index
    %c0_46 = arith.constant 0 : index
    %108 = vector.load %arg5[%c0_44, %c0_45, %c0_46] : memref<1x8x1xf32, #tpu.memory_space<vmem>>, vector<1x8x1xf32>
    %109 = vector.shape_cast %108 : vector<1x8x1xf32> to vector<8x1xf32>
    %110 = vector.broadcast %109 : vector<8x1xf32> to vector<8x32xf32>
    %111 = arith.mulf %107, %110 : vector<8x32xf32>
    %112 = arith.truncf %111 : vector<8x32xf32> to vector<8x32xbf16>
    %c0_47 = arith.constant 0 : index
    %c0_48 = arith.constant 0 : index
    %c0_49 = arith.constant 0 : index
    %113 = vector.load %arg14[%c0_47, %c0_48, %c0_49] : memref<1x8x32xbf16, #tpu.memory_space<vmem>>, vector<1x8x32xbf16>
    %114 = vector.shape_cast %113 : vector<1x8x32xbf16> to vector<8x32xbf16>
    %115 = vector.shape_cast %112 : vector<8x32xbf16> to vector<1x8x32xbf16>
    tpu.vector_store %arg14[%c0_47, %c0_48, %c0_49], %115 {strides = array<i32>} : memref<1x8x32xbf16, #tpu.memory_space<vmem>>, vector<1x8x32xbf16>,
    return
  }
  func.func @transform_0(%arg0: i32, %arg1: i32) -> (i32, i32, i32) {
    %c0_i32 = arith.constant 0 : i32
    %c0_i32_0 = arith.constant 0 : i32
    return %arg0, %arg1, %c0_i32 : i32, i32, i32
  }
  func.func @transform_1(%arg0: i32, %arg1: i32) -> (i32, i32, i32) {
    %c0_i32 = arith.constant 0 : i32
    %c0_i32_0 = arith.constant 0 : i32
    %c0_i32_1 = arith.constant 0 : i32
    return %arg0, %c0_i32, %c0_i32_0 : i32, i32, i32
  }
  func.func @transform_2(%arg0: i32, %arg1: i32) -> (i32, i32, i32) {
    %c0_i32 = arith.constant 0 : i32
    %c0_i32_0 = arith.constant 0 : i32
    %c0_i32_1 = arith.constant 0 : i32
    return %arg0, %c0_i32, %c0_i32_0 : i32, i32, i32
  }
  func.func @transform_3(%arg0: i32, %arg1: i32) -> (i32, i32, i32) {
    %c0_i32 = arith.constant 0 : i32
    %c0_i32_0 = arith.constant 0 : i32
    return %arg0, %arg1, %c0_i32 : i32, i32, i32
  }
  func.func @transform_4(%arg0: i32, %arg1: i32) -> (i32, i32) {
    %c0_i32 = arith.constant 0 : i32
    %c0_i32_0 = arith.constant 0 : i32
    %c0_i32_1 = arith.constant 0 : i32
    return %c0_i32, %c0_i32_0 : i32, i32
  }
  func.func @transform_5(%arg0: i32, %arg1: i32) -> (i32, i32) {
    %c0_i32 = arith.constant 0 : i32
    %c0_i32_0 = arith.constant 0 : i32
    %c0_i32_1 = arith.constant 0 : i32
    return %c0_i32, %c0_i32_0 : i32, i32
  }
  func.func @transform_6(%arg0: i32, %arg1: i32) -> (i32, i32) {
    %c0_i32 = arith.constant 0 : i32
    %c0_i32_0 = arith.constant 0 : i32
    %c0_i32_1 = arith.constant 0 : i32
    return %c0_i32, %c0_i32_0 : i32, i32
  }
  func.func @transform_7(%arg0: i32, %arg1: i32) -> (i32, i32) {
    %c0_i32 = arith.constant 0 : i32
    %c0_i32_0 = arith.constant 0 : i32
    %c0_i32_1 = arith.constant 0 : i32
    return %c0_i32, %c0_i32_0 : i32, i32
  }
  func.func @transform_8(%arg0: i32, %arg1: i32) -> (i32, i32) {
    %c0_i32 = arith.constant 0 : i32
    %c0_i32_0 = arith.constant 0 : i32
    %c0_i32_1 = arith.constant 0 : i32
    return %c0_i32, %c0_i32_0 : i32, i32
  }
  func.func @transform_9(%arg0: i32, %arg1: i32) -> (i32, i32) {
    %c0_i32 = arith.constant 0 : i32
    %c0_i32_0 = arith.constant 0 : i32
    %c0_i32_1 = arith.constant 0 : i32
    return %c0_i32, %c0_i32_0 : i32, i32
  }
  func.func @transform_10(%arg0: i32, %arg1: i32) -> (i32, i32) {
    %c0_i32 = arith.constant 0 : i32
    %c0_i32_0 = arith.constant 0 : i32
    %c0_i32_1 = arith.constant 0 : i32
    return %c0_i32, %c0_i32_0 : i32, i32
  }
  func.func @transform_11(%arg0: i32, %arg1: i32) -> (i32, i32) {
    %c0_i32 = arith.constant 0 : i32
    %c0_i32_0 = arith.constant 0 : i32
    %c0_i32_1 = arith.constant 0 : i32
    return %c0_i32, %c0_i32_0 : i32, i32
  }
  func.func @transform_12(%arg0: i32, %arg1: i32) -> (i32, i32, i32) {
    %c0_i32 = arith.constant 0 : i32
    %c0_i32_0 = arith.constant 0 : i32
    return %arg0, %arg1, %c0_i32 : i32, i32, i32
  }
}

module attributes {stable_mosaic.version = 11 : i64} {
  func.func @_mha_kernel(%arg0: i32, %arg1: i32, %arg2: memref<1x8x32xbf16, #tpu.memory_space<vmem>>, %arg3: memref<1x8x32xbf16, #tpu.memory_space<vmem>>, %arg4: memref<1x1x8xf32, #tpu.memory_space<vmem>>, %arg5: memref<1x8x1xf32, #tpu.memory_space<vmem>>, %arg6: memref<32x32xbf16, #tpu.memory_space<vmem>>, %arg7: memref<1x32xf32, #tpu.memory_space<vmem>>, %arg8: memref<32x64xbf16, #tpu.memory_space<vmem>>, %arg9: memref<1x64xf32, #tpu.memory_space<vmem>>, %arg10: memref<32x32xbf16, #tpu.memory_space<vmem>>, %arg11: memref<1x32xf32, #tpu.memory_space<vmem>>, %arg12: memref<1x32xf32, #tpu.memory_space<vmem>>, %arg13: memref<1x32xf32, #tpu.memory_space<vmem>>, %arg14: memref<1x8x32xbf16, #tpu.memory_space<vmem>>) attributes {dimension_semantics = [#tpu.dimension_semantics<parallel>, #tpu.dimension_semantics<parallel>], iteration_bounds = array<i64: 2, 1>, scalar_prefetch = 0 : i64, scratch_operands = 0 : i64, tpu.core_type = #tpu.core_type<tc>, window_params = [{transform_indices = @transform_0, window_bounds = array<i64: 1, 8, 32>}, {transform_indices = @transform_1, window_bounds = array<i64: 1, 8, 32>}, {transform_indices = @transform_2, window_bounds = array<i64: 1, 1, 8>}, {transform_indices = @transform_3, window_bounds = array<i64: 1, 8, 1>}, {pipeline_mode = #tpu.pipeline_mode<synchronous>, transform_indices = @transform_4, window_bounds = array<i64: 32, 32>}, {pipeline_mode = #tpu.pipeline_mode<synchronous>, transform_indices = @transform_5, window_bounds = array<i64: 1, 32>}, {pipeline_mode = #tpu.pipeline_mode<synchronous>, transform_indices = @transform_6, window_bounds = array<i64: 32, 64>}, {pipeline_mode = #tpu.pipeline_mode<synchronous>, transform_indices = @transform_7, window_bounds = array<i64: 1, 64>}, {pipeline_mode = #tpu.pipeline_mode<synchronous>, transform_indices = @transform_8, window_bounds = array<i64: 32, 32>}, {pipeline_mode = #tpu.pipeline_mode<synchronous>, transform_indices = @transform_9, window_bounds = array<i64: 1, 32>}, {pipeline_mode = #tpu.pipeline_mode<synchronous>, transform_indices = @transform_10, window_bounds = array<i64: 1, 32>}, {pipeline_mode = #tpu.pipeline_mode<synchronous>, transform_indices = @transform_11, window_bounds = array<i64: 1, 32>}, {transform_indices = @transform_12, window_bounds = array<i64: 1, 8, 32>}]} {
    %c0 = arith.constant 0 : index
    %c0_0 = arith.constant 0 : index
    %c0_1 = arith.constant 0 : index
    %0 = vector.load %arg2[%c0, %c0_0, %c0_1] : memref<1x8x32xbf16, #tpu.memory_space<vmem>>, vector<1x8x32xbf16>
    %1 = vector.shape_cast %0 : vector<1x8x32xbf16> to vector<8x32xbf16>
    %c0_2 = arith.constant 0 : index
    %c0_3 = arith.constant 0 : index
    %c0_4 = arith.constant 0 : index
    %2 = vector.load %arg3[%c0_2, %c0_3, %c0_4] : memref<1x8x32xbf16, #tpu.memory_space<vmem>>, vector<1x8x32xbf16>
    %3 = vector.shape_cast %2 : vector<1x8x32xbf16> to vector<8x32xbf16>
    %c0_5 = arith.constant 0 : index
    %c0_6 = arith.constant 0 : index
    %4 = vector.load %arg6[%c0_5, %c0_6] : memref<32x32xbf16, #tpu.memory_space<vmem>>, vector<32x32xbf16>
    %cst = arith.constant dense<0.000000e+00> : vector<8x32xf32>
    %5 = tpu.matmul %1, %4, %cst {dimension_numbers = #tpu.dot_dimension_numbers<[1], [0], [0], [1], [0, 0, 1, 1], [], []>} : vector<8x32xbf16>, vector<32x32xbf16>, vector<8x32xf32> -> vector<8x32xf32>
    %c0_7 = arith.constant 0 : index
    %c0_8 = arith.constant 0 : index
    %6 = vector.load %arg7[%c0_7, %c0_8] : memref<1x32xf32, #tpu.memory_space<vmem>>, vector<1x32xf32>
    %7 = vector.broadcast %6 : vector<1x32xf32> to vector<8x32xf32>
    %8 = arith.addf %5, %7 : vector<8x32xf32>
    %c0_9 = arith.constant 0 : index
    %c0_10 = arith.constant 0 : index
    %9 = vector.load %arg8[%c0_9, %c0_10] : memref<32x64xbf16, #tpu.memory_space<vmem>>, vector<32x64xbf16>
    %cst_11 = arith.constant dense<0.000000e+00> : vector<8x64xf32>
    %10 = tpu.matmul %3, %9, %cst_11 {dimension_numbers = #tpu.dot_dimension_numbers<[1], [0], [0], [1], [0, 0, 1, 1], [], []>} : vector<8x32xbf16>, vector<32x64xbf16>, vector<8x64xf32> -> vector<8x64xf32>
    %c0_12 = arith.constant 0 : index
    %c0_13 = arith.constant 0 : index
    %11 = vector.load %arg9[%c0_12, %c0_13] : memref<1x64xf32, #tpu.memory_space<vmem>>, vector<1x64xf32>
    %12 = vector.broadcast %11 : vector<1x64xf32> to vector<8x64xf32>
    %13 = arith.addf %10, %12 : vector<8x64xf32>
    %14 = vector.extract_strided_slice %13 {offsets = [0, 0], sizes = [8, 32], strides = [1, 1]} : vector<8x64xf32> to vector<8x32xf32>
    %15 = vector.extract_strided_slice %13 {offsets = [0, 32], sizes = [8, 32], strides = [1, 1]} : vector<8x64xf32> to vector<8x32xf32>
    %c0_14 = arith.constant 0 : index
    %c0_15 = arith.constant 0 : index
    %c0_16 = arith.constant 0 : index
    %16 = vector.load %arg4[%c0_14, %c0_15, %c0_16] : memref<1x1x8xf32, #tpu.memory_space<vmem>>, vector<1x1x8xf32>
    %17 = vector.shape_cast %16 : vector<1x1x8xf32> to vector<1x8xf32>
    %cst_17 = arith.constant 0.000000e+00 : f32
    %18 = vector.broadcast %cst_17 : f32 to vector<1x8xf32>
    %19 = arith.cmpf ogt, %17, %18 : vector<1x8xf32>
    %20 = vector.shape_cast %19 : vector<1x8xi1> to vector<1x8xi1>
    %21 = vector.broadcast %20 : vector<1x8xi1> to vector<8x8xi1>
    %22 = vector.extract_strided_slice %8 {offsets = [0, 0], sizes = [8, 16], strides = [1, 1]} : vector<8x32xf32> to vector<8x16xf32>
    %23 = arith.truncf %22 : vector<8x16xf32> to vector<8x16xbf16>
    %24 = vector.extract_strided_slice %14 {offsets = [0, 0], sizes = [8, 16], strides = [1, 1]} : vector<8x32xf32> to vector<8x16xf32>
    %25 = arith.truncf %24 : vector<8x16xf32> to vector<8x16xbf16>
    %26 = vector.extract_strided_slice %15 {offsets = [0, 0], sizes = [8, 16], strides = [1, 1]} : vector<8x32xf32> to vector<8x16xf32>
    %27 = arith.truncf %26 : vector<8x16xf32> to vector<8x16xbf16>
    %cst_18 = arith.constant dense<0.000000e+00> : vector<8x8xf32>
    %28 = tpu.matmul %23, %25, %cst_18 {dimension_numbers = #tpu.dot_dimension_numbers<[1], [1], [0], [0], [0, 0, 1, 0], [], []>} : vector<8x16xbf16>, vector<8x16xbf16>, vector<8x8xf32> -> vector<8x8xf32>
    %cst_19 = arith.constant 2.500000e-01 : f32
    %29 = vector.broadcast %cst_19 : f32 to vector<8x8xf32>
    %30 = arith.mulf %28, %29 : vector<8x8xf32>
    %cst_20 = arith.constant -1.000000e+30 : f32
    %31 = vector.broadcast %cst_20 : f32 to vector<8x8xf32>
    %32 = arith.select %21, %31, %30 : vector<8x8xi1>, vector<8x8xf32>
    %cst_21 = arith.constant dense<0xFF800000> : vector<8xf32>
    %33 = vector.multi_reduction <maximumf>, %32, %cst_21 [1] : vector<8x8xf32> to vector<8xf32>
    %34 = vector.shape_cast %33 : vector<8xf32> to vector<8x1xf32>
    %35 = vector.broadcast %34 : vector<8x1xf32> to vector<8x8xf32>
    %36 = arith.subf %32, %35 : vector<8x8xf32>
    %37 = math.exp %36 : vector<8x8xf32>
    %cst_22 = arith.constant dense<0.000000e+00> : vector<8xf32>
    %38 = vector.multi_reduction <add>, %37, %cst_22 [1] : vector<8x8xf32> to vector<8xf32>
    %39 = vector.shape_cast %38 : vector<8xf32> to vector<8x1xf32>
    %40 = tpu.reciprocal %39 {approx = true} : vector<8x1xf32> -> vector<8x1xf32>
    %41 = vector.broadcast %40 : vector<8x1xf32> to vector<8x8xf32>
    %42 = arith.mulf %37, %41 : vector<8x8xf32>
    %43 = arith.truncf %42 : vector<8x8xf32> to vector<8x8xbf16>
    %cst_23 = arith.constant dense<0.000000e+00> : vector<8x16xf32>
    %44 = tpu.matmul %43, %27, %cst_23 {dimension_numbers = #tpu.dot_dimension_numbers<[1], [0], [0], [1], [0, 0, 1, 1], [], []>} : vector<8x8xbf16>, vector<8x16xbf16>, vector<8x16xf32> -> vector<8x16xf32>
    %45 = vector.extract_strided_slice %8 {offsets = [0, 16], sizes = [8, 16], strides = [1, 1]} : vector<8x32xf32> to vector<8x16xf32>
    %46 = arith.truncf %45 : vector<8x16xf32> to vector<8x16xbf16>
    %47 = vector.extract_strided_slice %14 {offsets = [0, 16], sizes = [8, 16], strides = [1, 1]} : vector<8x32xf32> to vector<8x16xf32>
    %48 = arith.truncf %47 : vector<8x16xf32> to vector<8x16xbf16>
    %49 = vector.extract_strided_slice %15 {offsets = [0, 16], sizes = [8, 16], strides = [1, 1]} : vector<8x32xf32> to vector<8x16xf32>
    %50 = arith.truncf %49 : vector<8x16xf32> to vector<8x16xbf16>
    %cst_24 = arith.constant dense<0.000000e+00> : vector<8x8xf32>
    %51 = tpu.matmul %46, %48, %cst_24 {dimension_numbers = #tpu.dot_dimension_numbers<[1], [1], [0], [0], [0, 0, 1, 0], [], []>} : vector<8x16xbf16>, vector<8x16xbf16>, vector<8x8xf32> -> vector<8x8xf32>
    %cst_25 = arith.constant 2.500000e-01 : f32
    %52 = vector.broadcast %cst_25 : f32 to vector<8x8xf32>
    %53 = arith.mulf %51, %52 : vector<8x8xf32>
    %cst_26 = arith.constant -1.000000e+30 : f32
    %54 = vector.broadcast %cst_26 : f32 to vector<8x8xf32>
    %55 = arith.select %21, %54, %53 : vector<8x8xi1>, vector<8x8xf32>
    %cst_27 = arith.constant dense<0xFF800000> : vector<8xf32>
    %56 = vector.multi_reduction <maximumf>, %55, %cst_27 [1] : vector<8x8xf32> to vector<8xf32>
    %57 = vector.shape_cast %56 : vector<8xf32> to vector<8x1xf32>
    %58 = vector.broadcast %57 : vector<8x1xf32> to vector<8x8xf32>
    %59 = arith.subf %55, %58 : vector<8x8xf32>
    %60 = math.exp %59 : vector<8x8xf32>
    %cst_28 = arith.constant dense<0.000000e+00> : vector<8xf32>
    %61 = vector.multi_reduction <add>, %60, %cst_28 [1] : vector<8x8xf32> to vector<8xf32>
    %62 = vector.shape_cast %61 : vector<8xf32> to vector<8x1xf32>
    %63 = tpu.reciprocal %62 {approx = true} : vector<8x1xf32> -> vector<8x1xf32>
    %64 = vector.broadcast %63 : vector<8x1xf32> to vector<8x8xf32>
    %65 = arith.mulf %60, %64 : vector<8x8xf32>
    %66 = arith.truncf %65 : vector<8x8xf32> to vector<8x8xbf16>
    %cst_29 = arith.constant dense<0.000000e+00> : vector<8x16xf32>
    %67 = tpu.matmul %66, %50, %cst_29 {dimension_numbers = #tpu.dot_dimension_numbers<[1], [0], [0], [1], [0, 0, 1, 1], [], []>} : vector<8x8xbf16>, vector<8x16xbf16>, vector<8x16xf32> -> vector<8x16xf32>
    %68 = tpu.concatenate %44, %67 in 1 : vector<8x16xf32>, vector<8x16xf32> -> vector<8x32xf32>
    %69 = arith.truncf %68 : vector<8x32xf32> to vector<8x32xbf16>
    %c0_30 = arith.constant 0 : index
    %c0_31 = arith.constant 0 : index
    %70 = vector.load %arg10[%c0_30, %c0_31] : memref<32x32xbf16, #tpu.memory_space<vmem>>, vector<32x32xbf16>
    %cst_32 = arith.constant dense<0.000000e+00> : vector<8x32xf32>
    %71 = tpu.matmul %69, %70, %cst_32 {dimension_numbers = #tpu.dot_dimension_numbers<[1], [0], [0], [1], [0, 0, 1, 1], [], []>} : vector<8x32xbf16>, vector<32x32xbf16>, vector<8x32xf32> -> vector<8x32xf32>
    %c0_33 = arith.constant 0 : index
    %c0_34 = arith.constant 0 : index
    %72 = vector.load %arg11[%c0_33, %c0_34] : memref<1x32xf32, #tpu.memory_space<vmem>>, vector<1x32xf32>
    %73 = vector.broadcast %72 : vector<1x32xf32> to vector<8x32xf32>
    %74 = arith.addf %71, %73 : vector<8x32xf32>
    %75 = arith.extf %1 : vector<8x32xbf16> to vector<8x32xf32>
    %76 = arith.addf %74, %75 : vector<8x32xf32>
    %cst_35 = arith.constant dense<0.000000e+00> : vector<8xf32>
    %77 = vector.multi_reduction <add>, %76, %cst_35 [1] : vector<8x32xf32> to vector<8xf32>
    %78 = vector.shape_cast %77 : vector<8xf32> to vector<8x1xf32>
    %cst_36 = arith.constant 3.200000e+01 : f32
    %79 = vector.broadcast %cst_36 : f32 to vector<8x1xf32>
    %80 = arith.divf %78, %79 : vector<8x1xf32>
    %81 = vector.broadcast %80 : vector<8x1xf32> to vector<8x32xf32>
    %82 = arith.subf %76, %81 : vector<8x32xf32>
    %83 = arith.mulf %82, %82 : vector<8x32xf32>
    %cst_37 = arith.constant dense<0.000000e+00> : vector<8xf32>
    %84 = vector.multi_reduction <add>, %83, %cst_37 [1] : vector<8x32xf32> to vector<8xf32>
    %85 = vector.shape_cast %84 : vector<8xf32> to vector<8x1xf32>
    %cst_38 = arith.constant 3.200000e+01 : f32
    %86 = vector.broadcast %cst_38 : f32 to vector<8x1xf32>
    %87 = arith.divf %85, %86 : vector<8x1xf32>
    %88 = vector.broadcast %80 : vector<8x1xf32> to vector<8x32xf32>
    %89 = arith.subf %76, %88 : vector<8x32xf32>
    %cst_39 = arith.constant 9.99999974E-6 : f32
    %90 = vector.broadcast %cst_39 : f32 to vector<8x1xf32>
    %91 = arith.addf %87, %90 : vector<8x1xf32>
    %92 = math.rsqrt %91 : vector<8x1xf32>
    %93 = vector.broadcast %92 : vector<8x1xf32> to vector<8x32xf32>
    %94 = arith.mulf %89, %93 : vector<8x32xf32>
    %c0_40 = arith.constant 0 : index
    %c0_41 = arith.constant 0 : index
    %95 = vector.load %arg12[%c0_40, %c0_41] : memref<1x32xf32, #tpu.memory_space<vmem>>, vector<1x32xf32>
    %96 = vector.broadcast %95 : vector<1x32xf32> to vector<8x32xf32>
    %97 = arith.mulf %94, %96 : vector<8x32xf32>
    %c0_42 = arith.constant 0 : index
    %c0_43 = arith.constant 0 : index
    %98 = vector.load %arg13[%c0_42, %c0_43] : memref<1x32xf32, #tpu.memory_space<vmem>>, vector<1x32xf32>
    %99 = vector.broadcast %98 : vector<1x32xf32> to vector<8x32xf32>
    %100 = arith.addf %97, %99 : vector<8x32xf32>
    %c0_44 = arith.constant 0 : index
    %c0_45 = arith.constant 0 : index
    %c0_46 = arith.constant 0 : index
    %101 = vector.load %arg5[%c0_44, %c0_45, %c0_46] : memref<1x8x1xf32, #tpu.memory_space<vmem>>, vector<1x8x1xf32>
    %102 = vector.shape_cast %101 : vector<1x8x1xf32> to vector<8x1xf32>
    %103 = vector.broadcast %102 : vector<8x1xf32> to vector<8x32xf32>
    %104 = arith.mulf %100, %103 : vector<8x32xf32>
    %105 = arith.truncf %104 : vector<8x32xf32> to vector<8x32xbf16>
    %c0_47 = arith.constant 0 : index
    %c0_48 = arith.constant 0 : index
    %c0_49 = arith.constant 0 : index
    %106 = vector.load %arg14[%c0_47, %c0_48, %c0_49] : memref<1x8x32xbf16, #tpu.memory_space<vmem>>, vector<1x8x32xbf16>
    %107 = vector.shape_cast %106 : vector<1x8x32xbf16> to vector<8x32xbf16>
    %108 = vector.shape_cast %105 : vector<8x32xbf16> to vector<1x8x32xbf16>
    tpu.vector_store %arg14[%c0_47, %c0_48, %c0_49], %108 {strides = array<i32>} : memref<1x8x32xbf16, #tpu.memory_space<vmem>>, vector<1x8x32xbf16>,
    return
  }
  func.func @transform_0(%arg0: i32, %arg1: i32) -> (i32, i32, i32) {
    %c0_i32 = arith.constant 0 : i32
    %c0_i32_0 = arith.constant 0 : i32
    return %arg0, %arg1, %c0_i32 : i32, i32, i32
  }
  func.func @transform_1(%arg0: i32, %arg1: i32) -> (i32, i32, i32) {
    %c0_i32 = arith.constant 0 : i32
    %c0_i32_0 = arith.constant 0 : i32
    %c0_i32_1 = arith.constant 0 : i32
    return %arg0, %c0_i32, %c0_i32_0 : i32, i32, i32
  }
  func.func @transform_2(%arg0: i32, %arg1: i32) -> (i32, i32, i32) {
    %c0_i32 = arith.constant 0 : i32
    %c0_i32_0 = arith.constant 0 : i32
    %c0_i32_1 = arith.constant 0 : i32
    return %arg0, %c0_i32, %c0_i32_0 : i32, i32, i32
  }
  func.func @transform_3(%arg0: i32, %arg1: i32) -> (i32, i32, i32) {
    %c0_i32 = arith.constant 0 : i32
    %c0_i32_0 = arith.constant 0 : i32
    return %arg0, %arg1, %c0_i32 : i32, i32, i32
  }
  func.func @transform_4(%arg0: i32, %arg1: i32) -> (i32, i32) {
    %c0_i32 = arith.constant 0 : i32
    %c0_i32_0 = arith.constant 0 : i32
    %c0_i32_1 = arith.constant 0 : i32
    return %c0_i32, %c0_i32_0 : i32, i32
  }
  func.func @transform_5(%arg0: i32, %arg1: i32) -> (i32, i32) {
    %c0_i32 = arith.constant 0 : i32
    %c0_i32_0 = arith.constant 0 : i32
    %c0_i32_1 = arith.constant 0 : i32
    return %c0_i32, %c0_i32_0 : i32, i32
  }
  func.func @transform_6(%arg0: i32, %arg1: i32) -> (i32, i32) {
    %c0_i32 = arith.constant 0 : i32
    %c0_i32_0 = arith.constant 0 : i32
    %c0_i32_1 = arith.constant 0 : i32
    return %c0_i32, %c0_i32_0 : i32, i32
  }
  func.func @transform_7(%arg0: i32, %arg1: i32) -> (i32, i32) {
    %c0_i32 = arith.constant 0 : i32
    %c0_i32_0 = arith.constant 0 : i32
    %c0_i32_1 = arith.constant 0 : i32
    return %c0_i32, %c0_i32_0 : i32, i32
  }
  func.func @transform_8(%arg0: i32, %arg1: i32) -> (i32, i32) {
    %c0_i32 = arith.constant 0 : i32
    %c0_i32_0 = arith.constant 0 : i32
    %c0_i32_1 = arith.constant 0 : i32
    return %c0_i32, %c0_i32_0 : i32, i32
  }
  func.func @transform_9(%arg0: i32, %arg1: i32) -> (i32, i32) {
    %c0_i32 = arith.constant 0 : i32
    %c0_i32_0 = arith.constant 0 : i32
    %c0_i32_1 = arith.constant 0 : i32
    return %c0_i32, %c0_i32_0 : i32, i32
  }
  func.func @transform_10(%arg0: i32, %arg1: i32) -> (i32, i32) {
    %c0_i32 = arith.constant 0 : i32
    %c0_i32_0 = arith.constant 0 : i32
    %c0_i32_1 = arith.constant 0 : i32
    return %c0_i32, %c0_i32_0 : i32, i32
  }
  func.func @transform_11(%arg0: i32, %arg1: i32) -> (i32, i32) {
    %c0_i32 = arith.constant 0 : i32
    %c0_i32_0 = arith.constant 0 : i32
    %c0_i32_1 = arith.constant 0 : i32
    return %c0_i32, %c0_i32_0 : i32, i32
  }
  func.func @transform_12(%arg0: i32, %arg1: i32) -> (i32, i32, i32) {
    %c0_i32 = arith.constant 0 : i32
    %c0_i32_0 = arith.constant 0 : i32
    return %arg0, %arg1, %c0_i32 : i32, i32, i32
  }
}

module attributes {stable_mosaic.version = 11 : i64} {
  func.func @_ffn_ln_kernel(%arg0: i32, %arg1: memref<16x32xbf16, #tpu.memory_space<vmem>>, %arg2: memref<32x64xbf16, #tpu.memory_space<vmem>>, %arg3: memref<1x64xf32, #tpu.memory_space<vmem>>, %arg4: memref<64x32xbf16, #tpu.memory_space<vmem>>, %arg5: memref<1x32xf32, #tpu.memory_space<vmem>>, %arg6: memref<1x32xf32, #tpu.memory_space<vmem>>, %arg7: memref<1x32xf32, #tpu.memory_space<vmem>>, %arg8: memref<16x1xf32, #tpu.memory_space<vmem>>, %arg9: memref<16x32xbf16, #tpu.memory_space<vmem>>) attributes {dimension_semantics = [#tpu.dimension_semantics<parallel>], iteration_bounds = array<i64: 1>, scalar_prefetch = 0 : i64, scratch_operands = 0 : i64, tpu.core_type = #tpu.core_type<tc>, window_params = [{transform_indices = @transform_0, window_bounds = array<i64: 16, 32>}, {pipeline_mode = #tpu.pipeline_mode<synchronous>, transform_indices = @transform_1, window_bounds = array<i64: 32, 64>}, {pipeline_mode = #tpu.pipeline_mode<synchronous>, transform_indices = @transform_2, window_bounds = array<i64: 1, 64>}, {pipeline_mode = #tpu.pipeline_mode<synchronous>, transform_indices = @transform_3, window_bounds = array<i64: 64, 32>}, {pipeline_mode = #tpu.pipeline_mode<synchronous>, transform_indices = @transform_4, window_bounds = array<i64: 1, 32>}, {pipeline_mode = #tpu.pipeline_mode<synchronous>, transform_indices = @transform_5, window_bounds = array<i64: 1, 32>}, {pipeline_mode = #tpu.pipeline_mode<synchronous>, transform_indices = @transform_6, window_bounds = array<i64: 1, 32>}, {transform_indices = @transform_7, window_bounds = array<i64: 16, 1>}, {transform_indices = @transform_8, window_bounds = array<i64: 16, 32>}]} {
    %c0 = arith.constant 0 : index
    %c0_0 = arith.constant 0 : index
    %0 = vector.load %arg1[%c0, %c0_0] : memref<16x32xbf16, #tpu.memory_space<vmem>>, vector<16x32xbf16>
    %c0_1 = arith.constant 0 : index
    %c0_2 = arith.constant 0 : index
    %1 = vector.load %arg2[%c0_1, %c0_2] : memref<32x64xbf16, #tpu.memory_space<vmem>>, vector<32x64xbf16>
    %cst = arith.constant dense<0.000000e+00> : vector<16x64xf32>
    %2 = tpu.matmul %0, %1, %cst {dimension_numbers = #tpu.dot_dimension_numbers<[1], [0], [0], [1], [0, 0, 1, 1], [], []>} : vector<16x32xbf16>, vector<32x64xbf16>, vector<16x64xf32> -> vector<16x64xf32>
    %c0_3 = arith.constant 0 : index
    %c0_4 = arith.constant 0 : index
    %3 = vector.load %arg3[%c0_3, %c0_4] : memref<1x64xf32, #tpu.memory_space<vmem>>, vector<1x64xf32>
    %4 = vector.broadcast %3 : vector<1x64xf32> to vector<16x64xf32>
    %5 = arith.addf %2, %4 : vector<16x64xf32>
    %cst_5 = arith.constant 0.000000e+00 : f32
    %6 = vector.broadcast %cst_5 : f32 to vector<16x64xf32>
    %7 = arith.maximumf %5, %6 : vector<16x64xf32>
    %8 = arith.truncf %7 : vector<16x64xf32> to vector<16x64xbf16>
    %c0_6 = arith.constant 0 : index
    %c0_7 = arith.constant 0 : index
    %9 = vector.load %arg4[%c0_6, %c0_7] : memref<64x32xbf16, #tpu.memory_space<vmem>>, vector<64x32xbf16>
    %cst_8 = arith.constant dense<0.000000e+00> : vector<16x32xf32>
    %10 = tpu.matmul %8, %9, %cst_8 {dimension_numbers = #tpu.dot_dimension_numbers<[1], [0], [0], [1], [0, 0, 1, 1], [], []>} : vector<16x64xbf16>, vector<64x32xbf16>, vector<16x32xf32> -> vector<16x32xf32>
    %c0_9 = arith.constant 0 : index
    %c0_10 = arith.constant 0 : index
    %11 = vector.load %arg5[%c0_9, %c0_10] : memref<1x32xf32, #tpu.memory_space<vmem>>, vector<1x32xf32>
    %12 = vector.broadcast %11 : vector<1x32xf32> to vector<16x32xf32>
    %13 = arith.addf %10, %12 : vector<16x32xf32>
    %14 = arith.extf %0 : vector<16x32xbf16> to vector<16x32xf32>
    %15 = arith.addf %13, %14 : vector<16x32xf32>
    %cst_11 = arith.constant dense<0.000000e+00> : vector<16xf32>
    %16 = vector.multi_reduction <add>, %15, %cst_11 [1] : vector<16x32xf32> to vector<16xf32>
    %17 = vector.shape_cast %16 : vector<16xf32> to vector<16x1xf32>
    %cst_12 = arith.constant 3.200000e+01 : f32
    %18 = vector.broadcast %cst_12 : f32 to vector<16x1xf32>
    %19 = arith.divf %17, %18 : vector<16x1xf32>
    %20 = vector.broadcast %19 : vector<16x1xf32> to vector<16x32xf32>
    %21 = arith.subf %15, %20 : vector<16x32xf32>
    %22 = arith.mulf %21, %21 : vector<16x32xf32>
    %cst_13 = arith.constant dense<0.000000e+00> : vector<16xf32>
    %23 = vector.multi_reduction <add>, %22, %cst_13 [1] : vector<16x32xf32> to vector<16xf32>
    %24 = vector.shape_cast %23 : vector<16xf32> to vector<16x1xf32>
    %cst_14 = arith.constant 3.200000e+01 : f32
    %25 = vector.broadcast %cst_14 : f32 to vector<16x1xf32>
    %26 = arith.divf %24, %25 : vector<16x1xf32>
    %27 = vector.broadcast %19 : vector<16x1xf32> to vector<16x32xf32>
    %28 = arith.subf %15, %27 : vector<16x32xf32>
    %cst_15 = arith.constant 9.99999974E-6 : f32
    %29 = vector.broadcast %cst_15 : f32 to vector<16x1xf32>
    %30 = arith.addf %26, %29 : vector<16x1xf32>
    %31 = math.rsqrt %30 : vector<16x1xf32>
    %32 = vector.broadcast %31 : vector<16x1xf32> to vector<16x32xf32>
    %33 = arith.mulf %28, %32 : vector<16x32xf32>
    %c0_16 = arith.constant 0 : index
    %c0_17 = arith.constant 0 : index
    %34 = vector.load %arg6[%c0_16, %c0_17] : memref<1x32xf32, #tpu.memory_space<vmem>>, vector<1x32xf32>
    %35 = vector.broadcast %34 : vector<1x32xf32> to vector<16x32xf32>
    %36 = arith.mulf %33, %35 : vector<16x32xf32>
    %c0_18 = arith.constant 0 : index
    %c0_19 = arith.constant 0 : index
    %37 = vector.load %arg7[%c0_18, %c0_19] : memref<1x32xf32, #tpu.memory_space<vmem>>, vector<1x32xf32>
    %38 = vector.broadcast %37 : vector<1x32xf32> to vector<16x32xf32>
    %39 = arith.addf %36, %38 : vector<16x32xf32>
    %c0_20 = arith.constant 0 : index
    %c0_21 = arith.constant 0 : index
    %40 = vector.load %arg8[%c0_20, %c0_21] : memref<16x1xf32, #tpu.memory_space<vmem>>, vector<16x1xf32>
    %41 = vector.broadcast %40 : vector<16x1xf32> to vector<16x32xf32>
    %42 = arith.mulf %39, %41 : vector<16x32xf32>
    %43 = arith.truncf %42 : vector<16x32xf32> to vector<16x32xbf16>
    %c0_22 = arith.constant 0 : index
    %c0_23 = arith.constant 0 : index
    %44 = vector.load %arg9[%c0_22, %c0_23] : memref<16x32xbf16, #tpu.memory_space<vmem>>, vector<16x32xbf16>
    tpu.vector_store %arg9[%c0_22, %c0_23], %43 {strides = array<i32>} : memref<16x32xbf16, #tpu.memory_space<vmem>>, vector<16x32xbf16>,
    return
  }
  func.func @transform_0(%arg0: i32) -> (i32, i32) {
    %c0_i32 = arith.constant 0 : i32
    %c0_i32_0 = arith.constant 0 : i32
    return %arg0, %c0_i32 : i32, i32
  }
  func.func @transform_1(%arg0: i32) -> (i32, i32) {
    %c0_i32 = arith.constant 0 : i32
    %c0_i32_0 = arith.constant 0 : i32
    %c0_i32_1 = arith.constant 0 : i32
    return %c0_i32, %c0_i32_0 : i32, i32
  }
  func.func @transform_2(%arg0: i32) -> (i32, i32) {
    %c0_i32 = arith.constant 0 : i32
    %c0_i32_0 = arith.constant 0 : i32
    %c0_i32_1 = arith.constant 0 : i32
    return %c0_i32, %c0_i32_0 : i32, i32
  }
  func.func @transform_3(%arg0: i32) -> (i32, i32) {
    %c0_i32 = arith.constant 0 : i32
    %c0_i32_0 = arith.constant 0 : i32
    %c0_i32_1 = arith.constant 0 : i32
    return %c0_i32, %c0_i32_0 : i32, i32
  }
  func.func @transform_4(%arg0: i32) -> (i32, i32) {
    %c0_i32 = arith.constant 0 : i32
    %c0_i32_0 = arith.constant 0 : i32
    %c0_i32_1 = arith.constant 0 : i32
    return %c0_i32, %c0_i32_0 : i32, i32
  }
  func.func @transform_5(%arg0: i32) -> (i32, i32) {
    %c0_i32 = arith.constant 0 : i32
    %c0_i32_0 = arith.constant 0 : i32
    %c0_i32_1 = arith.constant 0 : i32
    return %c0_i32, %c0_i32_0 : i32, i32
  }
  func.func @transform_6(%arg0: i32) -> (i32, i32) {
    %c0_i32 = arith.constant 0 : i32
    %c0_i32_0 = arith.constant 0 : i32
    %c0_i32_1 = arith.constant 0 : i32
    return %c0_i32, %c0_i32_0 : i32, i32
  }
  func.func @transform_7(%arg0: i32) -> (i32, i32) {
    %c0_i32 = arith.constant 0 : i32
    %c0_i32_0 = arith.constant 0 : i32
    return %arg0, %c0_i32 : i32, i32
  }
  func.func @transform_8(%arg0: i32) -> (i32, i32) {
    %c0_i32 = arith.constant 0 : i32
    %c0_i32_0 = arith.constant 0 : i32
    return %arg0, %c0_i32 : i32, i32
  }
}

module attributes {stable_mosaic.version = 11 : i64} {
  func.func @_proj_stats_kernel(%arg0: i32, %arg1: i32, %arg2: memref<16x32xbf16, #tpu.memory_space<vmem>>, %arg3: memref<32x2048xbf16, #tpu.memory_space<vmem>>, %arg4: memref<16x1xf32, #tpu.memory_space<vmem>>, %arg5: memref<16x1xf32, #tpu.memory_space<vmem>>, %arg6: memref<16x1xf32, #tpu.memory_space<vmem>>, %arg7: memref<16x1xf32, #tpu.memory_space<vmem>>) attributes {dimension_semantics = [#tpu.dimension_semantics<parallel>, #tpu.dimension_semantics<arbitrary>], iteration_bounds = array<i64: 1, 2>, scalar_prefetch = 0 : i64, scratch_operands = 2 : i64, tpu.core_type = #tpu.core_type<tc>, window_params = [{transform_indices = @transform_0, window_bounds = array<i64: 16, 32>}, {transform_indices = @transform_1, window_bounds = array<i64: 32, 2048>}, {transform_indices = @transform_2, window_bounds = array<i64: 16, 1>}, {transform_indices = @transform_3, window_bounds = array<i64: 16, 1>}]} {
    %c0_i32 = arith.constant 0 : i32
    %0 = arith.cmpi eq, %arg1, %c0_i32 : i32
    %1 = arith.extui %0 : i1 to i32
    %c0_i32_0 = arith.constant 0 : i32
    %2 = arith.cmpi ne, %1, %c0_i32_0 : i32
    scf.if %2 {
      %cst_18 = arith.constant 0xFF800000 : f32
      %28 = vector.broadcast %cst_18 : f32 to vector<16x1xf32>
      %c0_19 = arith.constant 0 : index
      %c0_20 = arith.constant 0 : index
      %29 = vector.load %arg6[%c0_19, %c0_20] : memref<16x1xf32, #tpu.memory_space<vmem>>, vector<16x1xf32>
      tpu.vector_store %arg6[%c0_19, %c0_20], %28 {strides = array<i32>} : memref<16x1xf32, #tpu.memory_space<vmem>>, vector<16x1xf32>,
      %cst_21 = arith.constant 0.000000e+00 : f32
      %30 = vector.broadcast %cst_21 : f32 to vector<16x1xf32>
      %c0_22 = arith.constant 0 : index
      %c0_23 = arith.constant 0 : index
      %31 = vector.load %arg7[%c0_22, %c0_23] : memref<16x1xf32, #tpu.memory_space<vmem>>, vector<16x1xf32>
      tpu.vector_store %arg7[%c0_22, %c0_23], %30 {strides = array<i32>} : memref<16x1xf32, #tpu.memory_space<vmem>>, vector<16x1xf32>,
    } else {
    }
    %c0 = arith.constant 0 : index
    %c0_1 = arith.constant 0 : index
    %3 = vector.load %arg2[%c0, %c0_1] : memref<16x32xbf16, #tpu.memory_space<vmem>>, vector<16x32xbf16>
    %c0_2 = arith.constant 0 : index
    %c0_3 = arith.constant 0 : index
    %4 = vector.load %arg3[%c0_2, %c0_3] : memref<32x2048xbf16, #tpu.memory_space<vmem>>, vector<32x2048xbf16>
    %cst = arith.constant dense<0.000000e+00> : vector<16x2048xf32>
    %5 = tpu.matmul %3, %4, %cst {dimension_numbers = #tpu.dot_dimension_numbers<[1], [0], [0], [1], [0, 0, 1, 1], [], []>} : vector<16x32xbf16>, vector<32x2048xbf16>, vector<16x2048xf32> -> vector<16x2048xf32>
    %cst_4 = arith.constant 1.000000e+00 : f32
    %6 = vector.broadcast %cst_4 : f32 to vector<16x2048xf32>
    %7 = arith.mulf %5, %6 : vector<16x2048xf32>
    %cst_5 = arith.constant dense<0xFF800000> : vector<16xf32>
    %8 = vector.multi_reduction <maximumf>, %7, %cst_5 [1] : vector<16x2048xf32> to vector<16xf32>
    %9 = vector.shape_cast %8 : vector<16xf32> to vector<16x1xf32>
    %c0_6 = arith.constant 0 : index
    %c0_7 = arith.constant 0 : index
    %10 = vector.load %arg6[%c0_6, %c0_7] : memref<16x1xf32, #tpu.memory_space<vmem>>, vector<16x1xf32>
    %11 = arith.maximumf %10, %9 : vector<16x1xf32>
    %c0_8 = arith.constant 0 : index
    %c0_9 = arith.constant 0 : index
    %12 = vector.load %arg7[%c0_8, %c0_9] : memref<16x1xf32, #tpu.memory_space<vmem>>, vector<16x1xf32>
    %c0_10 = arith.constant 0 : index
    %c0_11 = arith.constant 0 : index
    %13 = vector.load %arg6[%c0_10, %c0_11] : memref<16x1xf32, #tpu.memory_space<vmem>>, vector<16x1xf32>
    %14 = arith.subf %13, %11 : vector<16x1xf32>
    %15 = math.exp %14 : vector<16x1xf32>
    %16 = arith.mulf %12, %15 : vector<16x1xf32>
    %17 = vector.broadcast %11 : vector<16x1xf32> to vector<16x2048xf32>
    %18 = arith.subf %7, %17 : vector<16x2048xf32>
    %19 = math.exp %18 : vector<16x2048xf32>
    %cst_12 = arith.constant dense<0.000000e+00> : vector<16xf32>
    %20 = vector.multi_reduction <add>, %19, %cst_12 [1] : vector<16x2048xf32> to vector<16xf32>
    %21 = vector.shape_cast %20 : vector<16xf32> to vector<16x1xf32>
    %22 = arith.addf %16, %21 : vector<16x1xf32>
    %c0_13 = arith.constant 0 : index
    %c0_14 = arith.constant 0 : index
    %23 = vector.load %arg7[%c0_13, %c0_14] : memref<16x1xf32, #tpu.memory_space<vmem>>, vector<16x1xf32>
    tpu.vector_store %arg7[%c0_13, %c0_14], %22 {strides = array<i32>} : memref<16x1xf32, #tpu.memory_space<vmem>>, vector<16x1xf32>,
    %c0_15 = arith.constant 0 : index
    %c0_16 = arith.constant 0 : index
    %24 = vector.load %arg6[%c0_15, %c0_16] : memref<16x1xf32, #tpu.memory_space<vmem>>, vector<16x1xf32>
    tpu.vector_store %arg6[%c0_15, %c0_16], %11 {strides = array<i32>} : memref<16x1xf32, #tpu.memory_space<vmem>>, vector<16x1xf32>,
    %c1_i32 = arith.constant 1 : i32
    %25 = arith.cmpi eq, %arg1, %c1_i32 : i32
    %26 = arith.extui %25 : i1 to i32
    %c0_i32_17 = arith.constant 0 : i32
    %27 = arith.cmpi ne, %26, %c0_i32_17 : i32
    scf.if %27 {
      %c0_18 = arith.constant 0 : index
      %c0_19 = arith.constant 0 : index
      %28 = vector.load %arg6[%c0_18, %c0_19] : memref<16x1xf32, #tpu.memory_space<vmem>>, vector<16x1xf32>
      %c0_20 = arith.constant 0 : index
      %c0_21 = arith.constant 0 : index
      %29 = vector.load %arg4[%c0_20, %c0_21] : memref<16x1xf32, #tpu.memory_space<vmem>>, vector<16x1xf32>
      tpu.vector_store %arg4[%c0_20, %c0_21], %28 {strides = array<i32>} : memref<16x1xf32, #tpu.memory_space<vmem>>, vector<16x1xf32>,
      %c0_22 = arith.constant 0 : index
      %c0_23 = arith.constant 0 : index
      %30 = vector.load %arg7[%c0_22, %c0_23] : memref<16x1xf32, #tpu.memory_space<vmem>>, vector<16x1xf32>
      %c0_24 = arith.constant 0 : index
      %c0_25 = arith.constant 0 : index
      %31 = vector.load %arg5[%c0_24, %c0_25] : memref<16x1xf32, #tpu.memory_space<vmem>>, vector<16x1xf32>
      tpu.vector_store %arg5[%c0_24, %c0_25], %30 {strides = array<i32>} : memref<16x1xf32, #tpu.memory_space<vmem>>, vector<16x1xf32>,
    } else {
    }
    return
  }
  func.func @transform_0(%arg0: i32, %arg1: i32) -> (i32, i32) {
    %c0_i32 = arith.constant 0 : i32
    %c0_i32_0 = arith.constant 0 : i32
    return %arg0, %c0_i32 : i32, i32
  }
  func.func @transform_1(%arg0: i32, %arg1: i32) -> (i32, i32) {
    %c0_i32 = arith.constant 0 : i32
    %c0_i32_0 = arith.constant 0 : i32
    return %c0_i32, %arg1 : i32, i32
  }
  func.func @transform_2(%arg0: i32, %arg1: i32) -> (i32, i32) {
    %c0_i32 = arith.constant 0 : i32
    %c0_i32_0 = arith.constant 0 : i32
    return %arg0, %c0_i32 : i32, i32
  }
  func.func @transform_3(%arg0: i32, %arg1: i32) -> (i32, i32) {
    %c0_i32 = arith.constant 0 : i32
    %c0_i32_0 = arith.constant 0 : i32
    return %arg0, %c0_i32 : i32, i32
  }
}

module attributes {stable_mosaic.version = 11 : i64} {
  func.func @_proj_write_kernel(%arg0: i32, %arg1: i32, %arg2: memref<16x32xbf16, #tpu.memory_space<vmem>>, %arg3: memref<32x2048xbf16, #tpu.memory_space<vmem>>, %arg4: memref<16x1xf32, #tpu.memory_space<vmem>>, %arg5: memref<16x1xf32, #tpu.memory_space<vmem>>, %arg6: memref<16x2048xf32, #tpu.memory_space<vmem>>) attributes {dimension_semantics = [#tpu.dimension_semantics<parallel>, #tpu.dimension_semantics<parallel>], iteration_bounds = array<i64: 1, 2>, scalar_prefetch = 0 : i64, scratch_operands = 0 : i64, tpu.core_type = #tpu.core_type<tc>, window_params = [{transform_indices = @transform_0, window_bounds = array<i64: 16, 32>}, {transform_indices = @transform_1, window_bounds = array<i64: 32, 2048>}, {transform_indices = @transform_2, window_bounds = array<i64: 16, 1>}, {transform_indices = @transform_3, window_bounds = array<i64: 16, 1>}, {transform_indices = @transform_4, window_bounds = array<i64: 16, 2048>}]} {
    %c0 = arith.constant 0 : index
    %c0_0 = arith.constant 0 : index
    %0 = vector.load %arg2[%c0, %c0_0] : memref<16x32xbf16, #tpu.memory_space<vmem>>, vector<16x32xbf16>
    %c0_1 = arith.constant 0 : index
    %c0_2 = arith.constant 0 : index
    %1 = vector.load %arg3[%c0_1, %c0_2] : memref<32x2048xbf16, #tpu.memory_space<vmem>>, vector<32x2048xbf16>
    %cst = arith.constant dense<0.000000e+00> : vector<16x2048xf32>
    %2 = tpu.matmul %0, %1, %cst {dimension_numbers = #tpu.dot_dimension_numbers<[1], [0], [0], [1], [0, 0, 1, 1], [], []>} : vector<16x32xbf16>, vector<32x2048xbf16>, vector<16x2048xf32> -> vector<16x2048xf32>
    %cst_3 = arith.constant 1.000000e+00 : f32
    %3 = vector.broadcast %cst_3 : f32 to vector<16x2048xf32>
    %4 = arith.mulf %2, %3 : vector<16x2048xf32>
    %c0_4 = arith.constant 0 : index
    %c0_5 = arith.constant 0 : index
    %5 = vector.load %arg4[%c0_4, %c0_5] : memref<16x1xf32, #tpu.memory_space<vmem>>, vector<16x1xf32>
    %6 = vector.broadcast %5 : vector<16x1xf32> to vector<16x2048xf32>
    %7 = arith.subf %4, %6 : vector<16x2048xf32>
    %8 = math.exp %7 : vector<16x2048xf32>
    %c0_6 = arith.constant 0 : index
    %c0_7 = arith.constant 0 : index
    %9 = vector.load %arg5[%c0_6, %c0_7] : memref<16x1xf32, #tpu.memory_space<vmem>>, vector<16x1xf32>
    %10 = vector.broadcast %9 : vector<16x1xf32> to vector<16x2048xf32>
    %11 = arith.divf %8, %10 : vector<16x2048xf32>
    %c0_8 = arith.constant 0 : index
    %c0_9 = arith.constant 0 : index
    %12 = vector.load %arg6[%c0_8, %c0_9] : memref<16x2048xf32, #tpu.memory_space<vmem>>, vector<16x2048xf32>
    tpu.vector_store %arg6[%c0_8, %c0_9], %11 {strides = array<i32>} : memref<16x2048xf32, #tpu.memory_space<vmem>>, vector<16x2048xf32>,
    return
  }
  func.func @transform_0(%arg0: i32, %arg1: i32) -> (i32, i32) {
    %c0_i32 = arith.constant 0 : i32
    %c0_i32_0 = arith.constant 0 : i32
    return %arg0, %c0_i32 : i32, i32
  }
  func.func @transform_1(%arg0: i32, %arg1: i32) -> (i32, i32) {
    %c0_i32 = arith.constant 0 : i32
    %c0_i32_0 = arith.constant 0 : i32
    return %c0_i32, %arg1 : i32, i32
  }
  func.func @transform_2(%arg0: i32, %arg1: i32) -> (i32, i32) {
    %c0_i32 = arith.constant 0 : i32
    %c0_i32_0 = arith.constant 0 : i32
    return %arg0, %c0_i32 : i32, i32
  }
  func.func @transform_3(%arg0: i32, %arg1: i32) -> (i32, i32) {
    %c0_i32 = arith.constant 0 : i32
    %c0_i32_0 = arith.constant 0 : i32
    return %arg0, %c0_i32 : i32, i32
  }
  func.func @transform_4(%arg0: i32, %arg1: i32) -> (i32, i32) {
    %c0_i32 = arith.constant 0 : i32
    return %arg0, %arg1 : i32, i32
  }
}

</mosaic_0001>

<llo_original>
// kernel: tran_decoder_forward.10
$region0: #{tran_decoder_forward.10}
  #allocation0 [shape = 'u32[]', space=smem, size = 0x4, offset = 0x4, fixed_abs, tag = 'smem constant byte address 0x4 - core index']
  #allocation1 [shape = 'u32[72,128]{1,0:T(1,128)}', space=vmem, size = 0x9000, scoped, tag = 'internal scratch']
  %s0 = inlined_call_operand.vmem [shape: bf16[16,32], index: 0, kind: input, shape index: {}]
  %s1 = inlined_call_operand.vmem [shape: bf16[32,64], index: 1, kind: input, shape index: {}]
  %s2 = inlined_call_operand.vmem [shape: f32[1,64], index: 2, kind: input, shape index: {}]
  %s3 = inlined_call_operand.vmem [shape: bf16[64,32], index: 3, kind: input, shape index: {}]
  %s4 = inlined_call_operand.vmem [shape: f32[1,32], index: 4, kind: input, shape index: {}]
  %s5 = inlined_call_operand.vmem [shape: f32[1,32], index: 5, kind: input, shape index: {}]
  %s6 = inlined_call_operand.vmem [shape: f32[1,32], index: 6, kind: input, shape index: {}]
  %s7 = inlined_call_operand.vmem [shape: f32[16,1], index: 7, kind: input, shape index: {}]
  %s8 = inlined_call_operand.vmem [shape: bf16[16,32], index: 8, kind: output, shape index: {}]
  %s9 = sld [smem:[#allocation0]]
  $region42: #{tran_decoder_forward.10} parent=0
    _
  %s11 = ssub.s32 1, %s9
  %s12 = scalar_select 0, %s11, %s9
  // Predicated region
  $region2: #{tran_decoder_forward.10} parent=0 // pred_check
    _
  $region3: #{tran_decoder_forward.10} parent=0 // pred_check_branch
    %14 = sbr.rel (0) target = $region5
  $region4: #{tran_decoder_forward.10} parent=0 // pred_region
    _
  $region5: #{tran_decoder_forward.10} parent=0 // pred_fallthru
    _
  // Predicated region
  $region6: #{tran_decoder_forward.10} parent=0 // pred_check
    _
  $region7: #{tran_decoder_forward.10} parent=0 // pred_check_branch
    %16 = sbr.rel (0) target = $region9
  $region8: #{tran_decoder_forward.10} parent=0 // pred_region
    _
  $region9: #{tran_decoder_forward.10} parent=0 // pred_fallthru
    _
  // Predicated region
  $region10: #{tran_decoder_forward.10} parent=0 // pred_check
    _
  $region11: #{tran_decoder_forward.10} parent=0 // pred_check_branch
    %18 = sbr.rel (0) target = $region13
  $region12: #{tran_decoder_forward.10} parent=0 // pred_region
    _
  $region13: #{tran_decoder_forward.10} parent=0 // pred_fallthru
    _
  // Predicated region
  $region14: #{tran_decoder_forward.10} parent=0 // pred_check
    _
  $region15: #{tran_decoder_forward.10} parent=0 // pred_check_branch
    %20 = sbr.rel (0) target = $region17
  $region16: #{tran_decoder_forward.10} parent=0 // pred_region
    _
  $region17: #{tran_decoder_forward.10} parent=0 // pred_fallthru
    _
  // Predicated region
  $region18: #{tran_decoder_forward.10} parent=0 // pred_check
    _
  $region19: #{tran_decoder_forward.10} parent=0 // pred_check_branch
    %22 = sbr.rel (0) target = $region21
  $region20: #{tran_decoder_forward.10} parent=0 // pred_region
    _
  $region21: #{tran_decoder_forward.10} parent=0 // pred_fallthru
    _
  // Predicated region
  $region22: #{tran_decoder_forward.10} parent=0 // pred_check
    _
  $region23: #{tran_decoder_forward.10} parent=0 // pred_check_branch
    %24 = sbr.rel (0) target = $region25
  $region24: #{tran_decoder_forward.10} parent=0 // pred_region
    _
  $region25: #{tran_decoder_forward.10} parent=0 // pred_fallthru
    _
  // Predicated region
  $region26: #{tran_decoder_forward.10} parent=0 // pred_check
    _
  $region27: #{tran_decoder_forward.10} parent=0 // pred_check_branch
    %26 = sbr.rel (0) target = $region29
  $region28: #{tran_decoder_forward.10} parent=0 // pred_region
    _
  $region29: #{tran_decoder_forward.10} parent=0 // pred_fallthru
    _
  // Predicated region
  $region30: #{tran_decoder_forward.10} parent=0 // pred_check
    _
  $region31: #{tran_decoder_forward.10} parent=0 // pred_check_branch
    %28 = sbr.rel (0) target = $region33
  $region32: #{tran_decoder_forward.10} parent=0 // pred_region
    _
  $region33: #{tran_decoder_forward.10} parent=0 // pred_fallthru
    _
  %v30 = vld [vmem:[%s0] sm:$0xf]
  %v31 = vld [vmem:[%s0 + $0x4] sm:$0xf]
  %v32 = vld [vmem:[%s1] sm:$0xf]
  %v33 = vld [vmem:[%s1 + $0x4] sm:$0xf]
  %v34 = vld [vmem:[%s1 + $0x8] sm:$0xf]
  %v35 = vld [vmem:[%s1 + $0xc] sm:$0xf]
  %v36 = vld [vmem:[%s2] sm:$0x1]
  %v38 = vperm.slane %v36, 0
  %v42 = vunpack.c.l.b16 %v30
  %v43 = vunpack.c.l.b16 %v31
  %v44 = vpack.c.b16 %v43, %v42
  %v49 = vunpack.c.l.b16 %v32
  %v50 = vunpack.c.l.b16 %v33
  %v51 = vunpack.c.l.b16 %v34
  %v52 = vunpack.c.l.b16 %v35
  %v53 = vpack.c.b16 %v50, %v49
  %v54 = vpack.c.b16 %v52, %v51
  %vm57 = vcmask 261120
  %v59 = vsel %vm57, %v44, 0
  %61 = vmatpush.bf16.msra.mxu0 0
  %62 = vmatpush.bf16.msra.mxu0 0
  %63 = vmatpush.bf16.msra.mxu0 0
  %64 = vmatpush.bf16.msra.mxu0 0
  %65 = vmatpush.bf16.msra.mxu0 0
  %66 = vmatpush.bf16.msra.mxu0 0
  %67 = vmatpush.bf16.msra.mxu0 %v54
  %68 = vmatpush.bf16.msra.mxu0 %v53
  %69 = vmatmul.bf16.gmra.mxu0 %v59
  %v70 = vpop.f32.mrf.mxu0
  %v71 = vadd.f32 %v38, %v70
  %v72 = vpop.f32.mrf.mxu0
  %v73 = vadd.f32 %v38, %v72
  %74 = vdwg.mxu0
  %v75 = vmax.f32 %v71, 0.0
  %v76 = vmax.f32 %v73, 0.0
  %v77 = vpack.c.bf16 %v76, %v75
  %v78 = vld [vmem:[%s3] sm:$0xf]
  %v79 = vld [vmem:[%s3 + $0x4] sm:$0xf]
  %v80 = vld [vmem:[%s3 + $0x8] sm:$0xf]
  %v81 = vld [vmem:[%s3 + $0xc] sm:$0xf]
  %v82 = vld [vmem:[%s3 + $0x10] sm:$0xf]
  %v83 = vld [vmem:[%s3 + $0x14] sm:$0xf]
  %v84 = vld [vmem:[%s3 + $0x18] sm:$0xf]
  %v85 = vld [vmem:[%s3 + $0x1c] sm:$0xf]
  %v86 = vld [vmem:[%s4] sm:$0x1]
  %v88 = vperm.slane %v86, 0
  %v98 = vunpack.c.l.b16 %v78
  %v99 = vunpack.c.l.b16 %v79
  %v100 = vunpack.c.l.b16 %v80
  %v101 = vunpack.c.l.b16 %v81
  %v102 = vunpack.c.l.b16 %v82
  %v103 = vunpack.c.l.b16 %v83
  %v104 = vunpack.c.l.b16 %v84
  %v105 = vunpack.c.l.b16 %v85
  %v106 = vpack.c.b16 %v99, %v98
  %v107 = vpack.c.b16 %v101, %v100
  %v108 = vpack.c.b16 %v103, %v102
  %v109 = vpack.c.b16 %v105, %v104
  %vm114 = vcmask 523264
  %v116 = vsel %vm114, %v77, 0
  %118 = vmatpush.bf16.msra.mxu0 0
  %119 = vmatpush.bf16.msra.mxu0 0
  %120 = vmatpush.bf16.msra.mxu0 0
  %121 = vmatpush.bf16.msra.mxu0 0
  %122 = vmatpush.bf16.msra.mxu0 %v109
  %123 = vmatpush.bf16.msra.mxu0 %v108
  %124 = vmatpush.bf16.msra.mxu0 %v107
  %125 = vmatpush.bf16.msra.mxu0 %v106
  %126 = vmatmul.bf16.gmra.mxu0 %v116
  %v127 = vpop.f32.mrf.mxu0
  %v128 = vadd.f32 %v88, %v127
  %v129 = vpop.f32.mrf.mxu0
  %v130 = vadd.f32 %v88, %v129
  %131 = vdwg.mxu0
  %v132 = vunpack.c.l.bf16 %v30
  %v133 = vunpack.c.l.bf16 %v31
  %v134 = vadd.f32 %v128, %v132
  %v135 = vadd.f32 %v130, %v133
  %v136 = vsel %vm57, %v134, 0.0
  %137 = vadd.xlane.f32.xlu0 %v136
  %v138 = vpop.xlane.xlu0 %137
  %v139 = vsel %vm57, %v135, 0.0
  %140 = vadd.xlane.f32.xlu0 %v139
  %v141 = vpop.xlane.xlu0 %140
  %v142 = vrcp.pop 32.0
  %v143 = vmul.f32 32.0, %v142
  %v144 = vsub.f32 1.0, %v143
  %v145 = vmul.f32 %v142, %v144
  %v146 = vadd.f32 %v142, %v145
  %vm147 = vweird.f32 %v142
  %v148 = vsel %vm147, %v142, %v146
  %v149 = vmul.f32 %v138, %v148
  %v150 = vmul.f32 %v141, %v148
  %v151 = vsub.f32 %v134, %v149
  %v152 = vsub.f32 %v135, %v150
  %v153 = vmul.f32 %v151, %v151
  %v154 = vmul.f32 %v152, %v152
  %v155 = vsel %vm57, %v153, 0.0
  %156 = vadd.xlane.f32.xlu0 %v155
  %v157 = vpop.xlane.xlu0 %156
  %v158 = vsel %vm57, %v154, 0.0
  %159 = vadd.xlane.f32.xlu0 %v158
  %v160 = vpop.xlane.xlu0 %159
  %v161 = vmul.f32 %v157, %v148
  %v162 = vmul.f32 %v160, %v148
  %v163 = vadd.f32 %v161, 1e-05
  %v164 = vadd.f32 %v162, 1e-05
  %v165 = vrsqrt.pop %v163
  %v166 = vmul.f32 %v165, %v163
  %v167 = vmul.f32 %v166, %v165
  %v168 = vmul.f32 0.5, %v167
  %v169 = vsub.f32 1.5, %v168
  %v170 = vmul.f32 %v165, %v169
  %vm171 = vweird.f32 %v163
  %vm172 = vweird.f32 %v165
  %vm173 = vmor %vm171, %vm172
  %v174 = vsel %vm173, %v165, %v170
  %v175 = vrsqrt.pop %v164
  %v176 = vmul.f32 %v175, %v164
  %v177 = vmul.f32 %v176, %v175
  %v178 = vmul.f32 0.5, %v177
  %v179 = vsub.f32 1.5, %v178
  %v180 = vmul.f32 %v175, %v179
  %vm181 = vweird.f32 %v164
  %vm182 = vweird.f32 %v175
  %vm183 = vmor %vm181, %vm182
  %v184 = vsel %vm183, %v175, %v180
  %v185 = vmul.f32 %v151, %v174
  %v186 = vmul.f32 %v152, %v184
  %v187 = vld [vmem:[%s5] sm:$0x1]
  %v189 = vperm.slane %v187, 0
  %v191 = vmul.f32 %v185, %v189
  %v192 = vmul.f32 %v186, %v189
  %v193 = vld [vmem:[%s6] sm:$0x1]
  %v195 = vperm.slane %v193, 0
  %v197 = vadd.f32 %v191, %v195
  %v198 = vadd.f32 %v192, %v195
  %v199 = vld [vmem:[%s7] sm:$0xff]
  %v200 = vld [vmem:[%s7 + $0x8] sm:$0xff]
  %202 = vset.pattern.permute.xlu0 0
  %203 = vperm.xlu0 %202, %v199
  %v204 = vpop.permute.xlu0 %203
  %207 = vset.pattern.permute.xlu0 0
  %208 = vperm.xlu0 %207, %v200
  %v209 = vpop.permute.xlu0 %208
  %v211 = vmul.f32 %v197, %v204
  %v212 = vmul.f32 %v198, %v209
  %v213 = vpack.c.bf16 %v211, %v211
  %v214 = vpack.c.bf16 %v212, %v212
  %vm215 = vcmask 257024
  %216 = vst.msk [vmem:[%s8] sm:$0xf] %vm215, %v213
  %217 = vst.msk [vmem:[%s8 + $0x4] sm:$0xf] %vm215, %v214
  // Predicated region
  $region34: #{tran_decoder_forward.10} parent=0 // pred_check
    _
  $region35: #{tran_decoder_forward.10} parent=0 // pred_check_branch
    %219 = sbr.rel (0) target = $region37
  $region36: #{tran_decoder_forward.10} parent=0 // pred_region
    _
  $region37: #{tran_decoder_forward.10} parent=0 // pred_fallthru
    _
  // Predicated region
  $region38: #{tran_decoder_forward.10} parent=0 // pred_check
    _
  $region39: #{tran_decoder_forward.10} parent=0 // pred_check_branch
    %221 = sbr.rel (0) target = $region41
  $region40: #{tran_decoder_forward.10} parent=0 // pred_region
    _
  $region41: #{tran_decoder_forward.10} parent=0 // pred_fallthru
    _

// kernel: tran_decoder_forward.8
$region0: #{tran_decoder_forward.8}
  #allocation0 [shape = 'u32[]', space=smem, size = 0x4, offset = 0x4, fixed_abs, tag = 'smem constant byte address 0x4 - core index']
  #allocation1 [shape = 'u32[72,128]{1,0:T(1,128)}', space=vmem, size = 0x9000, scoped, tag = 'internal scratch']
  %s0 = inlined_call_operand.vmem [shape: bf16[2,8,32], index: 0, kind: input, shape index: {}, may-alias: {0,1}]
  %s1 = inlined_call_operand.vmem [shape: bf16[2,8,32], index: 1, kind: input, shape index: {}, may-alias: {0,1}]
  %s2 = inlined_call_operand.vmem [shape: f32[2,1,8], index: 2, kind: input, shape index: {}]
  %s3 = inlined_call_operand.vmem [shape: f32[2,8,1], index: 3, kind: input, shape index: {}]
  %s4 = inlined_call_operand.vmem [shape: bf16[32,32], index: 4, kind: input, shape index: {}]
  %s5 = inlined_call_operand.vmem [shape: f32[1,32], index: 5, kind: input, shape index: {}]
  %s6 = inlined_call_operand.vmem [shape: bf16[32,64], index: 6, kind: input, shape index: {}]
  %s7 = inlined_call_operand.vmem [shape: f32[1,64], index: 7, kind: input, shape index: {}]
  %s8 = inlined_call_operand.vmem [shape: bf16[32,32], index: 8, kind: input, shape index: {}]
  %s9 = inlined_call_operand.vmem [shape: f32[1,32], index: 9, kind: input, shape index: {}]
  %s10 = inlined_call_operand.vmem [shape: f32[1,32], index: 10, kind: input, shape index: {}]
  %s11 = inlined_call_operand.vmem [shape: f32[1,32], index: 11, kind: input, shape index: {}]
  %s12 = inlined_call_operand.vmem [shape: bf16[2,8,32], index: 12, kind: output, shape index: {}]
  %s13 = sld [smem:[#allocation0]]
  $region81: #{tran_decoder_forward.8} parent=0
    _
  %s15 = ssub.s32 1, %s13
  %s16 = scalar_select 0, %s15, %s13
  loop: start=0, step=1, limit=4
  $region2: #{tran_decoder_forward.8} parent=0 // loop_pre_header
    _
  $region3: #{tran_decoder_forward.8} parent=0 // loop_header
    %s18 = sphi 0, %s22
    %p19 = scmp.ge.s32.totalorder %s18, 4
    %s25 = sphi 0, %s37
    %s26 = sphi 0, %s33
    %s27 = sphi 0, %s25
    %s28 = sphi 0, %s26
    %s29 = sphi 0, %s27
    %s30 = sphi 0, %s28
    %s42 = sphi 0, %s44
    %s45 = sphi 0, %s42
    %s46 = sphi 0, %s45
    %s62 = sphi 0, %s46
    %s68 = sphi 0, %s70
    %s71 = sphi 0, %s68
    %s72 = sphi 0, %s71
    %s88 = sphi 0, %s72
    %s94 = sphi 0, %s96
    %s97 = sphi 0, %s94
    %s98 = sphi 0, %s97
    %s114 = sphi 0, %s98
    %s122 = sphi 0, %s124
    %s125 = sphi 0, %s122
    %s126 = sphi 0, %s125
    %s142 = sphi 0, %s126
    %s146 = sphi 0, %s146
    %s148 = sphi 0, %s146
    %s149 = sphi 0, %s148
    %s163 = sphi 0, %s149
    %s167 = sphi 0, %s167
    %s169 = sphi 0, %s167
    %s170 = sphi 0, %s169
    %s184 = sphi 0, %s170
    %s188 = sphi 0, %s188
    %s190 = sphi 0, %s188
    %s191 = sphi 0, %s190
    %s205 = sphi 0, %s191
    %s209 = sphi 0, %s209
    %s211 = sphi 0, %s209
    %s212 = sphi 0, %s211
    %s226 = sphi 0, %s212
    %s230 = sphi 0, %s230
    %s232 = sphi 0, %s230
    %s233 = sphi 0, %s232
    %s247 = sphi 0, %s233
    %s251 = sphi 0, %s251
    %s253 = sphi 0, %s251
    %s254 = sphi 0, %s253
    %s268 = sphi 0, %s254
    %s272 = sphi 0, %s272
    %s274 = sphi 0, %s272
    %s275 = sphi 0, %s274
    %s289 = sphi 0, %s275
    %s293 = sphi 0, %s293
    %s295 = sphi 0, %s293
    %s296 = sphi 0, %s295
    %s310 = sphi 0, %s296
    %s318 = sphi 0, %s320
    %s321 = sphi 0, %s318
    %s322 = sphi 0, %s321
    %s338 = sphi 0, %s322
  $region4: #{tran_decoder_forward.8} parent=0 // loop_header_branch
    %21 = sbr.rel (%p19) target = $region8
  $region5: #{tran_decoder_forward.8} parent=0 // loop_body
    %s23 = ssub.s32 %s18, 1
    %s24 = ssub.s32 %s18, 2
    %s31 = sadd.s32 1, %s26
    %p32 = scmp.ge.s32.totalorder %s31, 1
    %s33 = scalar_select %p32, 0, %s31
    %s34 = sadd.s32 1, %s25
    %s35 = scalar_select %p32, %s34, %s25
    %p36 = scmp.ge.s32.totalorder %s35, 2
    %s37 = scalar_select %p36, 0, %s35
    %s38 = ssub.s32 %s25, %s37
    %s39 = ssub.s32 %s26, %s33
    %s40 = sor.u32 %s38, %s39
    %p41 = scmp.eq.s32.totalorder %s40, 0
    %s43 = sadd.s32 %s42, 1
    %s44 = scalar_select %p41, %s42, %s43
    %p47 = pneg %p41
    %p48 = scmp.eq.s32.totalorder %s18, 1
    %p49 = por %p47, %p48
    %p50 = scmp.ne.s32.totalorder %s42, %s45
    %p51 = scmp.eq.s32.totalorder %s18, 0
    %p52 = por %p50, %p51
    %p53 = scmp.ne.s32.totalorder %s42, %s45
    %p54 = scmp.eq.s32.totalorder %s23, 1
    %p55 = por %p53, %p54
    %p56 = scmp.ne.s32.totalorder %s45, %s46
    %p57 = scmp.eq.s32.totalorder %s23, 0
    %p58 = por %p56, %p57
    %p59 = scmp.ne.s32.totalorder %s45, %s46
    %p60 = scmp.eq.s32.totalorder %s24, 1
    %p61 = por %p59, %p60
    %p63 = scmp.ne.s32.totalorder %s46, %s62
    %p64 = scmp.eq.s32.totalorder %s24, 0
    %p65 = por %p63, %p64
    %s66 = ssub.s32 %s25, %s37
    %p67 = scmp.eq.s32.totalorder %s66, 0
    %s69 = sadd.s32 %s68, 1
    %s70 = scalar_select %p67, %s68, %s69
    %p73 = pneg %p67
    %p74 = scmp.eq.s32.totalorder %s18, 1
    %p75 = por %p73, %p74
    %p76 = scmp.ne.s32.totalorder %s68, %s71
    %p77 = scmp.eq.s32.totalorder %s18, 0
    %p78 = por %p76, %p77
    %p79 = scmp.ne.s32.totalorder %s68, %s71
    %p80 = scmp.eq.s32.totalorder %s23, 1
    %p81 = por %p79, %p80
    %p82 = scmp.ne.s32.totalorder %s71, %s72
    %p83 = scmp.eq.s32.totalorder %s23, 0
    %p84 = por %p82, %p83
    %p85 = scmp.ne.s32.totalorder %s71, %s72
    %p86 = scmp.eq.s32.totalorder %s24, 1
    %p87 = por %p85, %p86
    %p89 = scmp.ne.s32.totalorder %s72, %s88
    %p90 = scmp.eq.s32.totalorder %s24, 0
    %p91 = por %p89, %p90
    %s92 = ssub.s32 %s25, %s37
    %p93 = scmp.eq.s32.totalorder %s92, 0
    %s95 = sadd.s32 %s94, 1
    %s96 = scalar_select %p93, %s94, %s95
    %p99 = pneg %p93
    %p100 = scmp.eq.s32.totalorder %s18, 1
    %p101 = por %p99, %p100
    %p102 = scmp.ne.s32.totalorder %s94, %s97
    %p103 = scmp.eq.s32.totalorder %s18, 0
    %p104 = por %p102, %p103
    %p105 = scmp.ne.s32.totalorder %s94, %s97
    %p106 = scmp.eq.s32.totalorder %s23, 1
    %p107 = por %p105, %p106
    %p108 = scmp.ne.s32.totalorder %s97, %s98
    %p109 = scmp.eq.s32.totalorder %s23, 0
    %p110 = por %p108, %p109
    %p111 = scmp.ne.s32.totalorder %s97, %s98
    %p112 = scmp.eq.s32.totalorder %s24, 1
    %p113 = por %p111, %p112
    %p115 = scmp.ne.s32.totalorder %s98, %s114
    %p116 = scmp.eq.s32.totalorder %s24, 0
    %p117 = por %p115, %p116
    %s118 = ssub.s32 %s25, %s37
    %s119 = ssub.s32 %s26, %s33
    %s120 = sor.u32 %s118, %s119
    %p121 = scmp.eq.s32.totalorder %s120, 0
    %s123 = sadd.s32 %s122, 1
    %s124 = scalar_select %p121, %s122, %s123
    %p127 = pneg %p121
    %p128 = scmp.eq.s32.totalorder %s18, 1
    %p129 = por %p127, %p128
    %p130 = scmp.ne.s32.totalorder %s122, %s125
    %p131 = scmp.eq.s32.totalorder %s18, 0
    %p132 = por %p130, %p131
    %p133 = scmp.ne.s32.totalorder %s122, %s125
    %p134 = scmp.eq.s32.totalorder %s23, 1
    %p135 = por %p133, %p134
    %p136 = scmp.ne.s32.totalorder %s125, %s126
    %p137 = scmp.eq.s32.totalorder %s23, 0
    %p138 = por %p136, %p137
    %p139 = scmp.ne.s32.totalorder %s125, %s126
    %p140 = scmp.eq.s32.totalorder %s24, 1
    %p141 = por %p139, %p140
    %p143 = scmp.ne.s32.totalorder %s126, %s142
    %p144 = scmp.eq.s32.totalorder %s24, 0
    %p145 = por %p143, %p144
    %s147 = sadd.s32 %s146, 1
    %p150 = scmp.eq.s32.totalorder %s18, 1
    %p151 = scmp.ne.s32.totalorder %s146, %s148
    %p152 = scmp.eq.s32.totalorder %s18, 0
    %p153 = por %p151, %p152
    %p154 = scmp.ne.s32.totalorder %s146, %s148
    %p155 = scmp.eq.s32.totalorder %s23, 1
    %p156 = por %p154, %p155
    %p157 = scmp.ne.s32.totalorder %s148, %s149
    %p158 = scmp.eq.s32.totalorder %s23, 0
    %p159 = por %p157, %p158
    %p160 = scmp.ne.s32.totalorder %s148, %s149
    %p161 = scmp.eq.s32.totalorder %s24, 1
    %p162 = por %p160, %p161
    %p164 = scmp.ne.s32.totalorder %s149, %s163
    %p165 = scmp.eq.s32.totalorder %s24, 0
    %p166 = por %p164, %p165
    %s168 = sadd.s32 %s167, 1
    %p171 = scmp.eq.s32.totalorder %s18, 1
    %p172 = scmp.ne.s32.totalorder %s167, %s169
    %p173 = scmp.eq.s32.totalorder %s18, 0
    %p174 = por %p172, %p173
    %p175 = scmp.ne.s32.totalorder %s167, %s169
    %p176 = scmp.eq.s32.totalorder %s23, 1
    %p177 = por %p175, %p176
    %p178 = scmp.ne.s32.totalorder %s169, %s170
    %p179 = scmp.eq.s32.totalorder %s23, 0
    %p180 = por %p178, %p179
    %p181 = scmp.ne.s32.totalorder %s169, %s170
    %p182 = scmp.eq.s32.totalorder %s24, 1
    %p183 = por %p181, %p182
    %p185 = scmp.ne.s32.totalorder %s170, %s184
    %p186 = scmp.eq.s32.totalorder %s24, 0
    %p187 = por %p185, %p186
    %s189 = sadd.s32 %s188, 1
    %p192 = scmp.eq.s32.totalorder %s18, 1
    %p193 = scmp.ne.s32.totalorder %s188, %s190
    %p194 = scmp.eq.s32.totalorder %s18, 0
    %p195 = por %p193, %p194
    %p196 = scmp.ne.s32.totalorder %s188, %s190
    %p197 = scmp.eq.s32.totalorder %s23, 1
    %p198 = por %p196, %p197
    %p199 = scmp.ne.s32.totalorder %s190, %s191
    %p200 = scmp.eq.s32.totalorder %s23, 0
    %p201 = por %p199, %p200
    %p202 = scmp.ne.s32.totalorder %s190, %s191
    %p203 = scmp.eq.s32.totalorder %s24, 1
    %p204 = por %p202, %p203
    %p206 = scmp.ne.s32.totalorder %s191, %s205
    %p207 = scmp.eq.s32.totalorder %s24, 0
    %p208 = por %p206, %p207
    %s210 = sadd.s32 %s209, 1
    %p213 = scmp.eq.s32.totalorder %s18, 1
    %p214 = scmp.ne.s32.totalorder %s209, %s211
    %p215 = scmp.eq.s32.totalorder %s18, 0
    %p216 = por %p214, %p215
    %p217 = scmp.ne.s32.totalorder %s209, %s211
    %p218 = scmp.eq.s32.totalorder %s23, 1
    %p219 = por %p217, %p218
    %p220 = scmp.ne.s32.totalorder %s211, %s212
    %p221 = scmp.eq.s32.totalorder %s23, 0
    %p222 = por %p220, %p221
    %p223 = scmp.ne.s32.totalorder %s211, %s212
    %p224 = scmp.eq.s32.totalorder %s24, 1
    %p225 = por %p223, %p224
    %p227 = scmp.ne.s32.totalorder %s212, %s226
    %p228 = scmp.eq.s32.totalorder %s24, 0
    %p229 = por %p227, %p228
    %s231 = sadd.s32 %s230, 1
    %p234 = scmp.eq.s32.totalorder %s18, 1
    %p235 = scmp.ne.s32.totalorder %s230, %s232
    %p236 = scmp.eq.s32.totalorder %s18, 0
    %p237 = por %p235, %p236
    %p238 = scmp.ne.s32.totalorder %s230, %s232
    %p239 = scmp.eq.s32.totalorder %s23, 1
    %p240 = por %p238, %p239
    %p241 = scmp.ne.s32.totalorder %s232, %s233
    %p242 = scmp.eq.s32.totalorder %s23, 0
    %p243 = por %p241, %p242
    %p244 = scmp.ne.s32.totalorder %s232, %s233
    %p245 = scmp.eq.s32.totalorder %s24, 1
    %p246 = por %p244, %p245
    %p248 = scmp.ne.s32.totalorder %s233, %s247
    %p249 = scmp.eq.s32.totalorder %s24, 0
    %p250 = por %p248, %p249
    %s252 = sadd.s32 %s251, 1
    %p255 = scmp.eq.s32.totalorder %s18, 1
    %p256 = scmp.ne.s32.totalorder %s251, %s253
    %p257 = scmp.eq.s32.totalorder %s18, 0
    %p258 = por %p256, %p257
    %p259 = scmp.ne.s32.totalorder %s251, %s253
    %p260 = scmp.eq.s32.totalorder %s23, 1
    %p261 = por %p259, %p260
    %p262 = scmp.ne.s32.totalorder %s253, %s254
    %p263 = scmp.eq.s32.totalorder %s23, 0
    %p264 = por %p262, %p263
    %p265 = scmp.ne.s32.totalorder %s253, %s254
    %p266 = scmp.eq.s32.totalorder %s24, 1
    %p267 = por %p265, %p266
    %p269 = scmp.ne.s32.totalorder %s254, %s268
    %p270 = scmp.eq.s32.totalorder %s24, 0
    %p271 = por %p269, %p270
    %s273 = sadd.s32 %s272, 1
    %p276 = scmp.eq.s32.totalorder %s18, 1
    %p277 = scmp.ne.s32.totalorder %s272, %s274
    %p278 = scmp.eq.s32.totalorder %s18, 0
    %p279 = por %p277, %p278
    %p280 = scmp.ne.s32.totalorder %s272, %s274
    %p281 = scmp.eq.s32.totalorder %s23, 1
    %p282 = por %p280, %p281
    %p283 = scmp.ne.s32.totalorder %s274, %s275
    %p284 = scmp.eq.s32.totalorder %s23, 0
    %p285 = por %p283, %p284
    %p286 = scmp.ne.s32.totalorder %s274, %s275
    %p287 = scmp.eq.s32.totalorder %s24, 1
    %p288 = por %p286, %p287
    %p290 = scmp.ne.s32.totalorder %s275, %s289
    %p291 = scmp.eq.s32.totalorder %s24, 0
    %p292 = por %p290, %p291
    %s294 = sadd.s32 %s293, 1
    %p297 = scmp.eq.s32.totalorder %s18, 1
    %p298 = scmp.ne.s32.totalorder %s293, %s295
    %p299 = scmp.eq.s32.totalorder %s18, 0
    %p300 = por %p298, %p299
    %p301 = scmp.ne.s32.totalorder %s293, %s295
    %p302 = scmp.eq.s32.totalorder %s23, 1
    %p303 = por %p301, %p302
    %p304 = scmp.ne.s32.totalorder %s295, %s296
    %p305 = scmp.eq.s32.totalorder %s23, 0
    %p306 = por %p304, %p305
    %p307 = scmp.ne.s32.totalorder %s295, %s296
    %p308 = scmp.eq.s32.totalorder %s24, 1
    %p309 = por %p307, %p308
    %p311 = scmp.ne.s32.totalorder %s296, %s310
    %p312 = scmp.eq.s32.totalorder %s24, 0
    %p313 = por %p311, %p312
    %s314 = ssub.s32 %s25, %s37
    %s315 = ssub.s32 %s26, %s33
    %s316 = sor.u32 %s314, %s315
    %p317 = scmp.eq.s32.totalorder %s316, 0
    %s319 = sadd.s32 %s318, 1
    %s320 = scalar_select %p317, %s318, %s319
    %p323 = pneg %p317
    %p324 = scmp.eq.s32.totalorder %s18, 1
    %p325 = por %p323, %p324
    %p326 = scmp.ne.s32.totalorder %s318, %s321
    %p327 = scmp.eq.s32.totalorder %s18, 0
    %p328 = por %p326, %p327
    %p329 = scmp.ne.s32.totalorder %s318, %s321
    %p330 = scmp.eq.s32.totalorder %s23, 1
    %p331 = por %p329, %p330
    %p332 = scmp.ne.s32.totalorder %s321, %s322
    %p333 = scmp.eq.s32.totalorder %s23, 0
    %p334 = por %p332, %p333
    %p335 = scmp.ne.s32.totalorder %s321, %s322
    %p336 = scmp.eq.s32.totalorder %s24, 1
    %p337 = por %p335, %p336
    %p339 = scmp.ne.s32.totalorder %s322, %s338
    %p340 = scmp.eq.s32.totalorder %s24, 0
    %p341 = por %p339, %p340
    %p342 = scmp.le.s32.totalorder 1, %s18
    %p343 = scmp.lt.s32.totalorder %s18, 3
    %p344 = pnand %p342, %p343
    %p345 = pneg %p344
    // Predicated region
    $region9: #{tran_decoder_forward.8} parent=5 // pred_check
      _
    $region10: #{tran_decoder_forward.8} parent=5 // pred_check_branch
      %347 = sbr.rel (%p344) target = $region12
    $region11: #{tran_decoder_forward.8} parent=5 // pred_region
      %s348 = ssub.s32 %s18, 1
      // Predicated region
      $region13: #{tran_decoder_forward.8} parent=11 // pred_check
        %p349 = pneg %p159
      $region14: #{tran_decoder_forward.8} parent=11 // pred_check_branch
        %351 = sbr.rel (%p349) target = $region16
      $region15: #{tran_decoder_forward.8} parent=11 // pred_region
        _
      $region16: #{tran_decoder_forward.8} parent=11 // pred_fallthru
        _
      // Predicated region
      $region17: #{tran_decoder_forward.8} parent=11 // pred_check
        %p352 = pneg %p180
      $region18: #{tran_decoder_forward.8} parent=11 // pred_check_branch
        %354 = sbr.rel (%p352) target = $region20
      $region19: #{tran_decoder_forward.8} parent=11 // pred_region
        _
      $region20: #{tran_decoder_forward.8} parent=11 // pred_fallthru
        _
      // Predicated region
      $region21: #{tran_decoder_forward.8} parent=11 // pred_check
        %p355 = pneg %p201
      $region22: #{tran_decoder_forward.8} parent=11 // pred_check_branch
        %357 = sbr.rel (%p355) target = $region24
      $region23: #{tran_decoder_forward.8} parent=11 // pred_region
        _
      $region24: #{tran_decoder_forward.8} parent=11 // pred_fallthru
        _
      // Predicated region
      $region25: #{tran_decoder_forward.8} parent=11 // pred_check
        %p358 = pneg %p222
      $region26: #{tran_decoder_forward.8} parent=11 // pred_check_branch
        %360 = sbr.rel (%p358) target = $region28
      $region27: #{tran_decoder_forward.8} parent=11 // pred_region
        _
      $region28: #{tran_decoder_forward.8} parent=11 // pred_fallthru
        _
      // Predicated region
      $region29: #{tran_decoder_forward.8} parent=11 // pred_check
        %p361 = pneg %p243
      $region30: #{tran_decoder_forward.8} parent=11 // pred_check_branch
        %363 = sbr.rel (%p361) target = $region32
      $region31: #{tran_decoder_forward.8} parent=11 // pred_region
        _
      $region32: #{tran_decoder_forward.8} parent=11 // pred_fallthru
        _
      // Predicated region
      $region33: #{tran_decoder_forward.8} parent=11 // pred_check
        %p364 = pneg %p264
      $region34: #{tran_decoder_forward.8} parent=11 // pred_check_branch
        %366 = sbr.rel (%p364) target = $region36
      $region35: #{tran_decoder_forward.8} parent=11 // pred_region
        _
      $region36: #{tran_decoder_forward.8} parent=11 // pred_fallthru
        _
      // Predicated region
      $region37: #{tran_decoder_forward.8} parent=11 // pred_check
        %p367 = pneg %p285
      $region38: #{tran_decoder_forward.8} parent=11 // pred_check_branch
        %369 = sbr.rel (%p367) target = $region40
      $region39: #{tran_decoder_forward.8} parent=11 // pred_region
        _
      $region40: #{tran_decoder_forward.8} parent=11 // pred_fallthru
        _
      // Predicated region
      $region41: #{tran_decoder_forward.8} parent=11 // pred_check
        %p370 = pneg %p306
      $region42: #{tran_decoder_forward.8} parent=11 // pred_check_branch
        %372 = sbr.rel (%p370) target = $region44
      $region43: #{tran_decoder_forward.8} parent=11 // pred_region
        _
      $region44: #{tran_decoder_forward.8} parent=11 // pred_fallthru
        _
    $region12: #{tran_decoder_forward.8} parent=5 // pred_fallthru
      _
    %p373 = scmp.lt.s32.totalorder %s18, 2
    // Predicated region
    $region45: #{tran_decoder_forward.8} parent=5 // pred_check
      %p374 = pneg %p373
    $region46: #{tran_decoder_forward.8} parent=5 // pred_check_branch
      %376 = sbr.rel (%p374) target = $region48
    $region47: #{tran_decoder_forward.8} parent=5 // pred_region
      // Predicated region
      $region49: #{tran_decoder_forward.8} parent=47 // pred_check
        %p377 = pneg %p52
      $region50: #{tran_decoder_forward.8} parent=47 // pred_check_branch
        %379 = sbr.rel (%p377) target = $region52
      $region51: #{tran_decoder_forward.8} parent=47 // pred_region
        %p380 = scmp.lt.s32.totalorder %s25, 1
        %s381 = scalar_select %p380, %s25, 1
        %p382 = scmp.lt.s32.totalorder %s26, 0
        %s383 = scalar_select %p382, %s26, 0
        %s384 = sadd.s32 %s383, %s381
        %s385 = smul.addr %s384, 4
        %s386 = scalar_lea.vmem %s0, %s385
      $region52: #{tran_decoder_forward.8} parent=47 // pred_fallthru
        _
      // Predicated region
      $region53: #{tran_decoder_forward.8} parent=47 // pred_check
        %p387 = pneg %p78
      $region54: #{tran_decoder_forward.8} parent=47 // pred_check_branch
        %389 = sbr.rel (%p387) target = $region56
      $region55: #{tran_decoder_forward.8} parent=47 // pred_region
        %p390 = scmp.lt.s32.totalorder %s25, 1
        %s391 = scalar_select %p390, %s25, 1
        %s392 = smul.addr %s391, 4
        %s393 = scalar_lea.vmem %s1, %s392
      $region56: #{tran_decoder_forward.8} parent=47 // pred_fallthru
        _
      // Predicated region
      $region57: #{tran_decoder_forward.8} parent=47 // pred_check
        %p394 = pneg %p104
      $region58: #{tran_decoder_forward.8} parent=47 // pred_check_branch
        %396 = sbr.rel (%p394) target = $region60
      $region59: #{tran_decoder_forward.8} parent=47 // pred_region
        %p397 = scmp.lt.s32.totalorder %s25, 1
        %s398 = scalar_select %p397, %s25, 1
        %s399 = scalar_lea.vmem %s2, %s398
      $region60: #{tran_decoder_forward.8} parent=47 // pred_fallthru
        _
      // Predicated region
      $region61: #{tran_decoder_forward.8} parent=47 // pred_check
        %p400 = pneg %p132
      $region62: #{tran_decoder_forward.8} parent=47 // pred_check_branch
        %402 = sbr.rel (%p400) target = $region64
      $region63: #{tran_decoder_forward.8} parent=47 // pred_region
        %p403 = scmp.lt.s32.totalorder %s25, 1
        %s404 = scalar_select %p403, %s25, 1
        %p405 = scmp.lt.s32.totalorder %s26, 0
        %s406 = scalar_select %p405, %s26, 0
        %s407 = sadd.s32 %s406, %s404
        %s408 = smul.addr %s407, 8
        %s409 = scalar_lea.vmem %s3, %s408
      $region64: #{tran_decoder_forward.8} parent=47 // pred_fallthru
        _
    $region48: #{tran_decoder_forward.8} parent=5 // pred_fallthru
      _
    %p410 = scmp.le.s32.totalorder 1, %s18
    %p411 = scmp.lt.s32.totalorder %s18, 3
    %p412 = pnand %p410, %p411
    %p413 = pneg %p412
    // Predicated region
    $region65: #{tran_decoder_forward.8} parent=5 // pred_check
      _
    $region66: #{tran_decoder_forward.8} parent=5 // pred_check_branch
      %415 = sbr.rel (%p412) target = $region68
    $region67: #{tran_decoder_forward.8} parent=5 // pred_region
      %s416 = ssub.s32 %s18, 1
      %p417 = scmp.lt.s32.totalorder %s27, 1
      %s418 = scalar_select %p417, %s27, 1
      %p419 = scmp.lt.s32.totalorder %s28, 0
      %s420 = scalar_select %p419, %s28, 0
      %s421 = sadd.s32 %s420, %s418
      %s422 = smul.addr %s421, 4
      %s423 = scalar_lea.vmem %s0, %s422
      %p424 = pneg %p58
      %p425 = pneg %p55
      %p426 = scmp.lt.s32.totalorder %s27, 1
      %s427 = scalar_select %p426, %s27, 1
      %s428 = smul.addr %s427, 4
      %s429 = scalar_lea.vmem %s1, %s428
      %p430 = pneg %p84
      %p431 = pneg %p81
      %p432 = scmp.lt.s32.totalorder %s27, 1
      %s433 = scalar_select %p432, %s27, 1
      %s434 = scalar_lea.vmem %s2, %s433
      %p435 = pneg %p110
      %p436 = pneg %p107
      %p437 = scmp.lt.s32.totalorder %s27, 1
      %s438 = scalar_select %p437, %s27, 1
      %p439 = scmp.lt.s32.totalorder %s28, 0
      %s440 = scalar_select %p439, %s28, 0
      %s441 = sadd.s32 %s440, %s438
      %s442 = smul.addr %s441, 8
      %s443 = scalar_lea.vmem %s3, %s442
      %p444 = pneg %p138
      %p445 = pneg %p135
      %p446 = pneg %p159
      %p447 = pneg %p156
      %p448 = pneg %p180
      %p449 = pneg %p177
      %p450 = pneg %p201
      %p451 = pneg %p198
      %p452 = pneg %p222
      %p453 = pneg %p219
      %p454 = pneg %p243
      %p455 = pneg %p240
      %p456 = pneg %p264
      %p457 = pneg %p261
      %p458 = pneg %p285
      %p459 = pneg %p282
      %p460 = pneg %p306
      %p461 = pneg %p303
      %p462 = pneg %p334
      %p463 = pneg %p331
      %p464 = scmp.lt.s32.totalorder %s27, 1
      %s465 = scalar_select %p464, %s27, 1
      %p466 = scmp.lt.s32.totalorder %s28, 0
      %s467 = scalar_select %p466, %s28, 0
      %s468 = sadd.s32 %s467, %s465
      %s469 = smul.addr %s468, 4
      %s470 = scalar_lea.vmem %s12, %s469
      %p471 = scmp.lt.s32.totalorder %s27, 1
      %s472 = scalar_select %p471, %s27, 1
      %p473 = scmp.lt.s32.totalorder %s28, 0
      %s474 = scalar_select %p473, %s28, 0
      %s475 = sadd.s32 %s474, %s472
      %s476 = smul.addr %s475, 4
      %s477 = scalar_lea.vmem %s0, %s476
      %p478 = scmp.lt.s32.totalorder %s27, 1
      %s479 = scalar_select %p478, %s27, 1
      %s480 = smul.addr %s479, 4
      %s481 = scalar_lea.vmem %s1, %s480
      %p482 = scmp.lt.s32.totalorder %s27, 1
      %s483 = scalar_select %p482, %s27, 1
      %s484 = scalar_lea.vmem %s2, %s483
      %p485 = scmp.lt.s32.totalorder %s27, 1
      %s486 = scalar_select %p485, %s27, 1
      %p487 = scmp.lt.s32.totalorder %s28, 0
      %s488 = scalar_select %p487, %s28, 0
      %s489 = sadd.s32 %s488, %s486
      %s490 = smul.addr %s489, 8
      %s491 = scalar_lea.vmem %s3, %s490
      %p492 = scmp.lt.s32.totalorder %s27, 1
      %s493 = scalar_select %p492, %s27, 1
      %p494 = scmp.lt.s32.totalorder %s28, 0
      %s495 = scalar_select %p494, %s28, 0
      %s496 = sadd.s32 %s495, %s493
      %s497 = smul.addr %s496, 4
      %s498 = scalar_lea.vmem %s12, %s497
      %v500 = vld [vmem:[%s477] sm:$0xf]
      %v501 = vld [vmem:[%s481] sm:$0xf]
      %v502 = vld [vmem:[%s4] sm:$0xf]
      %v503 = vld [vmem:[%s4 + $0x4] sm:$0xf]
      %v504 = vld [vmem:[%s4 + $0x8] sm:$0xf]
      %v505 = vld [vmem:[%s4 + $0xc] sm:$0xf]
      %v506 = vld [vmem:[%s5] sm:$0x1]
      %v508 = vperm.slane %v506, 0
      %v514 = vunpack.c.l.b16 %v502
      %v515 = vunpack.c.l.b16 %v503
      %v516 = vunpack.c.l.b16 %v504
      %v517 = vunpack.c.l.b16 %v505
      %v518 = vpack.c.b16 %v515, %v514
      %v519 = vpack.c.b16 %v517, %v516
      %vm522 = vcmask 261120
      %v524 = vsel %vm522, %v500, 0
      %526 = vmatpush.bf16.msra.mxu0 0
      %527 = vmatpush.bf16.msra.mxu0 0
      %528 = vmatpush.bf16.msra.mxu0 0
      %529 = vmatpush.bf16.msra.mxu0 0
      %530 = vmatpush.bf16.msra.mxu0 0
      %531 = vmatpush.bf16.msra.mxu0 0
      %532 = vmatpush.bf16.msra.mxu0 %v519
      %533 = vmatpush.bf16.msra.mxu0 %v518
      %534 = vmatmul.bf16.gmra.mxu0 %v524
      %v535 = vpop.f32.mrf.mxu0
      %v536 = vadd.f32 %v508, %v535
      %v537 = vpop.f32.mrf.mxu0
      %538 = vdwg.mxu0
      %v539 = vld [vmem:[%s6] sm:$0xf]
      %v540 = vld [vmem:[%s6 + $0x4] sm:$0xf]
      %v541 = vld [vmem:[%s6 + $0x8] sm:$0xf]
      %v542 = vld [vmem:[%s6 + $0xc] sm:$0xf]
      %v543 = vld [vmem:[%s7] sm:$0x1]
      %v545 = vperm.slane %v543, 0
      %v551 = vunpack.c.l.b16 %v539
      %v552 = vunpack.c.l.b16 %v540
      %v553 = vunpack.c.l.b16 %v541
      %v554 = vunpack.c.l.b16 %v542
      %v555 = vpack.c.b16 %v552, %v551
      %v556 = vpack.c.b16 %v554, %v553
      %v560 = vsel %vm522, %v501, 0
      %562 = vmatpush.bf16.msra.mxu0 0
      %563 = vmatpush.bf16.msra.mxu0 0
      %564 = vmatpush.bf16.msra.mxu0 0
      %565 = vmatpush.bf16.msra.mxu0 0
      %566 = vmatpush.bf16.msra.mxu0 0
      %567 = vmatpush.bf16.msra.mxu0 0
      %568 = vmatpush.bf16.msra.mxu0 %v556
      %569 = vmatpush.bf16.msra.mxu0 %v555
      %570 = vmatmul.bf16.gmra.mxu0 %v560
      %v571 = vpop.f32.mrf.mxu0
      %v572 = vadd.f32 %v545, %v571
      %v573 = vpop.f32.mrf.mxu0
      %574 = vdwg.mxu0
      %v575 = vld [vmem:[%s484] sm:$0x1]
      %vm576 = vcmp.gt.f32.partialorder %v575, 0.0
      %v577 = vsel %vm576, 1, 0
      %v578 = vperm.slane %v577, 0
      %vm579 = vcmp.eq.s32.totalorder %v578, 1
      %s580 = smul.u32 %s28, 8
      %v581 = vlaneseq
      %v582 = vshrl.u32 %v581, 7
      %v583 = vstv %s580
      %v584 = vadd.s32 %v583, %v582
      %v585 = vlaneseq
      %v586 = vand.u32 %v585, 127
      %vm587 = vcmp.gt.s32.totalorder %v586, %v584
      %vm588 = vmor %vm579, %vm587
      %v589 = vpack.c.bf16 %v536, %v536
      %v590 = vpack.c.bf16 %v572, %v572
      %vm591 = vcmask 130048
      %v593 = vsel %vm591, %v589, 0
      %v596 = vsel %vm591, %v590, 0
      %598 = vmatpush.bf16.xpose.msra.mxu0 0
      %599 = vmatpush.bf16.xpose.msra.mxu0 0
      %600 = vmatpush.bf16.xpose.msra.mxu0 0
      %601 = vmatpush.bf16.xpose.msra.mxu0 0
      %602 = vmatpush.bf16.xpose.msra.mxu0 0
      %603 = vmatpush.bf16.xpose.msra.mxu0 0
      %604 = vmatpush.bf16.xpose.msra.mxu0 0
      %605 = vmatpush.bf16.xpose.msra.mxu0 %v596
      %606 = vmatmul.bf16.gmra.mxu0 %v593
      %v607 = vpop.f32.mrf.mxu0
      %v608 = vadd.f32 0.0, %v607
      %v609 = vpop.f32.mrf.mxu0
      %610 = vdwg.mxu0
      %v611 = vmul.f32 %v608, 0.25
      %v612 = vsel %vm588, -1e+30, %v611
      %vm613 = vcmask 64512
      %v614 = vsel %vm613, %v612, -inf
      %615 = vmax.xlane.f32.xlu0 %v614
      %v616 = vpop.xlane.xlu0 %615
      %v617 = vsub.f32 %v612, %v616
      %v618 = vmul.f32 %v617, 1.442695
      %v619 = vpow.pop %v618
      %v620 = vsel %vm613, %v619, 0.0
      %621 = vadd.xlane.f32.xlu0 %v620
      %v622 = vpop.xlane.xlu0 %621
      %v623 = vrcp.pop %v622
      %v624 = vmul.f32 %v619, %v623
      %v625 = vpack.c.bf16 %v624, %v624
      %627 = vrot.lane.b32.xlu0 %v590, 96
      %v628 = vpop.permute.xlu0 %627
      %v630 = vsel %vm613, %v625, 0
      %vm632 = vcmask 1043456
      %v634 = vsel %vm632, %v628, 0
      %636 = vmatpush.bf16.msra.mxu0 0
      %637 = vmatpush.bf16.msra.mxu0 0
      %638 = vmatpush.bf16.msra.mxu0 0
      %639 = vmatpush.bf16.msra.mxu0 0
      %640 = vmatpush.bf16.msra.mxu0 0
      %641 = vmatpush.bf16.msra.mxu0 0
      %642 = vmatpush.bf16.msra.mxu0 0
      %643 = vmatpush.bf16.msra.mxu0 %v634
      %644 = vmatmul.bf16.gmra.mxu0 %v630
      %v645 = vpop.f32.mrf.mxu0
      %v646 = vadd.f32 0.0, %v645
      %v647 = vpop.f32.mrf.mxu0
      %648 = vdwg.mxu0
      %650 = vrot.lane.b32.xlu0 %v589, 112
      %v651 = vpop.permute.xlu0 %650
      %652 = vrot.lane.b32.xlu0 %v590, 112
      %v653 = vpop.permute.xlu0 %652
      %v655 = vsel %vm591, %v651, 0
      %v658 = vsel %vm591, %v653, 0
      %660 = vmatpush.bf16.xpose.msra.mxu0 0
      %661 = vmatpush.bf16.xpose.msra.mxu0 0
      %662 = vmatpush.bf16.xpose.msra.mxu0 0
      %663 = vmatpush.bf16.xpose.msra.mxu0 0
      %664 = vmatpush.bf16.xpose.msra.mxu0 0
      %665 = vmatpush.bf16.xpose.msra.mxu0 0
      %666 = vmatpush.bf16.xpose.msra.mxu0 0
      %667 = vmatpush.bf16.xpose.msra.mxu0 %v658
      %668 = vmatmul.bf16.gmra.mxu0 %v655
      %v669 = vpop.f32.mrf.mxu0
      %v670 = vadd.f32 0.0, %v669
      %v671 = vpop.f32.mrf.mxu0
      %672 = vdwg.mxu0
      %v673 = vmul.f32 %v670, 0.25
      %v674 = vsel %vm588, -1e+30, %v673
      %v675 = vsel %vm613, %v674, -inf
      %676 = vmax.xlane.f32.xlu0 %v675
      %v677 = vpop.xlane.xlu0 %676
      %v678 = vsub.f32 %v674, %v677
      %v679 = vmul.f32 %v678, 1.442695
      %v680 = vpow.pop %v679
      %v681 = vsel %vm613, %v680, 0.0
      %682 = vadd.xlane.f32.xlu0 %v681
      %v683 = vpop.xlane.xlu0 %682
      %v684 = vrcp.pop %v683
      %v685 = vmul.f32 %v680, %v684
      %v686 = vpack.c.bf16 %v685, %v685
      %687 = vrot.lane.b32.xlu0 %v590, 80
      %v688 = vpop.permute.xlu0 %687
      %v690 = vsel %vm613, %v686, 0
      %v693 = vsel %vm632, %v688, 0
      %695 = vmatpush.bf16.msra.mxu0 0
      %696 = vmatpush.bf16.msra.mxu0 0
      %697 = vmatpush.bf16.msra.mxu0 0
      %698 = vmatpush.bf16.msra.mxu0 0
      %699 = vmatpush.bf16.msra.mxu0 0
      %700 = vmatpush.bf16.msra.mxu0 0
      %701 = vmatpush.bf16.msra.mxu0 0
      %702 = vmatpush.bf16.msra.mxu0 %v693
      %703 = vmatmul.bf16.gmra.mxu0 %v690
      %v704 = vpop.f32.mrf.mxu0
      %v705 = vadd.f32 0.0, %v704
      %v706 = vpop.f32.mrf.mxu0
      %707 = vdwg.mxu0
      %709 = vrot.lane.b32.xlu0 %v705, 16
      %v710 = vpop.permute.xlu0 %709
      %v712 = vsel %vm591, %v646, %v710
      %v713 = vpack.c.bf16 %v712, %v712
      %v714 = vld [vmem:[%s8] sm:$0xf]
      %v715 = vld [vmem:[%s8 + $0x4] sm:$0xf]
      %v716 = vld [vmem:[%s8 + $0x8] sm:$0xf]
      %v717 = vld [vmem:[%s8 + $0xc] sm:$0xf]
      %v718 = vld [vmem:[%s9] sm:$0x1]
      %v720 = vperm.slane %v718, 0
      %v726 = vunpack.c.l.b16 %v714
      %v727 = vunpack.c.l.b16 %v715
      %v728 = vunpack.c.l.b16 %v716
      %v729 = vunpack.c.l.b16 %v717
      %v730 = vpack.c.b16 %v727, %v726
      %v731 = vpack.c.b16 %v729, %v728
      %v735 = vsel %vm522, %v713, 0
      %737 = vmatpush.bf16.msra.mxu0 0
      %738 = vmatpush.bf16.msra.mxu0 0
      %739 = vmatpush.bf16.msra.mxu0 0
      %740 = vmatpush.bf16.msra.mxu0 0
      %741 = vmatpush.bf16.msra.mxu0 0
      %742 = vmatpush.bf16.msra.mxu0 0
      %743 = vmatpush.bf16.msra.mxu0 %v731
      %744 = vmatpush.bf16.msra.mxu0 %v730
      %745 = vmatmul.bf16.gmra.mxu0 %v735
      %v746 = vpop.f32.mrf.mxu0
      %v747 = vadd.f32 %v720, %v746
      %v748 = vpop.f32.mrf.mxu0
      %749 = vdwg.mxu0
      %v750 = vunpack.c.l.bf16 %v500
      %v751 = vadd.f32 %v747, %v750
      %v752 = vsel %vm522, %v751, 0.0
      %753 = vadd.xlane.f32.xlu0 %v752
      %v754 = vpop.xlane.xlu0 %753
      %v755 = vrcp.pop 32.0
      %v756 = vmul.f32 32.0, %v755
      %v757 = vsub.f32 1.0, %v756
      %v758 = vmul.f32 %v755, %v757
      %v759 = vadd.f32 %v755, %v758
      %vm760 = vweird.f32 %v755
      %v761 = vsel %vm760, %v755, %v759
      %v762 = vmul.f32 %v754, %v761
      %v763 = vsub.f32 %v751, %v762
      %v764 = vmul.f32 %v763, %v763
      %v765 = vsel %vm522, %v764, 0.0
      %766 = vadd.xlane.f32.xlu0 %v765
      %v767 = vpop.xlane.xlu0 %766
      %v768 = vmul.f32 %v767, %v761
      %v769 = vadd.f32 %v768, 1e-05
      %v770 = vrsqrt.pop %v769
      %v771 = vmul.f32 %v770, %v769
      %v772 = vmul.f32 %v771, %v770
      %v773 = vmul.f32 0.5, %v772
      %v774 = vsub.f32 1.5, %v773
      %v775 = vmul.f32 %v770, %v774
      %vm776 = vweird.f32 %v769
      %vm777 = vweird.f32 %v770
      %vm778 = vmor %vm776, %vm777
      %v779 = vsel %vm778, %v770, %v775
      %v780 = vmul.f32 %v763, %v779
      %v781 = vld [vmem:[%s10] sm:$0x1]
      %v783 = vperm.slane %v781, 0
      %v785 = vmul.f32 %v780, %v783
      %v786 = vld [vmem:[%s11] sm:$0x1]
      %v788 = vperm.slane %v786, 0
      %v790 = vadd.f32 %v785, %v788
      %v791 = vld [vmem:[%s491] sm:$0xff]
      %793 = vset.pattern.permute.xlu0 0
      %794 = vperm.xlu0 %793, %v791
      %v795 = vpop.permute.xlu0 %794
      %v797 = vmul.f32 %v790, %v795
      %v798 = vpack.c.bf16 %v797, %v797
      %vm799 = vcmask 257024
      %800 = vst.msk [vmem:[%s498] sm:$0xf] %vm799, %v798
      %p801 = scmp.lt.s32.totalorder %s27, 1
      %s802 = scalar_select %p801, %s27, 1
      %p803 = scmp.lt.s32.totalorder %s28, 0
      %s804 = scalar_select %p803, %s28, 0
      %s805 = sadd.s32 %s804, %s802
      %s806 = smul.addr %s805, 4
      %s807 = scalar_lea.vmem %s12, %s806
      // Predicated region
      $region69: #{tran_decoder_forward.8} parent=67 // pred_check
        %p808 = pneg %p331
      $region70: #{tran_decoder_forward.8} parent=67 // pred_check_branch
        %810 = sbr.rel (%p808) target = $region72
      $region71: #{tran_decoder_forward.8} parent=67 // pred_region
        _
      $region72: #{tran_decoder_forward.8} parent=67 // pred_fallthru
        _
    $region68: #{tran_decoder_forward.8} parent=5 // pred_fallthru
      _
    %p811 = scmp.le.s32.totalorder 2, %s18
    // Predicated region
    $region73: #{tran_decoder_forward.8} parent=5 // pred_check
      %p812 = pneg %p811
    $region74: #{tran_decoder_forward.8} parent=5 // pred_check_branch
      %814 = sbr.rel (%p812) target = $region76
    $region75: #{tran_decoder_forward.8} parent=5 // pred_region
      %s815 = ssub.s32 %s18, 2
      // Predicated region
      $region77: #{tran_decoder_forward.8} parent=75 // pred_check
        %p816 = pneg %p337
      $region78: #{tran_decoder_forward.8} parent=75 // pred_check_branch
        %818 = sbr.rel (%p816) target = $region80
      $region79: #{tran_decoder_forward.8} parent=75 // pred_region
        %p819 = scmp.lt.s32.totalorder %s29, 1
        %s820 = scalar_select %p819, %s29, 1
        %p821 = scmp.lt.s32.totalorder %s30, 0
        %s822 = scalar_select %p821, %s30, 0
        %s823 = sadd.s32 %s822, %s820
        %s824 = smul.addr %s823, 4
        %s825 = scalar_lea.vmem %s12, %s824
      $region80: #{tran_decoder_forward.8} parent=75 // pred_fallthru
        _
    $region76: #{tran_decoder_forward.8} parent=5 // pred_fallthru
      _
  $region6: #{tran_decoder_forward.8} parent=0 // loop_footer
    %s22 = sadd.s32 1, %s18
  $region7: #{tran_decoder_forward.8} parent=0 // loop_footer_branch
    %17 = sbr.rel target = $region3
  $region8: #{tran_decoder_forward.8} parent=0 // loop_exit
    _

// kernel: tran_decoder_forward.9
$region0: #{tran_decoder_forward.9}
  #allocation0 [shape = 'u32[]', space=smem, size = 0x4, offset = 0x4, fixed_abs, tag = 'smem constant byte address 0x4 - core index']
  #allocation1 [shape = 'u32[72,128]{1,0:T(1,128)}', space=vmem, size = 0x9000, scoped, tag = 'internal scratch']
  %s0 = inlined_call_operand.vmem [shape: bf16[2,8,32], index: 0, kind: input, shape index: {}]
  %s1 = inlined_call_operand.vmem [shape: bf16[2,8,32], index: 1, kind: input, shape index: {}]
  %s2 = inlined_call_operand.vmem [shape: f32[2,1,8], index: 2, kind: input, shape index: {}]
  %s3 = inlined_call_operand.vmem [shape: f32[2,8,1], index: 3, kind: input, shape index: {}]
  %s4 = inlined_call_operand.vmem [shape: bf16[32,32], index: 4, kind: input, shape index: {}]
  %s5 = inlined_call_operand.vmem [shape: f32[1,32], index: 5, kind: input, shape index: {}]
  %s6 = inlined_call_operand.vmem [shape: bf16[32,64], index: 6, kind: input, shape index: {}]
  %s7 = inlined_call_operand.vmem [shape: f32[1,64], index: 7, kind: input, shape index: {}]
  %s8 = inlined_call_operand.vmem [shape: bf16[32,32], index: 8, kind: input, shape index: {}]
  %s9 = inlined_call_operand.vmem [shape: f32[1,32], index: 9, kind: input, shape index: {}]
  %s10 = inlined_call_operand.vmem [shape: f32[1,32], index: 10, kind: input, shape index: {}]
  %s11 = inlined_call_operand.vmem [shape: f32[1,32], index: 11, kind: input, shape index: {}]
  %s12 = inlined_call_operand.vmem [shape: bf16[2,8,32], index: 12, kind: output, shape index: {}]
  %s13 = sld [smem:[#allocation0]]
  $region81: #{tran_decoder_forward.9} parent=0
    _
  %s15 = ssub.s32 1, %s13
  %s16 = scalar_select 0, %s15, %s13
  loop: start=0, step=1, limit=4
  $region2: #{tran_decoder_forward.9} parent=0 // loop_pre_header
    _
  $region3: #{tran_decoder_forward.9} parent=0 // loop_header
    %s18 = sphi 0, %s22
    %p19 = scmp.ge.s32.totalorder %s18, 4
    %s25 = sphi 0, %s37
    %s26 = sphi 0, %s33
    %s27 = sphi 0, %s25
    %s28 = sphi 0, %s26
    %s29 = sphi 0, %s27
    %s30 = sphi 0, %s28
    %s42 = sphi 0, %s44
    %s45 = sphi 0, %s42
    %s46 = sphi 0, %s45
    %s62 = sphi 0, %s46
    %s68 = sphi 0, %s70
    %s71 = sphi 0, %s68
    %s72 = sphi 0, %s71
    %s88 = sphi 0, %s72
    %s94 = sphi 0, %s96
    %s97 = sphi 0, %s94
    %s98 = sphi 0, %s97
    %s114 = sphi 0, %s98
    %s122 = sphi 0, %s124
    %s125 = sphi 0, %s122
    %s126 = sphi 0, %s125
    %s142 = sphi 0, %s126
    %s146 = sphi 0, %s146
    %s148 = sphi 0, %s146
    %s149 = sphi 0, %s148
    %s163 = sphi 0, %s149
    %s167 = sphi 0, %s167
    %s169 = sphi 0, %s167
    %s170 = sphi 0, %s169
    %s184 = sphi 0, %s170
    %s188 = sphi 0, %s188
    %s190 = sphi 0, %s188
    %s191 = sphi 0, %s190
    %s205 = sphi 0, %s191
    %s209 = sphi 0, %s209
    %s211 = sphi 0, %s209
    %s212 = sphi 0, %s211
    %s226 = sphi 0, %s212
    %s230 = sphi 0, %s230
    %s232 = sphi 0, %s230
    %s233 = sphi 0, %s232
    %s247 = sphi 0, %s233
    %s251 = sphi 0, %s251
    %s253 = sphi 0, %s251
    %s254 = sphi 0, %s253
    %s268 = sphi 0, %s254
    %s272 = sphi 0, %s272
    %s274 = sphi 0, %s272
    %s275 = sphi 0, %s274
    %s289 = sphi 0, %s275
    %s293 = sphi 0, %s293
    %s295 = sphi 0, %s293
    %s296 = sphi 0, %s295
    %s310 = sphi 0, %s296
    %s318 = sphi 0, %s320
    %s321 = sphi 0, %s318
    %s322 = sphi 0, %s321
    %s338 = sphi 0, %s322
  $region4: #{tran_decoder_forward.9} parent=0 // loop_header_branch
    %21 = sbr.rel (%p19) target = $region8
  $region5: #{tran_decoder_forward.9} parent=0 // loop_body
    %s23 = ssub.s32 %s18, 1
    %s24 = ssub.s32 %s18, 2
    %s31 = sadd.s32 1, %s26
    %p32 = scmp.ge.s32.totalorder %s31, 1
    %s33 = scalar_select %p32, 0, %s31
    %s34 = sadd.s32 1, %s25
    %s35 = scalar_select %p32, %s34, %s25
    %p36 = scmp.ge.s32.totalorder %s35, 2
    %s37 = scalar_select %p36, 0, %s35
    %s38 = ssub.s32 %s25, %s37
    %s39 = ssub.s32 %s26, %s33
    %s40 = sor.u32 %s38, %s39
    %p41 = scmp.eq.s32.totalorder %s40, 0
    %s43 = sadd.s32 %s42, 1
    %s44 = scalar_select %p41, %s42, %s43
    %p47 = pneg %p41
    %p48 = scmp.eq.s32.totalorder %s18, 1
    %p49 = por %p47, %p48
    %p50 = scmp.ne.s32.totalorder %s42, %s45
    %p51 = scmp.eq.s32.totalorder %s18, 0
    %p52 = por %p50, %p51
    %p53 = scmp.ne.s32.totalorder %s42, %s45
    %p54 = scmp.eq.s32.totalorder %s23, 1
    %p55 = por %p53, %p54
    %p56 = scmp.ne.s32.totalorder %s45, %s46
    %p57 = scmp.eq.s32.totalorder %s23, 0
    %p58 = por %p56, %p57
    %p59 = scmp.ne.s32.totalorder %s45, %s46
    %p60 = scmp.eq.s32.totalorder %s24, 1
    %p61 = por %p59, %p60
    %p63 = scmp.ne.s32.totalorder %s46, %s62
    %p64 = scmp.eq.s32.totalorder %s24, 0
    %p65 = por %p63, %p64
    %s66 = ssub.s32 %s25, %s37
    %p67 = scmp.eq.s32.totalorder %s66, 0
    %s69 = sadd.s32 %s68, 1
    %s70 = scalar_select %p67, %s68, %s69
    %p73 = pneg %p67
    %p74 = scmp.eq.s32.totalorder %s18, 1
    %p75 = por %p73, %p74
    %p76 = scmp.ne.s32.totalorder %s68, %s71
    %p77 = scmp.eq.s32.totalorder %s18, 0
    %p78 = por %p76, %p77
    %p79 = scmp.ne.s32.totalorder %s68, %s71
    %p80 = scmp.eq.s32.totalorder %s23, 1
    %p81 = por %p79, %p80
    %p82 = scmp.ne.s32.totalorder %s71, %s72
    %p83 = scmp.eq.s32.totalorder %s23, 0
    %p84 = por %p82, %p83
    %p85 = scmp.ne.s32.totalorder %s71, %s72
    %p86 = scmp.eq.s32.totalorder %s24, 1
    %p87 = por %p85, %p86
    %p89 = scmp.ne.s32.totalorder %s72, %s88
    %p90 = scmp.eq.s32.totalorder %s24, 0
    %p91 = por %p89, %p90
    %s92 = ssub.s32 %s25, %s37
    %p93 = scmp.eq.s32.totalorder %s92, 0
    %s95 = sadd.s32 %s94, 1
    %s96 = scalar_select %p93, %s94, %s95
    %p99 = pneg %p93
    %p100 = scmp.eq.s32.totalorder %s18, 1
    %p101 = por %p99, %p100
    %p102 = scmp.ne.s32.totalorder %s94, %s97
    %p103 = scmp.eq.s32.totalorder %s18, 0
    %p104 = por %p102, %p103
    %p105 = scmp.ne.s32.totalorder %s94, %s97
    %p106 = scmp.eq.s32.totalorder %s23, 1
    %p107 = por %p105, %p106
    %p108 = scmp.ne.s32.totalorder %s97, %s98
    %p109 = scmp.eq.s32.totalorder %s23, 0
    %p110 = por %p108, %p109
    %p111 = scmp.ne.s32.totalorder %s97, %s98
    %p112 = scmp.eq.s32.totalorder %s24, 1
    %p113 = por %p111, %p112
    %p115 = scmp.ne.s32.totalorder %s98, %s114
    %p116 = scmp.eq.s32.totalorder %s24, 0
    %p117 = por %p115, %p116
    %s118 = ssub.s32 %s25, %s37
    %s119 = ssub.s32 %s26, %s33
    %s120 = sor.u32 %s118, %s119
    %p121 = scmp.eq.s32.totalorder %s120, 0
    %s123 = sadd.s32 %s122, 1
    %s124 = scalar_select %p121, %s122, %s123
    %p127 = pneg %p121
    %p128 = scmp.eq.s32.totalorder %s18, 1
    %p129 = por %p127, %p128
    %p130 = scmp.ne.s32.totalorder %s122, %s125
    %p131 = scmp.eq.s32.totalorder %s18, 0
    %p132 = por %p130, %p131
    %p133 = scmp.ne.s32.totalorder %s122, %s125
    %p134 = scmp.eq.s32.totalorder %s23, 1
    %p135 = por %p133, %p134
    %p136 = scmp.ne.s32.totalorder %s125, %s126
    %p137 = scmp.eq.s32.totalorder %s23, 0
    %p138 = por %p136, %p137
    %p139 = scmp.ne.s32.totalorder %s125, %s126
    %p140 = scmp.eq.s32.totalorder %s24, 1
    %p141 = por %p139, %p140
    %p143 = scmp.ne.s32.totalorder %s126, %s142
    %p144 = scmp.eq.s32.totalorder %s24, 0
    %p145 = por %p143, %p144
    %s147 = sadd.s32 %s146, 1
    %p150 = scmp.eq.s32.totalorder %s18, 1
    %p151 = scmp.ne.s32.totalorder %s146, %s148
    %p152 = scmp.eq.s32.totalorder %s18, 0
    %p153 = por %p151, %p152
    %p154 = scmp.ne.s32.totalorder %s146, %s148
    %p155 = scmp.eq.s32.totalorder %s23, 1
    %p156 = por %p154, %p155
    %p157 = scmp.ne.s32.totalorder %s148, %s149
    %p158 = scmp.eq.s32.totalorder %s23, 0
    %p159 = por %p157, %p158
    %p160 = scmp.ne.s32.totalorder %s148, %s149
    %p161 = scmp.eq.s32.totalorder %s24, 1
    %p162 = por %p160, %p161
    %p164 = scmp.ne.s32.totalorder %s149, %s163
    %p165 = scmp.eq.s32.totalorder %s24, 0
    %p166 = por %p164, %p165
    %s168 = sadd.s32 %s167, 1
    %p171 = scmp.eq.s32.totalorder %s18, 1
    %p172 = scmp.ne.s32.totalorder %s167, %s169
    %p173 = scmp.eq.s32.totalorder %s18, 0
    %p174 = por %p172, %p173
    %p175 = scmp.ne.s32.totalorder %s167, %s169
    %p176 = scmp.eq.s32.totalorder %s23, 1
    %p177 = por %p175, %p176
    %p178 = scmp.ne.s32.totalorder %s169, %s170
    %p179 = scmp.eq.s32.totalorder %s23, 0
    %p180 = por %p178, %p179
    %p181 = scmp.ne.s32.totalorder %s169, %s170
    %p182 = scmp.eq.s32.totalorder %s24, 1
    %p183 = por %p181, %p182
    %p185 = scmp.ne.s32.totalorder %s170, %s184
    %p186 = scmp.eq.s32.totalorder %s24, 0
    %p187 = por %p185, %p186
    %s189 = sadd.s32 %s188, 1
    %p192 = scmp.eq.s32.totalorder %s18, 1
    %p193 = scmp.ne.s32.totalorder %s188, %s190
    %p194 = scmp.eq.s32.totalorder %s18, 0
    %p195 = por %p193, %p194
    %p196 = scmp.ne.s32.totalorder %s188, %s190
    %p197 = scmp.eq.s32.totalorder %s23, 1
    %p198 = por %p196, %p197
    %p199 = scmp.ne.s32.totalorder %s190, %s191
    %p200 = scmp.eq.s32.totalorder %s23, 0
    %p201 = por %p199, %p200
    %p202 = scmp.ne.s32.totalorder %s190, %s191
    %p203 = scmp.eq.s32.totalorder %s24, 1
    %p204 = por %p202, %p203
    %p206 = scmp.ne.s32.totalorder %s191, %s205
    %p207 = scmp.eq.s32.totalorder %s24, 0
    %p208 = por %p206, %p207
    %s210 = sadd.s32 %s209, 1
    %p213 = scmp.eq.s32.totalorder %s18, 1
    %p214 = scmp.ne.s32.totalorder %s209, %s211
    %p215 = scmp.eq.s32.totalorder %s18, 0
    %p216 = por %p214, %p215
    %p217 = scmp.ne.s32.totalorder %s209, %s211
    %p218 = scmp.eq.s32.totalorder %s23, 1
    %p219 = por %p217, %p218
    %p220 = scmp.ne.s32.totalorder %s211, %s212
    %p221 = scmp.eq.s32.totalorder %s23, 0
    %p222 = por %p220, %p221
    %p223 = scmp.ne.s32.totalorder %s211, %s212
    %p224 = scmp.eq.s32.totalorder %s24, 1
    %p225 = por %p223, %p224
    %p227 = scmp.ne.s32.totalorder %s212, %s226
    %p228 = scmp.eq.s32.totalorder %s24, 0
    %p229 = por %p227, %p228
    %s231 = sadd.s32 %s230, 1
    %p234 = scmp.eq.s32.totalorder %s18, 1
    %p235 = scmp.ne.s32.totalorder %s230, %s232
    %p236 = scmp.eq.s32.totalorder %s18, 0
    %p237 = por %p235, %p236
    %p238 = scmp.ne.s32.totalorder %s230, %s232
    %p239 = scmp.eq.s32.totalorder %s23, 1
    %p240 = por %p238, %p239
    %p241 = scmp.ne.s32.totalorder %s232, %s233
    %p242 = scmp.eq.s32.totalorder %s23, 0
    %p243 = por %p241, %p242
    %p244 = scmp.ne.s32.totalorder %s232, %s233
    %p245 = scmp.eq.s32.totalorder %s24, 1
    %p246 = por %p244, %p245
    %p248 = scmp.ne.s32.totalorder %s233, %s247
    %p249 = scmp.eq.s32.totalorder %s24, 0
    %p250 = por %p248, %p249
    %s252 = sadd.s32 %s251, 1
    %p255 = scmp.eq.s32.totalorder %s18, 1
    %p256 = scmp.ne.s32.totalorder %s251, %s253
    %p257 = scmp.eq.s32.totalorder %s18, 0
    %p258 = por %p256, %p257
    %p259 = scmp.ne.s32.totalorder %s251, %s253
    %p260 = scmp.eq.s32.totalorder %s23, 1
    %p261 = por %p259, %p260
    %p262 = scmp.ne.s32.totalorder %s253, %s254
    %p263 = scmp.eq.s32.totalorder %s23, 0
    %p264 = por %p262, %p263
    %p265 = scmp.ne.s32.totalorder %s253, %s254
    %p266 = scmp.eq.s32.totalorder %s24, 1
    %p267 = por %p265, %p266
    %p269 = scmp.ne.s32.totalorder %s254, %s268
    %p270 = scmp.eq.s32.totalorder %s24, 0
    %p271 = por %p269, %p270
    %s273 = sadd.s32 %s272, 1
    %p276 = scmp.eq.s32.totalorder %s18, 1
    %p277 = scmp.ne.s32.totalorder %s272, %s274
    %p278 = scmp.eq.s32.totalorder %s18, 0
    %p279 = por %p277, %p278
    %p280 = scmp.ne.s32.totalorder %s272, %s274
    %p281 = scmp.eq.s32.totalorder %s23, 1
    %p282 = por %p280, %p281
    %p283 = scmp.ne.s32.totalorder %s274, %s275
    %p284 = scmp.eq.s32.totalorder %s23, 0
    %p285 = por %p283, %p284
    %p286 = scmp.ne.s32.totalorder %s274, %s275
    %p287 = scmp.eq.s32.totalorder %s24, 1
    %p288 = por %p286, %p287
    %p290 = scmp.ne.s32.totalorder %s275, %s289
    %p291 = scmp.eq.s32.totalorder %s24, 0
    %p292 = por %p290, %p291
    %s294 = sadd.s32 %s293, 1
    %p297 = scmp.eq.s32.totalorder %s18, 1
    %p298 = scmp.ne.s32.totalorder %s293, %s295
    %p299 = scmp.eq.s32.totalorder %s18, 0
    %p300 = por %p298, %p299
    %p301 = scmp.ne.s32.totalorder %s293, %s295
    %p302 = scmp.eq.s32.totalorder %s23, 1
    %p303 = por %p301, %p302
    %p304 = scmp.ne.s32.totalorder %s295, %s296
    %p305 = scmp.eq.s32.totalorder %s23, 0
    %p306 = por %p304, %p305
    %p307 = scmp.ne.s32.totalorder %s295, %s296
    %p308 = scmp.eq.s32.totalorder %s24, 1
    %p309 = por %p307, %p308
    %p311 = scmp.ne.s32.totalorder %s296, %s310
    %p312 = scmp.eq.s32.totalorder %s24, 0
    %p313 = por %p311, %p312
    %s314 = ssub.s32 %s25, %s37
    %s315 = ssub.s32 %s26, %s33
    %s316 = sor.u32 %s314, %s315
    %p317 = scmp.eq.s32.totalorder %s316, 0
    %s319 = sadd.s32 %s318, 1
    %s320 = scalar_select %p317, %s318, %s319
    %p323 = pneg %p317
    %p324 = scmp.eq.s32.totalorder %s18, 1
    %p325 = por %p323, %p324
    %p326 = scmp.ne.s32.totalorder %s318, %s321
    %p327 = scmp.eq.s32.totalorder %s18, 0
    %p328 = por %p326, %p327
    %p329 = scmp.ne.s32.totalorder %s318, %s321
    %p330 = scmp.eq.s32.totalorder %s23, 1
    %p331 = por %p329, %p330
    %p332 = scmp.ne.s32.totalorder %s321, %s322
    %p333 = scmp.eq.s32.totalorder %s23, 0
    %p334 = por %p332, %p333
    %p335 = scmp.ne.s32.totalorder %s321, %s322
    %p336 = scmp.eq.s32.totalorder %s24, 1
    %p337 = por %p335, %p336
    %p339 = scmp.ne.s32.totalorder %s322, %s338
    %p340 = scmp.eq.s32.totalorder %s24, 0
    %p341 = por %p339, %p340
    %p342 = scmp.le.s32.totalorder 1, %s18
    %p343 = scmp.lt.s32.totalorder %s18, 3
    %p344 = pnand %p342, %p343
    %p345 = pneg %p344
    // Predicated region
    $region9: #{tran_decoder_forward.9} parent=5 // pred_check
      _
    $region10: #{tran_decoder_forward.9} parent=5 // pred_check_branch
      %347 = sbr.rel (%p344) target = $region12
    $region11: #{tran_decoder_forward.9} parent=5 // pred_region
      %s348 = ssub.s32 %s18, 1
      // Predicated region
      $region13: #{tran_decoder_forward.9} parent=11 // pred_check
        %p349 = pneg %p159
      $region14: #{tran_decoder_forward.9} parent=11 // pred_check_branch
        %351 = sbr.rel (%p349) target = $region16
      $region15: #{tran_decoder_forward.9} parent=11 // pred_region
        _
      $region16: #{tran_decoder_forward.9} parent=11 // pred_fallthru
        _
      // Predicated region
      $region17: #{tran_decoder_forward.9} parent=11 // pred_check
        %p352 = pneg %p180
      $region18: #{tran_decoder_forward.9} parent=11 // pred_check_branch
        %354 = sbr.rel (%p352) target = $region20
      $region19: #{tran_decoder_forward.9} parent=11 // pred_region
        _
      $region20: #{tran_decoder_forward.9} parent=11 // pred_fallthru
        _
      // Predicated region
      $region21: #{tran_decoder_forward.9} parent=11 // pred_check
        %p355 = pneg %p201
      $region22: #{tran_decoder_forward.9} parent=11 // pred_check_branch
        %357 = sbr.rel (%p355) target = $region24
      $region23: #{tran_decoder_forward.9} parent=11 // pred_region
        _
      $region24: #{tran_decoder_forward.9} parent=11 // pred_fallthru
        _
      // Predicated region
      $region25: #{tran_decoder_forward.9} parent=11 // pred_check
        %p358 = pneg %p222
      $region26: #{tran_decoder_forward.9} parent=11 // pred_check_branch
        %360 = sbr.rel (%p358) target = $region28
      $region27: #{tran_decoder_forward.9} parent=11 // pred_region
        _
      $region28: #{tran_decoder_forward.9} parent=11 // pred_fallthru
        _
      // Predicated region
      $region29: #{tran_decoder_forward.9} parent=11 // pred_check
        %p361 = pneg %p243
      $region30: #{tran_decoder_forward.9} parent=11 // pred_check_branch
        %363 = sbr.rel (%p361) target = $region32
      $region31: #{tran_decoder_forward.9} parent=11 // pred_region
        _
      $region32: #{tran_decoder_forward.9} parent=11 // pred_fallthru
        _
      // Predicated region
      $region33: #{tran_decoder_forward.9} parent=11 // pred_check
        %p364 = pneg %p264
      $region34: #{tran_decoder_forward.9} parent=11 // pred_check_branch
        %366 = sbr.rel (%p364) target = $region36
      $region35: #{tran_decoder_forward.9} parent=11 // pred_region
        _
      $region36: #{tran_decoder_forward.9} parent=11 // pred_fallthru
        _
      // Predicated region
      $region37: #{tran_decoder_forward.9} parent=11 // pred_check
        %p367 = pneg %p285
      $region38: #{tran_decoder_forward.9} parent=11 // pred_check_branch
        %369 = sbr.rel (%p367) target = $region40
      $region39: #{tran_decoder_forward.9} parent=11 // pred_region
        _
      $region40: #{tran_decoder_forward.9} parent=11 // pred_fallthru
        _
      // Predicated region
      $region41: #{tran_decoder_forward.9} parent=11 // pred_check
        %p370 = pneg %p306
      $region42: #{tran_decoder_forward.9} parent=11 // pred_check_branch
        %372 = sbr.rel (%p370) target = $region44
      $region43: #{tran_decoder_forward.9} parent=11 // pred_region
        _
      $region44: #{tran_decoder_forward.9} parent=11 // pred_fallthru
        _
    $region12: #{tran_decoder_forward.9} parent=5 // pred_fallthru
      _
    %p373 = scmp.lt.s32.totalorder %s18, 2
    // Predicated region
    $region45: #{tran_decoder_forward.9} parent=5 // pred_check
      %p374 = pneg %p373
    $region46: #{tran_decoder_forward.9} parent=5 // pred_check_branch
      %376 = sbr.rel (%p374) target = $region48
    $region47: #{tran_decoder_forward.9} parent=5 // pred_region
      // Predicated region
      $region49: #{tran_decoder_forward.9} parent=47 // pred_check
        %p377 = pneg %p52
      $region50: #{tran_decoder_forward.9} parent=47 // pred_check_branch
        %379 = sbr.rel (%p377) target = $region52
      $region51: #{tran_decoder_forward.9} parent=47 // pred_region
        %p380 = scmp.lt.s32.totalorder %s25, 1
        %s381 = scalar_select %p380, %s25, 1
        %p382 = scmp.lt.s32.totalorder %s26, 0
        %s383 = scalar_select %p382, %s26, 0
        %s384 = sadd.s32 %s383, %s381
        %s385 = smul.addr %s384, 4
        %s386 = scalar_lea.vmem %s0, %s385
      $region52: #{tran_decoder_forward.9} parent=47 // pred_fallthru
        _
      // Predicated region
      $region53: #{tran_decoder_forward.9} parent=47 // pred_check
        %p387 = pneg %p78
      $region54: #{tran_decoder_forward.9} parent=47 // pred_check_branch
        %389 = sbr.rel (%p387) target = $region56
      $region55: #{tran_decoder_forward.9} parent=47 // pred_region
        %p390 = scmp.lt.s32.totalorder %s25, 1
        %s391 = scalar_select %p390, %s25, 1
        %s392 = smul.addr %s391, 4
        %s393 = scalar_lea.vmem %s1, %s392
      $region56: #{tran_decoder_forward.9} parent=47 // pred_fallthru
        _
      // Predicated region
      $region57: #{tran_decoder_forward.9} parent=47 // pred_check
        %p394 = pneg %p104
      $region58: #{tran_decoder_forward.9} parent=47 // pred_check_branch
        %396 = sbr.rel (%p394) target = $region60
      $region59: #{tran_decoder_forward.9} parent=47 // pred_region
        %p397 = scmp.lt.s32.totalorder %s25, 1
        %s398 = scalar_select %p397, %s25, 1
        %s399 = scalar_lea.vmem %s2, %s398
      $region60: #{tran_decoder_forward.9} parent=47 // pred_fallthru
        _
      // Predicated region
      $region61: #{tran_decoder_forward.9} parent=47 // pred_check
        %p400 = pneg %p132
      $region62: #{tran_decoder_forward.9} parent=47 // pred_check_branch
        %402 = sbr.rel (%p400) target = $region64
      $region63: #{tran_decoder_forward.9} parent=47 // pred_region
        %p403 = scmp.lt.s32.totalorder %s25, 1
        %s404 = scalar_select %p403, %s25, 1
        %p405 = scmp.lt.s32.totalorder %s26, 0
        %s406 = scalar_select %p405, %s26, 0
        %s407 = sadd.s32 %s406, %s404
        %s408 = smul.addr %s407, 8
        %s409 = scalar_lea.vmem %s3, %s408
      $region64: #{tran_decoder_forward.9} parent=47 // pred_fallthru
        _
    $region48: #{tran_decoder_forward.9} parent=5 // pred_fallthru
      _
    %p410 = scmp.le.s32.totalorder 1, %s18
    %p411 = scmp.lt.s32.totalorder %s18, 3
    %p412 = pnand %p410, %p411
    %p413 = pneg %p412
    // Predicated region
    $region65: #{tran_decoder_forward.9} parent=5 // pred_check
      _
    $region66: #{tran_decoder_forward.9} parent=5 // pred_check_branch
      %415 = sbr.rel (%p412) target = $region68
    $region67: #{tran_decoder_forward.9} parent=5 // pred_region
      %s416 = ssub.s32 %s18, 1
      %p417 = scmp.lt.s32.totalorder %s27, 1
      %s418 = scalar_select %p417, %s27, 1
      %p419 = scmp.lt.s32.totalorder %s28, 0
      %s420 = scalar_select %p419, %s28, 0
      %s421 = sadd.s32 %s420, %s418
      %s422 = smul.addr %s421, 4
      %s423 = scalar_lea.vmem %s0, %s422
      %p424 = pneg %p58
      %p425 = pneg %p55
      %p426 = scmp.lt.s32.totalorder %s27, 1
      %s427 = scalar_select %p426, %s27, 1
      %s428 = smul.addr %s427, 4
      %s429 = scalar_lea.vmem %s1, %s428
      %p430 = pneg %p84
      %p431 = pneg %p81
      %p432 = scmp.lt.s32.totalorder %s27, 1
      %s433 = scalar_select %p432, %s27, 1
      %s434 = scalar_lea.vmem %s2, %s433
      %p435 = pneg %p110
      %p436 = pneg %p107
      %p437 = scmp.lt.s32.totalorder %s27, 1
      %s438 = scalar_select %p437, %s27, 1
      %p439 = scmp.lt.s32.totalorder %s28, 0
      %s440 = scalar_select %p439, %s28, 0
      %s441 = sadd.s32 %s440, %s438
      %s442 = smul.addr %s441, 8
      %s443 = scalar_lea.vmem %s3, %s442
      %p444 = pneg %p138
      %p445 = pneg %p135
      %p446 = pneg %p159
      %p447 = pneg %p156
      %p448 = pneg %p180
      %p449 = pneg %p177
      %p450 = pneg %p201
      %p451 = pneg %p198
      %p452 = pneg %p222
      %p453 = pneg %p219
      %p454 = pneg %p243
      %p455 = pneg %p240
      %p456 = pneg %p264
      %p457 = pneg %p261
      %p458 = pneg %p285
      %p459 = pneg %p282
      %p460 = pneg %p306
      %p461 = pneg %p303
      %p462 = pneg %p334
      %p463 = pneg %p331
      %p464 = scmp.lt.s32.totalorder %s27, 1
      %s465 = scalar_select %p464, %s27, 1
      %p466 = scmp.lt.s32.totalorder %s28, 0
      %s467 = scalar_select %p466, %s28, 0
      %s468 = sadd.s32 %s467, %s465
      %s469 = smul.addr %s468, 4
      %s470 = scalar_lea.vmem %s12, %s469
      %p471 = scmp.lt.s32.totalorder %s27, 1
      %s472 = scalar_select %p471, %s27, 1
      %p473 = scmp.lt.s32.totalorder %s28, 0
      %s474 = scalar_select %p473, %s28, 0
      %s475 = sadd.s32 %s474, %s472
      %s476 = smul.addr %s475, 4
      %s477 = scalar_lea.vmem %s0, %s476
      %p478 = scmp.lt.s32.totalorder %s27, 1
      %s479 = scalar_select %p478, %s27, 1
      %s480 = smul.addr %s479, 4
      %s481 = scalar_lea.vmem %s1, %s480
      %p482 = scmp.lt.s32.totalorder %s27, 1
      %s483 = scalar_select %p482, %s27, 1
      %s484 = scalar_lea.vmem %s2, %s483
      %p485 = scmp.lt.s32.totalorder %s27, 1
      %s486 = scalar_select %p485, %s27, 1
      %p487 = scmp.lt.s32.totalorder %s28, 0
      %s488 = scalar_select %p487, %s28, 0
      %s489 = sadd.s32 %s488, %s486
      %s490 = smul.addr %s489, 8
      %s491 = scalar_lea.vmem %s3, %s490
      %p492 = scmp.lt.s32.totalorder %s27, 1
      %s493 = scalar_select %p492, %s27, 1
      %p494 = scmp.lt.s32.totalorder %s28, 0
      %s495 = scalar_select %p494, %s28, 0
      %s496 = sadd.s32 %s495, %s493
      %s497 = smul.addr %s496, 4
      %s498 = scalar_lea.vmem %s12, %s497
      %v500 = vld [vmem:[%s477] sm:$0xf]
      %v501 = vld [vmem:[%s481] sm:$0xf]
      %v502 = vld [vmem:[%s4] sm:$0xf]
      %v503 = vld [vmem:[%s4 + $0x4] sm:$0xf]
      %v504 = vld [vmem:[%s4 + $0x8] sm:$0xf]
      %v505 = vld [vmem:[%s4 + $0xc] sm:$0xf]
      %v506 = vld [vmem:[%s5] sm:$0x1]
      %v508 = vperm.slane %v506, 0
      %v514 = vunpack.c.l.b16 %v502
      %v515 = vunpack.c.l.b16 %v503
      %v516 = vunpack.c.l.b16 %v504
      %v517 = vunpack.c.l.b16 %v505
      %v518 = vpack.c.b16 %v515, %v514
      %v519 = vpack.c.b16 %v517, %v516
      %vm522 = vcmask 261120
      %v524 = vsel %vm522, %v500, 0
      %526 = vmatpush.bf16.msra.mxu0 0
      %527 = vmatpush.bf16.msra.mxu0 0
      %528 = vmatpush.bf16.msra.mxu0 0
      %529 = vmatpush.bf16.msra.mxu0 0
      %530 = vmatpush.bf16.msra.mxu0 0
      %531 = vmatpush.bf16.msra.mxu0 0
      %532 = vmatpush.bf16.msra.mxu0 %v519
      %533 = vmatpush.bf16.msra.mxu0 %v518
      %534 = vmatmul.bf16.gmra.mxu0 %v524
      %v535 = vpop.f32.mrf.mxu0
      %v536 = vadd.f32 %v508, %v535
      %v537 = vpop.f32.mrf.mxu0
      %538 = vdwg.mxu0
      %v539 = vld [vmem:[%s6] sm:$0xf]
      %v540 = vld [vmem:[%s6 + $0x4] sm:$0xf]
      %v541 = vld [vmem:[%s6 + $0x8] sm:$0xf]
      %v542 = vld [vmem:[%s6 + $0xc] sm:$0xf]
      %v543 = vld [vmem:[%s7] sm:$0x1]
      %v545 = vperm.slane %v543, 0
      %v551 = vunpack.c.l.b16 %v539
      %v552 = vunpack.c.l.b16 %v540
      %v553 = vunpack.c.l.b16 %v541
      %v554 = vunpack.c.l.b16 %v542
      %v555 = vpack.c.b16 %v552, %v551
      %v556 = vpack.c.b16 %v554, %v553
      %v560 = vsel %vm522, %v501, 0
      %562 = vmatpush.bf16.msra.mxu0 0
      %563 = vmatpush.bf16.msra.mxu0 0
      %564 = vmatpush.bf16.msra.mxu0 0
      %565 = vmatpush.bf16.msra.mxu0 0
      %566 = vmatpush.bf16.msra.mxu0 0
      %567 = vmatpush.bf16.msra.mxu0 0
      %568 = vmatpush.bf16.msra.mxu0 %v556
      %569 = vmatpush.bf16.msra.mxu0 %v555
      %570 = vmatmul.bf16.gmra.mxu0 %v560
      %v571 = vpop.f32.mrf.mxu0
      %v572 = vadd.f32 %v545, %v571
      %v573 = vpop.f32.mrf.mxu0
      %574 = vdwg.mxu0
      %v575 = vld [vmem:[%s484] sm:$0x1]
      %vm576 = vcmp.gt.f32.partialorder %v575, 0.0
      %v577 = vsel %vm576, 1, 0
      %v578 = vperm.slane %v577, 0
      %vm579 = vcmp.eq.s32.totalorder %v578, 1
      %v580 = vpack.c.bf16 %v536, %v536
      %v581 = vpack.c.bf16 %v572, %v572
      %vm582 = vcmask 130048
      %v584 = vsel %vm582, %v580, 0
      %v587 = vsel %vm582, %v581, 0
      %589 = vmatpush.bf16.xpose.msra.mxu0 0
      %590 = vmatpush.bf16.xpose.msra.mxu0 0
      %591 = vmatpush.bf16.xpose.msra.mxu0 0
      %592 = vmatpush.bf16.xpose.msra.mxu0 0
      %593 = vmatpush.bf16.xpose.msra.mxu0 0
      %594 = vmatpush.bf16.xpose.msra.mxu0 0
      %595 = vmatpush.bf16.xpose.msra.mxu0 0
      %596 = vmatpush.bf16.xpose.msra.mxu0 %v587
      %597 = vmatmul.bf16.gmra.mxu0 %v584
      %v598 = vpop.f32.mrf.mxu0
      %v599 = vadd.f32 0.0, %v598
      %v600 = vpop.f32.mrf.mxu0
      %601 = vdwg.mxu0
      %v602 = vmul.f32 %v599, 0.25
      %v603 = vsel %vm579, -1e+30, %v602
      %vm604 = vcmask 64512
      %v605 = vsel %vm604, %v603, -inf
      %606 = vmax.xlane.f32.xlu0 %v605
      %v607 = vpop.xlane.xlu0 %606
      %v608 = vsub.f32 %v603, %v607
      %v609 = vmul.f32 %v608, 1.442695
      %v610 = vpow.pop %v609
      %v611 = vsel %vm604, %v610, 0.0
      %612 = vadd.xlane.f32.xlu0 %v611
      %v613 = vpop.xlane.xlu0 %612
      %v614 = vrcp.pop %v613
      %v615 = vmul.f32 %v610, %v614
      %v616 = vpack.c.bf16 %v615, %v615
      %618 = vrot.lane.b32.xlu0 %v581, 96
      %v619 = vpop.permute.xlu0 %618
      %v621 = vsel %vm604, %v616, 0
      %vm623 = vcmask 1043456
      %v625 = vsel %vm623, %v619, 0
      %627 = vmatpush.bf16.msra.mxu0 0
      %628 = vmatpush.bf16.msra.mxu0 0
      %629 = vmatpush.bf16.msra.mxu0 0
      %630 = vmatpush.bf16.msra.mxu0 0
      %631 = vmatpush.bf16.msra.mxu0 0
      %632 = vmatpush.bf16.msra.mxu0 0
      %633 = vmatpush.bf16.msra.mxu0 0
      %634 = vmatpush.bf16.msra.mxu0 %v625
      %635 = vmatmul.bf16.gmra.mxu0 %v621
      %v636 = vpop.f32.mrf.mxu0
      %v637 = vadd.f32 0.0, %v636
      %v638 = vpop.f32.mrf.mxu0
      %639 = vdwg.mxu0
      %641 = vrot.lane.b32.xlu0 %v580, 112
      %v642 = vpop.permute.xlu0 %641
      %643 = vrot.lane.b32.xlu0 %v581, 112
      %v644 = vpop.permute.xlu0 %643
      %v646 = vsel %vm582, %v642, 0
      %v649 = vsel %vm582, %v644, 0
      %651 = vmatpush.bf16.xpose.msra.mxu0 0
      %652 = vmatpush.bf16.xpose.msra.mxu0 0
      %653 = vmatpush.bf16.xpose.msra.mxu0 0
      %654 = vmatpush.bf16.xpose.msra.mxu0 0
      %655 = vmatpush.bf16.xpose.msra.mxu0 0
      %656 = vmatpush.bf16.xpose.msra.mxu0 0
      %657 = vmatpush.bf16.xpose.msra.mxu0 0
      %658 = vmatpush.bf16.xpose.msra.mxu0 %v649
      %659 = vmatmul.bf16.gmra.mxu0 %v646
      %v660 = vpop.f32.mrf.mxu0
      %v661 = vadd.f32 0.0, %v660
      %v662 = vpop.f32.mrf.mxu0
      %663 = vdwg.mxu0
      %v664 = vmul.f32 %v661, 0.25
      %v665 = vsel %vm579, -1e+30, %v664
      %v666 = vsel %vm604, %v665, -inf
      %667 = vmax.xlane.f32.xlu0 %v666
      %v668 = vpop.xlane.xlu0 %667
      %v669 = vsub.f32 %v665, %v668
      %v670 = vmul.f32 %v669, 1.442695
      %v671 = vpow.pop %v670
      %v672 = vsel %vm604, %v671, 0.0
      %673 = vadd.xlane.f32.xlu0 %v672
      %v674 = vpop.xlane.xlu0 %673
      %v675 = vrcp.pop %v674
      %v676 = vmul.f32 %v671, %v675
      %v677 = vpack.c.bf16 %v676, %v676
      %678 = vrot.lane.b32.xlu0 %v581, 80
      %v679 = vpop.permute.xlu0 %678
      %v681 = vsel %vm604, %v677, 0
      %v684 = vsel %vm623, %v679, 0
      %686 = vmatpush.bf16.msra.mxu0 0
      %687 = vmatpush.bf16.msra.mxu0 0
      %688 = vmatpush.bf16.msra.mxu0 0
      %689 = vmatpush.bf16.msra.mxu0 0
      %690 = vmatpush.bf16.msra.mxu0 0
      %691 = vmatpush.bf16.msra.mxu0 0
      %692 = vmatpush.bf16.msra.mxu0 0
      %693 = vmatpush.bf16.msra.mxu0 %v684
      %694 = vmatmul.bf16.gmra.mxu0 %v681
      %v695 = vpop.f32.mrf.mxu0
      %v696 = vadd.f32 0.0, %v695
      %v697 = vpop.f32.mrf.mxu0
      %698 = vdwg.mxu0
      %700 = vrot.lane.b32.xlu0 %v696, 16
      %v701 = vpop.permute.xlu0 %700
      %v703 = vsel %vm582, %v637, %v701
      %v704 = vpack.c.bf16 %v703, %v703
      %v705 = vld [vmem:[%s8] sm:$0xf]
      %v706 = vld [vmem:[%s8 + $0x4] sm:$0xf]
      %v707 = vld [vmem:[%s8 + $0x8] sm:$0xf]
      %v708 = vld [vmem:[%s8 + $0xc] sm:$0xf]
      %v709 = vld [vmem:[%s9] sm:$0x1]
      %v711 = vperm.slane %v709, 0
      %v717 = vunpack.c.l.b16 %v705
      %v718 = vunpack.c.l.b16 %v706
      %v719 = vunpack.c.l.b16 %v707
      %v720 = vunpack.c.l.b16 %v708
      %v721 = vpack.c.b16 %v718, %v717
      %v722 = vpack.c.b16 %v720, %v719
      %v726 = vsel %vm522, %v704, 0
      %728 = vmatpush.bf16.msra.mxu0 0
      %729 = vmatpush.bf16.msra.mxu0 0
      %730 = vmatpush.bf16.msra.mxu0 0
      %731 = vmatpush.bf16.msra.mxu0 0
      %732 = vmatpush.bf16.msra.mxu0 0
      %733 = vmatpush.bf16.msra.mxu0 0
      %734 = vmatpush.bf16.msra.mxu0 %v722
      %735 = vmatpush.bf16.msra.mxu0 %v721
      %736 = vmatmul.bf16.gmra.mxu0 %v726
      %v737 = vpop.f32.mrf.mxu0
      %v738 = vadd.f32 %v711, %v737
      %v739 = vpop.f32.mrf.mxu0
      %740 = vdwg.mxu0
      %v741 = vunpack.c.l.bf16 %v500
      %v742 = vadd.f32 %v738, %v741
      %v743 = vsel %vm522, %v742, 0.0
      %744 = vadd.xlane.f32.xlu0 %v743
      %v745 = vpop.xlane.xlu0 %744
      %v746 = vrcp.pop 32.0
      %v747 = vmul.f32 32.0, %v746
      %v748 = vsub.f32 1.0, %v747
      %v749 = vmul.f32 %v746, %v748
      %v750 = vadd.f32 %v746, %v749
      %vm751 = vweird.f32 %v746
      %v752 = vsel %vm751, %v746, %v750
      %v753 = vmul.f32 %v745, %v752
      %v754 = vsub.f32 %v742, %v753
      %v755 = vmul.f32 %v754, %v754
      %v756 = vsel %vm522, %v755, 0.0
      %757 = vadd.xlane.f32.xlu0 %v756
      %v758 = vpop.xlane.xlu0 %757
      %v759 = vmul.f32 %v758, %v752
      %v760 = vadd.f32 %v759, 1e-05
      %v761 = vrsqrt.pop %v760
      %v762 = vmul.f32 %v761, %v760
      %v763 = vmul.f32 %v762, %v761
      %v764 = vmul.f32 0.5, %v763
      %v765 = vsub.f32 1.5, %v764
      %v766 = vmul.f32 %v761, %v765
      %vm767 = vweird.f32 %v760
      %vm768 = vweird.f32 %v761
      %vm769 = vmor %vm767, %vm768
      %v770 = vsel %vm769, %v761, %v766
      %v771 = vmul.f32 %v754, %v770
      %v772 = vld [vmem:[%s10] sm:$0x1]
      %v774 = vperm.slane %v772, 0
      %v776 = vmul.f32 %v771, %v774
      %v777 = vld [vmem:[%s11] sm:$0x1]
      %v779 = vperm.slane %v777, 0
      %v781 = vadd.f32 %v776, %v779
      %v782 = vld [vmem:[%s491] sm:$0xff]
      %784 = vset.pattern.permute.xlu0 0
      %785 = vperm.xlu0 %784, %v782
      %v786 = vpop.permute.xlu0 %785
      %v788 = vmul.f32 %v781, %v786
      %v789 = vpack.c.bf16 %v788, %v788
      %vm790 = vcmask 257024
      %791 = vst.msk [vmem:[%s498] sm:$0xf] %vm790, %v789
      %p792 = scmp.lt.s32.totalorder %s27, 1
      %s793 = scalar_select %p792, %s27, 1
      %p794 = scmp.lt.s32.totalorder %s28, 0
      %s795 = scalar_select %p794, %s28, 0
      %s796 = sadd.s32 %s795, %s793
      %s797 = smul.addr %s796, 4
      %s798 = scalar_lea.vmem %s12, %s797
      // Predicated region
      $region69: #{tran_decoder_forward.9} parent=67 // pred_check
        %p799 = pneg %p331
      $region70: #{tran_decoder_forward.9} parent=67 // pred_check_branch
        %801 = sbr.rel (%p799) target = $region72
      $region71: #{tran_decoder_forward.9} parent=67 // pred_region
        _
      $region72: #{tran_decoder_forward.9} parent=67 // pred_fallthru
        _
    $region68: #{tran_decoder_forward.9} parent=5 // pred_fallthru
      _
    %p802 = scmp.le.s32.totalorder 2, %s18
    // Predicated region
    $region73: #{tran_decoder_forward.9} parent=5 // pred_check
      %p803 = pneg %p802
    $region74: #{tran_decoder_forward.9} parent=5 // pred_check_branch
      %805 = sbr.rel (%p803) target = $region76
    $region75: #{tran_decoder_forward.9} parent=5 // pred_region
      %s806 = ssub.s32 %s18, 2
      // Predicated region
      $region77: #{tran_decoder_forward.9} parent=75 // pred_check
        %p807 = pneg %p337
      $region78: #{tran_decoder_forward.9} parent=75 // pred_check_branch
        %809 = sbr.rel (%p807) target = $region80
      $region79: #{tran_decoder_forward.9} parent=75 // pred_region
        %p810 = scmp.lt.s32.totalorder %s29, 1
        %s811 = scalar_select %p810, %s29, 1
        %p812 = scmp.lt.s32.totalorder %s30, 0
        %s813 = scalar_select %p812, %s30, 0
        %s814 = sadd.s32 %s813, %s811
        %s815 = smul.addr %s814, 4
        %s816 = scalar_lea.vmem %s12, %s815
      $region80: #{tran_decoder_forward.9} parent=75 // pred_fallthru
        _
    $region76: #{tran_decoder_forward.9} parent=5 // pred_fallthru
      _
  $region6: #{tran_decoder_forward.9} parent=0 // loop_footer
    %s22 = sadd.s32 1, %s18
  $region7: #{tran_decoder_forward.9} parent=0 // loop_footer_branch
    %17 = sbr.rel target = $region3
  $region8: #{tran_decoder_forward.9} parent=0 // loop_exit
    _

// kernel: tran_decoder_forward.11
$region0: #{tran_decoder_forward.11}
  #allocation0 [shape = 'u32[]', space=smem, size = 0x4, offset = 0x4, fixed_abs, tag = 'smem constant byte address 0x4 - core index']
  #allocation1 [shape = 'u32[72,128]{1,0:T(1,128)}', space=vmem, size = 0x9000, scoped, tag = 'internal scratch']
  %s0 = inlined_call_operand.vmem [shape: bf16[2,8,32], index: 0, kind: input, shape index: {}, may-alias: {0,1}]
  %s1 = inlined_call_operand.vmem [shape: bf16[2,8,32], index: 1, kind: input, shape index: {}, may-alias: {0,1}]
  %s2 = inlined_call_operand.vmem [shape: f32[2,1,8], index: 2, kind: input, shape index: {}]
  %s3 = inlined_call_operand.vmem [shape: f32[2,8,1], index: 3, kind: input, shape index: {}]
  %s4 = inlined_call_operand.vmem [shape: bf16[32,32], index: 4, kind: input, shape index: {}]
  %s5 = inlined_call_operand.vmem [shape: f32[1,32], index: 5, kind: input, shape index: {}]
  %s6 = inlined_call_operand.vmem [shape: bf16[32,64], index: 6, kind: input, shape index: {}]
  %s7 = inlined_call_operand.vmem [shape: f32[1,64], index: 7, kind: input, shape index: {}]
  %s8 = inlined_call_operand.vmem [shape: bf16[32,32], index: 8, kind: input, shape index: {}]
  %s9 = inlined_call_operand.vmem [shape: f32[1,32], index: 9, kind: input, shape index: {}]
  %s10 = inlined_call_operand.vmem [shape: f32[1,32], index: 10, kind: input, shape index: {}]
  %s11 = inlined_call_operand.hbm [shape: f32[1,32], index: 11, kind: input, shape index: {}]
  %s12 = inlined_call_operand.vmem [shape: bf16[2,8,32], index: 12, kind: output, shape index: {}]
  %s13 = sld [smem:[#allocation0]]
  $region85: #{tran_decoder_forward.11} parent=0
    _
  %s15 = ssub.s32 1, %s13
  %s16 = scalar_select 0, %s15, %s13
  $region1: #{tran_decoder_forward.11} parent=0
    #allocation2 [shape = 'u8[512]{0}', space=vmem, size = 0x400, scoped, tag = 'input window, operand 11, single buffered']
    #allocation3 [shape = 's32[2]{0}', space=sflag, size = 0x8, scoped, tag = 'scoped memory for tran_decoder_forward.11']
    %17 = vsyncpa [#allocation3], 0
    loop: start=0, step=1, limit=4
    $region2: #{tran_decoder_forward.11} parent=1 // loop_pre_header
      _
    $region3: #{tran_decoder_forward.11} parent=1 // loop_header
      %s19 = sphi 0, %s23
      %p20 = scmp.ge.s32.totalorder %s19, 4
      %s26 = sphi 0, %s38
      %s27 = sphi 0, %s34
      %s28 = sphi 0, %s26
      %s29 = sphi 0, %s27
      %s30 = sphi 0, %s28
      %s31 = sphi 0, %s29
      %s43 = sphi 0, %s45
      %s46 = sphi 0, %s43
      %s47 = sphi 0, %s46
      %s63 = sphi 0, %s47
      %s69 = sphi 0, %s71
      %s72 = sphi 0, %s69
      %s73 = sphi 0, %s72
      %s89 = sphi 0, %s73
      %s95 = sphi 0, %s97
      %s98 = sphi 0, %s95
      %s99 = sphi 0, %s98
      %s115 = sphi 0, %s99
      %s123 = sphi 0, %s125
      %s126 = sphi 0, %s123
      %s127 = sphi 0, %s126
      %s143 = sphi 0, %s127
      %s147 = sphi 0, %s147
      %s149 = sphi 0, %s147
      %s150 = sphi 0, %s149
      %s164 = sphi 0, %s150
      %s168 = sphi 0, %s168
      %s170 = sphi 0, %s168
      %s171 = sphi 0, %s170
      %s185 = sphi 0, %s171
      %s189 = sphi 0, %s189
      %s191 = sphi 0, %s189
      %s192 = sphi 0, %s191
      %s206 = sphi 0, %s192
      %s210 = sphi 0, %s210
      %s212 = sphi 0, %s210
      %s213 = sphi 0, %s212
      %s227 = sphi 0, %s213
      %s231 = sphi 0, %s231
      %s233 = sphi 0, %s231
      %s234 = sphi 0, %s233
      %s248 = sphi 0, %s234
      %s252 = sphi 0, %s252
      %s254 = sphi 0, %s252
      %s255 = sphi 0, %s254
      %s269 = sphi 0, %s255
      %s273 = sphi 0, %s273
      %s275 = sphi 0, %s273
      %s276 = sphi 0, %s275
      %s290 = sphi 0, %s276
      %s294 = sphi 0, %s294
      %s296 = sphi 0, %s294
      %s297 = sphi 0, %s296
      %s311 = sphi 0, %s297
      %s319 = sphi 0, %s321
      %s322 = sphi 0, %s319
      %s323 = sphi 0, %s322
      %s339 = sphi 0, %s323
    $region4: #{tran_decoder_forward.11} parent=1 // loop_header_branch
      %22 = sbr.rel (%p20) target = $region8
    $region5: #{tran_decoder_forward.11} parent=1 // loop_body
      %s24 = ssub.s32 %s19, 1
      %s25 = ssub.s32 %s19, 2
      %s32 = sadd.s32 1, %s27
      %p33 = scmp.ge.s32.totalorder %s32, 1
      %s34 = scalar_select %p33, 0, %s32
      %s35 = sadd.s32 1, %s26
      %s36 = scalar_select %p33, %s35, %s26
      %p37 = scmp.ge.s32.totalorder %s36, 2
      %s38 = scalar_select %p37, 0, %s36
      %s39 = ssub.s32 %s26, %s38
      %s40 = ssub.s32 %s27, %s34
      %s41 = sor.u32 %s39, %s40
      %p42 = scmp.eq.s32.totalorder %s41, 0
      %s44 = sadd.s32 %s43, 1
      %s45 = scalar_select %p42, %s43, %s44
      %p48 = pneg %p42
      %p49 = scmp.eq.s32.totalorder %s19, 1
      %p50 = por %p48, %p49
      %p51 = scmp.ne.s32.totalorder %s43, %s46
      %p52 = scmp.eq.s32.totalorder %s19, 0
      %p53 = por %p51, %p52
      %p54 = scmp.ne.s32.totalorder %s43, %s46
      %p55 = scmp.eq.s32.totalorder %s24, 1
      %p56 = por %p54, %p55
      %p57 = scmp.ne.s32.totalorder %s46, %s47
      %p58 = scmp.eq.s32.totalorder %s24, 0
      %p59 = por %p57, %p58
      %p60 = scmp.ne.s32.totalorder %s46, %s47
      %p61 = scmp.eq.s32.totalorder %s25, 1
      %p62 = por %p60, %p61
      %p64 = scmp.ne.s32.totalorder %s47, %s63
      %p65 = scmp.eq.s32.totalorder %s25, 0
      %p66 = por %p64, %p65
      %s67 = ssub.s32 %s26, %s38
      %p68 = scmp.eq.s32.totalorder %s67, 0
      %s70 = sadd.s32 %s69, 1
      %s71 = scalar_select %p68, %s69, %s70
      %p74 = pneg %p68
      %p75 = scmp.eq.s32.totalorder %s19, 1
      %p76 = por %p74, %p75
      %p77 = scmp.ne.s32.totalorder %s69, %s72
      %p78 = scmp.eq.s32.totalorder %s19, 0
      %p79 = por %p77, %p78
      %p80 = scmp.ne.s32.totalorder %s69, %s72
      %p81 = scmp.eq.s32.totalorder %s24, 1
      %p82 = por %p80, %p81
      %p83 = scmp.ne.s32.totalorder %s72, %s73
      %p84 = scmp.eq.s32.totalorder %s24, 0
      %p85 = por %p83, %p84
      %p86 = scmp.ne.s32.totalorder %s72, %s73
      %p87 = scmp.eq.s32.totalorder %s25, 1
      %p88 = por %p86, %p87
      %p90 = scmp.ne.s32.totalorder %s73, %s89
      %p91 = scmp.eq.s32.totalorder %s25, 0
      %p92 = por %p90, %p91
      %s93 = ssub.s32 %s26, %s38
      %p94 = scmp.eq.s32.totalorder %s93, 0
      %s96 = sadd.s32 %s95, 1
      %s97 = scalar_select %p94, %s95, %s96
      %p100 = pneg %p94
      %p101 = scmp.eq.s32.totalorder %s19, 1
      %p102 = por %p100, %p101
      %p103 = scmp.ne.s32.totalorder %s95, %s98
      %p104 = scmp.eq.s32.totalorder %s19, 0
      %p105 = por %p103, %p104
      %p106 = scmp.ne.s32.totalorder %s95, %s98
      %p107 = scmp.eq.s32.totalorder %s24, 1
      %p108 = por %p106, %p107
      %p109 = scmp.ne.s32.totalorder %s98, %s99
      %p110 = scmp.eq.s32.totalorder %s24, 0
      %p111 = por %p109, %p110
      %p112 = scmp.ne.s32.totalorder %s98, %s99
      %p113 = scmp.eq.s32.totalorder %s25, 1
      %p114 = por %p112, %p113
      %p116 = scmp.ne.s32.totalorder %s99, %s115
      %p117 = scmp.eq.s32.totalorder %s25, 0
      %p118 = por %p116, %p117
      %s119 = ssub.s32 %s26, %s38
      %s120 = ssub.s32 %s27, %s34
      %s121 = sor.u32 %s119, %s120
      %p122 = scmp.eq.s32.totalorder %s121, 0
      %s124 = sadd.s32 %s123, 1
      %s125 = scalar_select %p122, %s123, %s124
      %p128 = pneg %p122
      %p129 = scmp.eq.s32.totalorder %s19, 1
      %p130 = por %p128, %p129
      %p131 = scmp.ne.s32.totalorder %s123, %s126
      %p132 = scmp.eq.s32.totalorder %s19, 0
      %p133 = por %p131, %p132
      %p134 = scmp.ne.s32.totalorder %s123, %s126
      %p135 = scmp.eq.s32.totalorder %s24, 1
      %p136 = por %p134, %p135
      %p137 = scmp.ne.s32.totalorder %s126, %s127
      %p138 = scmp.eq.s32.totalorder %s24, 0
      %p139 = por %p137, %p138
      %p140 = scmp.ne.s32.totalorder %s126, %s127
      %p141 = scmp.eq.s32.totalorder %s25, 1
      %p142 = por %p140, %p141
      %p144 = scmp.ne.s32.totalorder %s127, %s143
      %p145 = scmp.eq.s32.totalorder %s25, 0
      %p146 = por %p144, %p145
      %s148 = sadd.s32 %s147, 1
      %p151 = scmp.eq.s32.totalorder %s19, 1
      %p152 = scmp.ne.s32.totalorder %s147, %s149
      %p153 = scmp.eq.s32.totalorder %s19, 0
      %p154 = por %p152, %p153
      %p155 = scmp.ne.s32.totalorder %s147, %s149
      %p156 = scmp.eq.s32.totalorder %s24, 1
      %p157 = por %p155, %p156
      %p158 = scmp.ne.s32.totalorder %s149, %s150
      %p159 = scmp.eq.s32.totalorder %s24, 0
      %p160 = por %p158, %p159
      %p161 = scmp.ne.s32.totalorder %s149, %s150
      %p162 = scmp.eq.s32.totalorder %s25, 1
      %p163 = por %p161, %p162
      %p165 = scmp.ne.s32.totalorder %s150, %s164
      %p166 = scmp.eq.s32.totalorder %s25, 0
      %p167 = por %p165, %p166
      %s169 = sadd.s32 %s168, 1
      %p172 = scmp.eq.s32.totalorder %s19, 1
      %p173 = scmp.ne.s32.totalorder %s168, %s170
      %p174 = scmp.eq.s32.totalorder %s19, 0
      %p175 = por %p173, %p174
      %p176 = scmp.ne.s32.totalorder %s168, %s170
      %p177 = scmp.eq.s32.totalorder %s24, 1
      %p178 = por %p176, %p177
      %p179 = scmp.ne.s32.totalorder %s170, %s171
      %p180 = scmp.eq.s32.totalorder %s24, 0
      %p181 = por %p179, %p180
      %p182 = scmp.ne.s32.totalorder %s170, %s171
      %p183 = scmp.eq.s32.totalorder %s25, 1
      %p184 = por %p182, %p183
      %p186 = scmp.ne.s32.totalorder %s171, %s185
      %p187 = scmp.eq.s32.totalorder %s25, 0
      %p188 = por %p186, %p187
      %s190 = sadd.s32 %s189, 1
      %p193 = scmp.eq.s32.totalorder %s19, 1
      %p194 = scmp.ne.s32.totalorder %s189, %s191
      %p195 = scmp.eq.s32.totalorder %s19, 0
      %p196 = por %p194, %p195
      %p197 = scmp.ne.s32.totalorder %s189, %s191
      %p198 = scmp.eq.s32.totalorder %s24, 1
      %p199 = por %p197, %p198
      %p200 = scmp.ne.s32.totalorder %s191, %s192
      %p201 = scmp.eq.s32.totalorder %s24, 0
      %p202 = por %p200, %p201
      %p203 = scmp.ne.s32.totalorder %s191, %s192
      %p204 = scmp.eq.s32.totalorder %s25, 1
      %p205 = por %p203, %p204
      %p207 = scmp.ne.s32.totalorder %s192, %s206
      %p208 = scmp.eq.s32.totalorder %s25, 0
      %p209 = por %p207, %p208
      %s211 = sadd.s32 %s210, 1
      %p214 = scmp.eq.s32.totalorder %s19, 1
      %p215 = scmp.ne.s32.totalorder %s210, %s212
      %p216 = scmp.eq.s32.totalorder %s19, 0
      %p217 = por %p215, %p216
      %p218 = scmp.ne.s32.totalorder %s210, %s212
      %p219 = scmp.eq.s32.totalorder %s24, 1
      %p220 = por %p218, %p219
      %p221 = scmp.ne.s32.totalorder %s212, %s213
      %p222 = scmp.eq.s32.totalorder %s24, 0
      %p223 = por %p221, %p222
      %p224 = scmp.ne.s32.totalorder %s212, %s213
      %p225 = scmp.eq.s32.totalorder %s25, 1
      %p226 = por %p224, %p225
      %p228 = scmp.ne.s32.totalorder %s213, %s227
      %p229 = scmp.eq.s32.totalorder %s25, 0
      %p230 = por %p228, %p229
      %s232 = sadd.s32 %s231, 1
      %p235 = scmp.eq.s32.totalorder %s19, 1
      %p236 = scmp.ne.s32.totalorder %s231, %s233
      %p237 = scmp.eq.s32.totalorder %s19, 0
      %p238 = por %p236, %p237
      %p239 = scmp.ne.s32.totalorder %s231, %s233
      %p240 = scmp.eq.s32.totalorder %s24, 1
      %p241 = por %p239, %p240
      %p242 = scmp.ne.s32.totalorder %s233, %s234
      %p243 = scmp.eq.s32.totalorder %s24, 0
      %p244 = por %p242, %p243
      %p245 = scmp.ne.s32.totalorder %s233, %s234
      %p246 = scmp.eq.s32.totalorder %s25, 1
      %p247 = por %p245, %p246
      %p249 = scmp.ne.s32.totalorder %s234, %s248
      %p250 = scmp.eq.s32.totalorder %s25, 0
      %p251 = por %p249, %p250
      %s253 = sadd.s32 %s252, 1
      %p256 = scmp.eq.s32.totalorder %s19, 1
      %p257 = scmp.ne.s32.totalorder %s252, %s254
      %p258 = scmp.eq.s32.totalorder %s19, 0
      %p259 = por %p257, %p258
      %p260 = scmp.ne.s32.totalorder %s252, %s254
      %p261 = scmp.eq.s32.totalorder %s24, 1
      %p262 = por %p260, %p261
      %p263 = scmp.ne.s32.totalorder %s254, %s255
      %p264 = scmp.eq.s32.totalorder %s24, 0
      %p265 = por %p263, %p264
      %p266 = scmp.ne.s32.totalorder %s254, %s255
      %p267 = scmp.eq.s32.totalorder %s25, 1
      %p268 = por %p266, %p267
      %p270 = scmp.ne.s32.totalorder %s255, %s269
      %p271 = scmp.eq.s32.totalorder %s25, 0
      %p272 = por %p270, %p271
      %s274 = sadd.s32 %s273, 1
      %p277 = scmp.eq.s32.totalorder %s19, 1
      %p278 = scmp.ne.s32.totalorder %s273, %s275
      %p279 = scmp.eq.s32.totalorder %s19, 0
      %p280 = por %p278, %p279
      %p281 = scmp.ne.s32.totalorder %s273, %s275
      %p282 = scmp.eq.s32.totalorder %s24, 1
      %p283 = por %p281, %p282
      %p284 = scmp.ne.s32.totalorder %s275, %s276
      %p285 = scmp.eq.s32.totalorder %s24, 0
      %p286 = por %p284, %p285
      %p287 = scmp.ne.s32.totalorder %s275, %s276
      %p288 = scmp.eq.s32.totalorder %s25, 1
      %p289 = por %p287, %p288
      %p291 = scmp.ne.s32.totalorder %s276, %s290
      %p292 = scmp.eq.s32.totalorder %s25, 0
      %p293 = por %p291, %p292
      %s295 = sadd.s32 %s294, 1
      %p298 = scmp.eq.s32.totalorder %s19, 1
      %p299 = scmp.ne.s32.totalorder %s294, %s296
      %p300 = scmp.eq.s32.totalorder %s19, 0
      %p301 = por %p299, %p300
      %p302 = scmp.ne.s32.totalorder %s294, %s296
      %p303 = scmp.eq.s32.totalorder %s24, 1
      %p304 = por %p302, %p303
      %p305 = scmp.ne.s32.totalorder %s296, %s297
      %p306 = scmp.eq.s32.totalorder %s24, 0
      %p307 = por %p305, %p306
      %p308 = scmp.ne.s32.totalorder %s296, %s297
      %p309 = scmp.eq.s32.totalorder %s25, 1
      %p310 = por %p308, %p309
      %p312 = scmp.ne.s32.totalorder %s297, %s311
      %p313 = scmp.eq.s32.totalorder %s25, 0
      %p314 = por %p312, %p313
      %s315 = ssub.s32 %s26, %s38
      %s316 = ssub.s32 %s27, %s34
      %s317 = sor.u32 %s315, %s316
      %p318 = scmp.eq.s32.totalorder %s317, 0
      %s320 = sadd.s32 %s319, 1
      %s321 = scalar_select %p318, %s319, %s320
      %p324 = pneg %p318
      %p325 = scmp.eq.s32.totalorder %s19, 1
      %p326 = por %p324, %p325
      %p327 = scmp.ne.s32.totalorder %s319, %s322
      %p328 = scmp.eq.s32.totalorder %s19, 0
      %p329 = por %p327, %p328
      %p330 = scmp.ne.s32.totalorder %s319, %s322
      %p331 = scmp.eq.s32.totalorder %s24, 1
      %p332 = por %p330, %p331
      %p333 = scmp.ne.s32.totalorder %s322, %s323
      %p334 = scmp.eq.s32.totalorder %s24, 0
      %p335 = por %p333, %p334
      %p336 = scmp.ne.s32.totalorder %s322, %s323
      %p337 = scmp.eq.s32.totalorder %s25, 1
      %p338 = por %p336, %p337
      %p340 = scmp.ne.s32.totalorder %s323, %s339
      %p341 = scmp.eq.s32.totalorder %s25, 0
      %p342 = por %p340, %p341
      %p343 = scmp.le.s32.totalorder 1, %s19
      %p344 = scmp.lt.s32.totalorder %s19, 3
      %p345 = pnand %p343, %p344
      %p346 = pneg %p345
      // Predicated region
      $region9: #{tran_decoder_forward.11} parent=5 // pred_check
        _
      $region10: #{tran_decoder_forward.11} parent=5 // pred_check_branch
        %348 = sbr.rel (%p345) target = $region12
      $region11: #{tran_decoder_forward.11} parent=5 // pred_region
        %s349 = ssub.s32 %s19, 1
        // Predicated region
        $region13: #{tran_decoder_forward.11} parent=11 // pred_check
          %p350 = pneg %p160
        $region14: #{tran_decoder_forward.11} parent=11 // pred_check_branch
          %352 = sbr.rel (%p350) target = $region16
        $region15: #{tran_decoder_forward.11} parent=11 // pred_region
          _
        $region16: #{tran_decoder_forward.11} parent=11 // pred_fallthru
          _
        // Predicated region
        $region17: #{tran_decoder_forward.11} parent=11 // pred_check
          %p353 = pneg %p181
        $region18: #{tran_decoder_forward.11} parent=11 // pred_check_branch
          %355 = sbr.rel (%p353) target = $region20
        $region19: #{tran_decoder_forward.11} parent=11 // pred_region
          _
        $region20: #{tran_decoder_forward.11} parent=11 // pred_fallthru
          _
        // Predicated region
        $region21: #{tran_decoder_forward.11} parent=11 // pred_check
          %p356 = pneg %p202
        $region22: #{tran_decoder_forward.11} parent=11 // pred_check_branch
          %358 = sbr.rel (%p356) target = $region24
        $region23: #{tran_decoder_forward.11} parent=11 // pred_region
          _
        $region24: #{tran_decoder_forward.11} parent=11 // pred_fallthru
          _
        // Predicated region
        $region25: #{tran_decoder_forward.11} parent=11 // pred_check
          %p359 = pneg %p223
        $region26: #{tran_decoder_forward.11} parent=11 // pred_check_branch
          %361 = sbr.rel (%p359) target = $region28
        $region27: #{tran_decoder_forward.11} parent=11 // pred_region
          _
        $region28: #{tran_decoder_forward.11} parent=11 // pred_fallthru
          _
        // Predicated region
        $region29: #{tran_decoder_forward.11} parent=11 // pred_check
          %p362 = pneg %p244
        $region30: #{tran_decoder_forward.11} parent=11 // pred_check_branch
          %364 = sbr.rel (%p362) target = $region32
        $region31: #{tran_decoder_forward.11} parent=11 // pred_region
          _
        $region32: #{tran_decoder_forward.11} parent=11 // pred_fallthru
          _
        // Predicated region
        $region33: #{tran_decoder_forward.11} parent=11 // pred_check
          %p365 = pneg %p265
        $region34: #{tran_decoder_forward.11} parent=11 // pred_check_branch
          %367 = sbr.rel (%p365) target = $region36
        $region35: #{tran_decoder_forward.11} parent=11 // pred_region
          _
        $region36: #{tran_decoder_forward.11} parent=11 // pred_fallthru
          _
        // Predicated region
        $region37: #{tran_decoder_forward.11} parent=11 // pred_check
          %p368 = pneg %p286
        $region38: #{tran_decoder_forward.11} parent=11 // pred_check_branch
          %370 = sbr.rel (%p368) target = $region40
        $region39: #{tran_decoder_forward.11} parent=11 // pred_region
          _
        $region40: #{tran_decoder_forward.11} parent=11 // pred_fallthru
          _
        // Predicated region
        $region41: #{tran_decoder_forward.11} parent=11 // pred_check
          %p371 = pneg %p307
        $region42: #{tran_decoder_forward.11} parent=11 // pred_check_branch
          %373 = sbr.rel (%p371) target = $region44
        $region43: #{tran_decoder_forward.11} parent=11 // pred_region
          %375 = vsyncadd [#allocation3], 0
          %s377 = sshll.u32 %s11, 4
          %s378 = int_to_ptr.hbm [resolvable:$true] %s377
          %s379 = sshll.u32 [#allocation2], 4
          %s380 = int_to_ptr.vmem [resolvable:$true] %s379
          %382 = dma.hbm_to_vmem [thread:$0]  %s378, 16, %s380, [#allocation3]
        $region44: #{tran_decoder_forward.11} parent=11 // pred_fallthru
          _
      $region12: #{tran_decoder_forward.11} parent=5 // pred_fallthru
        _
      %p383 = scmp.lt.s32.totalorder %s19, 2
      // Predicated region
      $region45: #{tran_decoder_forward.11} parent=5 // pred_check
        %p384 = pneg %p383
      $region46: #{tran_decoder_forward.11} parent=5 // pred_check_branch
        %386 = sbr.rel (%p384) target = $region48
      $region47: #{tran_decoder_forward.11} parent=5 // pred_region
        // Predicated region
        $region49: #{tran_decoder_forward.11} parent=47 // pred_check
          %p387 = pneg %p53
        $region50: #{tran_decoder_forward.11} parent=47 // pred_check_branch
          %389 = sbr.rel (%p387) target = $region52
        $region51: #{tran_decoder_forward.11} parent=47 // pred_region
          %p390 = scmp.lt.s32.totalorder %s26, 1
          %s391 = scalar_select %p390, %s26, 1
          %p392 = scmp.lt.s32.totalorder %s27, 0
          %s393 = scalar_select %p392, %s27, 0
          %s394 = sadd.s32 %s393, %s391
          %s395 = smul.addr %s394, 4
          %s396 = scalar_lea.vmem %s0, %s395
        $region52: #{tran_decoder_forward.11} parent=47 // pred_fallthru
          _
        // Predicated region
        $region53: #{tran_decoder_forward.11} parent=47 // pred_check
          %p397 = pneg %p79
        $region54: #{tran_decoder_forward.11} parent=47 // pred_check_branch
          %399 = sbr.rel (%p397) target = $region56
        $region55: #{tran_decoder_forward.11} parent=47 // pred_region
          %p400 = scmp.lt.s32.totalorder %s26, 1
          %s401 = scalar_select %p400, %s26, 1
          %s402 = smul.addr %s401, 4
          %s403 = scalar_lea.vmem %s1, %s402
        $region56: #{tran_decoder_forward.11} parent=47 // pred_fallthru
          _
        // Predicated region
        $region57: #{tran_decoder_forward.11} parent=47 // pred_check
          %p404 = pneg %p105
        $region58: #{tran_decoder_forward.11} parent=47 // pred_check_branch
          %406 = sbr.rel (%p404) target = $region60
        $region59: #{tran_decoder_forward.11} parent=47 // pred_region
          %p407 = scmp.lt.s32.totalorder %s26, 1
          %s408 = scalar_select %p407, %s26, 1
          %s409 = scalar_lea.vmem %s2, %s408
        $region60: #{tran_decoder_forward.11} parent=47 // pred_fallthru
          _
        // Predicated region
        $region61: #{tran_decoder_forward.11} parent=47 // pred_check
          %p410 = pneg %p133
        $region62: #{tran_decoder_forward.11} parent=47 // pred_check_branch
          %412 = sbr.rel (%p410) target = $region64
        $region63: #{tran_decoder_forward.11} parent=47 // pred_region
          %p413 = scmp.lt.s32.totalorder %s26, 1
          %s414 = scalar_select %p413, %s26, 1
          %p415 = scmp.lt.s32.totalorder %s27, 0
          %s416 = scalar_select %p415, %s27, 0
          %s417 = sadd.s32 %s416, %s414
          %s418 = smul.addr %s417, 8
          %s419 = scalar_lea.vmem %s3, %s418
        $region64: #{tran_decoder_forward.11} parent=47 // pred_fallthru
          _
      $region48: #{tran_decoder_forward.11} parent=5 // pred_fallthru
        _
      %p420 = scmp.le.s32.totalorder 1, %s19
      %p421 = scmp.lt.s32.totalorder %s19, 3
      %p422 = pnand %p420, %p421
      %p423 = pneg %p422
      // Predicated region
      $region65: #{tran_decoder_forward.11} parent=5 // pred_check
        _
      $region66: #{tran_decoder_forward.11} parent=5 // pred_check_branch
        %425 = sbr.rel (%p422) target = $region68
      $region67: #{tran_decoder_forward.11} parent=5 // pred_region
        %s426 = ssub.s32 %s19, 1
        // Predicated region
        $region69: #{tran_decoder_forward.11} parent=67 // pred_check
          %p427 = pneg %p307
        $region70: #{tran_decoder_forward.11} parent=67 // pred_check_branch
          %429 = sbr.rel (%p427) target = $region72
        $region71: #{tran_decoder_forward.11} parent=67 // pred_region
          %431 = dma.done [#allocation3], 16
        $region72: #{tran_decoder_forward.11} parent=67 // pred_fallthru
          _
        %p432 = scmp.lt.s32.totalorder %s28, 1
        %s433 = scalar_select %p432, %s28, 1
        %p434 = scmp.lt.s32.totalorder %s29, 0
        %s435 = scalar_select %p434, %s29, 0
        %s436 = sadd.s32 %s435, %s433
        %s437 = smul.addr %s436, 4
        %s438 = scalar_lea.vmem %s0, %s437
        %p439 = pneg %p59
        %p440 = pneg %p56
        %p441 = scmp.lt.s32.totalorder %s28, 1
        %s442 = scalar_select %p441, %s28, 1
        %s443 = smul.addr %s442, 4
        %s444 = scalar_lea.vmem %s1, %s443
        %p445 = pneg %p85
        %p446 = pneg %p82
        %p447 = scmp.lt.s32.totalorder %s28, 1
        %s448 = scalar_select %p447, %s28, 1
        %s449 = scalar_lea.vmem %s2, %s448
        %p450 = pneg %p111
        %p451 = pneg %p108
        %p452 = scmp.lt.s32.totalorder %s28, 1
        %s453 = scalar_select %p452, %s28, 1
        %p454 = scmp.lt.s32.totalorder %s29, 0
        %s455 = scalar_select %p454, %s29, 0
        %s456 = sadd.s32 %s455, %s453
        %s457 = smul.addr %s456, 8
        %s458 = scalar_lea.vmem %s3, %s457
        %p459 = pneg %p139
        %p460 = pneg %p136
        %p461 = pneg %p160
        %p462 = pneg %p157
        %p463 = pneg %p181
        %p464 = pneg %p178
        %p465 = pneg %p202
        %p466 = pneg %p199
        %p467 = pneg %p223
        %p468 = pneg %p220
        %p469 = pneg %p244
        %p470 = pneg %p241
        %p471 = pneg %p265
        %p472 = pneg %p262
        %p473 = pneg %p286
        %p474 = pneg %p283
        %p475 = pneg %p307
        %p476 = pneg %p304
        %p477 = pneg %p335
        %p478 = pneg %p332
        %p479 = scmp.lt.s32.totalorder %s28, 1
        %s480 = scalar_select %p479, %s28, 1
        %p481 = scmp.lt.s32.totalorder %s29, 0
        %s482 = scalar_select %p481, %s29, 0
        %s483 = sadd.s32 %s482, %s480
        %s484 = smul.addr %s483, 4
        %s485 = scalar_lea.vmem %s12, %s484
        %p486 = scmp.lt.s32.totalorder %s28, 1
        %s487 = scalar_select %p486, %s28, 1
        %p488 = scmp.lt.s32.totalorder %s29, 0
        %s489 = scalar_select %p488, %s29, 0
        %s490 = sadd.s32 %s489, %s487
        %s491 = smul.addr %s490, 4
        %s492 = scalar_lea.vmem %s0, %s491
        %p493 = scmp.lt.s32.totalorder %s28, 1
        %s494 = scalar_select %p493, %s28, 1
        %s495 = smul.addr %s494, 4
        %s496 = scalar_lea.vmem %s1, %s495
        %p497 = scmp.lt.s32.totalorder %s28, 1
        %s498 = scalar_select %p497, %s28, 1
        %s499 = scalar_lea.vmem %s2, %s498
        %p500 = scmp.lt.s32.totalorder %s28, 1
        %s501 = scalar_select %p500, %s28, 1
        %p502 = scmp.lt.s32.totalorder %s29, 0
        %s503 = scalar_select %p502, %s29, 0
        %s504 = sadd.s32 %s503, %s501
        %s505 = smul.addr %s504, 8
        %s506 = scalar_lea.vmem %s3, %s505
        %p507 = scmp.lt.s32.totalorder %s28, 1
        %s508 = scalar_select %p507, %s28, 1
        %p509 = scmp.lt.s32.totalorder %s29, 0
        %s510 = scalar_select %p509, %s29, 0
        %s511 = sadd.s32 %s510, %s508
        %s512 = smul.addr %s511, 4
        %s513 = scalar_lea.vmem %s12, %s512
        %v515 = vld [vmem:[%s492] sm:$0xf]
        %v516 = vld [vmem:[%s496] sm:$0xf]
        %v517 = vld [vmem:[%s4] sm:$0xf]
        %v518 = vld [vmem:[%s4 + $0x4] sm:$0xf]
        %v519 = vld [vmem:[%s4 + $0x8] sm:$0xf]
        %v520 = vld [vmem:[%s4 + $0xc] sm:$0xf]
        %v521 = vld [vmem:[%s5] sm:$0x1]
        %v523 = vperm.slane %v521, 0
        %v529 = vunpack.c.l.b16 %v517
        %v530 = vunpack.c.l.b16 %v518
        %v531 = vunpack.c.l.b16 %v519
        %v532 = vunpack.c.l.b16 %v520
        %v533 = vpack.c.b16 %v530, %v529
        %v534 = vpack.c.b16 %v532, %v531
        %vm537 = vcmask 261120
        %v539 = vsel %vm537, %v515, 0
        %541 = vmatpush.bf16.msra.mxu0 0
        %542 = vmatpush.bf16.msra.mxu0 0
        %543 = vmatpush.bf16.msra.mxu0 0
        %544 = vmatpush.bf16.msra.mxu0 0
        %545 = vmatpush.bf16.msra.mxu0 0
        %546 = vmatpush.bf16.msra.mxu0 0
        %547 = vmatpush.bf16.msra.mxu0 %v534
        %548 = vmatpush.bf16.msra.mxu0 %v533
        %549 = vmatmul.bf16.gmra.mxu0 %v539
        %v550 = vpop.f32.mrf.mxu0
        %v551 = vadd.f32 %v523, %v550
        %v552 = vpop.f32.mrf.mxu0
        %553 = vdwg.mxu0
        %v554 = vld [vmem:[%s6] sm:$0xf]
        %v555 = vld [vmem:[%s6 + $0x4] sm:$0xf]
        %v556 = vld [vmem:[%s6 + $0x8] sm:$0xf]
        %v557 = vld [vmem:[%s6 + $0xc] sm:$0xf]
        %v558 = vld [vmem:[%s7] sm:$0x1]
        %v560 = vperm.slane %v558, 0
        %v566 = vunpack.c.l.b16 %v554
        %v567 = vunpack.c.l.b16 %v555
        %v568 = vunpack.c.l.b16 %v556
        %v569 = vunpack.c.l.b16 %v557
        %v570 = vpack.c.b16 %v567, %v566
        %v571 = vpack.c.b16 %v569, %v568
        %v575 = vsel %vm537, %v516, 0
        %577 = vmatpush.bf16.msra.mxu0 0
        %578 = vmatpush.bf16.msra.mxu0 0
        %579 = vmatpush.bf16.msra.mxu0 0
        %580 = vmatpush.bf16.msra.mxu0 0
        %581 = vmatpush.bf16.msra.mxu0 0
        %582 = vmatpush.bf16.msra.mxu0 0
        %583 = vmatpush.bf16.msra.mxu0 %v571
        %584 = vmatpush.bf16.msra.mxu0 %v570
        %585 = vmatmul.bf16.gmra.mxu0 %v575
        %v586 = vpop.f32.mrf.mxu0
        %v587 = vadd.f32 %v560, %v586
        %v588 = vpop.f32.mrf.mxu0
        %589 = vdwg.mxu0
        %v590 = vld [vmem:[%s499] sm:$0x1]
        %vm591 = vcmp.gt.f32.partialorder %v590, 0.0
        %v592 = vsel %vm591, 1, 0
        %v593 = vperm.slane %v592, 0
        %vm594 = vcmp.eq.s32.totalorder %v593, 1
        %s595 = smul.u32 %s29, 8
        %v596 = vlaneseq
        %v597 = vshrl.u32 %v596, 7
        %v598 = vstv %s595
        %v599 = vadd.s32 %v598, %v597
        %v600 = vlaneseq
        %v601 = vand.u32 %v600, 127
        %vm602 = vcmp.gt.s32.totalorder %v601, %v599
        %vm603 = vmor %vm594, %vm602
        %v604 = vpack.c.bf16 %v551, %v551
        %v605 = vpack.c.bf16 %v587, %v587
        %vm606 = vcmask 130048
        %v608 = vsel %vm606, %v604, 0
        %v611 = vsel %vm606, %v605, 0
        %613 = vmatpush.bf16.xpose.msra.mxu0 0
        %614 = vmatpush.bf16.xpose.msra.mxu0 0
        %615 = vmatpush.bf16.xpose.msra.mxu0 0
        %616 = vmatpush.bf16.xpose.msra.mxu0 0
        %617 = vmatpush.bf16.xpose.msra.mxu0 0
        %618 = vmatpush.bf16.xpose.msra.mxu0 0
        %619 = vmatpush.bf16.xpose.msra.mxu0 0
        %620 = vmatpush.bf16.xpose.msra.mxu0 %v611
        %621 = vmatmul.bf16.gmra.mxu0 %v608
        %v622 = vpop.f32.mrf.mxu0
        %v623 = vadd.f32 0.0, %v622
        %v624 = vpop.f32.mrf.mxu0
        %625 = vdwg.mxu0
        %v626 = vmul.f32 %v623, 0.25
        %v627 = vsel %vm603, -1e+30, %v626
        %vm628 = vcmask 64512
        %v629 = vsel %vm628, %v627, -inf
        %630 = vmax.xlane.f32.xlu0 %v629
        %v631 = vpop.xlane.xlu0 %630
        %v632 = vsub.f32 %v627, %v631
        %v633 = vmul.f32 %v632, 1.442695
        %v634 = vpow.pop %v633
        %v635 = vsel %vm628, %v634, 0.0
        %636 = vadd.xlane.f32.xlu0 %v635
        %v637 = vpop.xlane.xlu0 %636
        %v638 = vrcp.pop %v637
        %v639 = vmul.f32 %v634, %v638
        %v640 = vpack.c.bf16 %v639, %v639
        %642 = vrot.lane.b32.xlu0 %v605, 96
        %v643 = vpop.permute.xlu0 %642
        %v645 = vsel %vm628, %v640, 0
        %vm647 = vcmask 1043456
        %v649 = vsel %vm647, %v643, 0
        %651 = vmatpush.bf16.msra.mxu0 0
        %652 = vmatpush.bf16.msra.mxu0 0
        %653 = vmatpush.bf16.msra.mxu0 0
        %654 = vmatpush.bf16.msra.mxu0 0
        %655 = vmatpush.bf16.msra.mxu0 0
        %656 = vmatpush.bf16.msra.mxu0 0
        %657 = vmatpush.bf16.msra.mxu0 0
        %658 = vmatpush.bf16.msra.mxu0 %v649
        %659 = vmatmul.bf16.gmra.mxu0 %v645
        %v660 = vpop.f32.mrf.mxu0
        %v661 = vadd.f32 0.0, %v660
        %v662 = vpop.f32.mrf.mxu0
        %663 = vdwg.mxu0
        %665 = vrot.lane.b32.xlu0 %v604, 112
        %v666 = vpop.permute.xlu0 %665
        %667 = vrot.lane.b32.xlu0 %v605, 112
        %v668 = vpop.permute.xlu0 %667
        %v670 = vsel %vm606, %v666, 0
        %v673 = vsel %vm606, %v668, 0
        %675 = vmatpush.bf16.xpose.msra.mxu0 0
        %676 = vmatpush.bf16.xpose.msra.mxu0 0
        %677 = vmatpush.bf16.xpose.msra.mxu0 0
        %678 = vmatpush.bf16.xpose.msra.mxu0 0
        %679 = vmatpush.bf16.xpose.msra.mxu0 0
        %680 = vmatpush.bf16.xpose.msra.mxu0 0
        %681 = vmatpush.bf16.xpose.msra.mxu0 0
        %682 = vmatpush.bf16.xpose.msra.mxu0 %v673
        %683 = vmatmul.bf16.gmra.mxu0 %v670
        %v684 = vpop.f32.mrf.mxu0
        %v685 = vadd.f32 0.0, %v684
        %v686 = vpop.f32.mrf.mxu0
        %687 = vdwg.mxu0
        %v688 = vmul.f32 %v685, 0.25
        %v689 = vsel %vm603, -1e+30, %v688
        %v690 = vsel %vm628, %v689, -inf
        %691 = vmax.xlane.f32.xlu0 %v690
        %v692 = vpop.xlane.xlu0 %691
        %v693 = vsub.f32 %v689, %v692
        %v694 = vmul.f32 %v693, 1.442695
        %v695 = vpow.pop %v694
        %v696 = vsel %vm628, %v695, 0.0
        %697 = vadd.xlane.f32.xlu0 %v696
        %v698 = vpop.xlane.xlu0 %697
        %v699 = vrcp.pop %v698
        %v700 = vmul.f32 %v695, %v699
        %v701 = vpack.c.bf16 %v700, %v700
        %702 = vrot.lane.b32.xlu0 %v605, 80
        %v703 = vpop.permute.xlu0 %702
        %v705 = vsel %vm628, %v701, 0
        %v708 = vsel %vm647, %v703, 0
        %710 = vmatpush.bf16.msra.mxu0 0
        %711 = vmatpush.bf16.msra.mxu0 0
        %712 = vmatpush.bf16.msra.mxu0 0
        %713 = vmatpush.bf16.msra.mxu0 0
        %714 = vmatpush.bf16.msra.mxu0 0
        %715 = vmatpush.bf16.msra.mxu0 0
        %716 = vmatpush.bf16.msra.mxu0 0
        %717 = vmatpush.bf16.msra.mxu0 %v708
        %718 = vmatmul.bf16.gmra.mxu0 %v705
        %v719 = vpop.f32.mrf.mxu0
        %v720 = vadd.f32 0.0, %v719
        %v721 = vpop.f32.mrf.mxu0
        %722 = vdwg.mxu0
        %724 = vrot.lane.b32.xlu0 %v720, 16
        %v725 = vpop.permute.xlu0 %724
        %v727 = vsel %vm606, %v661, %v725
        %v728 = vpack.c.bf16 %v727, %v727
        %v729 = vld [vmem:[%s8] sm:$0xf]
        %v730 = vld [vmem:[%s8 + $0x4] sm:$0xf]
        %v731 = vld [vmem:[%s8 + $0x8] sm:$0xf]
        %v732 = vld [vmem:[%s8 + $0xc] sm:$0xf]
        %v733 = vld [vmem:[%s9] sm:$0x1]
        %v735 = vperm.slane %v733, 0
        %v741 = vunpack.c.l.b16 %v729
        %v742 = vunpack.c.l.b16 %v730
        %v743 = vunpack.c.l.b16 %v731
        %v744 = vunpack.c.l.b16 %v732
        %v745 = vpack.c.b16 %v742, %v741
        %v746 = vpack.c.b16 %v744, %v743
        %v750 = vsel %vm537, %v728, 0
        %752 = vmatpush.bf16.msra.mxu0 0
        %753 = vmatpush.bf16.msra.mxu0 0
        %754 = vmatpush.bf16.msra.mxu0 0
        %755 = vmatpush.bf16.msra.mxu0 0
        %756 = vmatpush.bf16.msra.mxu0 0
        %757 = vmatpush.bf16.msra.mxu0 0
        %758 = vmatpush.bf16.msra.mxu0 %v746
        %759 = vmatpush.bf16.msra.mxu0 %v745
        %760 = vmatmul.bf16.gmra.mxu0 %v750
        %v761 = vpop.f32.mrf.mxu0
        %v762 = vadd.f32 %v735, %v761
        %v763 = vpop.f32.mrf.mxu0
        %764 = vdwg.mxu0
        %v765 = vunpack.c.l.bf16 %v515
        %v766 = vadd.f32 %v762, %v765
        %v767 = vsel %vm537, %v766, 0.0
        %768 = vadd.xlane.f32.xlu0 %v767
        %v769 = vpop.xlane.xlu0 %768
        %v770 = vrcp.pop 32.0
        %v771 = vmul.f32 32.0, %v770
        %v772 = vsub.f32 1.0, %v771
        %v773 = vmul.f32 %v770, %v772
        %v774 = vadd.f32 %v770, %v773
        %vm775 = vweird.f32 %v770
        %v776 = vsel %vm775, %v770, %v774
        %v777 = vmul.f32 %v769, %v776
        %v778 = vsub.f32 %v766, %v777
        %v779 = vmul.f32 %v778, %v778
        %v780 = vsel %vm537, %v779, 0.0
        %781 = vadd.xlane.f32.xlu0 %v780
        %v782 = vpop.xlane.xlu0 %781
        %v783 = vmul.f32 %v782, %v776
        %v784 = vadd.f32 %v783, 1e-05
        %v785 = vrsqrt.pop %v784
        %v786 = vmul.f32 %v785, %v784
        %v787 = vmul.f32 %v786, %v785
        %v788 = vmul.f32 0.5, %v787
        %v789 = vsub.f32 1.5, %v788
        %v790 = vmul.f32 %v785, %v789
        %vm791 = vweird.f32 %v784
        %vm792 = vweird.f32 %v785
        %vm793 = vmor %vm791, %vm792
        %v794 = vsel %vm793, %v785, %v790
        %v795 = vmul.f32 %v778, %v794
        %v796 = vld [vmem:[%s10] sm:$0x1]
        %v798 = vperm.slane %v796, 0
        %v800 = vmul.f32 %v795, %v798
        %v801 = vld [vmem:[#allocation2] sm:$0x1]
        %v803 = vperm.slane %v801, 0
        %v805 = vadd.f32 %v800, %v803
        %v806 = vld [vmem:[%s506] sm:$0xff]
        %808 = vset.pattern.permute.xlu0 0
        %809 = vperm.xlu0 %808, %v806
        %v810 = vpop.permute.xlu0 %809
        %v812 = vmul.f32 %v805, %v810
        %v813 = vpack.c.bf16 %v812, %v812
        %vm814 = vcmask 257024
        %815 = vst.msk [vmem:[%s513] sm:$0xf] %vm814, %v813
        %p816 = scmp.lt.s32.totalorder %s28, 1
        %s817 = scalar_select %p816, %s28, 1
        %p818 = scmp.lt.s32.totalorder %s29, 0
        %s819 = scalar_select %p818, %s29, 0
        %s820 = sadd.s32 %s819, %s817
        %s821 = smul.addr %s820, 4
        %s822 = scalar_lea.vmem %s12, %s821
        // Predicated region
        $region73: #{tran_decoder_forward.11} parent=67 // pred_check
          %p823 = pneg %p332
        $region74: #{tran_decoder_forward.11} parent=67 // pred_check_branch
          %825 = sbr.rel (%p823) target = $region76
        $region75: #{tran_decoder_forward.11} parent=67 // pred_region
          _
        $region76: #{tran_decoder_forward.11} parent=67 // pred_fallthru
          _
      $region68: #{tran_decoder_forward.11} parent=5 // pred_fallthru
        _
      %p826 = scmp.le.s32.totalorder 2, %s19
      // Predicated region
      $region77: #{tran_decoder_forward.11} parent=5 // pred_check
        %p827 = pneg %p826
      $region78: #{tran_decoder_forward.11} parent=5 // pred_check_branch
        %829 = sbr.rel (%p827) target = $region80
      $region79: #{tran_decoder_forward.11} parent=5 // pred_region
        %s830 = ssub.s32 %s19, 2
        // Predicated region
        $region81: #{tran_decoder_forward.11} parent=79 // pred_check
          %p831 = pneg %p338
        $region82: #{tran_decoder_forward.11} parent=79 // pred_check_branch
          %833 = sbr.rel (%p831) target = $region84
        $region83: #{tran_decoder_forward.11} parent=79 // pred_region
          %p834 = scmp.lt.s32.totalorder %s30, 1
          %s835 = scalar_select %p834, %s30, 1
          %p836 = scmp.lt.s32.totalorder %s31, 0
          %s837 = scalar_select %p836, %s31, 0
          %s838 = sadd.s32 %s837, %s835
          %s839 = smul.addr %s838, 4
          %s840 = scalar_lea.vmem %s12, %s839
        $region84: #{tran_decoder_forward.11} parent=79 // pred_fallthru
          _
      $region80: #{tran_decoder_forward.11} parent=5 // pred_fallthru
        _
    $region6: #{tran_decoder_forward.11} parent=1 // loop_footer
      %s23 = sadd.s32 1, %s19
    $region7: #{tran_decoder_forward.11} parent=1 // loop_footer_branch
      %18 = sbr.rel target = $region3
    $region8: #{tran_decoder_forward.11} parent=1 // loop_exit
      _
    %841 = vsyncpa [#allocation3], 1
    %s842 = scalar_lea.sflag [#allocation3], 1
    %843 = vsyncpa %s842, 1

// kernel: tran_decoder_forward.13
$region0: #{tran_decoder_forward.13}
  #allocation0 [shape = 'u32[]', space=smem, size = 0x4, offset = 0x4, fixed_abs, tag = 'smem constant byte address 0x4 - core index']
  #allocation1 [shape = 'u32[72,128]{1,0:T(1,128)}', space=vmem, size = 0x9000, scoped, tag = 'internal scratch']
  %s0 = inlined_call_operand.vmem [shape: bf16[16,32], index: 0, kind: input, shape index: {}]
  %s1 = inlined_call_operand.vmem [shape: bf16[32,64], index: 1, kind: input, shape index: {}]
  %s2 = inlined_call_operand.hbm [shape: f32[1,64], index: 2, kind: input, shape index: {}]
  %s3 = inlined_call_operand.vmem [shape: bf16[64,32], index: 3, kind: input, shape index: {}]
  %s4 = inlined_call_operand.hbm [shape: f32[1,32], index: 4, kind: input, shape index: {}]
  %s5 = inlined_call_operand.hbm [shape: f32[1,32], index: 5, kind: input, shape index: {}]
  %s6 = inlined_call_operand.hbm [shape: f32[1,32], index: 6, kind: input, shape index: {}]
  %s7 = inlined_call_operand.vmem [shape: f32[16,1], index: 7, kind: input, shape index: {}]
  %s8 = inlined_call_operand.vmem [shape: bf16[16,32], index: 8, kind: output, shape index: {}]
  %s9 = sld [smem:[#allocation0]]
  $region58: #{tran_decoder_forward.13} parent=0
    _
  %s11 = ssub.s32 1, %s9
  %s12 = scalar_select 0, %s11, %s9
  $region1: #{tran_decoder_forward.13} parent=0
    #allocation2 [shape = 'u8[512]{0}', space=vmem, size = 0x400, scoped, tag = 'input window, operand 2, single buffered']
    #allocation3 [shape = 's32[1]{0}', space=sflag, size = 0x4, scoped, tag = 'scoped memory for tran_decoder_forward.13']
    #allocation4 [shape = 'u8[512]{0}', space=vmem, size = 0x400, scoped, tag = 'input window, operand 4, single buffered']
    #allocation5 [shape = 's32[1]{0}', space=sflag, size = 0x4, scoped, tag = 'scoped memory for tran_decoder_forward.13']
    #allocation6 [shape = 'u8[512]{0}', space=vmem, size = 0x400, scoped, tag = 'input window, operand 5, single buffered']
    #allocation7 [shape = 'u8[512]{0}', space=vmem, size = 0x400, scoped, tag = 'input window, operand 6, single buffered']
    #allocation8 [shape = 's32[1]{0}', space=sflag, size = 0x4, scoped, tag = 'scoped memory for tran_decoder_forward.13']
    %13 = vsyncpa [#allocation3], 0
    %14 = vsyncpa [#allocation5], 0
    %15 = vsyncpa [#allocation8], 0
    // Predicated region
    $region2: #{tran_decoder_forward.13} parent=1 // pred_check
      _
    $region3: #{tran_decoder_forward.13} parent=1 // pred_check_branch
      %17 = sbr.rel (0) target = $region5
    $region4: #{tran_decoder_forward.13} parent=1 // pred_region
      _
    $region5: #{tran_decoder_forward.13} parent=1 // pred_fallthru
      _
    // Predicated region
    $region6: #{tran_decoder_forward.13} parent=1 // pred_check
      _
    $region7: #{tran_decoder_forward.13} parent=1 // pred_check_branch
      %19 = sbr.rel (0) target = $region9
    $region8: #{tran_decoder_forward.13} parent=1 // pred_region
      _
    $region9: #{tran_decoder_forward.13} parent=1 // pred_fallthru
      _
    // Predicated region
    $region10: #{tran_decoder_forward.13} parent=1 // pred_check
      _
    $region11: #{tran_decoder_forward.13} parent=1 // pred_check_branch
      %21 = sbr.rel (0) target = $region13
    $region12: #{tran_decoder_forward.13} parent=1 // pred_region
      %23 = vsyncadd [#allocation3], 0
      %s25 = sshll.u32 %s2, 4
      %s26 = int_to_ptr.hbm [resolvable:$true] %s25
      %s27 = sshll.u32 [#allocation2], 4
      %s28 = int_to_ptr.vmem [resolvable:$true] %s27
      %30 = dma.hbm_to_vmem [thread:$0]  %s26, 16, %s28, [#allocation3]
    $region13: #{tran_decoder_forward.13} parent=1 // pred_fallthru
      _
    // Predicated region
    $region14: #{tran_decoder_forward.13} parent=1 // pred_check
      _
    $region15: #{tran_decoder_forward.13} parent=1 // pred_check_branch
      %32 = sbr.rel (0) target = $region17
    $region16: #{tran_decoder_forward.13} parent=1 // pred_region
      _
    $region17: #{tran_decoder_forward.13} parent=1 // pred_fallthru
      _
    // Predicated region
    $region18: #{tran_decoder_forward.13} parent=1 // pred_check
      _
    $region19: #{tran_decoder_forward.13} parent=1 // pred_check_branch
      %34 = sbr.rel (0) target = $region21
    $region20: #{tran_decoder_forward.13} parent=1 // pred_region
      %36 = vsyncadd [#allocation5], 0
      %s38 = sshll.u32 %s4, 4
      %s39 = int_to_ptr.hbm [resolvable:$true] %s38
      %s40 = sshll.u32 [#allocation4], 4
      %s41 = int_to_ptr.vmem [resolvable:$true] %s40
      %43 = dma.hbm_to_vmem [thread:$0]  %s39, 16, %s41, [#allocation5]
    $region21: #{tran_decoder_forward.13} parent=1 // pred_fallthru
      _
    // Predicated region
    $region22: #{tran_decoder_forward.13} parent=1 // pred_check
      _
    $region23: #{tran_decoder_forward.13} parent=1 // pred_check_branch
      %45 = sbr.rel (0) target = $region25
    $region24: #{tran_decoder_forward.13} parent=1 // pred_region
      %47 = vsyncadd [#allocation5], 0
      %s49 = sshll.u32 %s5, 4
      %s50 = int_to_ptr.hbm [resolvable:$true] %s49
      %s51 = sshll.u32 [#allocation6], 4
      %s52 = int_to_ptr.vmem [resolvable:$true] %s51
      %54 = dma.hbm_to_vmem [thread:$0]  %s50, 16, %s52, [#allocation5]
    $region25: #{tran_decoder_forward.13} parent=1 // pred_fallthru
      _
    // Predicated region
    $region26: #{tran_decoder_forward.13} parent=1 // pred_check
      _
    $region27: #{tran_decoder_forward.13} parent=1 // pred_check_branch
      %56 = sbr.rel (0) target = $region29
    $region28: #{tran_decoder_forward.13} parent=1 // pred_region
      %58 = vsyncadd [#allocation8], 0
      %s60 = sshll.u32 %s6, 4
      %s61 = int_to_ptr.hbm [resolvable:$true] %s60
      %s62 = sshll.u32 [#allocation7], 4
      %s63 = int_to_ptr.vmem [resolvable:$true] %s62
      %65 = dma.hbm_to_vmem [thread:$0]  %s61, 16, %s63, [#allocation8]
    $region29: #{tran_decoder_forward.13} parent=1 // pred_fallthru
      _
    // Predicated region
    $region30: #{tran_decoder_forward.13} parent=1 // pred_check
      _
    $region31: #{tran_decoder_forward.13} parent=1 // pred_check_branch
      %67 = sbr.rel (0) target = $region33
    $region32: #{tran_decoder_forward.13} parent=1 // pred_region
      _
    $region33: #{tran_decoder_forward.13} parent=1 // pred_fallthru
      _
    // Predicated region
    $region34: #{tran_decoder_forward.13} parent=1 // pred_check
      _
    $region35: #{tran_decoder_forward.13} parent=1 // pred_check_branch
      %69 = sbr.rel (0) target = $region37
    $region36: #{tran_decoder_forward.13} parent=1 // pred_region
      %71 = dma.done [#allocation3], 16
    $region37: #{tran_decoder_forward.13} parent=1 // pred_fallthru
      _
    // Predicated region
    $region38: #{tran_decoder_forward.13} parent=1 // pred_check
      _
    $region39: #{tran_decoder_forward.13} parent=1 // pred_check_branch
      %73 = sbr.rel (0) target = $region41
    $region40: #{tran_decoder_forward.13} parent=1 // pred_region
      %75 = dma.done [#allocation5], 16
    $region41: #{tran_decoder_forward.13} parent=1 // pred_fallthru
      _
    // Predicated region
    $region42: #{tran_decoder_forward.13} parent=1 // pred_check
      _
    $region43: #{tran_decoder_forward.13} parent=1 // pred_check_branch
      %77 = sbr.rel (0) target = $region45
    $region44: #{tran_decoder_forward.13} parent=1 // pred_region
      %79 = dma.done [#allocation5], 16
    $region45: #{tran_decoder_forward.13} parent=1 // pred_fallthru
      _
    // Predicated region
    $region46: #{tran_decoder_forward.13} parent=1 // pred_check
      _
    $region47: #{tran_decoder_forward.13} parent=1 // pred_check_branch
      %81 = sbr.rel (0) target = $region49
    $region48: #{tran_decoder_forward.13} parent=1 // pred_region
      %83 = dma.done [#allocation8], 16
    $region49: #{tran_decoder_forward.13} parent=1 // pred_fallthru
      _
    %v85 = vld [vmem:[%s0] sm:$0xf]
    %v86 = vld [vmem:[%s0 + $0x4] sm:$0xf]
    %v87 = vld [vmem:[%s1] sm:$0xf]
    %v88 = vld [vmem:[%s1 + $0x4] sm:$0xf]
    %v89 = vld [vmem:[%s1 + $0x8] sm:$0xf]
    %v90 = vld [vmem:[%s1 + $0xc] sm:$0xf]
    %v91 = vld [vmem:[#allocation2] sm:$0x1]
    %v93 = vperm.slane %v91, 0
    %v97 = vunpack.c.l.b16 %v85
    %v98 = vunpack.c.l.b16 %v86
    %v99 = vpack.c.b16 %v98, %v97
    %v104 = vunpack.c.l.b16 %v87
    %v105 = vunpack.c.l.b16 %v88
    %v106 = vunpack.c.l.b16 %v89
    %v107 = vunpack.c.l.b16 %v90
    %v108 = vpack.c.b16 %v105, %v104
    %v109 = vpack.c.b16 %v107, %v106
    %vm112 = vcmask 261120
    %v114 = vsel %vm112, %v99, 0
    %116 = vmatpush.bf16.msra.mxu0 0
    %117 = vmatpush.bf16.msra.mxu0 0
    %118 = vmatpush.bf16.msra.mxu0 0
    %119 = vmatpush.bf16.msra.mxu0 0
    %120 = vmatpush.bf16.msra.mxu0 0
    %121 = vmatpush.bf16.msra.mxu0 0
    %122 = vmatpush.bf16.msra.mxu0 %v109
    %123 = vmatpush.bf16.msra.mxu0 %v108
    %124 = vmatmul.bf16.gmra.mxu0 %v114
    %v125 = vpop.f32.mrf.mxu0
    %v126 = vadd.f32 %v93, %v125
    %v127 = vpop.f32.mrf.mxu0
    %v128 = vadd.f32 %v93, %v127
    %129 = vdwg.mxu0
    %v130 = vmax.f32 %v126, 0.0
    %v131 = vmax.f32 %v128, 0.0
    %v132 = vpack.c.bf16 %v131, %v130
    %v133 = vld [vmem:[%s3] sm:$0xf]
    %v134 = vld [vmem:[%s3 + $0x4] sm:$0xf]
    %v135 = vld [vmem:[%s3 + $0x8] sm:$0xf]
    %v136 = vld [vmem:[%s3 + $0xc] sm:$0xf]
    %v137 = vld [vmem:[%s3 + $0x10] sm:$0xf]
    %v138 = vld [vmem:[%s3 + $0x14] sm:$0xf]
    %v139 = vld [vmem:[%s3 + $0x18] sm:$0xf]
    %v140 = vld [vmem:[%s3 + $0x1c] sm:$0xf]
    %v141 = vld [vmem:[#allocation4] sm:$0x1]
    %v143 = vperm.slane %v141, 0
    %v153 = vunpack.c.l.b16 %v133
    %v154 = vunpack.c.l.b16 %v134
    %v155 = vunpack.c.l.b16 %v135
    %v156 = vunpack.c.l.b16 %v136
    %v157 = vunpack.c.l.b16 %v137
    %v158 = vunpack.c.l.b16 %v138
    %v159 = vunpack.c.l.b16 %v139
    %v160 = vunpack.c.l.b16 %v140
    %v161 = vpack.c.b16 %v154, %v153
    %v162 = vpack.c.b16 %v156, %v155
    %v163 = vpack.c.b16 %v158, %v157
    %v164 = vpack.c.b16 %v160, %v159
    %vm169 = vcmask 523264
    %v171 = vsel %vm169, %v132, 0
    %173 = vmatpush.bf16.msra.mxu0 0
    %174 = vmatpush.bf16.msra.mxu0 0
    %175 = vmatpush.bf16.msra.mxu0 0
    %176 = vmatpush.bf16.msra.mxu0 0
    %177 = vmatpush.bf16.msra.mxu0 %v164
    %178 = vmatpush.bf16.msra.mxu0 %v163
    %179 = vmatpush.bf16.msra.mxu0 %v162
    %180 = vmatpush.bf16.msra.mxu0 %v161
    %181 = vmatmul.bf16.gmra.mxu0 %v171
    %v182 = vpop.f32.mrf.mxu0
    %v183 = vadd.f32 %v143, %v182
    %v184 = vpop.f32.mrf.mxu0
    %v185 = vadd.f32 %v143, %v184
    %186 = vdwg.mxu0
    %v187 = vunpack.c.l.bf16 %v85
    %v188 = vunpack.c.l.bf16 %v86
    %v189 = vadd.f32 %v183, %v187
    %v190 = vadd.f32 %v185, %v188
    %v191 = vsel %vm112, %v189, 0.0
    %192 = vadd.xlane.f32.xlu0 %v191
    %v193 = vpop.xlane.xlu0 %192
    %v194 = vsel %vm112, %v190, 0.0
    %195 = vadd.xlane.f32.xlu0 %v194
    %v196 = vpop.xlane.xlu0 %195
    %v197 = vrcp.pop 32.0
    %v198 = vmul.f32 32.0, %v197
    %v199 = vsub.f32 1.0, %v198
    %v200 = vmul.f32 %v197, %v199
    %v201 = vadd.f32 %v197, %v200
    %vm202 = vweird.f32 %v197
    %v203 = vsel %vm202, %v197, %v201
    %v204 = vmul.f32 %v193, %v203
    %v205 = vmul.f32 %v196, %v203
    %v206 = vsub.f32 %v189, %v204
    %v207 = vsub.f32 %v190, %v205
    %v208 = vmul.f32 %v206, %v206
    %v209 = vmul.f32 %v207, %v207
    %v210 = vsel %vm112, %v208, 0.0
    %211 = vadd.xlane.f32.xlu0 %v210
    %v212 = vpop.xlane.xlu0 %211
    %v213 = vsel %vm112, %v209, 0.0
    %214 = vadd.xlane.f32.xlu0 %v213
    %v215 = vpop.xlane.xlu0 %214
    %v216 = vmul.f32 %v212, %v203
    %v217 = vmul.f32 %v215, %v203
    %v218 = vadd.f32 %v216, 1e-05
    %v219 = vadd.f32 %v217, 1e-05
    %v220 = vrsqrt.pop %v218
    %v221 = vmul.f32 %v220, %v218
    %v222 = vmul.f32 %v221, %v220
    %v223 = vmul.f32 0.5, %v222
    %v224 = vsub.f32 1.5, %v223
    %v225 = vmul.f32 %v220, %v224
    %vm226 = vweird.f32 %v218
    %vm227 = vweird.f32 %v220
    %vm228 = vmor %vm226, %vm227
    %v229 = vsel %vm228, %v220, %v225
    %v230 = vrsqrt.pop %v219
    %v231 = vmul.f32 %v230, %v219
    %v232 = vmul.f32 %v231, %v230
    %v233 = vmul.f32 0.5, %v232
    %v234 = vsub.f32 1.5, %v233
    %v235 = vmul.f32 %v230, %v234
    %vm236 = vweird.f32 %v219
    %vm237 = vweird.f32 %v230
    %vm238 = vmor %vm236, %vm237
    %v239 = vsel %vm238, %v230, %v235
    %v240 = vmul.f32 %v206, %v229
    %v241 = vmul.f32 %v207, %v239
    %v242 = vld [vmem:[#allocation6] sm:$0x1]
    %v244 = vperm.slane %v242, 0
    %v246 = vmul.f32 %v240, %v244
    %v247 = vmul.f32 %v241, %v244
    %v248 = vld [vmem:[#allocation7] sm:$0x1]
    %v250 = vperm.slane %v248, 0
    %v252 = vadd.f32 %v246, %v250
    %v253 = vadd.f32 %v247, %v250
    %v254 = vld [vmem:[%s7] sm:$0xff]
    %v255 = vld [vmem:[%s7 + $0x8] sm:$0xff]
    %257 = vset.pattern.permute.xlu0 0
    %258 = vperm.xlu0 %257, %v254
    %v259 = vpop.permute.xlu0 %258
    %262 = vset.pattern.permute.xlu0 0
    %263 = vperm.xlu0 %262, %v255
    %v264 = vpop.permute.xlu0 %263
    %v266 = vmul.f32 %v252, %v259
    %v267 = vmul.f32 %v253, %v264
    %v268 = vpack.c.bf16 %v266, %v266
    %v269 = vpack.c.bf16 %v267, %v267
    %vm270 = vcmask 257024
    %271 = vst.msk [vmem:[%s8] sm:$0xf] %vm270, %v268
    %272 = vst.msk [vmem:[%s8 + $0x4] sm:$0xf] %vm270, %v269
    // Predicated region
    $region50: #{tran_decoder_forward.13} parent=1 // pred_check
      _
    $region51: #{tran_decoder_forward.13} parent=1 // pred_check_branch
      %274 = sbr.rel (0) target = $region53
    $region52: #{tran_decoder_forward.13} parent=1 // pred_region
      _
    $region53: #{tran_decoder_forward.13} parent=1 // pred_fallthru
      _
    // Predicated region
    $region54: #{tran_decoder_forward.13} parent=1 // pred_check
      _
    $region55: #{tran_decoder_forward.13} parent=1 // pred_check_branch
      %276 = sbr.rel (0) target = $region57
    $region56: #{tran_decoder_forward.13} parent=1 // pred_region
      _
    $region57: #{tran_decoder_forward.13} parent=1 // pred_fallthru
      _
    %277 = vsyncpa [#allocation3], 1
    %278 = vsyncpa [#allocation5], 1
    %279 = vsyncpa [#allocation8], 1

// kernel: tran_decoder_forward.12
$region0: #{tran_decoder_forward.12}
  #allocation0 [shape = 'u32[]', space=smem, size = 0x4, offset = 0x4, fixed_abs, tag = 'smem constant byte address 0x4 - core index']
  #allocation1 [shape = 'u32[72,128]{1,0:T(1,128)}', space=vmem, size = 0x9000, scoped, tag = 'internal scratch']
  %s0 = inlined_call_operand.vmem [shape: bf16[2,8,32], index: 0, kind: input, shape index: {}]
  %s1 = inlined_call_operand.vmem [shape: bf16[2,8,32], index: 1, kind: input, shape index: {}]
  %s2 = inlined_call_operand.vmem [shape: f32[2,1,8], index: 2, kind: input, shape index: {}]
  %s3 = inlined_call_operand.vmem [shape: f32[2,8,1], index: 3, kind: input, shape index: {}]
  %s4 = inlined_call_operand.vmem [shape: bf16[32,32], index: 4, kind: input, shape index: {}]
  %s5 = inlined_call_operand.hbm [shape: f32[1,32], index: 5, kind: input, shape index: {}]
  %s6 = inlined_call_operand.vmem [shape: bf16[32,64], index: 6, kind: input, shape index: {}]
  %s7 = inlined_call_operand.hbm [shape: f32[1,64], index: 7, kind: input, shape index: {}]
  %s8 = inlined_call_operand.vmem [shape: bf16[32,32], index: 8, kind: input, shape index: {}]
  %s9 = inlined_call_operand.hbm [shape: f32[1,32], index: 9, kind: input, shape index: {}]
  %s10 = inlined_call_operand.hbm [shape: f32[1,32], index: 10, kind: input, shape index: {}]
  %s11 = inlined_call_operand.hbm [shape: f32[1,32], index: 11, kind: input, shape index: {}]
  %s12 = inlined_call_operand.vmem [shape: bf16[2,8,32], index: 12, kind: output, shape index: {}]
  %s13 = sld [smem:[#allocation0]]
  $region101: #{tran_decoder_forward.12} parent=0
    _
  %s15 = ssub.s32 1, %s13
  %s16 = scalar_select 0, %s15, %s13
  $region1: #{tran_decoder_forward.12} parent=0
    #allocation2 [shape = 'u8[512]{0}', space=vmem, size = 0x400, scoped, tag = 'input window, operand 5, single buffered']
    #allocation3 [shape = 's32[2]{0}', space=sflag, size = 0x8, scoped, tag = 'scoped memory for tran_decoder_forward.12']
    #allocation4 [shape = 'u8[512]{0}', space=vmem, size = 0x400, scoped, tag = 'input window, operand 7, single buffered']
    #allocation5 [shape = 's32[1]{0}', space=sflag, size = 0x4, scoped, tag = 'scoped memory for tran_decoder_forward.12']
    #allocation6 [shape = 'u8[512]{0}', space=vmem, size = 0x400, scoped, tag = 'input window, operand 9, single buffered']
    #allocation7 [shape = 'u8[512]{0}', space=vmem, size = 0x400, scoped, tag = 'input window, operand 10, single buffered']
    #allocation8 [shape = 's32[1]{0}', space=sflag, size = 0x4, scoped, tag = 'scoped memory for tran_decoder_forward.12']
    #allocation9 [shape = 'u8[512]{0}', space=vmem, size = 0x400, scoped, tag = 'input window, operand 11, single buffered']
    %17 = vsyncpa [#allocation3], 0
    %18 = vsyncpa [#allocation5], 0
    %19 = vsyncpa [#allocation8], 0
    loop: start=0, step=1, limit=4
    $region2: #{tran_decoder_forward.12} parent=1 // loop_pre_header
      _
    $region3: #{tran_decoder_forward.12} parent=1 // loop_header
      %s21 = sphi 0, %s25
      %p22 = scmp.ge.s32.totalorder %s21, 4
      %s28 = sphi 0, %s40
      %s29 = sphi 0, %s36
      %s30 = sphi 0, %s28
      %s31 = sphi 0, %s29
      %s32 = sphi 0, %s30
      %s33 = sphi 0, %s31
      %s45 = sphi 0, %s47
      %s48 = sphi 0, %s45
      %s49 = sphi 0, %s48
      %s65 = sphi 0, %s49
      %s71 = sphi 0, %s73
      %s74 = sphi 0, %s71
      %s75 = sphi 0, %s74
      %s91 = sphi 0, %s75
      %s97 = sphi 0, %s99
      %s100 = sphi 0, %s97
      %s101 = sphi 0, %s100
      %s117 = sphi 0, %s101
      %s125 = sphi 0, %s127
      %s128 = sphi 0, %s125
      %s129 = sphi 0, %s128
      %s145 = sphi 0, %s129
      %s149 = sphi 0, %s149
      %s151 = sphi 0, %s149
      %s152 = sphi 0, %s151
      %s166 = sphi 0, %s152
      %s170 = sphi 0, %s170
      %s172 = sphi 0, %s170
      %s173 = sphi 0, %s172
      %s187 = sphi 0, %s173
      %s191 = sphi 0, %s191
      %s193 = sphi 0, %s191
      %s194 = sphi 0, %s193
      %s208 = sphi 0, %s194
      %s212 = sphi 0, %s212
      %s214 = sphi 0, %s212
      %s215 = sphi 0, %s214
      %s229 = sphi 0, %s215
      %s233 = sphi 0, %s233
      %s235 = sphi 0, %s233
      %s236 = sphi 0, %s235
      %s250 = sphi 0, %s236
      %s254 = sphi 0, %s254
      %s256 = sphi 0, %s254
      %s257 = sphi 0, %s256
      %s271 = sphi 0, %s257
      %s275 = sphi 0, %s275
      %s277 = sphi 0, %s275
      %s278 = sphi 0, %s277
      %s292 = sphi 0, %s278
      %s296 = sphi 0, %s296
      %s298 = sphi 0, %s296
      %s299 = sphi 0, %s298
      %s313 = sphi 0, %s299
      %s321 = sphi 0, %s323
      %s324 = sphi 0, %s321
      %s325 = sphi 0, %s324
      %s341 = sphi 0, %s325
    $region4: #{tran_decoder_forward.12} parent=1 // loop_header_branch
      %24 = sbr.rel (%p22) target = $region8
    $region5: #{tran_decoder_forward.12} parent=1 // loop_body
      %s26 = ssub.s32 %s21, 1
      %s27 = ssub.s32 %s21, 2
      %s34 = sadd.s32 1, %s29
      %p35 = scmp.ge.s32.totalorder %s34, 1
      %s36 = scalar_select %p35, 0, %s34
      %s37 = sadd.s32 1, %s28
      %s38 = scalar_select %p35, %s37, %s28
      %p39 = scmp.ge.s32.totalorder %s38, 2
      %s40 = scalar_select %p39, 0, %s38
      %s41 = ssub.s32 %s28, %s40
      %s42 = ssub.s32 %s29, %s36
      %s43 = sor.u32 %s41, %s42
      %p44 = scmp.eq.s32.totalorder %s43, 0
      %s46 = sadd.s32 %s45, 1
      %s47 = scalar_select %p44, %s45, %s46
      %p50 = pneg %p44
      %p51 = scmp.eq.s32.totalorder %s21, 1
      %p52 = por %p50, %p51
      %p53 = scmp.ne.s32.totalorder %s45, %s48
      %p54 = scmp.eq.s32.totalorder %s21, 0
      %p55 = por %p53, %p54
      %p56 = scmp.ne.s32.totalorder %s45, %s48
      %p57 = scmp.eq.s32.totalorder %s26, 1
      %p58 = por %p56, %p57
      %p59 = scmp.ne.s32.totalorder %s48, %s49
      %p60 = scmp.eq.s32.totalorder %s26, 0
      %p61 = por %p59, %p60
      %p62 = scmp.ne.s32.totalorder %s48, %s49
      %p63 = scmp.eq.s32.totalorder %s27, 1
      %p64 = por %p62, %p63
      %p66 = scmp.ne.s32.totalorder %s49, %s65
      %p67 = scmp.eq.s32.totalorder %s27, 0
      %p68 = por %p66, %p67
      %s69 = ssub.s32 %s28, %s40
      %p70 = scmp.eq.s32.totalorder %s69, 0
      %s72 = sadd.s32 %s71, 1
      %s73 = scalar_select %p70, %s71, %s72
      %p76 = pneg %p70
      %p77 = scmp.eq.s32.totalorder %s21, 1
      %p78 = por %p76, %p77
      %p79 = scmp.ne.s32.totalorder %s71, %s74
      %p80 = scmp.eq.s32.totalorder %s21, 0
      %p81 = por %p79, %p80
      %p82 = scmp.ne.s32.totalorder %s71, %s74
      %p83 = scmp.eq.s32.totalorder %s26, 1
      %p84 = por %p82, %p83
      %p85 = scmp.ne.s32.totalorder %s74, %s75
      %p86 = scmp.eq.s32.totalorder %s26, 0
      %p87 = por %p85, %p86
      %p88 = scmp.ne.s32.totalorder %s74, %s75
      %p89 = scmp.eq.s32.totalorder %s27, 1
      %p90 = por %p88, %p89
      %p92 = scmp.ne.s32.totalorder %s75, %s91
      %p93 = scmp.eq.s32.totalorder %s27, 0
      %p94 = por %p92, %p93
      %s95 = ssub.s32 %s28, %s40
      %p96 = scmp.eq.s32.totalorder %s95, 0
      %s98 = sadd.s32 %s97, 1
      %s99 = scalar_select %p96, %s97, %s98
      %p102 = pneg %p96
      %p103 = scmp.eq.s32.totalorder %s21, 1
      %p104 = por %p102, %p103
      %p105 = scmp.ne.s32.totalorder %s97, %s100
      %p106 = scmp.eq.s32.totalorder %s21, 0
      %p107 = por %p105, %p106
      %p108 = scmp.ne.s32.totalorder %s97, %s100
      %p109 = scmp.eq.s32.totalorder %s26, 1
      %p110 = por %p108, %p109
      %p111 = scmp.ne.s32.totalorder %s100, %s101
      %p112 = scmp.eq.s32.totalorder %s26, 0
      %p113 = por %p111, %p112
      %p114 = scmp.ne.s32.totalorder %s100, %s101
      %p115 = scmp.eq.s32.totalorder %s27, 1
      %p116 = por %p114, %p115
      %p118 = scmp.ne.s32.totalorder %s101, %s117
      %p119 = scmp.eq.s32.totalorder %s27, 0
      %p120 = por %p118, %p119
      %s121 = ssub.s32 %s28, %s40
      %s122 = ssub.s32 %s29, %s36
      %s123 = sor.u32 %s121, %s122
      %p124 = scmp.eq.s32.totalorder %s123, 0
      %s126 = sadd.s32 %s125, 1
      %s127 = scalar_select %p124, %s125, %s126
      %p130 = pneg %p124
      %p131 = scmp.eq.s32.totalorder %s21, 1
      %p132 = por %p130, %p131
      %p133 = scmp.ne.s32.totalorder %s125, %s128
      %p134 = scmp.eq.s32.totalorder %s21, 0
      %p135 = por %p133, %p134
      %p136 = scmp.ne.s32.totalorder %s125, %s128
      %p137 = scmp.eq.s32.totalorder %s26, 1
      %p138 = por %p136, %p137
      %p139 = scmp.ne.s32.totalorder %s128, %s129
      %p140 = scmp.eq.s32.totalorder %s26, 0
      %p141 = por %p139, %p140
      %p142 = scmp.ne.s32.totalorder %s128, %s129
      %p143 = scmp.eq.s32.totalorder %s27, 1
      %p144 = por %p142, %p143
      %p146 = scmp.ne.s32.totalorder %s129, %s145
      %p147 = scmp.eq.s32.totalorder %s27, 0
      %p148 = por %p146, %p147
      %s150 = sadd.s32 %s149, 1
      %p153 = scmp.eq.s32.totalorder %s21, 1
      %p154 = scmp.ne.s32.totalorder %s149, %s151
      %p155 = scmp.eq.s32.totalorder %s21, 0
      %p156 = por %p154, %p155
      %p157 = scmp.ne.s32.totalorder %s149, %s151
      %p158 = scmp.eq.s32.totalorder %s26, 1
      %p159 = por %p157, %p158
      %p160 = scmp.ne.s32.totalorder %s151, %s152
      %p161 = scmp.eq.s32.totalorder %s26, 0
      %p162 = por %p160, %p161
      %p163 = scmp.ne.s32.totalorder %s151, %s152
      %p164 = scmp.eq.s32.totalorder %s27, 1
      %p165 = por %p163, %p164
      %p167 = scmp.ne.s32.totalorder %s152, %s166
      %p168 = scmp.eq.s32.totalorder %s27, 0
      %p169 = por %p167, %p168
      %s171 = sadd.s32 %s170, 1
      %p174 = scmp.eq.s32.totalorder %s21, 1
      %p175 = scmp.ne.s32.totalorder %s170, %s172
      %p176 = scmp.eq.s32.totalorder %s21, 0
      %p177 = por %p175, %p176
      %p178 = scmp.ne.s32.totalorder %s170, %s172
      %p179 = scmp.eq.s32.totalorder %s26, 1
      %p180 = por %p178, %p179
      %p181 = scmp.ne.s32.totalorder %s172, %s173
      %p182 = scmp.eq.s32.totalorder %s26, 0
      %p183 = por %p181, %p182
      %p184 = scmp.ne.s32.totalorder %s172, %s173
      %p185 = scmp.eq.s32.totalorder %s27, 1
      %p186 = por %p184, %p185
      %p188 = scmp.ne.s32.totalorder %s173, %s187
      %p189 = scmp.eq.s32.totalorder %s27, 0
      %p190 = por %p188, %p189
      %s192 = sadd.s32 %s191, 1
      %p195 = scmp.eq.s32.totalorder %s21, 1
      %p196 = scmp.ne.s32.totalorder %s191, %s193
      %p197 = scmp.eq.s32.totalorder %s21, 0
      %p198 = por %p196, %p197
      %p199 = scmp.ne.s32.totalorder %s191, %s193
      %p200 = scmp.eq.s32.totalorder %s26, 1
      %p201 = por %p199, %p200
      %p202 = scmp.ne.s32.totalorder %s193, %s194
      %p203 = scmp.eq.s32.totalorder %s26, 0
      %p204 = por %p202, %p203
      %p205 = scmp.ne.s32.totalorder %s193, %s194
      %p206 = scmp.eq.s32.totalorder %s27, 1
      %p207 = por %p205, %p206
      %p209 = scmp.ne.s32.totalorder %s194, %s208
      %p210 = scmp.eq.s32.totalorder %s27, 0
      %p211 = por %p209, %p210
      %s213 = sadd.s32 %s212, 1
      %p216 = scmp.eq.s32.totalorder %s21, 1
      %p217 = scmp.ne.s32.totalorder %s212, %s214
      %p218 = scmp.eq.s32.totalorder %s21, 0
      %p219 = por %p217, %p218
      %p220 = scmp.ne.s32.totalorder %s212, %s214
      %p221 = scmp.eq.s32.totalorder %s26, 1
      %p222 = por %p220, %p221
      %p223 = scmp.ne.s32.totalorder %s214, %s215
      %p224 = scmp.eq.s32.totalorder %s26, 0
      %p225 = por %p223, %p224
      %p226 = scmp.ne.s32.totalorder %s214, %s215
      %p227 = scmp.eq.s32.totalorder %s27, 1
      %p228 = por %p226, %p227
      %p230 = scmp.ne.s32.totalorder %s215, %s229
      %p231 = scmp.eq.s32.totalorder %s27, 0
      %p232 = por %p230, %p231
      %s234 = sadd.s32 %s233, 1
      %p237 = scmp.eq.s32.totalorder %s21, 1
      %p238 = scmp.ne.s32.totalorder %s233, %s235
      %p239 = scmp.eq.s32.totalorder %s21, 0
      %p240 = por %p238, %p239
      %p241 = scmp.ne.s32.totalorder %s233, %s235
      %p242 = scmp.eq.s32.totalorder %s26, 1
      %p243 = por %p241, %p242
      %p244 = scmp.ne.s32.totalorder %s235, %s236
      %p245 = scmp.eq.s32.totalorder %s26, 0
      %p246 = por %p244, %p245
      %p247 = scmp.ne.s32.totalorder %s235, %s236
      %p248 = scmp.eq.s32.totalorder %s27, 1
      %p249 = por %p247, %p248
      %p251 = scmp.ne.s32.totalorder %s236, %s250
      %p252 = scmp.eq.s32.totalorder %s27, 0
      %p253 = por %p251, %p252
      %s255 = sadd.s32 %s254, 1
      %p258 = scmp.eq.s32.totalorder %s21, 1
      %p259 = scmp.ne.s32.totalorder %s254, %s256
      %p260 = scmp.eq.s32.totalorder %s21, 0
      %p261 = por %p259, %p260
      %p262 = scmp.ne.s32.totalorder %s254, %s256
      %p263 = scmp.eq.s32.totalorder %s26, 1
      %p264 = por %p262, %p263
      %p265 = scmp.ne.s32.totalorder %s256, %s257
      %p266 = scmp.eq.s32.totalorder %s26, 0
      %p267 = por %p265, %p266
      %p268 = scmp.ne.s32.totalorder %s256, %s257
      %p269 = scmp.eq.s32.totalorder %s27, 1
      %p270 = por %p268, %p269
      %p272 = scmp.ne.s32.totalorder %s257, %s271
      %p273 = scmp.eq.s32.totalorder %s27, 0
      %p274 = por %p272, %p273
      %s276 = sadd.s32 %s275, 1
      %p279 = scmp.eq.s32.totalorder %s21, 1
      %p280 = scmp.ne.s32.totalorder %s275, %s277
      %p281 = scmp.eq.s32.totalorder %s21, 0
      %p282 = por %p280, %p281
      %p283 = scmp.ne.s32.totalorder %s275, %s277
      %p284 = scmp.eq.s32.totalorder %s26, 1
      %p285 = por %p283, %p284
      %p286 = scmp.ne.s32.totalorder %s277, %s278
      %p287 = scmp.eq.s32.totalorder %s26, 0
      %p288 = por %p286, %p287
      %p289 = scmp.ne.s32.totalorder %s277, %s278
      %p290 = scmp.eq.s32.totalorder %s27, 1
      %p291 = por %p289, %p290
      %p293 = scmp.ne.s32.totalorder %s278, %s292
      %p294 = scmp.eq.s32.totalorder %s27, 0
      %p295 = por %p293, %p294
      %s297 = sadd.s32 %s296, 1
      %p300 = scmp.eq.s32.totalorder %s21, 1
      %p301 = scmp.ne.s32.totalorder %s296, %s298
      %p302 = scmp.eq.s32.totalorder %s21, 0
      %p303 = por %p301, %p302
      %p304 = scmp.ne.s32.totalorder %s296, %s298
      %p305 = scmp.eq.s32.totalorder %s26, 1
      %p306 = por %p304, %p305
      %p307 = scmp.ne.s32.totalorder %s298, %s299
      %p308 = scmp.eq.s32.totalorder %s26, 0
      %p309 = por %p307, %p308
      %p310 = scmp.ne.s32.totalorder %s298, %s299
      %p311 = scmp.eq.s32.totalorder %s27, 1
      %p312 = por %p310, %p311
      %p314 = scmp.ne.s32.totalorder %s299, %s313
      %p315 = scmp.eq.s32.totalorder %s27, 0
      %p316 = por %p314, %p315
      %s317 = ssub.s32 %s28, %s40
      %s318 = ssub.s32 %s29, %s36
      %s319 = sor.u32 %s317, %s318
      %p320 = scmp.eq.s32.totalorder %s319, 0
      %s322 = sadd.s32 %s321, 1
      %s323 = scalar_select %p320, %s321, %s322
      %p326 = pneg %p320
      %p327 = scmp.eq.s32.totalorder %s21, 1
      %p328 = por %p326, %p327
      %p329 = scmp.ne.s32.totalorder %s321, %s324
      %p330 = scmp.eq.s32.totalorder %s21, 0
      %p331 = por %p329, %p330
      %p332 = scmp.ne.s32.totalorder %s321, %s324
      %p333 = scmp.eq.s32.totalorder %s26, 1
      %p334 = por %p332, %p333
      %p335 = scmp.ne.s32.totalorder %s324, %s325
      %p336 = scmp.eq.s32.totalorder %s26, 0
      %p337 = por %p335, %p336
      %p338 = scmp.ne.s32.totalorder %s324, %s325
      %p339 = scmp.eq.s32.totalorder %s27, 1
      %p340 = por %p338, %p339
      %p342 = scmp.ne.s32.totalorder %s325, %s341
      %p343 = scmp.eq.s32.totalorder %s27, 0
      %p344 = por %p342, %p343
      %p345 = scmp.le.s32.totalorder 1, %s21
      %p346 = scmp.lt.s32.totalorder %s21, 3
      %p347 = pnand %p345, %p346
      %p348 = pneg %p347
      // Predicated region
      $region9: #{tran_decoder_forward.12} parent=5 // pred_check
        _
      $region10: #{tran_decoder_forward.12} parent=5 // pred_check_branch
        %350 = sbr.rel (%p347) target = $region12
      $region11: #{tran_decoder_forward.12} parent=5 // pred_region
        %s351 = ssub.s32 %s21, 1
        // Predicated region
        $region13: #{tran_decoder_forward.12} parent=11 // pred_check
          %p352 = pneg %p162
        $region14: #{tran_decoder_forward.12} parent=11 // pred_check_branch
          %354 = sbr.rel (%p352) target = $region16
        $region15: #{tran_decoder_forward.12} parent=11 // pred_region
          _
        $region16: #{tran_decoder_forward.12} parent=11 // pred_fallthru
          _
        // Predicated region
        $region17: #{tran_decoder_forward.12} parent=11 // pred_check
          %p355 = pneg %p183
        $region18: #{tran_decoder_forward.12} parent=11 // pred_check_branch
          %357 = sbr.rel (%p355) target = $region20
        $region19: #{tran_decoder_forward.12} parent=11 // pred_region
          %359 = vsyncadd [#allocation3], 0
          %s361 = sshll.u32 %s5, 4
          %s362 = int_to_ptr.hbm [resolvable:$true] %s361
          %s363 = sshll.u32 [#allocation2], 4
          %s364 = int_to_ptr.vmem [resolvable:$true] %s363
          %366 = dma.hbm_to_vmem [thread:$0]  %s362, 16, %s364, [#allocation3]
        $region20: #{tran_decoder_forward.12} parent=11 // pred_fallthru
          _
        // Predicated region
        $region21: #{tran_decoder_forward.12} parent=11 // pred_check
          %p367 = pneg %p204
        $region22: #{tran_decoder_forward.12} parent=11 // pred_check_branch
          %369 = sbr.rel (%p367) target = $region24
        $region23: #{tran_decoder_forward.12} parent=11 // pred_region
          _
        $region24: #{tran_decoder_forward.12} parent=11 // pred_fallthru
          _
        // Predicated region
        $region25: #{tran_decoder_forward.12} parent=11 // pred_check
          %p370 = pneg %p225
        $region26: #{tran_decoder_forward.12} parent=11 // pred_check_branch
          %372 = sbr.rel (%p370) target = $region28
        $region27: #{tran_decoder_forward.12} parent=11 // pred_region
          %374 = vsyncadd [#allocation5], 0
          %s376 = sshll.u32 %s7, 4
          %s377 = int_to_ptr.hbm [resolvable:$true] %s376
          %s378 = sshll.u32 [#allocation4], 4
          %s379 = int_to_ptr.vmem [resolvable:$true] %s378
          %381 = dma.hbm_to_vmem [thread:$0]  %s377, 16, %s379, [#allocation5]
        $region28: #{tran_decoder_forward.12} parent=11 // pred_fallthru
          _
        // Predicated region
        $region29: #{tran_decoder_forward.12} parent=11 // pred_check
          %p382 = pneg %p246
        $region30: #{tran_decoder_forward.12} parent=11 // pred_check_branch
          %384 = sbr.rel (%p382) target = $region32
        $region31: #{tran_decoder_forward.12} parent=11 // pred_region
          _
        $region32: #{tran_decoder_forward.12} parent=11 // pred_fallthru
          _
        // Predicated region
        $region33: #{tran_decoder_forward.12} parent=11 // pred_check
          %p385 = pneg %p267
        $region34: #{tran_decoder_forward.12} parent=11 // pred_check_branch
          %387 = sbr.rel (%p385) target = $region36
        $region35: #{tran_decoder_forward.12} parent=11 // pred_region
          %389 = vsyncadd [#allocation5], 0
          %s391 = sshll.u32 %s9, 4
          %s392 = int_to_ptr.hbm [resolvable:$true] %s391
          %s393 = sshll.u32 [#allocation6], 4
          %s394 = int_to_ptr.vmem [resolvable:$true] %s393
          %396 = dma.hbm_to_vmem [thread:$0]  %s392, 16, %s394, [#allocation5]
        $region36: #{tran_decoder_forward.12} parent=11 // pred_fallthru
          _
        // Predicated region
        $region37: #{tran_decoder_forward.12} parent=11 // pred_check
          %p397 = pneg %p288
        $region38: #{tran_decoder_forward.12} parent=11 // pred_check_branch
          %399 = sbr.rel (%p397) target = $region40
        $region39: #{tran_decoder_forward.12} parent=11 // pred_region
          %401 = vsyncadd [#allocation8], 0
          %s403 = sshll.u32 %s10, 4
          %s404 = int_to_ptr.hbm [resolvable:$true] %s403
          %s405 = sshll.u32 [#allocation7], 4
          %s406 = int_to_ptr.vmem [resolvable:$true] %s405
          %408 = dma.hbm_to_vmem [thread:$0]  %s404, 16, %s406, [#allocation8]
        $region40: #{tran_decoder_forward.12} parent=11 // pred_fallthru
          _
        // Predicated region
        $region41: #{tran_decoder_forward.12} parent=11 // pred_check
          %p409 = pneg %p309
        $region42: #{tran_decoder_forward.12} parent=11 // pred_check_branch
          %411 = sbr.rel (%p409) target = $region44
        $region43: #{tran_decoder_forward.12} parent=11 // pred_region
          %413 = vsyncadd [#allocation8], 0
          %s415 = sshll.u32 %s11, 4
          %s416 = int_to_ptr.hbm [resolvable:$true] %s415
          %s417 = sshll.u32 [#allocation9], 4
          %s418 = int_to_ptr.vmem [resolvable:$true] %s417
          %420 = dma.hbm_to_vmem [thread:$0]  %s416, 16, %s418, [#allocation8]
        $region44: #{tran_decoder_forward.12} parent=11 // pred_fallthru
          _
      $region12: #{tran_decoder_forward.12} parent=5 // pred_fallthru
        _
      %p421 = scmp.lt.s32.totalorder %s21, 2
      // Predicated region
      $region45: #{tran_decoder_forward.12} parent=5 // pred_check
        %p422 = pneg %p421
      $region46: #{tran_decoder_forward.12} parent=5 // pred_check_branch
        %424 = sbr.rel (%p422) target = $region48
      $region47: #{tran_decoder_forward.12} parent=5 // pred_region
        // Predicated region
        $region49: #{tran_decoder_forward.12} parent=47 // pred_check
          %p425 = pneg %p55
        $region50: #{tran_decoder_forward.12} parent=47 // pred_check_branch
          %427 = sbr.rel (%p425) target = $region52
        $region51: #{tran_decoder_forward.12} parent=47 // pred_region
          %p428 = scmp.lt.s32.totalorder %s28, 1
          %s429 = scalar_select %p428, %s28, 1
          %p430 = scmp.lt.s32.totalorder %s29, 0
          %s431 = scalar_select %p430, %s29, 0
          %s432 = sadd.s32 %s431, %s429
          %s433 = smul.addr %s432, 4
          %s434 = scalar_lea.vmem %s0, %s433
        $region52: #{tran_decoder_forward.12} parent=47 // pred_fallthru
          _
        // Predicated region
        $region53: #{tran_decoder_forward.12} parent=47 // pred_check
          %p435 = pneg %p81
        $region54: #{tran_decoder_forward.12} parent=47 // pred_check_branch
          %437 = sbr.rel (%p435) target = $region56
        $region55: #{tran_decoder_forward.12} parent=47 // pred_region
          %p438 = scmp.lt.s32.totalorder %s28, 1
          %s439 = scalar_select %p438, %s28, 1
          %s440 = smul.addr %s439, 4
          %s441 = scalar_lea.vmem %s1, %s440
        $region56: #{tran_decoder_forward.12} parent=47 // pred_fallthru
          _
        // Predicated region
        $region57: #{tran_decoder_forward.12} parent=47 // pred_check
          %p442 = pneg %p107
        $region58: #{tran_decoder_forward.12} parent=47 // pred_check_branch
          %444 = sbr.rel (%p442) target = $region60
        $region59: #{tran_decoder_forward.12} parent=47 // pred_region
          %p445 = scmp.lt.s32.totalorder %s28, 1
          %s446 = scalar_select %p445, %s28, 1
          %s447 = scalar_lea.vmem %s2, %s446
        $region60: #{tran_decoder_forward.12} parent=47 // pred_fallthru
          _
        // Predicated region
        $region61: #{tran_decoder_forward.12} parent=47 // pred_check
          %p448 = pneg %p135
        $region62: #{tran_decoder_forward.12} parent=47 // pred_check_branch
          %450 = sbr.rel (%p448) target = $region64
        $region63: #{tran_decoder_forward.12} parent=47 // pred_region
          %p451 = scmp.lt.s32.totalorder %s28, 1
          %s452 = scalar_select %p451, %s28, 1
          %p453 = scmp.lt.s32.totalorder %s29, 0
          %s454 = scalar_select %p453, %s29, 0
          %s455 = sadd.s32 %s454, %s452
          %s456 = smul.addr %s455, 8
          %s457 = scalar_lea.vmem %s3, %s456
        $region64: #{tran_decoder_forward.12} parent=47 // pred_fallthru
          _
      $region48: #{tran_decoder_forward.12} parent=5 // pred_fallthru
        _
      %p458 = scmp.le.s32.totalorder 1, %s21
      %p459 = scmp.lt.s32.totalorder %s21, 3
      %p460 = pnand %p458, %p459
      %p461 = pneg %p460
      // Predicated region
      $region65: #{tran_decoder_forward.12} parent=5 // pred_check
        _
      $region66: #{tran_decoder_forward.12} parent=5 // pred_check_branch
        %463 = sbr.rel (%p460) target = $region68
      $region67: #{tran_decoder_forward.12} parent=5 // pred_region
        %s464 = ssub.s32 %s21, 1
        // Predicated region
        $region69: #{tran_decoder_forward.12} parent=67 // pred_check
          %p465 = pneg %p183
        $region70: #{tran_decoder_forward.12} parent=67 // pred_check_branch
          %467 = sbr.rel (%p465) target = $region72
        $region71: #{tran_decoder_forward.12} parent=67 // pred_region
          %469 = dma.done [#allocation3], 16
        $region72: #{tran_decoder_forward.12} parent=67 // pred_fallthru
          _
        // Predicated region
        $region73: #{tran_decoder_forward.12} parent=67 // pred_check
          %p470 = pneg %p225
        $region74: #{tran_decoder_forward.12} parent=67 // pred_check_branch
          %472 = sbr.rel (%p470) target = $region76
        $region75: #{tran_decoder_forward.12} parent=67 // pred_region
          %474 = dma.done [#allocation5], 16
        $region76: #{tran_decoder_forward.12} parent=67 // pred_fallthru
          _
        // Predicated region
        $region77: #{tran_decoder_forward.12} parent=67 // pred_check
          %p475 = pneg %p267
        $region78: #{tran_decoder_forward.12} parent=67 // pred_check_branch
          %477 = sbr.rel (%p475) target = $region80
        $region79: #{tran_decoder_forward.12} parent=67 // pred_region
          %479 = dma.done [#allocation5], 16
        $region80: #{tran_decoder_forward.12} parent=67 // pred_fallthru
          _
        // Predicated region
        $region81: #{tran_decoder_forward.12} parent=67 // pred_check
          %p480 = pneg %p288
        $region82: #{tran_decoder_forward.12} parent=67 // pred_check_branch
          %482 = sbr.rel (%p480) target = $region84
        $region83: #{tran_decoder_forward.12} parent=67 // pred_region
          %484 = dma.done [#allocation8], 16
        $region84: #{tran_decoder_forward.12} parent=67 // pred_fallthru
          _
        // Predicated region
        $region85: #{tran_decoder_forward.12} parent=67 // pred_check
          %p485 = pneg %p309
        $region86: #{tran_decoder_forward.12} parent=67 // pred_check_branch
          %487 = sbr.rel (%p485) target = $region88
        $region87: #{tran_decoder_forward.12} parent=67 // pred_region
          %489 = dma.done [#allocation8], 16
        $region88: #{tran_decoder_forward.12} parent=67 // pred_fallthru
          _
        %p490 = scmp.lt.s32.totalorder %s30, 1
        %s491 = scalar_select %p490, %s30, 1
        %p492 = scmp.lt.s32.totalorder %s31, 0
        %s493 = scalar_select %p492, %s31, 0
        %s494 = sadd.s32 %s493, %s491
        %s495 = smul.addr %s494, 4
        %s496 = scalar_lea.vmem %s0, %s495
        %p497 = pneg %p61
        %p498 = pneg %p58
        %p499 = scmp.lt.s32.totalorder %s30, 1
        %s500 = scalar_select %p499, %s30, 1
        %s501 = smul.addr %s500, 4
        %s502 = scalar_lea.vmem %s1, %s501
        %p503 = pneg %p87
        %p504 = pneg %p84
        %p505 = scmp.lt.s32.totalorder %s30, 1
        %s506 = scalar_select %p505, %s30, 1
        %s507 = scalar_lea.vmem %s2, %s506
        %p508 = pneg %p113
        %p509 = pneg %p110
        %p510 = scmp.lt.s32.totalorder %s30, 1
        %s511 = scalar_select %p510, %s30, 1
        %p512 = scmp.lt.s32.totalorder %s31, 0
        %s513 = scalar_select %p512, %s31, 0
        %s514 = sadd.s32 %s513, %s511
        %s515 = smul.addr %s514, 8
        %s516 = scalar_lea.vmem %s3, %s515
        %p517 = pneg %p141
        %p518 = pneg %p138
        %p519 = pneg %p162
        %p520 = pneg %p159
        %p521 = pneg %p183
        %p522 = pneg %p180
        %p523 = pneg %p204
        %p524 = pneg %p201
        %p525 = pneg %p225
        %p526 = pneg %p222
        %p527 = pneg %p246
        %p528 = pneg %p243
        %p529 = pneg %p267
        %p530 = pneg %p264
        %p531 = pneg %p288
        %p532 = pneg %p285
        %p533 = pneg %p309
        %p534 = pneg %p306
        %p535 = pneg %p337
        %p536 = pneg %p334
        %p537 = scmp.lt.s32.totalorder %s30, 1
        %s538 = scalar_select %p537, %s30, 1
        %p539 = scmp.lt.s32.totalorder %s31, 0
        %s540 = scalar_select %p539, %s31, 0
        %s541 = sadd.s32 %s540, %s538
        %s542 = smul.addr %s541, 4
        %s543 = scalar_lea.vmem %s12, %s542
        %p544 = scmp.lt.s32.totalorder %s30, 1
        %s545 = scalar_select %p544, %s30, 1
        %p546 = scmp.lt.s32.totalorder %s31, 0
        %s547 = scalar_select %p546, %s31, 0
        %s548 = sadd.s32 %s547, %s545
        %s549 = smul.addr %s548, 4
        %s550 = scalar_lea.vmem %s0, %s549
        %p551 = scmp.lt.s32.totalorder %s30, 1
        %s552 = scalar_select %p551, %s30, 1
        %s553 = smul.addr %s552, 4
        %s554 = scalar_lea.vmem %s1, %s553
        %p555 = scmp.lt.s32.totalorder %s30, 1
        %s556 = scalar_select %p555, %s30, 1
        %s557 = scalar_lea.vmem %s2, %s556
        %p558 = scmp.lt.s32.totalorder %s30, 1
        %s559 = scalar_select %p558, %s30, 1
        %p560 = scmp.lt.s32.totalorder %s31, 0
        %s561 = scalar_select %p560, %s31, 0
        %s562 = sadd.s32 %s561, %s559
        %s563 = smul.addr %s562, 8
        %s564 = scalar_lea.vmem %s3, %s563
        %p565 = scmp.lt.s32.totalorder %s30, 1
        %s566 = scalar_select %p565, %s30, 1
        %p567 = scmp.lt.s32.totalorder %s31, 0
        %s568 = scalar_select %p567, %s31, 0
        %s569 = sadd.s32 %s568, %s566
        %s570 = smul.addr %s569, 4
        %s571 = scalar_lea.vmem %s12, %s570
        %v573 = vld [vmem:[%s550] sm:$0xf]
        %v574 = vld [vmem:[%s554] sm:$0xf]
        %v575 = vld [vmem:[%s4] sm:$0xf]
        %v576 = vld [vmem:[%s4 + $0x4] sm:$0xf]
        %v577 = vld [vmem:[%s4 + $0x8] sm:$0xf]
        %v578 = vld [vmem:[%s4 + $0xc] sm:$0xf]
        %v579 = vld [vmem:[#allocation2] sm:$0x1]
        %v581 = vperm.slane %v579, 0
        %v587 = vunpack.c.l.b16 %v575
        %v588 = vunpack.c.l.b16 %v576
        %v589 = vunpack.c.l.b16 %v577
        %v590 = vunpack.c.l.b16 %v578
        %v591 = vpack.c.b16 %v588, %v587
        %v592 = vpack.c.b16 %v590, %v589
        %vm595 = vcmask 261120
        %v597 = vsel %vm595, %v573, 0
        %599 = vmatpush.bf16.msra.mxu0 0
        %600 = vmatpush.bf16.msra.mxu0 0
        %601 = vmatpush.bf16.msra.mxu0 0
        %602 = vmatpush.bf16.msra.mxu0 0
        %603 = vmatpush.bf16.msra.mxu0 0
        %604 = vmatpush.bf16.msra.mxu0 0
        %605 = vmatpush.bf16.msra.mxu0 %v592
        %606 = vmatpush.bf16.msra.mxu0 %v591
        %607 = vmatmul.bf16.gmra.mxu0 %v597
        %v608 = vpop.f32.mrf.mxu0
        %v609 = vadd.f32 %v581, %v608
        %v610 = vpop.f32.mrf.mxu0
        %611 = vdwg.mxu0
        %v612 = vld [vmem:[%s6] sm:$0xf]
        %v613 = vld [vmem:[%s6 + $0x4] sm:$0xf]
        %v614 = vld [vmem:[%s6 + $0x8] sm:$0xf]
        %v615 = vld [vmem:[%s6 + $0xc] sm:$0xf]
        %v616 = vld [vmem:[#allocation4] sm:$0x1]
        %v618 = vperm.slane %v616, 0
        %v624 = vunpack.c.l.b16 %v612
        %v625 = vunpack.c.l.b16 %v613
        %v626 = vunpack.c.l.b16 %v614
        %v627 = vunpack.c.l.b16 %v615
        %v628 = vpack.c.b16 %v625, %v624
        %v629 = vpack.c.b16 %v627, %v626
        %v633 = vsel %vm595, %v574, 0
        %635 = vmatpush.bf16.msra.mxu0 0
        %636 = vmatpush.bf16.msra.mxu0 0
        %637 = vmatpush.bf16.msra.mxu0 0
        %638 = vmatpush.bf16.msra.mxu0 0
        %639 = vmatpush.bf16.msra.mxu0 0
        %640 = vmatpush.bf16.msra.mxu0 0
        %641 = vmatpush.bf16.msra.mxu0 %v629
        %642 = vmatpush.bf16.msra.mxu0 %v628
        %643 = vmatmul.bf16.gmra.mxu0 %v633
        %v644 = vpop.f32.mrf.mxu0
        %v645 = vadd.f32 %v618, %v644
        %v646 = vpop.f32.mrf.mxu0
        %647 = vdwg.mxu0
        %v648 = vld [vmem:[%s557] sm:$0x1]
        %vm649 = vcmp.gt.f32.partialorder %v648, 0.0
        %v650 = vsel %vm649, 1, 0
        %v651 = vperm.slane %v650, 0
        %vm652 = vcmp.eq.s32.totalorder %v651, 1
        %v653 = vpack.c.bf16 %v609, %v609
        %v654 = vpack.c.bf16 %v645, %v645
        %vm655 = vcmask 130048
        %v657 = vsel %vm655, %v653, 0
        %v660 = vsel %vm655, %v654, 0
        %662 = vmatpush.bf16.xpose.msra.mxu0 0
        %663 = vmatpush.bf16.xpose.msra.mxu0 0
        %664 = vmatpush.bf16.xpose.msra.mxu0 0
        %665 = vmatpush.bf16.xpose.msra.mxu0 0
        %666 = vmatpush.bf16.xpose.msra.mxu0 0
        %667 = vmatpush.bf16.xpose.msra.mxu0 0
        %668 = vmatpush.bf16.xpose.msra.mxu0 0
        %669 = vmatpush.bf16.xpose.msra.mxu0 %v660
        %670 = vmatmul.bf16.gmra.mxu0 %v657
        %v671 = vpop.f32.mrf.mxu0
        %v672 = vadd.f32 0.0, %v671
        %v673 = vpop.f32.mrf.mxu0
        %674 = vdwg.mxu0
        %v675 = vmul.f32 %v672, 0.25
        %v676 = vsel %vm652, -1e+30, %v675
        %vm677 = vcmask 64512
        %v678 = vsel %vm677, %v676, -inf
        %679 = vmax.xlane.f32.xlu0 %v678
        %v680 = vpop.xlane.xlu0 %679
        %v681 = vsub.f32 %v676, %v680
        %v682 = vmul.f32 %v681, 1.442695
        %v683 = vpow.pop %v682
        %v684 = vsel %vm677, %v683, 0.0
        %685 = vadd.xlane.f32.xlu0 %v684
        %v686 = vpop.xlane.xlu0 %685
        %v687 = vrcp.pop %v686
        %v688 = vmul.f32 %v683, %v687
        %v689 = vpack.c.bf16 %v688, %v688
        %691 = vrot.lane.b32.xlu0 %v654, 96
        %v692 = vpop.permute.xlu0 %691
        %v694 = vsel %vm677, %v689, 0
        %vm696 = vcmask 1043456
        %v698 = vsel %vm696, %v692, 0
        %700 = vmatpush.bf16.msra.mxu0 0
        %701 = vmatpush.bf16.msra.mxu0 0
        %702 = vmatpush.bf16.msra.mxu0 0
        %703 = vmatpush.bf16.msra.mxu0 0
        %704 = vmatpush.bf16.msra.mxu0 0
        %705 = vmatpush.bf16.msra.mxu0 0
        %706 = vmatpush.bf16.msra.mxu0 0
        %707 = vmatpush.bf16.msra.mxu0 %v698
        %708 = vmatmul.bf16.gmra.mxu0 %v694
        %v709 = vpop.f32.mrf.mxu0
        %v710 = vadd.f32 0.0, %v709
        %v711 = vpop.f32.mrf.mxu0
        %712 = vdwg.mxu0
        %714 = vrot.lane.b32.xlu0 %v653, 112
        %v715 = vpop.permute.xlu0 %714
        %716 = vrot.lane.b32.xlu0 %v654, 112
        %v717 = vpop.permute.xlu0 %716
        %v719 = vsel %vm655, %v715, 0
        %v722 = vsel %vm655, %v717, 0
        %724 = vmatpush.bf16.xpose.msra.mxu0 0
        %725 = vmatpush.bf16.xpose.msra.mxu0 0
        %726 = vmatpush.bf16.xpose.msra.mxu0 0
        %727 = vmatpush.bf16.xpose.msra.mxu0 0
        %728 = vmatpush.bf16.xpose.msra.mxu0 0
        %729 = vmatpush.bf16.xpose.msra.mxu0 0
        %730 = vmatpush.bf16.xpose.msra.mxu0 0
        %731 = vmatpush.bf16.xpose.msra.mxu0 %v722
        %732 = vmatmul.bf16.gmra.mxu0 %v719
        %v733 = vpop.f32.mrf.mxu0
        %v734 = vadd.f32 0.0, %v733
        %v735 = vpop.f32.mrf.mxu0
        %736 = vdwg.mxu0
        %v737 = vmul.f32 %v734, 0.25
        %v738 = vsel %vm652, -1e+30, %v737
        %v739 = vsel %vm677, %v738, -inf
        %740 = vmax.xlane.f32.xlu0 %v739
        %v741 = vpop.xlane.xlu0 %740
        %v742 = vsub.f32 %v738, %v741
        %v743 = vmul.f32 %v742, 1.442695
        %v744 = vpow.pop %v743
        %v745 = vsel %vm677, %v744, 0.0
        %746 = vadd.xlane.f32.xlu0 %v745
        %v747 = vpop.xlane.xlu0 %746
        %v748 = vrcp.pop %v747
        %v749 = vmul.f32 %v744, %v748
        %v750 = vpack.c.bf16 %v749, %v749
        %751 = vrot.lane.b32.xlu0 %v654, 80
        %v752 = vpop.permute.xlu0 %751
        %v754 = vsel %vm677, %v750, 0
        %v757 = vsel %vm696, %v752, 0
        %759 = vmatpush.bf16.msra.mxu0 0
        %760 = vmatpush.bf16.msra.mxu0 0
        %761 = vmatpush.bf16.msra.mxu0 0
        %762 = vmatpush.bf16.msra.mxu0 0
        %763 = vmatpush.bf16.msra.mxu0 0
        %764 = vmatpush.bf16.msra.mxu0 0
        %765 = vmatpush.bf16.msra.mxu0 0
        %766 = vmatpush.bf16.msra.mxu0 %v757
        %767 = vmatmul.bf16.gmra.mxu0 %v754
        %v768 = vpop.f32.mrf.mxu0
        %v769 = vadd.f32 0.0, %v768
        %v770 = vpop.f32.mrf.mxu0
        %771 = vdwg.mxu0
        %773 = vrot.lane.b32.xlu0 %v769, 16
        %v774 = vpop.permute.xlu0 %773
        %v776 = vsel %vm655, %v710, %v774
        %v777 = vpack.c.bf16 %v776, %v776
        %v778 = vld [vmem:[%s8] sm:$0xf]
        %v779 = vld [vmem:[%s8 + $0x4] sm:$0xf]
        %v780 = vld [vmem:[%s8 + $0x8] sm:$0xf]
        %v781 = vld [vmem:[%s8 + $0xc] sm:$0xf]
        %v782 = vld [vmem:[#allocation6] sm:$0x1]
        %v784 = vperm.slane %v782, 0
        %v790 = vunpack.c.l.b16 %v778
        %v791 = vunpack.c.l.b16 %v779
        %v792 = vunpack.c.l.b16 %v780
        %v793 = vunpack.c.l.b16 %v781
        %v794 = vpack.c.b16 %v791, %v790
        %v795 = vpack.c.b16 %v793, %v792
        %v799 = vsel %vm595, %v777, 0
        %801 = vmatpush.bf16.msra.mxu0 0
        %802 = vmatpush.bf16.msra.mxu0 0
        %803 = vmatpush.bf16.msra.mxu0 0
        %804 = vmatpush.bf16.msra.mxu0 0
        %805 = vmatpush.bf16.msra.mxu0 0
        %806 = vmatpush.bf16.msra.mxu0 0
        %807 = vmatpush.bf16.msra.mxu0 %v795
        %808 = vmatpush.bf16.msra.mxu0 %v794
        %809 = vmatmul.bf16.gmra.mxu0 %v799
        %v810 = vpop.f32.mrf.mxu0
        %v811 = vadd.f32 %v784, %v810
        %v812 = vpop.f32.mrf.mxu0
        %813 = vdwg.mxu0
        %v814 = vunpack.c.l.bf16 %v573
        %v815 = vadd.f32 %v811, %v814
        %v816 = vsel %vm595, %v815, 0.0
        %817 = vadd.xlane.f32.xlu0 %v816
        %v818 = vpop.xlane.xlu0 %817
        %v819 = vrcp.pop 32.0
        %v820 = vmul.f32 32.0, %v819
        %v821 = vsub.f32 1.0, %v820
        %v822 = vmul.f32 %v819, %v821
        %v823 = vadd.f32 %v819, %v822
        %vm824 = vweird.f32 %v819
        %v825 = vsel %vm824, %v819, %v823
        %v826 = vmul.f32 %v818, %v825
        %v827 = vsub.f32 %v815, %v826
        %v828 = vmul.f32 %v827, %v827
        %v829 = vsel %vm595, %v828, 0.0
        %830 = vadd.xlane.f32.xlu0 %v829
        %v831 = vpop.xlane.xlu0 %830
        %v832 = vmul.f32 %v831, %v825
        %v833 = vadd.f32 %v832, 1e-05
        %v834 = vrsqrt.pop %v833
        %v835 = vmul.f32 %v834, %v833
        %v836 = vmul.f32 %v835, %v834
        %v837 = vmul.f32 0.5, %v836
        %v838 = vsub.f32 1.5, %v837
        %v839 = vmul.f32 %v834, %v838
        %vm840 = vweird.f32 %v833
        %vm841 = vweird.f32 %v834
        %vm842 = vmor %vm840, %vm841
        %v843 = vsel %vm842, %v834, %v839
        %v844 = vmul.f32 %v827, %v843
        %v845 = vld [vmem:[#allocation7] sm:$0x1]
        %v847 = vperm.slane %v845, 0
        %v849 = vmul.f32 %v844, %v847
        %v850 = vld [vmem:[#allocation9] sm:$0x1]
        %v852 = vperm.slane %v850, 0
        %v854 = vadd.f32 %v849, %v852
        %v855 = vld [vmem:[%s564] sm:$0xff]
        %857 = vset.pattern.permute.xlu0 0
        %858 = vperm.xlu0 %857, %v855
        %v859 = vpop.permute.xlu0 %858
        %v861 = vmul.f32 %v854, %v859
        %v862 = vpack.c.bf16 %v861, %v861
        %vm863 = vcmask 257024
        %864 = vst.msk [vmem:[%s571] sm:$0xf] %vm863, %v862
        %p865 = scmp.lt.s32.totalorder %s30, 1
        %s866 = scalar_select %p865, %s30, 1
        %p867 = scmp.lt.s32.totalorder %s31, 0
        %s868 = scalar_select %p867, %s31, 0
        %s869 = sadd.s32 %s868, %s866
        %s870 = smul.addr %s869, 4
        %s871 = scalar_lea.vmem %s12, %s870
        // Predicated region
        $region89: #{tran_decoder_forward.12} parent=67 // pred_check
          %p872 = pneg %p334
        $region90: #{tran_decoder_forward.12} parent=67 // pred_check_branch
          %874 = sbr.rel (%p872) target = $region92
        $region91: #{tran_decoder_forward.12} parent=67 // pred_region
          _
        $region92: #{tran_decoder_forward.12} parent=67 // pred_fallthru
          _
      $region68: #{tran_decoder_forward.12} parent=5 // pred_fallthru
        _
      %p875 = scmp.le.s32.totalorder 2, %s21
      // Predicated region
      $region93: #{tran_decoder_forward.12} parent=5 // pred_check
        %p876 = pneg %p875
      $region94: #{tran_decoder_forward.12} parent=5 // pred_check_branch
        %878 = sbr.rel (%p876) target = $region96
      $region95: #{tran_decoder_forward.12} parent=5 // pred_region
        %s879 = ssub.s32 %s21, 2
        // Predicated region
        $region97: #{tran_decoder_forward.12} parent=95 // pred_check
          %p880 = pneg %p340
        $region98: #{tran_decoder_forward.12} parent=95 // pred_check_branch
          %882 = sbr.rel (%p880) target = $region100
        $region99: #{tran_decoder_forward.12} parent=95 // pred_region
          %p883 = scmp.lt.s32.totalorder %s32, 1
          %s884 = scalar_select %p883, %s32, 1
          %p885 = scmp.lt.s32.totalorder %s33, 0
          %s886 = scalar_select %p885, %s33, 0
          %s887 = sadd.s32 %s886, %s884
          %s888 = smul.addr %s887, 4
          %s889 = scalar_lea.vmem %s12, %s888
        $region100: #{tran_decoder_forward.12} parent=95 // pred_fallthru
          _
      $region96: #{tran_decoder_forward.12} parent=5 // pred_fallthru
        _
    $region6: #{tran_decoder_forward.12} parent=1 // loop_footer
      %s25 = sadd.s32 1, %s21
    $region7: #{tran_decoder_forward.12} parent=1 // loop_footer_branch
      %20 = sbr.rel target = $region3
    $region8: #{tran_decoder_forward.12} parent=1 // loop_exit
      _
    %890 = vsyncpa [#allocation3], 1
    %s891 = scalar_lea.sflag [#allocation3], 1
    %892 = vsyncpa %s891, 1
    %893 = vsyncpa [#allocation5], 1
    %894 = vsyncpa [#allocation8], 1

// kernel: tran_decoder_forward.14
$region0: #{tran_decoder_forward.14}
  #allocation0 [shape = 'u32[]', space=smem, size = 0x4, offset = 0x4, fixed_abs, tag = 'smem constant byte address 0x4 - core index']
  #allocation1 [shape = 'u32[72,128]{1,0:T(1,128)}', space=vmem, size = 0x9000, scoped, tag = 'internal scratch']
  #allocation2 [shape = 'f32[16,1]{1,0:T(8,128)}', space=vmem, size = 0x2000, scoped, tag = 'scratch operand']
  #allocation3 [shape = 'f32[16,1]{1,0:T(8,128)}', space=vmem, size = 0x2000, scoped, tag = 'scratch operand']
  %s0 = inlined_call_operand.vmem [shape: bf16[16,32], index: 0, kind: input, shape index: {}]
  %s1 = inlined_call_operand.vmem [shape: bf16[32,4096], index: 1, kind: input, shape index: {}]
  %s2 = inlined_call_operand.vmem [shape: f32[16,1], index: 2, kind: output, shape index: {0}]
  %s3 = inlined_call_operand.vmem [shape: f32[16,1], index: 3, kind: output, shape index: {1}]
  %4 = xla_tuple %s2, %s3
  %s5 = sld [smem:[#allocation0]]
  $region80: #{tran_decoder_forward.14} parent=0
    _
  %s7 = ssub.s32 1, %s5
  %s8 = scalar_select 0, %s7, %s5
  $region1: #{tran_decoder_forward.14} parent=0
    #allocation4 [shape = 'u8[262144]{0}', space=vmem, size = 0x40000, scoped, tag = 'input window, operand 1']
    loop: start=0, step=1, limit=4
    $region2: #{tran_decoder_forward.14} parent=1 // loop_pre_header
      _
    $region3: #{tran_decoder_forward.14} parent=1 // loop_header
      %s10 = sphi 0, %s14
      %p11 = scmp.ge.s32.totalorder %s10, 4
      %s17 = sphi 0, %s29
      %s18 = sphi 0, %s25
      %s19 = sphi 0, %s17
      %s20 = sphi 0, %s18
      %s21 = sphi 0, %s19
      %s22 = sphi 0, %s20
      %s32 = sphi 0, %s34
      %s35 = sphi 0, %s32
      %s36 = sphi 0, %s35
      %s52 = sphi 0, %s36
      %s58 = sphi 0, %s60
      %s61 = sphi 0, %s58
      %s62 = sphi 0, %s61
      %s78 = sphi 0, %s62
      %s84 = sphi 0, %s86
      %s87 = sphi 0, %s84
      %s88 = sphi 0, %s87
      %s104 = sphi 0, %s88
      %s110 = sphi 0, %s112
      %s113 = sphi 0, %s110
      %s114 = sphi 0, %s113
      %s130 = sphi 0, %s114
    $region4: #{tran_decoder_forward.14} parent=1 // loop_header_branch
      %13 = sbr.rel (%p11) target = $region8
    $region5: #{tran_decoder_forward.14} parent=1 // loop_body
      %s15 = ssub.s32 %s10, 1
      %s16 = ssub.s32 %s10, 2
      %s23 = sadd.s32 1, %s18
      %p24 = scmp.ge.s32.totalorder %s23, 2
      %s25 = scalar_select %p24, 0, %s23
      %s26 = sadd.s32 1, %s17
      %s27 = scalar_select %p24, %s26, %s17
      %p28 = scmp.ge.s32.totalorder %s27, 1
      %s29 = scalar_select %p28, 0, %s27
      %s30 = ssub.s32 %s17, %s29
      %p31 = scmp.eq.s32.totalorder %s30, 0
      %s33 = sadd.s32 %s32, 1
      %s34 = scalar_select %p31, %s32, %s33
      %p37 = pneg %p31
      %p38 = scmp.eq.s32.totalorder %s10, 1
      %p39 = por %p37, %p38
      %p40 = scmp.ne.s32.totalorder %s32, %s35
      %p41 = scmp.eq.s32.totalorder %s10, 0
      %p42 = por %p40, %p41
      %p43 = scmp.ne.s32.totalorder %s32, %s35
      %p44 = scmp.eq.s32.totalorder %s15, 1
      %p45 = por %p43, %p44
      %p46 = scmp.ne.s32.totalorder %s35, %s36
      %p47 = scmp.eq.s32.totalorder %s15, 0
      %p48 = por %p46, %p47
      %p49 = scmp.ne.s32.totalorder %s35, %s36
      %p50 = scmp.eq.s32.totalorder %s16, 1
      %p51 = por %p49, %p50
      %p53 = scmp.ne.s32.totalorder %s36, %s52
      %p54 = scmp.eq.s32.totalorder %s16, 0
      %p55 = por %p53, %p54
      %s56 = ssub.s32 %s18, %s25
      %p57 = scmp.eq.s32.totalorder %s56, 0
      %s59 = sadd.s32 %s58, 1
      %s60 = scalar_select %p57, %s58, %s59
      %p63 = pneg %p57
      %p64 = scmp.eq.s32.totalorder %s10, 1
      %p65 = por %p63, %p64
      %p66 = scmp.ne.s32.totalorder %s58, %s61
      %p67 = scmp.eq.s32.totalorder %s10, 0
      %p68 = por %p66, %p67
      %p69 = scmp.ne.s32.totalorder %s58, %s61
      %p70 = scmp.eq.s32.totalorder %s15, 1
      %p71 = por %p69, %p70
      %p72 = scmp.ne.s32.totalorder %s61, %s62
      %p73 = scmp.eq.s32.totalorder %s15, 0
      %p74 = por %p72, %p73
      %p75 = scmp.ne.s32.totalorder %s61, %s62
      %p76 = scmp.eq.s32.totalorder %s16, 1
      %p77 = por %p75, %p76
      %p79 = scmp.ne.s32.totalorder %s62, %s78
      %p80 = scmp.eq.s32.totalorder %s16, 0
      %p81 = por %p79, %p80
      %s82 = ssub.s32 %s17, %s29
      %p83 = scmp.eq.s32.totalorder %s82, 0
      %s85 = sadd.s32 %s84, 1
      %s86 = scalar_select %p83, %s84, %s85
      %p89 = pneg %p83
      %p90 = scmp.eq.s32.totalorder %s10, 1
      %p91 = por %p89, %p90
      %p92 = scmp.ne.s32.totalorder %s84, %s87
      %p93 = scmp.eq.s32.totalorder %s10, 0
      %p94 = por %p92, %p93
      %p95 = scmp.ne.s32.totalorder %s84, %s87
      %p96 = scmp.eq.s32.totalorder %s15, 1
      %p97 = por %p95, %p96
      %p98 = scmp.ne.s32.totalorder %s87, %s88
      %p99 = scmp.eq.s32.totalorder %s15, 0
      %p100 = por %p98, %p99
      %p101 = scmp.ne.s32.totalorder %s87, %s88
      %p102 = scmp.eq.s32.totalorder %s16, 1
      %p103 = por %p101, %p102
      %p105 = scmp.ne.s32.totalorder %s88, %s104
      %p106 = scmp.eq.s32.totalorder %s16, 0
      %p107 = por %p105, %p106
      %s108 = ssub.s32 %s17, %s29
      %p109 = scmp.eq.s32.totalorder %s108, 0
      %s111 = sadd.s32 %s110, 1
      %s112 = scalar_select %p109, %s110, %s111
      %p115 = pneg %p109
      %p116 = scmp.eq.s32.totalorder %s10, 1
      %p117 = por %p115, %p116
      %p118 = scmp.ne.s32.totalorder %s110, %s113
      %p119 = scmp.eq.s32.totalorder %s10, 0
      %p120 = por %p118, %p119
      %p121 = scmp.ne.s32.totalorder %s110, %s113
      %p122 = scmp.eq.s32.totalorder %s15, 1
      %p123 = por %p121, %p122
      %p124 = scmp.ne.s32.totalorder %s113, %s114
      %p125 = scmp.eq.s32.totalorder %s15, 0
      %p126 = por %p124, %p125
      %p127 = scmp.ne.s32.totalorder %s113, %s114
      %p128 = scmp.eq.s32.totalorder %s16, 1
      %p129 = por %p127, %p128
      %p131 = scmp.ne.s32.totalorder %s114, %s130
      %p132 = scmp.eq.s32.totalorder %s16, 0
      %p133 = por %p131, %p132
      %p134 = scmp.le.s32.totalorder 1, %s10
      %p135 = scmp.lt.s32.totalorder %s10, 3
      %p136 = pnand %p134, %p135
      %p137 = pneg %p136
      // Predicated region
      $region9: #{tran_decoder_forward.14} parent=5 // pred_check
        _
      $region10: #{tran_decoder_forward.14} parent=5 // pred_check_branch
        %139 = sbr.rel (%p136) target = $region12
      $region11: #{tran_decoder_forward.14} parent=5 // pred_region
        %s140 = ssub.s32 %s10, 1
        // Predicated region
        $region13: #{tran_decoder_forward.14} parent=11 // pred_check
          %p141 = pneg %p48
        $region14: #{tran_decoder_forward.14} parent=11 // pred_check_branch
          %143 = sbr.rel (%p141) target = $region16
        $region15: #{tran_decoder_forward.14} parent=11 // pred_region
          %s144 = smul.u32 2, %s19
          %p145 = scmp.lt.s32.totalorder %s144, 1
          %s146 = scalar_select %p145, %s144, 1
          %s147 = smul.addr %s146, 4
          %s148 = scalar_lea.vmem %s0, %s147
          %s149 = smul.u32 2, %s19
        $region16: #{tran_decoder_forward.14} parent=11 // pred_fallthru
          _
      $region12: #{tran_decoder_forward.14} parent=5 // pred_fallthru
        _
      %p150 = scmp.lt.s32.totalorder %s10, 2
      // Predicated region
      $region17: #{tran_decoder_forward.14} parent=5 // pred_check
        %p151 = pneg %p150
      $region18: #{tran_decoder_forward.14} parent=5 // pred_check_branch
        %153 = sbr.rel (%p151) target = $region20
      $region19: #{tran_decoder_forward.14} parent=5 // pred_region
        // Predicated region
        $region21: #{tran_decoder_forward.14} parent=19 // pred_check
          %p154 = pneg %p68
        $region22: #{tran_decoder_forward.14} parent=19 // pred_check_branch
          %156 = sbr.rel (%p154) target = $region24
        $region23: #{tran_decoder_forward.14} parent=19 // pred_region
          %s157 = sand.u32 %s58, 1
          %s158 = sand.u32 %s58, 1
          %s159 = smul.addr %s158, 256
          %s160 = scalar_lea.vmem [#allocation4], %s159
          %s161 = smul.u32 16, %s18
          %s162 = smul.addr %s161, 4
          %s163 = scalar_lea.vmem %s1, %s162
          // Predicated region
          $region25: #{tran_decoder_forward.14} parent=23 // pred_check
            _
          $region26: #{tran_decoder_forward.14} parent=23 // pred_check_branch
            %165 = sbr.rel (0) target = $region28
          $region27: #{tran_decoder_forward.14} parent=23 // pred_region
            // Predicated region
            $region29: #{tran_decoder_forward.14} parent=27 // pred_check
              _
            $region30: #{tran_decoder_forward.14} parent=27 // pred_check_branch
              %167 = sbr.rel (0) target = $region32
            $region31: #{tran_decoder_forward.14} parent=27 // pred_region
              loop: start=0, step=1, limit=1
              $region33: #{tran_decoder_forward.14} parent=31 // loop_pre_header
                _
              $region34: #{tran_decoder_forward.14} parent=31 // loop_header
                %s169 = sphi 0, %s173
                %p170 = scmp.ge.s32.totalorder %s169, 1
                %s174 = sphi %s163, %s163
                %s175 = sphi %s160, %s160
              $region35: #{tran_decoder_forward.14} parent=31 // loop_header_branch
                %172 = sbr.rel (%p170) target = $region39
              $region36: #{tran_decoder_forward.14} parent=31 // loop_body
                %v176 = vld [vmem:[%s174] sm:$0xff]
                %177 = vst [vmem:[%s175] sm:$0xff] %v176
                %v178 = vld [vmem:[%s174 + $0x8] sm:$0xff]
                %179 = vst [vmem:[%s175 + $0x8] sm:$0xff] %v178
                %v180 = vld [vmem:[%s174 + $0x10] sm:$0xff]
                %181 = vst [vmem:[%s175 + $0x10] sm:$0xff] %v180
                %v182 = vld [vmem:[%s174 + $0x18] sm:$0xff]
                %183 = vst [vmem:[%s175 + $0x18] sm:$0xff] %v182
                %v184 = vld [vmem:[%s174 + $0x20] sm:$0xff]
                %185 = vst [vmem:[%s175 + $0x20] sm:$0xff] %v184
                %v186 = vld [vmem:[%s174 + $0x28] sm:$0xff]
                %187 = vst [vmem:[%s175 + $0x28] sm:$0xff] %v186
                %v188 = vld [vmem:[%s174 + $0x30] sm:$0xff]
                %189 = vst [vmem:[%s175 + $0x30] sm:$0xff] %v188
                %v190 = vld [vmem:[%s174 + $0x38] sm:$0xff]
                %191 = vst [vmem:[%s175 + $0x38] sm:$0xff] %v190
                %v192 = vld [vmem:[%s174 + $0x80] sm:$0xff]
                %193 = vst [vmem:[%s175 + $0x40] sm:$0xff] %v192
                %v194 = vld [vmem:[%s174 + $0x88] sm:$0xff]
                %195 = vst [vmem:[%s175 + $0x48] sm:$0xff] %v194
                %v196 = vld [vmem:[%s174 + $0x90] sm:$0xff]
                %197 = vst [vmem:[%s175 + $0x50] sm:$0xff] %v196
                %v198 = vld [vmem:[%s174 + $0x98] sm:$0xff]
                %199 = vst [vmem:[%s175 + $0x58] sm:$0xff] %v198
                %v200 = vld [vmem:[%s174 + $0xa0] sm:$0xff]
                %201 = vst [vmem:[%s175 + $0x60] sm:$0xff] %v200
                %v202 = vld [vmem:[%s174 + $0xa8] sm:$0xff]
                %203 = vst [vmem:[%s175 + $0x68] sm:$0xff] %v202
                %v204 = vld [vmem:[%s174 + $0xb0] sm:$0xff]
                %205 = vst [vmem:[%s175 + $0x70] sm:$0xff] %v204
                %v206 = vld [vmem:[%s174 + $0xb8] sm:$0xff]
                %207 = vst [vmem:[%s175 + $0x78] sm:$0xff] %v206
                %v208 = vld [vmem:[%s174 + $0x100] sm:$0xff]
                %209 = vst [vmem:[%s175 + $0x80] sm:$0xff] %v208
                %v210 = vld [vmem:[%s174 + $0x108] sm:$0xff]
                %211 = vst [vmem:[%s175 + $0x88] sm:$0xff] %v210
                %v212 = vld [vmem:[%s174 + $0x110] sm:$0xff]
                %213 = vst [vmem:[%s175 + $0x90] sm:$0xff] %v212
                %v214 = vld [vmem:[%s174 + $0x118] sm:$0xff]
                %215 = vst [vmem:[%s175 + $0x98] sm:$0xff] %v214
                %v216 = vld [vmem:[%s174 + $0x120] sm:$0xff]
                %217 = vst [vmem:[%s175 + $0xa0] sm:$0xff] %v216
                %v218 = vld [vmem:[%s174 + $0x128] sm:$0xff]
                %219 = vst [vmem:[%s175 + $0xa8] sm:$0xff] %v218
                %v220 = vld [vmem:[%s174 + $0x130] sm:$0xff]
                %221 = vst [vmem:[%s175 + $0xb0] sm:$0xff] %v220
                %v222 = vld [vmem:[%s174 + $0x138] sm:$0xff]
                %223 = vst [vmem:[%s175 + $0xb8] sm:$0xff] %v222
                %v224 = vld [vmem:[%s174 + $0x180] sm:$0xff]
                %225 = vst [vmem:[%s175 + $0xc0] sm:$0xff] %v224
                %v226 = vld [vmem:[%s174 + $0x188] sm:$0xff]
                %227 = vst [vmem:[%s175 + $0xc8] sm:$0xff] %v226
                %v228 = vld [vmem:[%s174 + $0x190] sm:$0xff]
                %229 = vst [vmem:[%s175 + $0xd0] sm:$0xff] %v228
                %v230 = vld [vmem:[%s174 + $0x198] sm:$0xff]
                %231 = vst [vmem:[%s175 + $0xd8] sm:$0xff] %v230
                %v232 = vld [vmem:[%s174 + $0x1a0] sm:$0xff]
                %233 = vst [vmem:[%s175 + $0xe0] sm:$0xff] %v232
                %v234 = vld [vmem:[%s174 + $0x1a8] sm:$0xff]
                %235 = vst [vmem:[%s175 + $0xe8] sm:$0xff] %v234
                %v236 = vld [vmem:[%s174 + $0x1b0] sm:$0xff]
                %237 = vst [vmem:[%s175 + $0xf0] sm:$0xff] %v236
                %v238 = vld [vmem:[%s174 + $0x1b8] sm:$0xff]
                %239 = vst [vmem:[%s175 + $0xf8] sm:$0xff] %v238
              $region37: #{tran_decoder_forward.14} parent=31 // loop_footer
                %s173 = sadd.s32 1, %s169
              $region38: #{tran_decoder_forward.14} parent=31 // loop_footer_branch
                %168 = sbr.rel target = $region34
              $region39: #{tran_decoder_forward.14} parent=31 // loop_exit
                _
            $region32: #{tran_decoder_forward.14} parent=27 // pred_fallthru
              _
            // Predicated region
            $region40: #{tran_decoder_forward.14} parent=27 // pred_check
              _
            $region41: #{tran_decoder_forward.14} parent=27 // pred_check_branch
              %241 = sbr.rel target = $region43
            $region42: #{tran_decoder_forward.14} parent=27 // pred_region
              _
            $region43: #{tran_decoder_forward.14} parent=27 // pred_fallthru
              _
          $region28: #{tran_decoder_forward.14} parent=23 // pred_fallthru
            _
          %242 = vnop
        $region24: #{tran_decoder_forward.14} parent=19 // pred_fallthru
          _
      $region20: #{tran_decoder_forward.14} parent=5 // pred_fallthru
        _
      %p243 = scmp.le.s32.totalorder 1, %s10
      %p244 = scmp.lt.s32.totalorder %s10, 3
      %p245 = pnand %p243, %p244
      %p246 = pneg %p245
      // Predicated region
      $region44: #{tran_decoder_forward.14} parent=5 // pred_check
        _
      $region45: #{tran_decoder_forward.14} parent=5 // pred_check_branch
        %248 = sbr.rel (%p245) target = $region47
      $region46: #{tran_decoder_forward.14} parent=5 // pred_region
        %s249 = ssub.s32 %s10, 1
        %s250 = sand.u32 %s61, 1
        %s251 = sand.u32 %s61, 1
        %s252 = smul.addr %s251, 256
        %s253 = scalar_lea.vmem [#allocation4], %s252
        // Predicated region
        $region48: #{tran_decoder_forward.14} parent=46 // pred_check
          %p254 = pneg %p74
        $region49: #{tran_decoder_forward.14} parent=46 // pred_check_branch
          %256 = sbr.rel (%p254) target = $region51
        $region50: #{tran_decoder_forward.14} parent=46 // pred_region
          _
        $region51: #{tran_decoder_forward.14} parent=46 // pred_fallthru
          _
        %s257 = smul.u32 2, %s19
        %p258 = scmp.lt.s32.totalorder %s257, 1
        %s259 = scalar_select %p258, %s257, 1
        %s260 = smul.addr %s259, 4
        %s261 = scalar_lea.vmem %s0, %s260
        %p262 = pneg %p48
        %p263 = pneg %p45
        %s264 = sand.u32 %s61, 1
        %s265 = sand.u32 %s61, 1
        %s266 = smul.addr %s265, 256
        %s267 = scalar_lea.vmem [#allocation4], %s266
        %p268 = pneg %p74
        %p269 = pneg %p71
        %p270 = pneg %p100
        %p271 = pneg %p97
        %s272 = smul.u32 2, %s19
        %p273 = scmp.lt.s32.totalorder %s272, 1
        %s274 = scalar_select %p273, %s272, 1
        %s275 = smul.addr %s274, 8
        %s276 = scalar_lea.vmem %s2, %s275
        %p277 = pneg %p126
        %p278 = pneg %p123
        %s279 = smul.u32 2, %s19
        %p280 = scmp.lt.s32.totalorder %s279, 1
        %s281 = scalar_select %p280, %s279, 1
        %s282 = smul.addr %s281, 8
        %s283 = scalar_lea.vmem %s3, %s282
        %s284 = smul.u32 2, %s19
        %p285 = scmp.lt.s32.totalorder %s284, 1
        %s286 = scalar_select %p285, %s284, 1
        %s287 = smul.addr %s286, 4
        %s288 = scalar_lea.vmem %s0, %s287
        %s289 = smul.u32 2, %s19
        %s290 = smul.u32 16, %s20
        %s291 = smul.u32 2, %s19
        %p292 = scmp.lt.s32.totalorder %s291, 1
        %s293 = scalar_select %p292, %s291, 1
        %s294 = smul.addr %s293, 8
        %s295 = scalar_lea.vmem %s2, %s294
        %s296 = smul.u32 2, %s19
        %s297 = smul.u32 2, %s19
        %p298 = scmp.lt.s32.totalorder %s297, 1
        %s299 = scalar_select %p298, %s297, 1
        %s300 = smul.addr %s299, 8
        %s301 = scalar_lea.vmem %s3, %s300
        %s302 = smul.u32 2, %s19
        %p304 = scmp.eq.s32.totalorder %s20, 0
        // Predicated region
        $region52: #{tran_decoder_forward.14} parent=46 // pred_check
          %p305 = pneg %p304
        $region53: #{tran_decoder_forward.14} parent=46 // pred_check_branch
          %307 = sbr.rel (%p305) target = $region55
        $region54: #{tran_decoder_forward.14} parent=46 // pred_region
          %vm308 = vcmask 7168
          %309 = vst.msk [vmem:[#allocation2] sm:$0xff] %vm308, -inf
          %310 = vst.msk [vmem:[#allocation2 + $0x8] sm:$0xff] %vm308, -inf
          %311 = vst.msk [vmem:[#allocation3] sm:$0xff] %vm308, 0.0
          %312 = vst.msk [vmem:[#allocation3 + $0x8] sm:$0xff] %vm308, 0.0
        $region55: #{tran_decoder_forward.14} parent=46 // pred_fallthru
          _
        %v313 = vld [vmem:[%s288] sm:$0xf]
        %v314 = vld [vmem:[%s288 + $0x4] sm:$0xf]
        %v315 = vld [vmem:[%s253] sm:$0xff]
        %v316 = vld [vmem:[%s253 + $0x8] sm:$0xff]
        %v317 = vld [vmem:[%s253 + $0x10] sm:$0xff]
        %v318 = vld [vmem:[%s253 + $0x18] sm:$0xff]
        %v319 = vld [vmem:[%s253 + $0x20] sm:$0xff]
        %v320 = vld [vmem:[%s253 + $0x28] sm:$0xff]
        %v321 = vld [vmem:[%s253 + $0x30] sm:$0xff]
        %v322 = vld [vmem:[%s253 + $0x38] sm:$0xff]
        %v323 = vld [vmem:[%s253 + $0x40] sm:$0xff]
        %v324 = vld [vmem:[%s253 + $0x48] sm:$0xff]
        %v325 = vld [vmem:[%s253 + $0x50] sm:$0xff]
        %v326 = vld [vmem:[%s253 + $0x58] sm:$0xff]
        %v327 = vld [vmem:[%s253 + $0x60] sm:$0xff]
        %v328 = vld [vmem:[%s253 + $0x68] sm:$0xff]
        %v329 = vld [vmem:[%s253 + $0x70] sm:$0xff]
        %v330 = vld [vmem:[%s253 + $0x78] sm:$0xff]
        %v331 = vld [vmem:[%s253 + $0x80] sm:$0xff]
        %v332 = vld [vmem:[%s253 + $0x88] sm:$0xff]
        %v333 = vld [vmem:[%s253 + $0x90] sm:$0xff]
        %v334 = vld [vmem:[%s253 + $0x98] sm:$0xff]
        %v335 = vld [vmem:[%s253 + $0xa0] sm:$0xff]
        %v336 = vld [vmem:[%s253 + $0xa8] sm:$0xff]
        %v337 = vld [vmem:[%s253 + $0xb0] sm:$0xff]
        %v338 = vld [vmem:[%s253 + $0xb8] sm:$0xff]
        %v339 = vld [vmem:[%s253 + $0xc0] sm:$0xff]
        %v340 = vld [vmem:[%s253 + $0xc8] sm:$0xff]
        %v341 = vld [vmem:[%s253 + $0xd0] sm:$0xff]
        %v342 = vld [vmem:[%s253 + $0xd8] sm:$0xff]
        %v343 = vld [vmem:[%s253 + $0xe0] sm:$0xff]
        %v344 = vld [vmem:[%s253 + $0xe8] sm:$0xff]
        %v345 = vld [vmem:[%s253 + $0xf0] sm:$0xff]
        %v346 = vld [vmem:[%s253 + $0xf8] sm:$0xff]
        %v349 = vunpack.c.l.b16 %v313
        %v350 = vunpack.c.l.b16 %v314
        %v351 = vpack.c.b16 %v350, %v349
        %v384 = vunpack.c.l.b16 %v315
        %v385 = vunpack.c.h.b16 %v315
        %v386 = vunpack.c.l.b16 %v316
        %v387 = vunpack.c.h.b16 %v316
        %v388 = vunpack.c.l.b16 %v317
        %v389 = vunpack.c.h.b16 %v317
        %v390 = vunpack.c.l.b16 %v318
        %v391 = vunpack.c.h.b16 %v318
        %v392 = vunpack.c.l.b16 %v319
        %v393 = vunpack.c.h.b16 %v319
        %v394 = vunpack.c.l.b16 %v320
        %v395 = vunpack.c.h.b16 %v320
        %v396 = vunpack.c.l.b16 %v321
        %v397 = vunpack.c.h.b16 %v321
        %v398 = vunpack.c.l.b16 %v322
        %v399 = vunpack.c.h.b16 %v322
        %v400 = vunpack.c.l.b16 %v323
        %v401 = vunpack.c.h.b16 %v323
        %v402 = vunpack.c.l.b16 %v324
        %v403 = vunpack.c.h.b16 %v324
        %v404 = vunpack.c.l.b16 %v325
        %v405 = vunpack.c.h.b16 %v325
        %v406 = vunpack.c.l.b16 %v326
        %v407 = vunpack.c.h.b16 %v326
        %v408 = vunpack.c.l.b16 %v327
        %v409 = vunpack.c.h.b16 %v327
        %v410 = vunpack.c.l.b16 %v328
        %v411 = vunpack.c.h.b16 %v328
        %v412 = vunpack.c.l.b16 %v329
        %v413 = vunpack.c.h.b16 %v329
        %v414 = vunpack.c.l.b16 %v330
        %v415 = vunpack.c.h.b16 %v330
        %v416 = vunpack.c.l.b16 %v331
        %v417 = vunpack.c.h.b16 %v331
        %v418 = vunpack.c.l.b16 %v332
        %v419 = vunpack.c.h.b16 %v332
        %v420 = vunpack.c.l.b16 %v333
        %v421 = vunpack.c.h.b16 %v333
        %v422 = vunpack.c.l.b16 %v334
        %v423 = vunpack.c.h.b16 %v334
        %v424 = vunpack.c.l.b16 %v335
        %v425 = vunpack.c.h.b16 %v335
        %v426 = vunpack.c.l.b16 %v336
        %v427 = vunpack.c.h.b16 %v336
        %v428 = vunpack.c.l.b16 %v337
        %v429 = vunpack.c.h.b16 %v337
        %v430 = vunpack.c.l.b16 %v338
        %v431 = vunpack.c.h.b16 %v338
        %v432 = vunpack.c.l.b16 %v339
        %v433 = vunpack.c.h.b16 %v339
        %v434 = vunpack.c.l.b16 %v340
        %v435 = vunpack.c.h.b16 %v340
        %v436 = vunpack.c.l.b16 %v341
        %v437 = vunpack.c.h.b16 %v341
        %v438 = vunpack.c.l.b16 %v342
        %v439 = vunpack.c.h.b16 %v342
        %v440 = vunpack.c.l.b16 %v343
        %v441 = vunpack.c.h.b16 %v343
        %v442 = vunpack.c.l.b16 %v344
        %v443 = vunpack.c.h.b16 %v344
        %v444 = vunpack.c.l.b16 %v345
        %v445 = vunpack.c.h.b16 %v345
        %v446 = vunpack.c.l.b16 %v346
        %v447 = vunpack.c.h.b16 %v346
        %v448 = vpack.c.b16 %v400, %v384
        %v449 = vpack.c.b16 %v401, %v385
        %v450 = vpack.c.b16 %v402, %v386
        %v451 = vpack.c.b16 %v403, %v387
        %v452 = vpack.c.b16 %v404, %v388
        %v453 = vpack.c.b16 %v405, %v389
        %v454 = vpack.c.b16 %v406, %v390
        %v455 = vpack.c.b16 %v407, %v391
        %v456 = vpack.c.b16 %v408, %v392
        %v457 = vpack.c.b16 %v409, %v393
        %v458 = vpack.c.b16 %v410, %v394
        %v459 = vpack.c.b16 %v411, %v395
        %v460 = vpack.c.b16 %v412, %v396
        %v461 = vpack.c.b16 %v413, %v397
        %v462 = vpack.c.b16 %v414, %v398
        %v463 = vpack.c.b16 %v415, %v399
        %v464 = vpack.c.b16 %v432, %v416
        %v465 = vpack.c.b16 %v433, %v417
        %v466 = vpack.c.b16 %v434, %v418
        %v467 = vpack.c.b16 %v435, %v419
        %v468 = vpack.c.b16 %v436, %v420
        %v469 = vpack.c.b16 %v437, %v421
        %v470 = vpack.c.b16 %v438, %v422
        %v471 = vpack.c.b16 %v439, %v423
        %v472 = vpack.c.b16 %v440, %v424
        %v473 = vpack.c.b16 %v441, %v425
        %v474 = vpack.c.b16 %v442, %v426
        %v475 = vpack.c.b16 %v443, %v427
        %v476 = vpack.c.b16 %v444, %v428
        %v477 = vpack.c.b16 %v445, %v429
        %v478 = vpack.c.b16 %v446, %v430
        %v479 = vpack.c.b16 %v447, %v431
        %vm512 = vcmask 261120
        %v514 = vsel %vm512, %v351, 0
        %516 = vmatpush.bf16.msra.mxu0 0
        %517 = vmatpush.bf16.msra.mxu0 0
        %518 = vmatpush.bf16.msra.mxu0 0
        %519 = vmatpush.bf16.msra.mxu0 0
        %520 = vmatpush.bf16.msra.mxu0 0
        %521 = vmatpush.bf16.msra.mxu0 0
        %522 = vmatpush.bf16.msra.mxu0 %v464
        %523 = vmatpush.bf16.msra.mxu0 %v448
        %524 = vmatmul.bf16.gmra.mxu0 %v514
        %v525 = vpop.f32.mrf.mxu0
        %v526 = vadd.f32 0.0, %v525
        %v527 = vpop.f32.mrf.mxu0
        %v528 = vadd.f32 0.0, %v527
        %529 = vdwg.mxu0
        %530 = vmatpush.bf16.msra.mxu0 0
        %531 = vmatpush.bf16.msra.mxu0 0
        %532 = vmatpush.bf16.msra.mxu0 0
        %533 = vmatpush.bf16.msra.mxu0 0
        %534 = vmatpush.bf16.msra.mxu0 0
        %535 = vmatpush.bf16.msra.mxu0 0
        %536 = vmatpush.bf16.msra.mxu0 %v465
        %537 = vmatpush.bf16.msra.mxu0 %v449
        %538 = vmatmul.bf16.gmra.mxu0 %v514
        %v539 = vpop.f32.mrf.mxu0
        %v540 = vadd.f32 0.0, %v539
        %v541 = vpop.f32.mrf.mxu0
        %v542 = vadd.f32 0.0, %v541
        %543 = vdwg.mxu0
        %544 = vmatpush.bf16.msra.mxu0 0
        %545 = vmatpush.bf16.msra.mxu0 0
        %546 = vmatpush.bf16.msra.mxu0 0
        %547 = vmatpush.bf16.msra.mxu0 0
        %548 = vmatpush.bf16.msra.mxu0 0
        %549 = vmatpush.bf16.msra.mxu0 0
        %550 = vmatpush.bf16.msra.mxu0 %v466
        %551 = vmatpush.bf16.msra.mxu0 %v450
        %552 = vmatmul.bf16.gmra.mxu0 %v514
        %v553 = vpop.f32.mrf.mxu0
        %v554 = vadd.f32 0.0, %v553
        %v555 = vpop.f32.mrf.mxu0
        %v556 = vadd.f32 0.0, %v555
        %557 = vdwg.mxu0
        %558 = vmatpush.bf16.msra.mxu0 0
        %559 = vmatpush.bf16.msra.mxu0 0
        %560 = vmatpush.bf16.msra.mxu0 0
        %561 = vmatpush.bf16.msra.mxu0 0
        %562 = vmatpush.bf16.msra.mxu0 0
        %563 = vmatpush.bf16.msra.mxu0 0
        %564 = vmatpush.bf16.msra.mxu0 %v467
        %565 = vmatpush.bf16.msra.mxu0 %v451
        %566 = vmatmul.bf16.gmra.mxu0 %v514
        %v567 = vpop.f32.mrf.mxu0
        %v568 = vadd.f32 0.0, %v567
        %v569 = vpop.f32.mrf.mxu0
        %v570 = vadd.f32 0.0, %v569
        %571 = vdwg.mxu0
        %572 = vmatpush.bf16.msra.mxu0 0
        %573 = vmatpush.bf16.msra.mxu0 0
        %574 = vmatpush.bf16.msra.mxu0 0
        %575 = vmatpush.bf16.msra.mxu0 0
        %576 = vmatpush.bf16.msra.mxu0 0
        %577 = vmatpush.bf16.msra.mxu0 0
        %578 = vmatpush.bf16.msra.mxu0 %v468
        %579 = vmatpush.bf16.msra.mxu0 %v452
        %580 = vmatmul.bf16.gmra.mxu0 %v514
        %v581 = vpop.f32.mrf.mxu0
        %v582 = vadd.f32 0.0, %v581
        %v583 = vpop.f32.mrf.mxu0
        %v584 = vadd.f32 0.0, %v583
        %585 = vdwg.mxu0
        %586 = vmatpush.bf16.msra.mxu0 0
        %587 = vmatpush.bf16.msra.mxu0 0
        %588 = vmatpush.bf16.msra.mxu0 0
        %589 = vmatpush.bf16.msra.mxu0 0
        %590 = vmatpush.bf16.msra.mxu0 0
        %591 = vmatpush.bf16.msra.mxu0 0
        %592 = vmatpush.bf16.msra.mxu0 %v469
        %593 = vmatpush.bf16.msra.mxu0 %v453
        %594 = vmatmul.bf16.gmra.mxu0 %v514
        %v595 = vpop.f32.mrf.mxu0
        %v596 = vadd.f32 0.0, %v595
        %v597 = vpop.f32.mrf.mxu0
        %v598 = vadd.f32 0.0, %v597
        %599 = vdwg.mxu0
        %600 = vmatpush.bf16.msra.mxu0 0
        %601 = vmatpush.bf16.msra.mxu0 0
        %602 = vmatpush.bf16.msra.mxu0 0
        %603 = vmatpush.bf16.msra.mxu0 0
        %604 = vmatpush.bf16.msra.mxu0 0
        %605 = vmatpush.bf16.msra.mxu0 0
        %606 = vmatpush.bf16.msra.mxu0 %v470
        %607 = vmatpush.bf16.msra.mxu0 %v454
        %608 = vmatmul.bf16.gmra.mxu0 %v514
        %v609 = vpop.f32.mrf.mxu0
        %v610 = vadd.f32 0.0, %v609
        %v611 = vpop.f32.mrf.mxu0
        %v612 = vadd.f32 0.0, %v611
        %613 = vdwg.mxu0
        %614 = vmatpush.bf16.msra.mxu0 0
        %615 = vmatpush.bf16.msra.mxu0 0
        %616 = vmatpush.bf16.msra.mxu0 0
        %617 = vmatpush.bf16.msra.mxu0 0
        %618 = vmatpush.bf16.msra.mxu0 0
        %619 = vmatpush.bf16.msra.mxu0 0
        %620 = vmatpush.bf16.msra.mxu0 %v471
        %621 = vmatpush.bf16.msra.mxu0 %v455
        %622 = vmatmul.bf16.gmra.mxu0 %v514
        %v623 = vpop.f32.mrf.mxu0
        %v624 = vadd.f32 0.0, %v623
        %v625 = vpop.f32.mrf.mxu0
        %v626 = vadd.f32 0.0, %v625
        %627 = vdwg.mxu0
        %628 = vmatpush.bf16.msra.mxu0 0
        %629 = vmatpush.bf16.msra.mxu0 0
        %630 = vmatpush.bf16.msra.mxu0 0
        %631 = vmatpush.bf16.msra.mxu0 0
        %632 = vmatpush.bf16.msra.mxu0 0
        %633 = vmatpush.bf16.msra.mxu0 0
        %634 = vmatpush.bf16.msra.mxu0 %v472
        %635 = vmatpush.bf16.msra.mxu0 %v456
        %636 = vmatmul.bf16.gmra.mxu0 %v514
        %v637 = vpop.f32.mrf.mxu0
        %v638 = vadd.f32 0.0, %v637
        %v639 = vpop.f32.mrf.mxu0
        %v640 = vadd.f32 0.0, %v639
        %641 = vdwg.mxu0
        %642 = vmatpush.bf16.msra.mxu0 0
        %643 = vmatpush.bf16.msra.mxu0 0
        %644 = vmatpush.bf16.msra.mxu0 0
        %645 = vmatpush.bf16.msra.mxu0 0
        %646 = vmatpush.bf16.msra.mxu0 0
        %647 = vmatpush.bf16.msra.mxu0 0
        %648 = vmatpush.bf16.msra.mxu0 %v473
        %649 = vmatpush.bf16.msra.mxu0 %v457
        %650 = vmatmul.bf16.gmra.mxu0 %v514
        %v651 = vpop.f32.mrf.mxu0
        %v652 = vadd.f32 0.0, %v651
        %v653 = vpop.f32.mrf.mxu0
        %v654 = vadd.f32 0.0, %v653
        %655 = vdwg.mxu0
        %656 = vmatpush.bf16.msra.mxu0 0
        %657 = vmatpush.bf16.msra.mxu0 0
        %658 = vmatpush.bf16.msra.mxu0 0
        %659 = vmatpush.bf16.msra.mxu0 0
        %660 = vmatpush.bf16.msra.mxu0 0
        %661 = vmatpush.bf16.msra.mxu0 0
        %662 = vmatpush.bf16.msra.mxu0 %v474
        %663 = vmatpush.bf16.msra.mxu0 %v458
        %664 = vmatmul.bf16.gmra.mxu0 %v514
        %v665 = vpop.f32.mrf.mxu0
        %v666 = vadd.f32 0.0, %v665
        %v667 = vpop.f32.mrf.mxu0
        %v668 = vadd.f32 0.0, %v667
        %669 = vdwg.mxu0
        %670 = vmatpush.bf16.msra.mxu0 0
        %671 = vmatpush.bf16.msra.mxu0 0
        %672 = vmatpush.bf16.msra.mxu0 0
        %673 = vmatpush.bf16.msra.mxu0 0
        %674 = vmatpush.bf16.msra.mxu0 0
        %675 = vmatpush.bf16.msra.mxu0 0
        %676 = vmatpush.bf16.msra.mxu0 %v475
        %677 = vmatpush.bf16.msra.mxu0 %v459
        %678 = vmatmul.bf16.gmra.mxu0 %v514
        %v679 = vpop.f32.mrf.mxu0
        %v680 = vadd.f32 0.0, %v679
        %v681 = vpop.f32.mrf.mxu0
        %v682 = vadd.f32 0.0, %v681
        %683 = vdwg.mxu0
        %684 = vmatpush.bf16.msra.mxu0 0
        %685 = vmatpush.bf16.msra.mxu0 0
        %686 = vmatpush.bf16.msra.mxu0 0
        %687 = vmatpush.bf16.msra.mxu0 0
        %688 = vmatpush.bf16.msra.mxu0 0
        %689 = vmatpush.bf16.msra.mxu0 0
        %690 = vmatpush.bf16.msra.mxu0 %v476
        %691 = vmatpush.bf16.msra.mxu0 %v460
        %692 = vmatmul.bf16.gmra.mxu0 %v514
        %v693 = vpop.f32.mrf.mxu0
        %v694 = vadd.f32 0.0, %v693
        %v695 = vpop.f32.mrf.mxu0
        %v696 = vadd.f32 0.0, %v695
        %697 = vdwg.mxu0
        %698 = vmatpush.bf16.msra.mxu0 0
        %699 = vmatpush.bf16.msra.mxu0 0
        %700 = vmatpush.bf16.msra.mxu0 0
        %701 = vmatpush.bf16.msra.mxu0 0
        %702 = vmatpush.bf16.msra.mxu0 0
        %703 = vmatpush.bf16.msra.mxu0 0
        %704 = vmatpush.bf16.msra.mxu0 %v477
        %705 = vmatpush.bf16.msra.mxu0 %v461
        %706 = vmatmul.bf16.gmra.mxu0 %v514
        %v707 = vpop.f32.mrf.mxu0
        %v708 = vadd.f32 0.0, %v707
        %v709 = vpop.f32.mrf.mxu0
        %v710 = vadd.f32 0.0, %v709
        %711 = vdwg.mxu0
        %712 = vmatpush.bf16.msra.mxu0 0
        %713 = vmatpush.bf16.msra.mxu0 0
        %714 = vmatpush.bf16.msra.mxu0 0
        %715 = vmatpush.bf16.msra.mxu0 0
        %716 = vmatpush.bf16.msra.mxu0 0
        %717 = vmatpush.bf16.msra.mxu0 0
        %718 = vmatpush.bf16.msra.mxu0 %v478
        %719 = vmatpush.bf16.msra.mxu0 %v462
        %720 = vmatmul.bf16.gmra.mxu0 %v514
        %v721 = vpop.f32.mrf.mxu0
        %v722 = vadd.f32 0.0, %v721
        %v723 = vpop.f32.mrf.mxu0
        %v724 = vadd.f32 0.0, %v723
        %725 = vdwg.mxu0
        %726 = vmatpush.bf16.msra.mxu0 0
        %727 = vmatpush.bf16.msra.mxu0 0
        %728 = vmatpush.bf16.msra.mxu0 0
        %729 = vmatpush.bf16.msra.mxu0 0
        %730 = vmatpush.bf16.msra.mxu0 0
        %731 = vmatpush.bf16.msra.mxu0 0
        %732 = vmatpush.bf16.msra.mxu0 %v479
        %733 = vmatpush.bf16.msra.mxu0 %v463
        %734 = vmatmul.bf16.gmra.mxu0 %v514
        %v735 = vpop.f32.mrf.mxu0
        %v736 = vadd.f32 0.0, %v735
        %v737 = vpop.f32.mrf.mxu0
        %v738 = vadd.f32 0.0, %v737
        %739 = vdwg.mxu0
        %v740 = vmax.f32 %v526, %v554
        %v741 = vmax.f32 %v540, %v568
        %v742 = vmax.f32 %v740, %v582
        %v743 = vmax.f32 %v741, %v596
        %v744 = vmax.f32 %v742, %v610
        %v745 = vmax.f32 %v743, %v624
        %v746 = vmax.f32 %v744, %v638
        %v747 = vmax.f32 %v745, %v652
        %v748 = vmax.f32 %v746, %v666
        %v749 = vmax.f32 %v747, %v680
        %v750 = vmax.f32 %v748, %v694
        %v751 = vmax.f32 %v749, %v708
        %v752 = vmax.f32 %v750, %v722
        %v753 = vmax.f32 %v751, %v736
        %v754 = vmax.f32 %v752, %v753
        %755 = vmax.xlane.f32.xlu0 %v754
        %v756 = vpop.xlane.xlu0 %755
        %v757 = vmax.f32 %v528, %v556
        %v758 = vmax.f32 %v542, %v570
        %v759 = vmax.f32 %v757, %v584
        %v760 = vmax.f32 %v758, %v598
        %v761 = vmax.f32 %v759, %v612
        %v762 = vmax.f32 %v760, %v626
        %v763 = vmax.f32 %v761, %v640
        %v764 = vmax.f32 %v762, %v654
        %v765 = vmax.f32 %v763, %v668
        %v766 = vmax.f32 %v764, %v682
        %v767 = vmax.f32 %v765, %v696
        %v768 = vmax.f32 %v766, %v710
        %v769 = vmax.f32 %v767, %v724
        %v770 = vmax.f32 %v768, %v738
        %v771 = vmax.f32 %v769, %v770
        %772 = vmax.xlane.f32.xlu0 %v771
        %v773 = vpop.xlane.xlu0 %772
        %v774 = vld [vmem:[#allocation2] sm:$0xff]
        %v775 = vld [vmem:[#allocation2 + $0x8] sm:$0xff]
        %v776 = vmax.f32 %v774, %v756
        %v777 = vmax.f32 %v775, %v773
        %v778 = vld [vmem:[#allocation3] sm:$0xff]
        %v779 = vld [vmem:[#allocation3 + $0x8] sm:$0xff]
        %v780 = vsub.f32 %v774, %v776
        %v781 = vsub.f32 %v775, %v777
        %v782 = vmul.f32 %v780, 1.442695
        %v783 = vpow.pop %v782
        %v784 = vmul.f32 %v781, 1.442695
        %v785 = vpow.pop %v784
        %v786 = vmul.f32 %v778, %v783
        %v787 = vmul.f32 %v779, %v785
        %789 = vset.pattern.permute.xlu0 0
        %790 = vperm.xlu0 %789, %v776
        %v791 = vpop.permute.xlu0 %790
        %794 = vset.pattern.permute.xlu0 0
        %795 = vperm.xlu0 %794, %v777
        %v796 = vpop.permute.xlu0 %795
        %v798 = vsub.f32 %v526, %v791
        %v799 = vsub.f32 %v540, %v791
        %v800 = vsub.f32 %v554, %v791
        %v801 = vsub.f32 %v568, %v791
        %v802 = vsub.f32 %v582, %v791
        %v803 = vsub.f32 %v596, %v791
        %v804 = vsub.f32 %v610, %v791
        %v805 = vsub.f32 %v624, %v791
        %v806 = vsub.f32 %v638, %v791
        %v807 = vsub.f32 %v652, %v791
        %v808 = vsub.f32 %v666, %v791
        %v809 = vsub.f32 %v680, %v791
        %v810 = vsub.f32 %v694, %v791
        %v811 = vsub.f32 %v708, %v791
        %v812 = vsub.f32 %v722, %v791
        %v813 = vsub.f32 %v736, %v791
        %v814 = vsub.f32 %v528, %v796
        %v815 = vsub.f32 %v542, %v796
        %v816 = vsub.f32 %v556, %v796
        %v817 = vsub.f32 %v570, %v796
        %v818 = vsub.f32 %v584, %v796
        %v819 = vsub.f32 %v598, %v796
        %v820 = vsub.f32 %v612, %v796
        %v821 = vsub.f32 %v626, %v796
        %v822 = vsub.f32 %v640, %v796
        %v823 = vsub.f32 %v654, %v796
        %v824 = vsub.f32 %v668, %v796
        %v825 = vsub.f32 %v682, %v796
        %v826 = vsub.f32 %v696, %v796
        %v827 = vsub.f32 %v710, %v796
        %v828 = vsub.f32 %v724, %v796
        %v829 = vsub.f32 %v738, %v796
        %v830 = vmul.f32 %v798, 1.442695
        %v831 = vpow.pop %v830
        %v832 = vmul.f32 %v799, 1.442695
        %v833 = vpow.pop %v832
        %v834 = vmul.f32 %v800, 1.442695
        %v835 = vpow.pop %v834
        %v836 = vmul.f32 %v801, 1.442695
        %v837 = vpow.pop %v836
        %v838 = vmul.f32 %v802, 1.442695
        %v839 = vpow.pop %v838
        %v840 = vmul.f32 %v803, 1.442695
        %v841 = vpow.pop %v840
        %v842 = vmul.f32 %v804, 1.442695
        %v843 = vpow.pop %v842
        %v844 = vmul.f32 %v805, 1.442695
        %v845 = vpow.pop %v844
        %v846 = vmul.f32 %v806, 1.442695
        %v847 = vpow.pop %v846
        %v848 = vmul.f32 %v807, 1.442695
        %v849 = vpow.pop %v848
        %v850 = vmul.f32 %v808, 1.442695
        %v851 = vpow.pop %v850
        %v852 = vmul.f32 %v809, 1.442695
        %v853 = vpow.pop %v852
        %v854 = vmul.f32 %v810, 1.442695
        %v855 = vpow.pop %v854
        %v856 = vmul.f32 %v811, 1.442695
        %v857 = vpow.pop %v856
        %v858 = vmul.f32 %v812, 1.442695
        %v859 = vpow.pop %v858
        %v860 = vmul.f32 %v813, 1.442695
        %v861 = vpow.pop %v860
        %v862 = vmul.f32 %v814, 1.442695
        %v863 = vpow.pop %v862
        %v864 = vmul.f32 %v815, 1.442695
        %v865 = vpow.pop %v864
        %v866 = vmul.f32 %v816, 1.442695
        %v867 = vpow.pop %v866
        %v868 = vmul.f32 %v817, 1.442695
        %v869 = vpow.pop %v868
        %v870 = vmul.f32 %v818, 1.442695
        %v871 = vpow.pop %v870
        %v872 = vmul.f32 %v819, 1.442695
        %v873 = vpow.pop %v872
        %v874 = vmul.f32 %v820, 1.442695
        %v875 = vpow.pop %v874
        %v876 = vmul.f32 %v821, 1.442695
        %v877 = vpow.pop %v876
        %v878 = vmul.f32 %v822, 1.442695
        %v879 = vpow.pop %v878
        %v880 = vmul.f32 %v823, 1.442695
        %v881 = vpow.pop %v880
        %v882 = vmul.f32 %v824, 1.442695
        %v883 = vpow.pop %v882
        %v884 = vmul.f32 %v825, 1.442695
        %v885 = vpow.pop %v884
        %v886 = vmul.f32 %v826, 1.442695
        %v887 = vpow.pop %v886
        %v888 = vmul.f32 %v827, 1.442695
        %v889 = vpow.pop %v888
        %v890 = vmul.f32 %v828, 1.442695
        %v891 = vpow.pop %v890
        %v892 = vmul.f32 %v829, 1.442695
        %v893 = vpow.pop %v892
        %v894 = vadd.f32 %v831, %v833
        %v895 = vadd.f32 %v894, %v835
        %v896 = vadd.f32 %v895, %v837
        %v897 = vadd.f32 %v896, %v839
        %v898 = vadd.f32 %v897, %v841
        %v899 = vadd.f32 %v898, %v843
        %v900 = vadd.f32 %v899, %v845
        %v901 = vadd.f32 %v900, %v847
        %v902 = vadd.f32 %v901, %v849
        %v903 = vadd.f32 %v902, %v851
        %v904 = vadd.f32 %v903, %v853
        %v905 = vadd.f32 %v904, %v855
        %v906 = vadd.f32 %v905, %v857
        %v907 = vadd.f32 %v906, %v859
        %v908 = vadd.f32 %v907, %v861
        %909 = vadd.xlane.f32.xlu0 %v908
        %v910 = vpop.xlane.xlu0 %909
        %v911 = vadd.f32 %v863, %v865
        %v912 = vadd.f32 %v911, %v867
        %v913 = vadd.f32 %v912, %v869
        %v914 = vadd.f32 %v913, %v871
        %v915 = vadd.f32 %v914, %v873
        %v916 = vadd.f32 %v915, %v875
        %v917 = vadd.f32 %v916, %v877
        %v918 = vadd.f32 %v917, %v879
        %v919 = vadd.f32 %v918, %v881
        %v920 = vadd.f32 %v919, %v883
        %v921 = vadd.f32 %v920, %v885
        %v922 = vadd.f32 %v921, %v887
        %v923 = vadd.f32 %v922, %v889
        %v924 = vadd.f32 %v923, %v891
        %v925 = vadd.f32 %v924, %v893
        %926 = vadd.xlane.f32.xlu0 %v925
        %v927 = vpop.xlane.xlu0 %926
        %v928 = vadd.f32 %v786, %v910
        %v929 = vadd.f32 %v787, %v927
        %vm930 = vcmask 7168
        %931 = vst.msk [vmem:[#allocation3] sm:$0xff] %vm930, %v928
        %932 = vst.msk [vmem:[#allocation3 + $0x8] sm:$0xff] %vm930, %v929
        %933 = vst.msk [vmem:[#allocation2] sm:$0xff] %vm930, %v776
        %934 = vst.msk [vmem:[#allocation2 + $0x8] sm:$0xff] %vm930, %v777
        %p935 = scmp.eq.s32.totalorder %s20, 1
        // Predicated region
        $region56: #{tran_decoder_forward.14} parent=46 // pred_check
          %p936 = pneg %p935
        $region57: #{tran_decoder_forward.14} parent=46 // pred_check_branch
          %938 = sbr.rel (%p936) target = $region59
        $region58: #{tran_decoder_forward.14} parent=46 // pred_region
          %v939 = vld [vmem:[#allocation2] sm:$0xff]
          %v940 = vld [vmem:[#allocation2 + $0x8] sm:$0xff]
          %941 = vst.msk [vmem:[%s295] sm:$0xff] %vm930, %v939
          %942 = vst.msk [vmem:[%s295 + $0x8] sm:$0xff] %vm930, %v940
          %v943 = vld [vmem:[#allocation3] sm:$0xff]
          %v944 = vld [vmem:[#allocation3 + $0x8] sm:$0xff]
          %945 = vst.msk [vmem:[%s301] sm:$0xff] %vm930, %v943
          %946 = vst.msk [vmem:[%s301 + $0x8] sm:$0xff] %vm930, %v944
        $region59: #{tran_decoder_forward.14} parent=46 // pred_fallthru
          _
        %s947 = smul.u32 2, %s19
        %p948 = scmp.lt.s32.totalorder %s947, 1
        %s949 = scalar_select %p948, %s947, 1
        %s950 = smul.addr %s949, 8
        %s951 = scalar_lea.vmem %s2, %s950
        %s952 = smul.u32 2, %s19
        %p953 = scmp.lt.s32.totalorder %s952, 1
        %s954 = scalar_select %p953, %s952, 1
        %s955 = smul.addr %s954, 8
        %s956 = scalar_lea.vmem %s3, %s955
        // Predicated region
        $region60: #{tran_decoder_forward.14} parent=46 // pred_check
          %p957 = pneg %p97
        $region61: #{tran_decoder_forward.14} parent=46 // pred_check_branch
          %959 = sbr.rel (%p957) target = $region63
        $region62: #{tran_decoder_forward.14} parent=46 // pred_region
          %s960 = smul.u32 2, %s19
        $region63: #{tran_decoder_forward.14} parent=46 // pred_fallthru
          _
        // Predicated region
        $region64: #{tran_decoder_forward.14} parent=46 // pred_check
          %p961 = pneg %p123
        $region65: #{tran_decoder_forward.14} parent=46 // pred_check_branch
          %963 = sbr.rel (%p961) target = $region67
        $region66: #{tran_decoder_forward.14} parent=46 // pred_region
          %s964 = smul.u32 2, %s19
        $region67: #{tran_decoder_forward.14} parent=46 // pred_fallthru
          _
        // Predicated region
        $region68: #{tran_decoder_forward.14} parent=46 // pred_check
          %p965 = pneg %p97
        $region69: #{tran_decoder_forward.14} parent=46 // pred_check_branch
          %967 = sbr.rel (%p965) target = $region71
        $region70: #{tran_decoder_forward.14} parent=46 // pred_region
          %s968 = smul.u32 2, %s19
          %p969 = scmp.lt.s32.totalorder %s968, 1
          %s970 = scalar_select %p969, %s968, 1
          %s971 = smul.addr %s970, 8
          %s972 = scalar_lea.vmem %s2, %s971
        $region71: #{tran_decoder_forward.14} parent=46 // pred_fallthru
          _
        // Predicated region
        $region72: #{tran_decoder_forward.14} parent=46 // pred_check
          %p973 = pneg %p123
        $region73: #{tran_decoder_forward.14} parent=46 // pred_check_branch
          %975 = sbr.rel (%p973) target = $region75
        $region74: #{tran_decoder_forward.14} parent=46 // pred_region
          %s976 = smul.u32 2, %s19
          %p977 = scmp.lt.s32.totalorder %s976, 1
          %s978 = scalar_select %p977, %s976, 1
          %s979 = smul.addr %s978, 8
          %s980 = scalar_lea.vmem %s3, %s979
        $region75: #{tran_decoder_forward.14} parent=46 // pred_fallthru
          _
      $region47: #{tran_decoder_forward.14} parent=5 // pred_fallthru
        _
      %p981 = scmp.le.s32.totalorder 2, %s10
      // Predicated region
      $region76: #{tran_decoder_forward.14} parent=5 // pred_check
        %p982 = pneg %p981
      $region77: #{tran_decoder_forward.14} parent=5 // pred_check_branch
        %984 = sbr.rel (%p982) target = $region79
      $region78: #{tran_decoder_forward.14} parent=5 // pred_region
        %s985 = ssub.s32 %s10, 2
      $region79: #{tran_decoder_forward.14} parent=5 // pred_fallthru
        _
    $region6: #{tran_decoder_forward.14} parent=1 // loop_footer
      %s14 = sadd.s32 1, %s10
    $region7: #{tran_decoder_forward.14} parent=1 // loop_footer_branch
      %9 = sbr.rel target = $region3
    $region8: #{tran_decoder_forward.14} parent=1 // loop_exit
      _

// kernel: tran_decoder_forward.15
$region0: #{tran_decoder_forward.15}
  #allocation0 [shape = 'u32[]', space=smem, size = 0x4, offset = 0x4, fixed_abs, tag = 'smem constant byte address 0x4 - core index']
  #allocation1 [shape = 'u32[72,128]{1,0:T(1,128)}', space=vmem, size = 0x9000, scoped, tag = 'internal scratch']
  %s0 = inlined_call_operand.vmem [shape: bf16[16,32], index: 0, kind: input, shape index: {}]
  %s1 = inlined_call_operand.vmem [shape: bf16[32,4096], index: 1, kind: input, shape index: {}]
  %s2 = inlined_call_operand.vmem [shape: f32[16,1], index: 2, kind: input, shape index: {}]
  %s3 = inlined_call_operand.vmem [shape: f32[16,1], index: 3, kind: input, shape index: {}]
  %s4 = inlined_call_operand.hbm [shape: f32[16,4096], index: 4, kind: output, shape index: {}]
  %s5 = sld [smem:[#allocation0]]
  $region72: #{tran_decoder_forward.15} parent=0
    _
  %s7 = ssub.s32 1, %s5
  %s8 = scalar_select 0, %s7, %s5
  $region1: #{tran_decoder_forward.15} parent=0
    #allocation2 [shape = 'u8[262144]{0}', space=vmem, size = 0x40000, scoped, tag = 'input window, operand 1']
    #allocation3 [shape = 'u8[262144]{0}', space=vmem, size = 0x40000, scoped, tag = 'output window, operand 0']
    #allocation4 [shape = 's32[2]{0}', space=sflag, size = 0x8, scoped, tag = 'scoped memory for tran_decoder_forward.15']
    %9 = vsyncpa [#allocation4], 0
    %s10 = scalar_lea.sflag [#allocation4], 1
    %11 = vsyncpa %s10, 0
    loop: start=0, step=1, limit=4
    $region2: #{tran_decoder_forward.15} parent=1 // loop_pre_header
      _
    $region3: #{tran_decoder_forward.15} parent=1 // loop_header
      %s13 = sphi 0, %s17
      %p14 = scmp.ge.s32.totalorder %s13, 4
      %s20 = sphi 0, %s32
      %s21 = sphi 0, %s28
      %s22 = sphi 0, %s20
      %s23 = sphi 0, %s21
      %s24 = sphi 0, %s22
      %s25 = sphi 0, %s23
      %s35 = sphi 0, %s37
      %s38 = sphi 0, %s35
      %s39 = sphi 0, %s38
      %s55 = sphi 0, %s39
      %s61 = sphi 0, %s63
      %s64 = sphi 0, %s61
      %s65 = sphi 0, %s64
      %s81 = sphi 0, %s65
      %s87 = sphi 0, %s89
      %s90 = sphi 0, %s87
      %s91 = sphi 0, %s90
      %s107 = sphi 0, %s91
      %s113 = sphi 0, %s115
      %s116 = sphi 0, %s113
      %s117 = sphi 0, %s116
      %s133 = sphi 0, %s117
      %s141 = sphi 0, %s143
      %s144 = sphi 0, %s141
      %s145 = sphi 0, %s144
      %s161 = sphi 0, %s145
    $region4: #{tran_decoder_forward.15} parent=1 // loop_header_branch
      %16 = sbr.rel (%p14) target = $region8
    $region5: #{tran_decoder_forward.15} parent=1 // loop_body
      %s18 = ssub.s32 %s13, 1
      %s19 = ssub.s32 %s13, 2
      %s26 = sadd.s32 1, %s21
      %p27 = scmp.ge.s32.totalorder %s26, 2
      %s28 = scalar_select %p27, 0, %s26
      %s29 = sadd.s32 1, %s20
      %s30 = scalar_select %p27, %s29, %s20
      %p31 = scmp.ge.s32.totalorder %s30, 1
      %s32 = scalar_select %p31, 0, %s30
      %s33 = ssub.s32 %s20, %s32
      %p34 = scmp.eq.s32.totalorder %s33, 0
      %s36 = sadd.s32 %s35, 1
      %s37 = scalar_select %p34, %s35, %s36
      %p40 = pneg %p34
      %p41 = scmp.eq.s32.totalorder %s13, 1
      %p42 = por %p40, %p41
      %p43 = scmp.ne.s32.totalorder %s35, %s38
      %p44 = scmp.eq.s32.totalorder %s13, 0
      %p45 = por %p43, %p44
      %p46 = scmp.ne.s32.totalorder %s35, %s38
      %p47 = scmp.eq.s32.totalorder %s18, 1
      %p48 = por %p46, %p47
      %p49 = scmp.ne.s32.totalorder %s38, %s39
      %p50 = scmp.eq.s32.totalorder %s18, 0
      %p51 = por %p49, %p50
      %p52 = scmp.ne.s32.totalorder %s38, %s39
      %p53 = scmp.eq.s32.totalorder %s19, 1
      %p54 = por %p52, %p53
      %p56 = scmp.ne.s32.totalorder %s39, %s55
      %p57 = scmp.eq.s32.totalorder %s19, 0
      %p58 = por %p56, %p57
      %s59 = ssub.s32 %s21, %s28
      %p60 = scmp.eq.s32.totalorder %s59, 0
      %s62 = sadd.s32 %s61, 1
      %s63 = scalar_select %p60, %s61, %s62
      %p66 = pneg %p60
      %p67 = scmp.eq.s32.totalorder %s13, 1
      %p68 = por %p66, %p67
      %p69 = scmp.ne.s32.totalorder %s61, %s64
      %p70 = scmp.eq.s32.totalorder %s13, 0
      %p71 = por %p69, %p70
      %p72 = scmp.ne.s32.totalorder %s61, %s64
      %p73 = scmp.eq.s32.totalorder %s18, 1
      %p74 = por %p72, %p73
      %p75 = scmp.ne.s32.totalorder %s64, %s65
      %p76 = scmp.eq.s32.totalorder %s18, 0
      %p77 = por %p75, %p76
      %p78 = scmp.ne.s32.totalorder %s64, %s65
      %p79 = scmp.eq.s32.totalorder %s19, 1
      %p80 = por %p78, %p79
      %p82 = scmp.ne.s32.totalorder %s65, %s81
      %p83 = scmp.eq.s32.totalorder %s19, 0
      %p84 = por %p82, %p83
      %s85 = ssub.s32 %s20, %s32
      %p86 = scmp.eq.s32.totalorder %s85, 0
      %s88 = sadd.s32 %s87, 1
      %s89 = scalar_select %p86, %s87, %s88
      %p92 = pneg %p86
      %p93 = scmp.eq.s32.totalorder %s13, 1
      %p94 = por %p92, %p93
      %p95 = scmp.ne.s32.totalorder %s87, %s90
      %p96 = scmp.eq.s32.totalorder %s13, 0
      %p97 = por %p95, %p96
      %p98 = scmp.ne.s32.totalorder %s87, %s90
      %p99 = scmp.eq.s32.totalorder %s18, 1
      %p100 = por %p98, %p99
      %p101 = scmp.ne.s32.totalorder %s90, %s91
      %p102 = scmp.eq.s32.totalorder %s18, 0
      %p103 = por %p101, %p102
      %p104 = scmp.ne.s32.totalorder %s90, %s91
      %p105 = scmp.eq.s32.totalorder %s19, 1
      %p106 = por %p104, %p105
      %p108 = scmp.ne.s32.totalorder %s91, %s107
      %p109 = scmp.eq.s32.totalorder %s19, 0
      %p110 = por %p108, %p109
      %s111 = ssub.s32 %s20, %s32
      %p112 = scmp.eq.s32.totalorder %s111, 0
      %s114 = sadd.s32 %s113, 1
      %s115 = scalar_select %p112, %s113, %s114
      %p118 = pneg %p112
      %p119 = scmp.eq.s32.totalorder %s13, 1
      %p120 = por %p118, %p119
      %p121 = scmp.ne.s32.totalorder %s113, %s116
      %p122 = scmp.eq.s32.totalorder %s13, 0
      %p123 = por %p121, %p122
      %p124 = scmp.ne.s32.totalorder %s113, %s116
      %p125 = scmp.eq.s32.totalorder %s18, 1
      %p126 = por %p124, %p125
      %p127 = scmp.ne.s32.totalorder %s116, %s117
      %p128 = scmp.eq.s32.totalorder %s18, 0
      %p129 = por %p127, %p128
      %p130 = scmp.ne.s32.totalorder %s116, %s117
      %p131 = scmp.eq.s32.totalorder %s19, 1
      %p132 = por %p130, %p131
      %p134 = scmp.ne.s32.totalorder %s117, %s133
      %p135 = scmp.eq.s32.totalorder %s19, 0
      %p136 = por %p134, %p135
      %s137 = ssub.s32 %s20, %s32
      %s138 = ssub.s32 %s21, %s28
      %s139 = sor.u32 %s137, %s138
      %p140 = scmp.eq.s32.totalorder %s139, 0
      %s142 = sadd.s32 %s141, 1
      %s143 = scalar_select %p140, %s141, %s142
      %p146 = pneg %p140
      %p147 = scmp.eq.s32.totalorder %s13, 1
      %p148 = por %p146, %p147
      %p149 = scmp.ne.s32.totalorder %s141, %s144
      %p150 = scmp.eq.s32.totalorder %s13, 0
      %p151 = por %p149, %p150
      %p152 = scmp.ne.s32.totalorder %s141, %s144
      %p153 = scmp.eq.s32.totalorder %s18, 1
      %p154 = por %p152, %p153
      %p155 = scmp.ne.s32.totalorder %s144, %s145
      %p156 = scmp.eq.s32.totalorder %s18, 0
      %p157 = por %p155, %p156
      %p158 = scmp.ne.s32.totalorder %s144, %s145
      %p159 = scmp.eq.s32.totalorder %s19, 1
      %p160 = por %p158, %p159
      %p162 = scmp.ne.s32.totalorder %s145, %s161
      %p163 = scmp.eq.s32.totalorder %s19, 0
      %p164 = por %p162, %p163
      %p165 = scmp.le.s32.totalorder 1, %s13
      %p166 = scmp.lt.s32.totalorder %s13, 3
      %p167 = pnand %p165, %p166
      %p168 = pneg %p167
      // Predicated region
      $region9: #{tran_decoder_forward.15} parent=5 // pred_check
        _
      $region10: #{tran_decoder_forward.15} parent=5 // pred_check_branch
        %170 = sbr.rel (%p167) target = $region12
      $region11: #{tran_decoder_forward.15} parent=5 // pred_region
        %s171 = ssub.s32 %s13, 1
        // Predicated region
        $region13: #{tran_decoder_forward.15} parent=11 // pred_check
          %p172 = pneg %p51
        $region14: #{tran_decoder_forward.15} parent=11 // pred_check_branch
          %174 = sbr.rel (%p172) target = $region16
        $region15: #{tran_decoder_forward.15} parent=11 // pred_region
          %s175 = smul.u32 2, %s22
          %p176 = scmp.lt.s32.totalorder %s175, 1
          %s177 = scalar_select %p176, %s175, 1
          %s178 = smul.addr %s177, 4
          %s179 = scalar_lea.vmem %s0, %s178
          %s180 = smul.u32 2, %s22
        $region16: #{tran_decoder_forward.15} parent=11 // pred_fallthru
          _
        // Predicated region
        $region17: #{tran_decoder_forward.15} parent=11 // pred_check
          %p181 = pneg %p103
        $region18: #{tran_decoder_forward.15} parent=11 // pred_check_branch
          %183 = sbr.rel (%p181) target = $region20
        $region19: #{tran_decoder_forward.15} parent=11 // pred_region
          %s184 = smul.u32 2, %s22
          %p185 = scmp.lt.s32.totalorder %s184, 1
          %s186 = scalar_select %p185, %s184, 1
          %s187 = smul.addr %s186, 8
          %s188 = scalar_lea.vmem %s2, %s187
          %s189 = smul.u32 2, %s22
        $region20: #{tran_decoder_forward.15} parent=11 // pred_fallthru
          _
        // Predicated region
        $region21: #{tran_decoder_forward.15} parent=11 // pred_check
          %p190 = pneg %p129
        $region22: #{tran_decoder_forward.15} parent=11 // pred_check_branch
          %192 = sbr.rel (%p190) target = $region24
        $region23: #{tran_decoder_forward.15} parent=11 // pred_region
          %s193 = smul.u32 2, %s22
          %p194 = scmp.lt.s32.totalorder %s193, 1
          %s195 = scalar_select %p194, %s193, 1
          %s196 = smul.addr %s195, 8
          %s197 = scalar_lea.vmem %s3, %s196
          %s198 = smul.u32 2, %s22
        $region24: #{tran_decoder_forward.15} parent=11 // pred_fallthru
          _
      $region12: #{tran_decoder_forward.15} parent=5 // pred_fallthru
        _
      %p199 = scmp.lt.s32.totalorder %s13, 2
      // Predicated region
      $region25: #{tran_decoder_forward.15} parent=5 // pred_check
        %p200 = pneg %p199
      $region26: #{tran_decoder_forward.15} parent=5 // pred_check_branch
        %202 = sbr.rel (%p200) target = $region28
      $region27: #{tran_decoder_forward.15} parent=5 // pred_region
        // Predicated region
        $region29: #{tran_decoder_forward.15} parent=27 // pred_check
          %p203 = pneg %p71
        $region30: #{tran_decoder_forward.15} parent=27 // pred_check_branch
          %205 = sbr.rel (%p203) target = $region32
        $region31: #{tran_decoder_forward.15} parent=27 // pred_region
          %s206 = sand.u32 %s61, 1
          %s207 = sand.u32 %s61, 1
          %s208 = smul.addr %s207, 256
          %s209 = scalar_lea.vmem [#allocation2], %s208
          %s210 = smul.u32 16, %s21
          %s211 = smul.addr %s210, 4
          %s212 = scalar_lea.vmem %s1, %s211
          // Predicated region
          $region33: #{tran_decoder_forward.15} parent=31 // pred_check
            _
          $region34: #{tran_decoder_forward.15} parent=31 // pred_check_branch
            %214 = sbr.rel (0) target = $region36
          $region35: #{tran_decoder_forward.15} parent=31 // pred_region
            // Predicated region
            $region37: #{tran_decoder_forward.15} parent=35 // pred_check
              _
            $region38: #{tran_decoder_forward.15} parent=35 // pred_check_branch
              %216 = sbr.rel (0) target = $region40
            $region39: #{tran_decoder_forward.15} parent=35 // pred_region
              loop: start=0, step=1, limit=1
              $region41: #{tran_decoder_forward.15} parent=39 // loop_pre_header
                _
              $region42: #{tran_decoder_forward.15} parent=39 // loop_header
                %s218 = sphi 0, %s222
                %p219 = scmp.ge.s32.totalorder %s218, 1
                %s223 = sphi %s212, %s212
                %s224 = sphi %s209, %s209
              $region43: #{tran_decoder_forward.15} parent=39 // loop_header_branch
                %221 = sbr.rel (%p219) target = $region47
              $region44: #{tran_decoder_forward.15} parent=39 // loop_body
                %v225 = vld [vmem:[%s223] sm:$0xff]
                %226 = vst [vmem:[%s224] sm:$0xff] %v225
                %v227 = vld [vmem:[%s223 + $0x8] sm:$0xff]
                %228 = vst [vmem:[%s224 + $0x8] sm:$0xff] %v227
                %v229 = vld [vmem:[%s223 + $0x10] sm:$0xff]
                %230 = vst [vmem:[%s224 + $0x10] sm:$0xff] %v229
                %v231 = vld [vmem:[%s223 + $0x18] sm:$0xff]
                %232 = vst [vmem:[%s224 + $0x18] sm:$0xff] %v231
                %v233 = vld [vmem:[%s223 + $0x20] sm:$0xff]
                %234 = vst [vmem:[%s224 + $0x20] sm:$0xff] %v233
                %v235 = vld [vmem:[%s223 + $0x28] sm:$0xff]
                %236 = vst [vmem:[%s224 + $0x28] sm:$0xff] %v235
                %v237 = vld [vmem:[%s223 + $0x30] sm:$0xff]
                %238 = vst [vmem:[%s224 + $0x30] sm:$0xff] %v237
                %v239 = vld [vmem:[%s223 + $0x38] sm:$0xff]
                %240 = vst [vmem:[%s224 + $0x38] sm:$0xff] %v239
                %v241 = vld [vmem:[%s223 + $0x80] sm:$0xff]
                %242 = vst [vmem:[%s224 + $0x40] sm:$0xff] %v241
                %v243 = vld [vmem:[%s223 + $0x88] sm:$0xff]
                %244 = vst [vmem:[%s224 + $0x48] sm:$0xff] %v243
                %v245 = vld [vmem:[%s223 + $0x90] sm:$0xff]
                %246 = vst [vmem:[%s224 + $0x50] sm:$0xff] %v245
                %v247 = vld [vmem:[%s223 + $0x98] sm:$0xff]
                %248 = vst [vmem:[%s224 + $0x58] sm:$0xff] %v247
                %v249 = vld [vmem:[%s223 + $0xa0] sm:$0xff]
                %250 = vst [vmem:[%s224 + $0x60] sm:$0xff] %v249
                %v251 = vld [vmem:[%s223 + $0xa8] sm:$0xff]
                %252 = vst [vmem:[%s224 + $0x68] sm:$0xff] %v251
                %v253 = vld [vmem:[%s223 + $0xb0] sm:$0xff]
                %254 = vst [vmem:[%s224 + $0x70] sm:$0xff] %v253
                %v255 = vld [vmem:[%s223 + $0xb8] sm:$0xff]
                %256 = vst [vmem:[%s224 + $0x78] sm:$0xff] %v255
                %v257 = vld [vmem:[%s223 + $0x100] sm:$0xff]
                %258 = vst [vmem:[%s224 + $0x80] sm:$0xff] %v257
                %v259 = vld [vmem:[%s223 + $0x108] sm:$0xff]
                %260 = vst [vmem:[%s224 + $0x88] sm:$0xff] %v259
                %v261 = vld [vmem:[%s223 + $0x110] sm:$0xff]
                %262 = vst [vmem:[%s224 + $0x90] sm:$0xff] %v261
                %v263 = vld [vmem:[%s223 + $0x118] sm:$0xff]
                %264 = vst [vmem:[%s224 + $0x98] sm:$0xff] %v263
                %v265 = vld [vmem:[%s223 + $0x120] sm:$0xff]
                %266 = vst [vmem:[%s224 + $0xa0] sm:$0xff] %v265
                %v267 = vld [vmem:[%s223 + $0x128] sm:$0xff]
                %268 = vst [vmem:[%s224 + $0xa8] sm:$0xff] %v267
                %v269 = vld [vmem:[%s223 + $0x130] sm:$0xff]
                %270 = vst [vmem:[%s224 + $0xb0] sm:$0xff] %v269
                %v271 = vld [vmem:[%s223 + $0x138] sm:$0xff]
                %272 = vst [vmem:[%s224 + $0xb8] sm:$0xff] %v271
                %v273 = vld [vmem:[%s223 + $0x180] sm:$0xff]
                %274 = vst [vmem:[%s224 + $0xc0] sm:$0xff] %v273
                %v275 = vld [vmem:[%s223 + $0x188] sm:$0xff]
                %276 = vst [vmem:[%s224 + $0xc8] sm:$0xff] %v275
                %v277 = vld [vmem:[%s223 + $0x190] sm:$0xff]
                %278 = vst [vmem:[%s224 + $0xd0] sm:$0xff] %v277
                %v279 = vld [vmem:[%s223 + $0x198] sm:$0xff]
                %280 = vst [vmem:[%s224 + $0xd8] sm:$0xff] %v279
                %v281 = vld [vmem:[%s223 + $0x1a0] sm:$0xff]
                %282 = vst [vmem:[%s224 + $0xe0] sm:$0xff] %v281
                %v283 = vld [vmem:[%s223 + $0x1a8] sm:$0xff]
                %284 = vst [vmem:[%s224 + $0xe8] sm:$0xff] %v283
                %v285 = vld [vmem:[%s223 + $0x1b0] sm:$0xff]
                %286 = vst [vmem:[%s224 + $0xf0] sm:$0xff] %v285
                %v287 = vld [vmem:[%s223 + $0x1b8] sm:$0xff]
                %288 = vst [vmem:[%s224 + $0xf8] sm:$0xff] %v287
              $region45: #{tran_decoder_forward.15} parent=39 // loop_footer
                %s222 = sadd.s32 1, %s218
              $region46: #{tran_decoder_forward.15} parent=39 // loop_footer_branch
                %217 = sbr.rel target = $region42
              $region47: #{tran_decoder_forward.15} parent=39 // loop_exit
                _
            $region40: #{tran_decoder_forward.15} parent=35 // pred_fallthru
              _
            // Predicated region
            $region48: #{tran_decoder_forward.15} parent=35 // pred_check
              _
            $region49: #{tran_decoder_forward.15} parent=35 // pred_check_branch
              %290 = sbr.rel target = $region51
            $region50: #{tran_decoder_forward.15} parent=35 // pred_region
              _
            $region51: #{tran_decoder_forward.15} parent=35 // pred_fallthru
              _
          $region36: #{tran_decoder_forward.15} parent=31 // pred_fallthru
            _
          %291 = vnop
        $region32: #{tran_decoder_forward.15} parent=27 // pred_fallthru
          _
      $region28: #{tran_decoder_forward.15} parent=5 // pred_fallthru
        _
      %p292 = scmp.le.s32.totalorder 1, %s13
      %p293 = scmp.lt.s32.totalorder %s13, 3
      %p294 = pnand %p292, %p293
      %p295 = pneg %p294
      // Predicated region
      $region52: #{tran_decoder_forward.15} parent=5 // pred_check
        _
      $region53: #{tran_decoder_forward.15} parent=5 // pred_check_branch
        %297 = sbr.rel (%p294) target = $region55
      $region54: #{tran_decoder_forward.15} parent=5 // pred_region
        %s298 = ssub.s32 %s13, 1
        %s299 = sand.u32 %s64, 1
        %s300 = sand.u32 %s64, 1
        %s301 = smul.addr %s300, 256
        %s302 = scalar_lea.vmem [#allocation2], %s301
        // Predicated region
        $region56: #{tran_decoder_forward.15} parent=54 // pred_check
          %p303 = pneg %p77
        $region57: #{tran_decoder_forward.15} parent=54 // pred_check_branch
          %305 = sbr.rel (%p303) target = $region59
        $region58: #{tran_decoder_forward.15} parent=54 // pred_region
          _
        $region59: #{tran_decoder_forward.15} parent=54 // pred_fallthru
          _
        %s306 = smul.u32 2, %s22
        %p307 = scmp.lt.s32.totalorder %s306, 1
        %s308 = scalar_select %p307, %s306, 1
        %s309 = smul.addr %s308, 4
        %s310 = scalar_lea.vmem %s0, %s309
        %p311 = pneg %p51
        %p312 = pneg %p48
        %s313 = sand.u32 %s64, 1
        %s314 = sand.u32 %s64, 1
        %s315 = smul.addr %s314, 256
        %s316 = scalar_lea.vmem [#allocation2], %s315
        %p317 = pneg %p77
        %p318 = pneg %p74
        %s319 = smul.u32 2, %s22
        %p320 = scmp.lt.s32.totalorder %s319, 1
        %s321 = scalar_select %p320, %s319, 1
        %s322 = smul.addr %s321, 8
        %s323 = scalar_lea.vmem %s2, %s322
        %p324 = pneg %p103
        %p325 = pneg %p100
        %s326 = smul.u32 2, %s22
        %p327 = scmp.lt.s32.totalorder %s326, 1
        %s328 = scalar_select %p327, %s326, 1
        %s329 = smul.addr %s328, 8
        %s330 = scalar_lea.vmem %s3, %s329
        %p331 = pneg %p129
        %p332 = pneg %p126
        %p333 = pneg %p157
        %p334 = pneg %p154
        %s335 = sand.u32 %s144, 1
        %s336 = scalar_lea.sflag [#allocation4], %s335
        %s337 = sand.u32 %s144, 1
        %s338 = smul.addr %s337, 256
        %s339 = scalar_lea.vmem [#allocation3], %s338
        %s340 = smul.u32 2, %s22
        %p341 = scmp.lt.s32.totalorder %s340, 1
        %s342 = scalar_select %p341, %s340, 1
        %s343 = smul.addr %s342, 4
        %s344 = scalar_lea.vmem %s0, %s343
        %s345 = smul.u32 2, %s22
        %s346 = smul.u32 16, %s23
        %s347 = smul.u32 2, %s22
        %p348 = scmp.lt.s32.totalorder %s347, 1
        %s349 = scalar_select %p348, %s347, 1
        %s350 = smul.addr %s349, 8
        %s351 = scalar_lea.vmem %s2, %s350
        %s352 = smul.u32 2, %s22
        %s353 = smul.u32 2, %s22
        %p354 = scmp.lt.s32.totalorder %s353, 1
        %s355 = scalar_select %p354, %s353, 1
        %s356 = smul.addr %s355, 8
        %s357 = scalar_lea.vmem %s3, %s356
        %s358 = smul.u32 2, %s22
        %s359 = smul.u32 2, %s22
        %s360 = smul.u32 16, %s23
        %v362 = vld [vmem:[%s344] sm:$0xf]
        %v363 = vld [vmem:[%s344 + $0x4] sm:$0xf]
        %v364 = vld [vmem:[%s302] sm:$0xff]
        %v365 = vld [vmem:[%s302 + $0x8] sm:$0xff]
        %v366 = vld [vmem:[%s302 + $0x10] sm:$0xff]
        %v367 = vld [vmem:[%s302 + $0x18] sm:$0xff]
        %v368 = vld [vmem:[%s302 + $0x20] sm:$0xff]
        %v369 = vld [vmem:[%s302 + $0x28] sm:$0xff]
        %v370 = vld [vmem:[%s302 + $0x30] sm:$0xff]
        %v371 = vld [vmem:[%s302 + $0x38] sm:$0xff]
        %v372 = vld [vmem:[%s302 + $0x40] sm:$0xff]
        %v373 = vld [vmem:[%s302 + $0x48] sm:$0xff]
        %v374 = vld [vmem:[%s302 + $0x50] sm:$0xff]
        %v375 = vld [vmem:[%s302 + $0x58] sm:$0xff]
        %v376 = vld [vmem:[%s302 + $0x60] sm:$0xff]
        %v377 = vld [vmem:[%s302 + $0x68] sm:$0xff]
        %v378 = vld [vmem:[%s302 + $0x70] sm:$0xff]
        %v379 = vld [vmem:[%s302 + $0x78] sm:$0xff]
        %v380 = vld [vmem:[%s302 + $0x80] sm:$0xff]
        %v381 = vld [vmem:[%s302 + $0x88] sm:$0xff]
        %v382 = vld [vmem:[%s302 + $0x90] sm:$0xff]
        %v383 = vld [vmem:[%s302 + $0x98] sm:$0xff]
        %v384 = vld [vmem:[%s302 + $0xa0] sm:$0xff]
        %v385 = vld [vmem:[%s302 + $0xa8] sm:$0xff]
        %v386 = vld [vmem:[%s302 + $0xb0] sm:$0xff]
        %v387 = vld [vmem:[%s302 + $0xb8] sm:$0xff]
        %v388 = vld [vmem:[%s302 + $0xc0] sm:$0xff]
        %v389 = vld [vmem:[%s302 + $0xc8] sm:$0xff]
        %v390 = vld [vmem:[%s302 + $0xd0] sm:$0xff]
        %v391 = vld [vmem:[%s302 + $0xd8] sm:$0xff]
        %v392 = vld [vmem:[%s302 + $0xe0] sm:$0xff]
        %v393 = vld [vmem:[%s302 + $0xe8] sm:$0xff]
        %v394 = vld [vmem:[%s302 + $0xf0] sm:$0xff]
        %v395 = vld [vmem:[%s302 + $0xf8] sm:$0xff]
        %v398 = vunpack.c.l.b16 %v362
        %v399 = vunpack.c.l.b16 %v363
        %v400 = vpack.c.b16 %v399, %v398
        %v433 = vunpack.c.l.b16 %v364
        %v434 = vunpack.c.h.b16 %v364
        %v435 = vunpack.c.l.b16 %v365
        %v436 = vunpack.c.h.b16 %v365
        %v437 = vunpack.c.l.b16 %v366
        %v438 = vunpack.c.h.b16 %v366
        %v439 = vunpack.c.l.b16 %v367
        %v440 = vunpack.c.h.b16 %v367
        %v441 = vunpack.c.l.b16 %v368
        %v442 = vunpack.c.h.b16 %v368
        %v443 = vunpack.c.l.b16 %v369
        %v444 = vunpack.c.h.b16 %v369
        %v445 = vunpack.c.l.b16 %v370
        %v446 = vunpack.c.h.b16 %v370
        %v447 = vunpack.c.l.b16 %v371
        %v448 = vunpack.c.h.b16 %v371
        %v449 = vunpack.c.l.b16 %v372
        %v450 = vunpack.c.h.b16 %v372
        %v451 = vunpack.c.l.b16 %v373
        %v452 = vunpack.c.h.b16 %v373
        %v453 = vunpack.c.l.b16 %v374
        %v454 = vunpack.c.h.b16 %v374
        %v455 = vunpack.c.l.b16 %v375
        %v456 = vunpack.c.h.b16 %v375
        %v457 = vunpack.c.l.b16 %v376
        %v458 = vunpack.c.h.b16 %v376
        %v459 = vunpack.c.l.b16 %v377
        %v460 = vunpack.c.h.b16 %v377
        %v461 = vunpack.c.l.b16 %v378
        %v462 = vunpack.c.h.b16 %v378
        %v463 = vunpack.c.l.b16 %v379
        %v464 = vunpack.c.h.b16 %v379
        %v465 = vunpack.c.l.b16 %v380
        %v466 = vunpack.c.h.b16 %v380
        %v467 = vunpack.c.l.b16 %v381
        %v468 = vunpack.c.h.b16 %v381
        %v469 = vunpack.c.l.b16 %v382
        %v470 = vunpack.c.h.b16 %v382
        %v471 = vunpack.c.l.b16 %v383
        %v472 = vunpack.c.h.b16 %v383
        %v473 = vunpack.c.l.b16 %v384
        %v474 = vunpack.c.h.b16 %v384
        %v475 = vunpack.c.l.b16 %v385
        %v476 = vunpack.c.h.b16 %v385
        %v477 = vunpack.c.l.b16 %v386
        %v478 = vunpack.c.h.b16 %v386
        %v479 = vunpack.c.l.b16 %v387
        %v480 = vunpack.c.h.b16 %v387
        %v481 = vunpack.c.l.b16 %v388
        %v482 = vunpack.c.h.b16 %v388
        %v483 = vunpack.c.l.b16 %v389
        %v484 = vunpack.c.h.b16 %v389
        %v485 = vunpack.c.l.b16 %v390
        %v486 = vunpack.c.h.b16 %v390
        %v487 = vunpack.c.l.b16 %v391
        %v488 = vunpack.c.h.b16 %v391
        %v489 = vunpack.c.l.b16 %v392
        %v490 = vunpack.c.h.b16 %v392
        %v491 = vunpack.c.l.b16 %v393
        %v492 = vunpack.c.h.b16 %v393
        %v493 = vunpack.c.l.b16 %v394
        %v494 = vunpack.c.h.b16 %v394
        %v495 = vunpack.c.l.b16 %v395
        %v496 = vunpack.c.h.b16 %v395
        %v497 = vpack.c.b16 %v449, %v433
        %v498 = vpack.c.b16 %v450, %v434
        %v499 = vpack.c.b16 %v451, %v435
        %v500 = vpack.c.b16 %v452, %v436
        %v501 = vpack.c.b16 %v453, %v437
        %v502 = vpack.c.b16 %v454, %v438
        %v503 = vpack.c.b16 %v455, %v439
        %v504 = vpack.c.b16 %v456, %v440
        %v505 = vpack.c.b16 %v457, %v441
        %v506 = vpack.c.b16 %v458, %v442
        %v507 = vpack.c.b16 %v459, %v443
        %v508 = vpack.c.b16 %v460, %v444
        %v509 = vpack.c.b16 %v461, %v445
        %v510 = vpack.c.b16 %v462, %v446
        %v511 = vpack.c.b16 %v463, %v447
        %v512 = vpack.c.b16 %v464, %v448
        %v513 = vpack.c.b16 %v481, %v465
        %v514 = vpack.c.b16 %v482, %v466
        %v515 = vpack.c.b16 %v483, %v467
        %v516 = vpack.c.b16 %v484, %v468
        %v517 = vpack.c.b16 %v485, %v469
        %v518 = vpack.c.b16 %v486, %v470
        %v519 = vpack.c.b16 %v487, %v471
        %v520 = vpack.c.b16 %v488, %v472
        %v521 = vpack.c.b16 %v489, %v473
        %v522 = vpack.c.b16 %v490, %v474
        %v523 = vpack.c.b16 %v491, %v475
        %v524 = vpack.c.b16 %v492, %v476
        %v525 = vpack.c.b16 %v493, %v477
        %v526 = vpack.c.b16 %v494, %v478
        %v527 = vpack.c.b16 %v495, %v479
        %v528 = vpack.c.b16 %v496, %v480
        %vm561 = vcmask 261120
        %v563 = vsel %vm561, %v400, 0
        %565 = vmatpush.bf16.msra.mxu0 0
        %566 = vmatpush.bf16.msra.mxu0 0
        %567 = vmatpush.bf16.msra.mxu0 0
        %568 = vmatpush.bf16.msra.mxu0 0
        %569 = vmatpush.bf16.msra.mxu0 0
        %570 = vmatpush.bf16.msra.mxu0 0
        %571 = vmatpush.bf16.msra.mxu0 %v513
        %572 = vmatpush.bf16.msra.mxu0 %v497
        %573 = vmatmul.bf16.gmra.mxu0 %v563
        %v574 = vpop.f32.mrf.mxu0
        %v575 = vadd.f32 0.0, %v574
        %v576 = vpop.f32.mrf.mxu0
        %v577 = vadd.f32 0.0, %v576
        %578 = vdwg.mxu0
        %579 = vmatpush.bf16.msra.mxu0 0
        %580 = vmatpush.bf16.msra.mxu0 0
        %581 = vmatpush.bf16.msra.mxu0 0
        %582 = vmatpush.bf16.msra.mxu0 0
        %583 = vmatpush.bf16.msra.mxu0 0
        %584 = vmatpush.bf16.msra.mxu0 0
        %585 = vmatpush.bf16.msra.mxu0 %v514
        %586 = vmatpush.bf16.msra.mxu0 %v498
        %587 = vmatmul.bf16.gmra.mxu0 %v563
        %v588 = vpop.f32.mrf.mxu0
        %v589 = vadd.f32 0.0, %v588
        %v590 = vpop.f32.mrf.mxu0
        %v591 = vadd.f32 0.0, %v590
        %592 = vdwg.mxu0
        %593 = vmatpush.bf16.msra.mxu0 0
        %594 = vmatpush.bf16.msra.mxu0 0
        %595 = vmatpush.bf16.msra.mxu0 0
        %596 = vmatpush.bf16.msra.mxu0 0
        %597 = vmatpush.bf16.msra.mxu0 0
        %598 = vmatpush.bf16.msra.mxu0 0
        %599 = vmatpush.bf16.msra.mxu0 %v515
        %600 = vmatpush.bf16.msra.mxu0 %v499
        %601 = vmatmul.bf16.gmra.mxu0 %v563
        %v602 = vpop.f32.mrf.mxu0
        %v603 = vadd.f32 0.0, %v602
        %v604 = vpop.f32.mrf.mxu0
        %v605 = vadd.f32 0.0, %v604
        %606 = vdwg.mxu0
        %607 = vmatpush.bf16.msra.mxu0 0
        %608 = vmatpush.bf16.msra.mxu0 0
        %609 = vmatpush.bf16.msra.mxu0 0
        %610 = vmatpush.bf16.msra.mxu0 0
        %611 = vmatpush.bf16.msra.mxu0 0
        %612 = vmatpush.bf16.msra.mxu0 0
        %613 = vmatpush.bf16.msra.mxu0 %v516
        %614 = vmatpush.bf16.msra.mxu0 %v500
        %615 = vmatmul.bf16.gmra.mxu0 %v563
        %v616 = vpop.f32.mrf.mxu0
        %v617 = vadd.f32 0.0, %v616
        %v618 = vpop.f32.mrf.mxu0
        %v619 = vadd.f32 0.0, %v618
        %620 = vdwg.mxu0
        %621 = vmatpush.bf16.msra.mxu0 0
        %622 = vmatpush.bf16.msra.mxu0 0
        %623 = vmatpush.bf16.msra.mxu0 0
        %624 = vmatpush.bf16.msra.mxu0 0
        %625 = vmatpush.bf16.msra.mxu0 0
        %626 = vmatpush.bf16.msra.mxu0 0
        %627 = vmatpush.bf16.msra.mxu0 %v517
        %628 = vmatpush.bf16.msra.mxu0 %v501
        %629 = vmatmul.bf16.gmra.mxu0 %v563
        %v630 = vpop.f32.mrf.mxu0
        %v631 = vadd.f32 0.0, %v630
        %v632 = vpop.f32.mrf.mxu0
        %v633 = vadd.f32 0.0, %v632
        %634 = vdwg.mxu0
        %635 = vmatpush.bf16.msra.mxu0 0
        %636 = vmatpush.bf16.msra.mxu0 0
        %637 = vmatpush.bf16.msra.mxu0 0
        %638 = vmatpush.bf16.msra.mxu0 0
        %639 = vmatpush.bf16.msra.mxu0 0
        %640 = vmatpush.bf16.msra.mxu0 0
        %641 = vmatpush.bf16.msra.mxu0 %v518
        %642 = vmatpush.bf16.msra.mxu0 %v502
        %643 = vmatmul.bf16.gmra.mxu0 %v563
        %v644 = vpop.f32.mrf.mxu0
        %v645 = vadd.f32 0.0, %v644
        %v646 = vpop.f32.mrf.mxu0
        %v647 = vadd.f32 0.0, %v646
        %648 = vdwg.mxu0
        %649 = vmatpush.bf16.msra.mxu0 0
        %650 = vmatpush.bf16.msra.mxu0 0
        %651 = vmatpush.bf16.msra.mxu0 0
        %652 = vmatpush.bf16.msra.mxu0 0
        %653 = vmatpush.bf16.msra.mxu0 0
        %654 = vmatpush.bf16.msra.mxu0 0
        %655 = vmatpush.bf16.msra.mxu0 %v519
        %656 = vmatpush.bf16.msra.mxu0 %v503
        %657 = vmatmul.bf16.gmra.mxu0 %v563
        %v658 = vpop.f32.mrf.mxu0
        %v659 = vadd.f32 0.0, %v658
        %v660 = vpop.f32.mrf.mxu0
        %v661 = vadd.f32 0.0, %v660
        %662 = vdwg.mxu0
        %663 = vmatpush.bf16.msra.mxu0 0
        %664 = vmatpush.bf16.msra.mxu0 0
        %665 = vmatpush.bf16.msra.mxu0 0
        %666 = vmatpush.bf16.msra.mxu0 0
        %667 = vmatpush.bf16.msra.mxu0 0
        %668 = vmatpush.bf16.msra.mxu0 0
        %669 = vmatpush.bf16.msra.mxu0 %v520
        %670 = vmatpush.bf16.msra.mxu0 %v504
        %671 = vmatmul.bf16.gmra.mxu0 %v563
        %v672 = vpop.f32.mrf.mxu0
        %v673 = vadd.f32 0.0, %v672
        %v674 = vpop.f32.mrf.mxu0
        %v675 = vadd.f32 0.0, %v674
        %676 = vdwg.mxu0
        %677 = vmatpush.bf16.msra.mxu0 0
        %678 = vmatpush.bf16.msra.mxu0 0
        %679 = vmatpush.bf16.msra.mxu0 0
        %680 = vmatpush.bf16.msra.mxu0 0
        %681 = vmatpush.bf16.msra.mxu0 0
        %682 = vmatpush.bf16.msra.mxu0 0
        %683 = vmatpush.bf16.msra.mxu0 %v521
        %684 = vmatpush.bf16.msra.mxu0 %v505
        %685 = vmatmul.bf16.gmra.mxu0 %v563
        %v686 = vpop.f32.mrf.mxu0
        %v687 = vadd.f32 0.0, %v686
        %v688 = vpop.f32.mrf.mxu0
        %v689 = vadd.f32 0.0, %v688
        %690 = vdwg.mxu0
        %691 = vmatpush.bf16.msra.mxu0 0
        %692 = vmatpush.bf16.msra.mxu0 0
        %693 = vmatpush.bf16.msra.mxu0 0
        %694 = vmatpush.bf16.msra.mxu0 0
        %695 = vmatpush.bf16.msra.mxu0 0
        %696 = vmatpush.bf16.msra.mxu0 0
        %697 = vmatpush.bf16.msra.mxu0 %v522
        %698 = vmatpush.bf16.msra.mxu0 %v506
        %699 = vmatmul.bf16.gmra.mxu0 %v563
        %v700 = vpop.f32.mrf.mxu0
        %v701 = vadd.f32 0.0, %v700
        %v702 = vpop.f32.mrf.mxu0
        %v703 = vadd.f32 0.0, %v702
        %704 = vdwg.mxu0
        %705 = vmatpush.bf16.msra.mxu0 0
        %706 = vmatpush.bf16.msra.mxu0 0
        %707 = vmatpush.bf16.msra.mxu0 0
        %708 = vmatpush.bf16.msra.mxu0 0
        %709 = vmatpush.bf16.msra.mxu0 0
        %710 = vmatpush.bf16.msra.mxu0 0
        %711 = vmatpush.bf16.msra.mxu0 %v523
        %712 = vmatpush.bf16.msra.mxu0 %v507
        %713 = vmatmul.bf16.gmra.mxu0 %v563
        %v714 = vpop.f32.mrf.mxu0
        %v715 = vadd.f32 0.0, %v714
        %v716 = vpop.f32.mrf.mxu0
        %v717 = vadd.f32 0.0, %v716
        %718 = vdwg.mxu0
        %719 = vmatpush.bf16.msra.mxu0 0
        %720 = vmatpush.bf16.msra.mxu0 0
        %721 = vmatpush.bf16.msra.mxu0 0
        %722 = vmatpush.bf16.msra.mxu0 0
        %723 = vmatpush.bf16.msra.mxu0 0
        %724 = vmatpush.bf16.msra.mxu0 0
        %725 = vmatpush.bf16.msra.mxu0 %v524
        %726 = vmatpush.bf16.msra.mxu0 %v508
        %727 = vmatmul.bf16.gmra.mxu0 %v563
        %v728 = vpop.f32.mrf.mxu0
        %v729 = vadd.f32 0.0, %v728
        %v730 = vpop.f32.mrf.mxu0
        %v731 = vadd.f32 0.0, %v730
        %732 = vdwg.mxu0
        %733 = vmatpush.bf16.msra.mxu0 0
        %734 = vmatpush.bf16.msra.mxu0 0
        %735 = vmatpush.bf16.msra.mxu0 0
        %736 = vmatpush.bf16.msra.mxu0 0
        %737 = vmatpush.bf16.msra.mxu0 0
        %738 = vmatpush.bf16.msra.mxu0 0
        %739 = vmatpush.bf16.msra.mxu0 %v525
        %740 = vmatpush.bf16.msra.mxu0 %v509
        %741 = vmatmul.bf16.gmra.mxu0 %v563
        %v742 = vpop.f32.mrf.mxu0
        %v743 = vadd.f32 0.0, %v742
        %v744 = vpop.f32.mrf.mxu0
        %v745 = vadd.f32 0.0, %v744
        %746 = vdwg.mxu0
        %747 = vmatpush.bf16.msra.mxu0 0
        %748 = vmatpush.bf16.msra.mxu0 0
        %749 = vmatpush.bf16.msra.mxu0 0
        %750 = vmatpush.bf16.msra.mxu0 0
        %751 = vmatpush.bf16.msra.mxu0 0
        %752 = vmatpush.bf16.msra.mxu0 0
        %753 = vmatpush.bf16.msra.mxu0 %v526
        %754 = vmatpush.bf16.msra.mxu0 %v510
        %755 = vmatmul.bf16.gmra.mxu0 %v563
        %v756 = vpop.f32.mrf.mxu0
        %v757 = vadd.f32 0.0, %v756
        %v758 = vpop.f32.mrf.mxu0
        %v759 = vadd.f32 0.0, %v758
        %760 = vdwg.mxu0
        %761 = vmatpush.bf16.msra.mxu0 0
        %762 = vmatpush.bf16.msra.mxu0 0
        %763 = vmatpush.bf16.msra.mxu0 0
        %764 = vmatpush.bf16.msra.mxu0 0
        %765 = vmatpush.bf16.msra.mxu0 0
        %766 = vmatpush.bf16.msra.mxu0 0
        %767 = vmatpush.bf16.msra.mxu0 %v527
        %768 = vmatpush.bf16.msra.mxu0 %v511
        %769 = vmatmul.bf16.gmra.mxu0 %v563
        %v770 = vpop.f32.mrf.mxu0
        %v771 = vadd.f32 0.0, %v770
        %v772 = vpop.f32.mrf.mxu0
        %v773 = vadd.f32 0.0, %v772
        %774 = vdwg.mxu0
        %775 = vmatpush.bf16.msra.mxu0 0
        %776 = vmatpush.bf16.msra.mxu0 0
        %777 = vmatpush.bf16.msra.mxu0 0
        %778 = vmatpush.bf16.msra.mxu0 0
        %779 = vmatpush.bf16.msra.mxu0 0
        %780 = vmatpush.bf16.msra.mxu0 0
        %781 = vmatpush.bf16.msra.mxu0 %v528
        %782 = vmatpush.bf16.msra.mxu0 %v512
        %783 = vmatmul.bf16.gmra.mxu0 %v563
        %v784 = vpop.f32.mrf.mxu0
        %v785 = vadd.f32 0.0, %v784
        %v786 = vpop.f32.mrf.mxu0
        %v787 = vadd.f32 0.0, %v786
        %788 = vdwg.mxu0
        %v789 = vld [vmem:[%s351] sm:$0xff]
        %v790 = vld [vmem:[%s351 + $0x8] sm:$0xff]
        %792 = vset.pattern.permute.xlu0 0
        %793 = vperm.xlu0 %792, %v789
        %v794 = vpop.permute.xlu0 %793
        %797 = vset.pattern.permute.xlu0 0
        %798 = vperm.xlu0 %797, %v790
        %v799 = vpop.permute.xlu0 %798
        %v801 = vsub.f32 %v575, %v794
        %v802 = vsub.f32 %v589, %v794
        %v803 = vsub.f32 %v603, %v794
        %v804 = vsub.f32 %v617, %v794
        %v805 = vsub.f32 %v631, %v794
        %v806 = vsub.f32 %v645, %v794
        %v807 = vsub.f32 %v659, %v794
        %v808 = vsub.f32 %v673, %v794
        %v809 = vsub.f32 %v687, %v794
        %v810 = vsub.f32 %v701, %v794
        %v811 = vsub.f32 %v715, %v794
        %v812 = vsub.f32 %v729, %v794
        %v813 = vsub.f32 %v743, %v794
        %v814 = vsub.f32 %v757, %v794
        %v815 = vsub.f32 %v771, %v794
        %v816 = vsub.f32 %v785, %v794
        %v817 = vsub.f32 %v577, %v799
        %v818 = vsub.f32 %v591, %v799
        %v819 = vsub.f32 %v605, %v799
        %v820 = vsub.f32 %v619, %v799
        %v821 = vsub.f32 %v633, %v799
        %v822 = vsub.f32 %v647, %v799
        %v823 = vsub.f32 %v661, %v799
        %v824 = vsub.f32 %v675, %v799
        %v825 = vsub.f32 %v689, %v799
        %v826 = vsub.f32 %v703, %v799
        %v827 = vsub.f32 %v717, %v799
        %v828 = vsub.f32 %v731, %v799
        %v829 = vsub.f32 %v745, %v799
        %v830 = vsub.f32 %v759, %v799
        %v831 = vsub.f32 %v773, %v799
        %v832 = vsub.f32 %v787, %v799
        %v833 = vmul.f32 %v801, 1.442695
        %v834 = vpow.pop %v833
        %v835 = vmul.f32 %v802, 1.442695
        %v836 = vpow.pop %v835
        %v837 = vmul.f32 %v803, 1.442695
        %v838 = vpow.pop %v837
        %v839 = vmul.f32 %v804, 1.442695
        %v840 = vpow.pop %v839
        %v841 = vmul.f32 %v805, 1.442695
        %v842 = vpow.pop %v841
        %v843 = vmul.f32 %v806, 1.442695
        %v844 = vpow.pop %v843
        %v845 = vmul.f32 %v807, 1.442695
        %v846 = vpow.pop %v845
        %v847 = vmul.f32 %v808, 1.442695
        %v848 = vpow.pop %v847
        %v849 = vmul.f32 %v809, 1.442695
        %v850 = vpow.pop %v849
        %v851 = vmul.f32 %v810, 1.442695
        %v852 = vpow.pop %v851
        %v853 = vmul.f32 %v811, 1.442695
        %v854 = vpow.pop %v853
        %v855 = vmul.f32 %v812, 1.442695
        %v856 = vpow.pop %v855
        %v857 = vmul.f32 %v813, 1.442695
        %v858 = vpow.pop %v857
        %v859 = vmul.f32 %v814, 1.442695
        %v860 = vpow.pop %v859
        %v861 = vmul.f32 %v815, 1.442695
        %v862 = vpow.pop %v861
        %v863 = vmul.f32 %v816, 1.442695
        %v864 = vpow.pop %v863
        %v865 = vmul.f32 %v817, 1.442695
        %v866 = vpow.pop %v865
        %v867 = vmul.f32 %v818, 1.442695
        %v868 = vpow.pop %v867
        %v869 = vmul.f32 %v819, 1.442695
        %v870 = vpow.pop %v869
        %v871 = vmul.f32 %v820, 1.442695
        %v872 = vpow.pop %v871
        %v873 = vmul.f32 %v821, 1.442695
        %v874 = vpow.pop %v873
        %v875 = vmul.f32 %v822, 1.442695
        %v876 = vpow.pop %v875
        %v877 = vmul.f32 %v823, 1.442695
        %v878 = vpow.pop %v877
        %v879 = vmul.f32 %v824, 1.442695
        %v880 = vpow.pop %v879
        %v881 = vmul.f32 %v825, 1.442695
        %v882 = vpow.pop %v881
        %v883 = vmul.f32 %v826, 1.442695
        %v884 = vpow.pop %v883
        %v885 = vmul.f32 %v827, 1.442695
        %v886 = vpow.pop %v885
        %v887 = vmul.f32 %v828, 1.442695
        %v888 = vpow.pop %v887
        %v889 = vmul.f32 %v829, 1.442695
        %v890 = vpow.pop %v889
        %v891 = vmul.f32 %v830, 1.442695
        %v892 = vpow.pop %v891
        %v893 = vmul.f32 %v831, 1.442695
        %v894 = vpow.pop %v893
        %v895 = vmul.f32 %v832, 1.442695
        %v896 = vpow.pop %v895
        %v897 = vld [vmem:[%s357] sm:$0xff]
        %v898 = vld [vmem:[%s357 + $0x8] sm:$0xff]
        %900 = vset.pattern.permute.xlu0 0
        %901 = vperm.xlu0 %900, %v897
        %v902 = vpop.permute.xlu0 %901
        %905 = vset.pattern.permute.xlu0 0
        %906 = vperm.xlu0 %905, %v898
        %v907 = vpop.permute.xlu0 %906
        %v909 = vrcp.pop %v902
        %v910 = vmul.f32 %v902, %v909
        %v911 = vsub.f32 1.0, %v910
        %v912 = vmul.f32 %v909, %v911
        %v913 = vadd.f32 %v909, %v912
        %vm914 = vweird.f32 %v902
        %vm915 = vweird.f32 %v909
        %vm916 = vmor %vm914, %vm915
        %v917 = vsel %vm916, %v909, %v913
        %v918 = vand.u32 2147483647, %v902
        %vm919 = vcmp.eq.f32.partialorder %v918, 8.507059e+37
        %v920 = vand.u32 %v902, 2147483648
        %v921 = vor.u32 1.1754944e-38, %v920
        %v922 = vsel %vm919, %v921, %v917
        %v923 = vmul.f32 %v834, %v922
        %v924 = vmul.f32 %v836, %v922
        %v925 = vmul.f32 %v838, %v922
        %v926 = vmul.f32 %v840, %v922
        %v927 = vmul.f32 %v842, %v922
        %v928 = vmul.f32 %v844, %v922
        %v929 = vmul.f32 %v846, %v922
        %v930 = vmul.f32 %v848, %v922
        %v931 = vmul.f32 %v850, %v922
        %v932 = vmul.f32 %v852, %v922
        %v933 = vmul.f32 %v854, %v922
        %v934 = vmul.f32 %v856, %v922
        %v935 = vmul.f32 %v858, %v922
        %v936 = vmul.f32 %v860, %v922
        %v937 = vmul.f32 %v862, %v922
        %v938 = vmul.f32 %v864, %v922
        %v939 = vrcp.pop %v907
        %v940 = vmul.f32 %v907, %v939
        %v941 = vsub.f32 1.0, %v940
        %v942 = vmul.f32 %v939, %v941
        %v943 = vadd.f32 %v939, %v942
        %vm944 = vweird.f32 %v907
        %vm945 = vweird.f32 %v939
        %vm946 = vmor %vm944, %vm945
        %v947 = vsel %vm946, %v939, %v943
        %v948 = vand.u32 2147483647, %v907
        %vm949 = vcmp.eq.f32.partialorder %v948, 8.507059e+37
        %v950 = vand.u32 %v907, 2147483648
        %v951 = vor.u32 1.1754944e-38, %v950
        %v952 = vsel %vm949, %v951, %v947
        %v953 = vmul.f32 %v866, %v952
        %v954 = vmul.f32 %v868, %v952
        %v955 = vmul.f32 %v870, %v952
        %v956 = vmul.f32 %v872, %v952
        %v957 = vmul.f32 %v874, %v952
        %v958 = vmul.f32 %v876, %v952
        %v959 = vmul.f32 %v878, %v952
        %v960 = vmul.f32 %v880, %v952
        %v961 = vmul.f32 %v882, %v952
        %v962 = vmul.f32 %v884, %v952
        %v963 = vmul.f32 %v886, %v952
        %v964 = vmul.f32 %v888, %v952
        %v965 = vmul.f32 %v890, %v952
        %v966 = vmul.f32 %v892, %v952
        %v967 = vmul.f32 %v894, %v952
        %v968 = vmul.f32 %v896, %v952
        %969 = vst [vmem:[%s339] sm:$0xff] %v923
        %970 = vst [vmem:[%s339 + $0x8] sm:$0xff] %v924
        %971 = vst [vmem:[%s339 + $0x10] sm:$0xff] %v925
        %972 = vst [vmem:[%s339 + $0x18] sm:$0xff] %v926
        %973 = vst [vmem:[%s339 + $0x20] sm:$0xff] %v927
        %974 = vst [vmem:[%s339 + $0x28] sm:$0xff] %v928
        %975 = vst [vmem:[%s339 + $0x30] sm:$0xff] %v929
        %976 = vst [vmem:[%s339 + $0x38] sm:$0xff] %v930
        %977 = vst [vmem:[%s339 + $0x40] sm:$0xff] %v931
        %978 = vst [vmem:[%s339 + $0x48] sm:$0xff] %v932
        %979 = vst [vmem:[%s339 + $0x50] sm:$0xff] %v933
        %980 = vst [vmem:[%s339 + $0x58] sm:$0xff] %v934
        %981 = vst [vmem:[%s339 + $0x60] sm:$0xff] %v935
        %982 = vst [vmem:[%s339 + $0x68] sm:$0xff] %v936
        %983 = vst [vmem:[%s339 + $0x70] sm:$0xff] %v937
        %984 = vst [vmem:[%s339 + $0x78] sm:$0xff] %v938
        %985 = vst [vmem:[%s339 + $0x80] sm:$0xff] %v953
        %986 = vst [vmem:[%s339 + $0x88] sm:$0xff] %v954
        %987 = vst [vmem:[%s339 + $0x90] sm:$0xff] %v955
        %988 = vst [vmem:[%s339 + $0x98] sm:$0xff] %v956
        %989 = vst [vmem:[%s339 + $0xa0] sm:$0xff] %v957
        %990 = vst [vmem:[%s339 + $0xa8] sm:$0xff] %v958
        %991 = vst [vmem:[%s339 + $0xb0] sm:$0xff] %v959
        %992 = vst [vmem:[%s339 + $0xb8] sm:$0xff] %v960
        %993 = vst [vmem:[%s339 + $0xc0] sm:$0xff] %v961
        %994 = vst [vmem:[%s339 + $0xc8] sm:$0xff] %v962
        %995 = vst [vmem:[%s339 + $0xd0] sm:$0xff] %v963
        %996 = vst [vmem:[%s339 + $0xd8] sm:$0xff] %v964
        %997 = vst [vmem:[%s339 + $0xe0] sm:$0xff] %v965
        %998 = vst [vmem:[%s339 + $0xe8] sm:$0xff] %v966
        %999 = vst [vmem:[%s339 + $0xf0] sm:$0xff] %v967
        %1000 = vst [vmem:[%s339 + $0xf8] sm:$0xff] %v968
        %s1001 = sand.u32 %s144, 1
        %s1002 = scalar_lea.sflag [#allocation4], %s1001
        %s1003 = sand.u32 %s144, 1
        %s1004 = smul.addr %s1003, 256
        %s1005 = scalar_lea.vmem [#allocation3], %s1004
        // Predicated region
        $region60: #{tran_decoder_forward.15} parent=54 // pred_check
          %p1006 = pneg %p154
        $region61: #{tran_decoder_forward.15} parent=54 // pred_check_branch
          %1008 = sbr.rel (%p1006) target = $region63
        $region62: #{tran_decoder_forward.15} parent=54 // pred_region
          %s1009 = smul.u32 2, %s22
          %s1010 = smul.u32 16, %s23
          %1012 = vsyncadd %s1002, 0
          %s1013 = smul.addr %s1009, 32
          %s1014 = sadd.s32 %s1010, %s1013
          %s1015 = smul.addr %s1014, 8
          %s1016 = scalar_lea.hbm %s4, %s1015
          %s1017 = sshll.u32 %s1005, 4
          %s1018 = int_to_ptr.vmem [resolvable:$true] %s1017
          %s1019 = sshll.u32 %s1016, 4
          %s1020 = int_to_ptr.hbm [resolvable:$true] %s1019
          %1025 = dma.vmem_to_hbm [thread:$0]  %s1018, 4096, %s1020, %s1002, 2048, 4096, 128
        $region63: #{tran_decoder_forward.15} parent=54 // pred_fallthru
          _
      $region55: #{tran_decoder_forward.15} parent=5 // pred_fallthru
        _
      %p1026 = scmp.le.s32.totalorder 2, %s13
      // Predicated region
      $region64: #{tran_decoder_forward.15} parent=5 // pred_check
        %p1027 = pneg %p1026
      $region65: #{tran_decoder_forward.15} parent=5 // pred_check_branch
        %1029 = sbr.rel (%p1027) target = $region67
      $region66: #{tran_decoder_forward.15} parent=5 // pred_region
        %s1030 = ssub.s32 %s13, 2
        // Predicated region
        $region68: #{tran_decoder_forward.15} parent=66 // pred_check
          %p1031 = pneg %p160
        $region69: #{tran_decoder_forward.15} parent=66 // pred_check_branch
          %1033 = sbr.rel (%p1031) target = $region71
        $region70: #{tran_decoder_forward.15} parent=66 // pred_region
          %s1034 = sand.u32 %s145, 1
          %s1035 = scalar_lea.sflag [#allocation4], %s1034
          %s1036 = sand.u32 %s145, 1
          %s1037 = smul.addr %s1036, 256
          %s1038 = scalar_lea.vmem [#allocation3], %s1037
          %1040 = dma.done %s1035, 4096
        $region71: #{tran_decoder_forward.15} parent=66 // pred_fallthru
          _
      $region67: #{tran_decoder_forward.15} parent=5 // pred_fallthru
        _
    $region6: #{tran_decoder_forward.15} parent=1 // loop_footer
      %s17 = sadd.s32 1, %s13
    $region7: #{tran_decoder_forward.15} parent=1 // loop_footer_branch
      %12 = sbr.rel target = $region3
    $region8: #{tran_decoder_forward.15} parent=1 // loop_exit
      _
    %1041 = vsyncpa [#allocation4], 1
    %s1042 = scalar_lea.sflag [#allocation4], 1
    %1043 = vsyncpa %s1042, 1

</llo_original>
